<compile_context>
chip_gen: v7x
topology: tpu7x:2x2x1
jax: 0.10.0
libtpu: 0.0.40
codegen_flags: <defaults>
</compile_context>

<pallas_src>
import functools

import numpy as np
import jax
import jax.numpy as jnp
from jax.experimental import pallas as pl
from jax.experimental.pallas import tpu as pltpu


def _round_up(x, m):
    return ((x + m - 1) // m) * m


# ----------------------------------------------------------------------------
# Pallas kernels
# ----------------------------------------------------------------------------
def _matmul_kernel(a_ref, b_ref, o_ref, acc_ref, *, activation):
    @pl.when(pl.program_id(2) == 0)
    def _():
        acc_ref[...] = jnp.zeros_like(acc_ref)

    acc_ref[...] += jnp.dot(a_ref[...], b_ref[...],
                            preferred_element_type=jnp.float32)

    @pl.when(pl.program_id(2) == pl.num_programs(2) - 1)
    def _():
        acc = acc_ref[...]                       # f32 epilogue math
        if activation == "tanh":
            acc = jnp.tanh(acc)
        o_ref[...] = acc.astype(o_ref.dtype)


def pallas_matmul(a, b, activation=None):
    """(M, K) @ (K, N) -> (M, N) f32.  bf16 MXU inputs, f32 accumulation.

    K / N are zero-padded to multiples of 128 (lane-dense output), M is padded
    to the row tile; the padding is sliced off before returning.
    """
    M, K = a.shape
    K2, N = b.shape
    assert K == K2

    if M >= 256:
        tm = 256
        Mp = _round_up(M, tm)
    else:
        Mp = _round_up(M, 8)
        tm = Mp
    Kp = _round_up(K, 128)
    Np = _round_up(N, 128)
    tn = 256 if Np % 256 == 0 else 128
    tk = 512 if Kp % 512 == 0 else (256 if Kp % 256 == 0 else 128)

    a_p = a.astype(jnp.bfloat16)
    b_p = b.astype(jnp.bfloat16)
    if (Mp, Kp) != (M, K):
        a_p = jnp.pad(a_p, ((0, Mp - M), (0, Kp - K)))
    if (Kp, Np) != (K, N):
        b_p = jnp.pad(b_p, ((0, Kp - K), (0, Np - N)))

    out = pl.pallas_call(
        functools.partial(_matmul_kernel, activation=activation),
        out_shape=jax.ShapeDtypeStruct((Mp, Np), jnp.float32),
        grid=(Mp // tm, Np // tn, Kp // tk),
        in_specs=[
            pl.BlockSpec((tm, tk), lambda i, j, k: (i, k)),
            pl.BlockSpec((tk, tn), lambda i, j, k: (k, j)),
        ],
        out_specs=pl.BlockSpec((tm, tn), lambda i, j, k: (i, j)),
        scratch_shapes=[pltpu.VMEM((tm, tn), jnp.float32)],
        compiler_params=pltpu.CompilerParams(
            dimension_semantics=("parallel", "parallel", "arbitrary"),
            vmem_limit_bytes=32 * 1024 * 1024,
        ),
    )(a_p, b_p)

    if (Mp, Np) != (M, N):
        out = out[:M, :N]
    return out


def _bn_relu_kernel(x_ref, g_ref, b_ref, o_ref, *, eps):
    x = x_ref[...]
    mean = jnp.mean(x, axis=0, keepdims=True)
    var = jnp.mean(jnp.square(x - mean), axis=0, keepdims=True)  # biased var
    y = (x - mean) * jax.lax.rsqrt(var + eps)
    y = y * g_ref[...] + b_ref[...]
    o_ref[...] = jnp.maximum(y, 0.0).astype(o_ref.dtype)


def pallas_bn_relu(x, gamma, beta, eps=1e-5):
    """Training-mode BatchNorm over rows of (M, C) + ReLU, tiled over channels."""
    M, C = x.shape
    x = x.astype(jnp.float32)
    g = gamma.reshape(1, C).astype(jnp.float32)
    b = beta.reshape(1, C).astype(jnp.float32)
    tc = 128 if C % 128 == 0 else C           # channel tiles are independent
    return pl.pallas_call(
        functools.partial(_bn_relu_kernel, eps=eps),
        out_shape=jax.ShapeDtypeStruct((M, C), jnp.float32),
        grid=(C // tc,),
        in_specs=[
            pl.BlockSpec((M, tc), lambda c: (0, c)),
            pl.BlockSpec((1, tc), lambda c: (0, c)),
            pl.BlockSpec((1, tc), lambda c: (0, c)),
        ],
        out_specs=pl.BlockSpec((M, tc), lambda c: (0, c)),
        compiler_params=pltpu.CompilerParams(
            dimension_semantics=("parallel",),
            vmem_limit_bytes=32 * 1024 * 1024,
        ),
    )(x, g, b)


# ----------------------------------------------------------------------------
# ConvTranspose2d(k=5, s=2, p=2, output_padding=1) via sub-pixel (phase) GEMM
# ----------------------------------------------------------------------------
def _deconv_weight_matrix(w_t):
    """PyTorch ConvTranspose2d weight (Cin, Cout, 5, 5) -> phase-GEMM matrix
    (9*Cin, 4*Cout); rows ordered (py, px, ci), cols ordered (ry, rx, co).

    out[2m+ry, 2n+rx] = sum_{py,px,ci} xpad[m+py, n+px, ci] * w[ci, co, ky, kx]
    with ky = ry + 4 - 2*py, kx = rx + 4 - 2*px (out-of-range taps are zero).
    """
    Cin, Cout, k, _ = w_t.shape
    assert k == 5
    w_pad = jnp.pad(w_t, ((0, 0), (0, 0), (0, 1), (0, 1)))  # index k -> zeros
    p = np.arange(3)
    r = np.arange(2)
    kk = r[None, :] + (k - 1) - 2 * p[:, None]               # (3, 2)
    kk = np.where((kk >= 0) & (kk < k), kk, k)               # invalid -> zero tap
    # gather: (Cin, Cout, py, ry, px, rx)
    w_g = w_pad[:, :, kk, :][:, :, :, :, kk]
    # -> (py, px, ci, ry, rx, co)
    w_g = jnp.transpose(w_g, (2, 4, 0, 3, 5, 1))
    return w_g.reshape(9 * Cin, 4 * Cout)


def conv_transpose_phase(x_nhwc, w_mat, activation=None):
    """x: (B, H, W, Cin) NHWC.  w_mat: (9*Cin, 4*Cout) from _deconv_weight_matrix.
    Returns (B, 2H, 2W, Cout)."""
    B, H, W, Cin = x_nhwc.shape
    Cout = w_mat.shape[1] // 4

    xp = jnp.pad(x_nhwc, ((0, 0), (1, 1), (1, 1), (0, 0)))
    # 3x3 im2col, patch order (py, px, ci) to match the weight matrix rows
    patches = [xp[:, py:py + H, px:px + W, :] for py in range(3) for px in range(3)]
    cols = jnp.concatenate(patches, axis=-1).reshape(B * H * W, 9 * Cin)

    out = pallas_matmul(cols, w_mat, activation=activation)   # (B*H*W, 4*Cout)

    # pixel shuffle: (ry, rx) phases interleave into the spatial dims
    out = out.reshape(B, H, W, 2, 2, Cout)
    out = out.transpose(0, 1, 3, 2, 4, 5).reshape(B, 2 * H, 2 * W, Cout)
    return out


# ----------------------------------------------------------------------------
# Generator forward
# ----------------------------------------------------------------------------
def _generator_forward(x, params):
    B = x.shape[0]

    # l1: Linear (no bias) + BN1d + ReLU.  w_lin_mat is already column-permuted
    # so the output feature order is (h, w, c) -> plain reshape to NHWC.
    y = pallas_matmul(x, params["w_lin_mat"])                       # (B, 16*C0)
    y = pallas_bn_relu(y, params["bn1_g"], params["bn1_b"])
    C0 = y.shape[1] // 16
    y = y.reshape(B, 4, 4, C0)                                      # NHWC

    # l2: three dconv + BN2d + ReLU blocks
    for w_mat, g, b in ((params["w_dc1_mat"], params["bn2_g"], params["bn2_b"]),
                        (params["w_dc2_mat"], params["bn3_g"], params["bn3_b"]),
                        (params["w_dc3_mat"], params["bn4_g"], params["bn4_b"])):
        y = conv_transpose_phase(y, w_mat)
        Bh, Hh, Wh, Ch = y.shape
        y = pallas_bn_relu(y.reshape(Bh * Hh * Wh, Ch), g, b).reshape(Bh, Hh, Wh, Ch)

    # l3: final dconv + Tanh (tanh fused into the GEMM epilogue)
    y = conv_transpose_phase(y, params["w_dc4_mat"], activation="tanh")  # (B,64,64,3)

    # back to PyTorch NCHW
    return y.transpose(0, 3, 1, 2)                                  # (B, 3, 64, 64)


generator_forward = jax.jit(_generator_forward)


# ----------------------------------------------------------------------------
# Parameters (PyTorch layout) + one-time conversion to kernel layout
# ----------------------------------------------------------------------------
def init_params(key, in_dim, feature_dim):
    fd = feature_dim
    C0 = fd * 8
    ks = jax.random.split(key, 12)
    f32 = jnp.float32
    return {
        # Linear(in_dim, C0*4*4, bias=False): PyTorch weight shape (out, in)
        "w_lin": 0.02 * jax.random.normal(ks[0], (C0 * 4 * 4, in_dim), f32),
        # BatchNorm: weights_init -> gamma ~ N(1, 0.02), beta = 0
        "bn1_g": 1.0 + 0.02 * jax.random.normal(ks[1], (C0 * 4 * 4,), f32),
        "bn1_b": jnp.zeros((C0 * 4 * 4,), f32),
        # ConvTranspose2d weights (Cin, Cout, 5, 5): weights_init -> N(0, 0.02)
        "w_dc1": 0.02 * jax.random.normal(ks[2], (fd * 8, fd * 4, 5, 5), f32),
        "bn2_g": 1.0 + 0.02 * jax.random.normal(ks[3], (fd * 4,), f32),
        "bn2_b": jnp.zeros((fd * 4,), f32),
        "w_dc2": 0.02 * jax.random.normal(ks[4], (fd * 4, fd * 2, 5, 5), f32),
        "bn3_g": 1.0 + 0.02 * jax.random.normal(ks[5], (fd * 2,), f32),
        "bn3_b": jnp.zeros((fd * 2,), f32),
        "w_dc3": 0.02 * jax.random.normal(ks[6], (fd * 2, fd, 5, 5), f32),
        "bn4_g": 1.0 + 0.02 * jax.random.normal(ks[7], (fd,), f32),
        "bn4_b": jnp.zeros((fd,), f32),
        "w_dc4": 0.02 * jax.random.normal(ks[8], (fd, 3, 5, 5), f32),
    }


def prepare_params(raw):
    """One-time re-layout of PyTorch-format weights into GEMM-ready matrices."""
    C0x16, in_dim = raw["w_lin"].shape
    C0 = C0x16 // 16

    # Permute Linear output features from (c, h, w) to (h, w, c) order so the
    # post-BN reshape is directly NHWC.  BatchNorm params permute identically.
    h, w, c = np.meshgrid(np.arange(4), np.arange(4), np.arange(C0), indexing="ij")
    perm = (c * 16 + h * 4 + w).reshape(-1)

    return {
        "w_lin_mat": raw["w_lin"][perm, :].T,          # (in_dim, 16*C0), NHWC cols
        "bn1_g": raw["bn1_g"][perm],
        "bn1_b": raw["bn1_b"][perm],
        "w_dc1_mat": _deconv_weight_matrix(raw["w_dc1"]),
        "bn2_g": raw["bn2_g"], "bn2_b": raw["bn2_b"],
        "w_dc2_mat": _deconv_weight_matrix(raw["w_dc2"]),
        "bn3_g": raw["bn3_g"], "bn3_b": raw["bn3_b"],
        "w_dc3_mat": _deconv_weight_matrix(raw["w_dc3"]),
        "bn4_g": raw["bn4_g"], "bn4_b": raw["bn4_b"],
        "w_dc4_mat": _deconv_weight_matrix(raw["w_dc4"]),
    }


if __name__ == "__main__":
    key = jax.random.PRNGKey(0)
    k_param, k_x = jax.random.split(key)

    batch, in_dim, feature_dim = 2, 32, 8   # small-shape instantiation
    raw_params = init_params(k_param, in_dim, feature_dim)
    params = prepare_params(raw_params)
    x = jax.random.normal(k_x, (batch, in_dim), jnp.float32)

    out = generator_forward(x, params)
    out = jax.block_until_ready(out)

    assert out.shape == (batch, 3, 64, 64), out.shape
    assert out.dtype == jnp.float32
    assert bool(jnp.all(jnp.isfinite(out)))
    assert bool(jnp.all(jnp.abs(out) <= 1.0))  # tanh range

    print("KERNEL_OK")
</pallas_src>

<mosaic_0001>
module attributes {stable_mosaic.version = 11 : i64} {
  func.func @_bn_relu_kernel(%arg0: i32, %arg1: memref<2x128xf32, #tpu.memory_space<vmem>>, %arg2: memref<1x128xf32, #tpu.memory_space<vmem>>, %arg3: memref<1x128xf32, #tpu.memory_space<vmem>>, %arg4: memref<2x128xf32, #tpu.memory_space<vmem>>) attributes {dimension_semantics = [#tpu.dimension_semantics<parallel>], iteration_bounds = array<i64: 8>, scalar_prefetch = 0 : i64, scratch_operands = 0 : i64, tpu.core_type = #tpu.core_type<tc>, window_params = [{transform_indices = @transform_0, window_bounds = array<i64: 2, 128>}, {transform_indices = @transform_1, window_bounds = array<i64: 1, 128>}, {transform_indices = @transform_2, window_bounds = array<i64: 1, 128>}, {transform_indices = @transform_3, window_bounds = array<i64: 2, 128>}]} {
    %c0 = arith.constant 0 : index
    %c0_0 = arith.constant 0 : index
    %0 = vector.load %arg1[%c0, %c0_0] : memref<2x128xf32, #tpu.memory_space<vmem>>, vector<2x128xf32>
    %cst = arith.constant dense<0.000000e+00> : vector<128xf32>
    %1 = vector.multi_reduction <add>, %0, %cst [0] : vector<2x128xf32> to vector<128xf32>
    %2 = vector.shape_cast %1 : vector<128xf32> to vector<1x128xf32>
    %cst_1 = arith.constant 2.000000e+00 : f32
    %3 = vector.broadcast %cst_1 : f32 to vector<1x128xf32>
    %4 = arith.divf %2, %3 : vector<1x128xf32>
    %5 = vector.broadcast %4 : vector<1x128xf32> to vector<2x128xf32>
    %6 = arith.subf %0, %5 : vector<2x128xf32>
    %7 = arith.mulf %6, %6 : vector<2x128xf32>
    %cst_2 = arith.constant dense<0.000000e+00> : vector<128xf32>
    %8 = vector.multi_reduction <add>, %7, %cst_2 [0] : vector<2x128xf32> to vector<128xf32>
    %9 = vector.shape_cast %8 : vector<128xf32> to vector<1x128xf32>
    %cst_3 = arith.constant 2.000000e+00 : f32
    %10 = vector.broadcast %cst_3 : f32 to vector<1x128xf32>
    %11 = arith.divf %9, %10 : vector<1x128xf32>
    %12 = vector.broadcast %4 : vector<1x128xf32> to vector<2x128xf32>
    %13 = arith.subf %0, %12 : vector<2x128xf32>
    %cst_4 = arith.constant 9.99999974E-6 : f32
    %14 = vector.broadcast %cst_4 : f32 to vector<1x128xf32>
    %15 = arith.addf %11, %14 : vector<1x128xf32>
    %16 = math.rsqrt %15 : vector<1x128xf32>
    %17 = vector.broadcast %16 : vector<1x128xf32> to vector<2x128xf32>
    %18 = arith.mulf %13, %17 : vector<2x128xf32>
    %c0_5 = arith.constant 0 : index
    %c0_6 = arith.constant 0 : index
    %19 = vector.load %arg2[%c0_5, %c0_6] : memref<1x128xf32, #tpu.memory_space<vmem>>, vector<1x128xf32>
    %20 = vector.broadcast %19 : vector<1x128xf32> to vector<2x128xf32>
    %21 = arith.mulf %18, %20 : vector<2x128xf32>
    %c0_7 = arith.constant 0 : index
    %c0_8 = arith.constant 0 : index
    %22 = vector.load %arg3[%c0_7, %c0_8] : memref<1x128xf32, #tpu.memory_space<vmem>>, vector<1x128xf32>
    %23 = vector.broadcast %22 : vector<1x128xf32> to vector<2x128xf32>
    %24 = arith.addf %21, %23 : vector<2x128xf32>
    %cst_9 = arith.constant 0.000000e+00 : f32
    %25 = vector.broadcast %cst_9 : f32 to vector<2x128xf32>
    %26 = arith.maximumf %24, %25 : vector<2x128xf32>
    %c0_10 = arith.constant 0 : index
    %c0_11 = arith.constant 0 : index
    %27 = vector.load %arg4[%c0_10, %c0_11] : memref<2x128xf32, #tpu.memory_space<vmem>>, vector<2x128xf32>
    tpu.vector_store %arg4[%c0_10, %c0_11], %26 {strides = array<i32>} : memref<2x128xf32, #tpu.memory_space<vmem>>, vector<2x128xf32>,
    return
  }
  func.func @transform_0(%arg0: i32) -> (i32, i32) {
    %c0_i32 = arith.constant 0 : i32
    %c0_i32_0 = arith.constant 0 : i32
    return %c0_i32, %arg0 : i32, i32
  }
  func.func @transform_1(%arg0: i32) -> (i32, i32) {
    %c0_i32 = arith.constant 0 : i32
    %c0_i32_0 = arith.constant 0 : i32
    return %c0_i32, %arg0 : i32, i32
  }
  func.func @transform_2(%arg0: i32) -> (i32, i32) {
    %c0_i32 = arith.constant 0 : i32
    %c0_i32_0 = arith.constant 0 : i32
    return %c0_i32, %arg0 : i32, i32
  }
  func.func @transform_3(%arg0: i32) -> (i32, i32) {
    %c0_i32 = arith.constant 0 : i32
    %c0_i32_0 = arith.constant 0 : i32
    return %c0_i32, %arg0 : i32, i32
  }
}

module attributes {stable_mosaic.version = 11 : i64} {
  func.func @_matmul_kernel(%arg0: i32, %arg1: i32, %arg2: i32, %arg3: memref<8x128xbf16, #tpu.memory_space<vmem>>, %arg4: memref<128x256xbf16, #tpu.memory_space<vmem>>, %arg5: memref<8x256xf32, #tpu.memory_space<vmem>>, %arg6: memref<8x256xf32, #tpu.memory_space<vmem>>) attributes {dimension_semantics = [#tpu.dimension_semantics<parallel>, #tpu.dimension_semantics<parallel>, #tpu.dimension_semantics<arbitrary>], iteration_bounds = array<i64: 1, 4, 1>, scalar_prefetch = 0 : i64, scratch_operands = 1 : i64, tpu.core_type = #tpu.core_type<tc>, window_params = [{transform_indices = @transform_0, window_bounds = array<i64: 8, 128>}, {transform_indices = @transform_1, window_bounds = array<i64: 128, 256>}, {transform_indices = @transform_2, window_bounds = array<i64: 8, 256>}]} {
    %c0_i32 = arith.constant 0 : i32
    %0 = arith.cmpi eq, %arg2, %c0_i32 : i32
    %1 = arith.extui %0 : i1 to i32
    %c0_i32_0 = arith.constant 0 : i32
    %2 = arith.cmpi ne, %1, %c0_i32_0 : i32
    scf.if %2 {
      %cst_10 = arith.constant 0.000000e+00 : f32
      %12 = vector.broadcast %cst_10 : f32 to vector<8x256xf32>
      %c0_11 = arith.constant 0 : index
      %c0_12 = arith.constant 0 : index
      %13 = vector.load %arg6[%c0_11, %c0_12] : memref<8x256xf32, #tpu.memory_space<vmem>>, vector<8x256xf32>
      tpu.vector_store %arg6[%c0_11, %c0_12], %12 {strides = array<i32>} : memref<8x256xf32, #tpu.memory_space<vmem>>, vector<8x256xf32>,
    } else {
    }
    %c0 = arith.constant 0 : index
    %c0_1 = arith.constant 0 : index
    %3 = vector.load %arg6[%c0, %c0_1] : memref<8x256xf32, #tpu.memory_space<vmem>>, vector<8x256xf32>
    %c0_2 = arith.constant 0 : index
    %c0_3 = arith.constant 0 : index
    %4 = vector.load %arg3[%c0_2, %c0_3] : memref<8x128xbf16, #tpu.memory_space<vmem>>, vector<8x128xbf16>
    %c0_4 = arith.constant 0 : index
    %c0_5 = arith.constant 0 : index
    %5 = vector.load %arg4[%c0_4, %c0_5] : memref<128x256xbf16, #tpu.memory_space<vmem>>, vector<128x256xbf16>
    %cst = arith.constant dense<0.000000e+00> : vector<8x256xf32>
    %6 = tpu.matmul %4, %5, %cst {dimension_numbers = #tpu.dot_dimension_numbers<[1], [0], [0], [1], [0, 0, 1, 1], [], []>} : vector<8x128xbf16>, vector<128x256xbf16>, vector<8x256xf32> -> vector<8x256xf32>
    %7 = arith.addf %3, %6 : vector<8x256xf32>
    %c0_6 = arith.constant 0 : index
    %c0_7 = arith.constant 0 : index
    %8 = vector.load %arg6[%c0_6, %c0_7] : memref<8x256xf32, #tpu.memory_space<vmem>>, vector<8x256xf32>
    tpu.vector_store %arg6[%c0_6, %c0_7], %7 {strides = array<i32>} : memref<8x256xf32, #tpu.memory_space<vmem>>, vector<8x256xf32>,
    %c0_i32_8 = arith.constant 0 : i32
    %9 = arith.cmpi eq, %arg2, %c0_i32_8 : i32
    %10 = arith.extui %9 : i1 to i32
    %c0_i32_9 = arith.constant 0 : i32
    %11 = arith.cmpi ne, %10, %c0_i32_9 : i32
    scf.if %11 {
      %c0_10 = arith.constant 0 : index
      %c0_11 = arith.constant 0 : index
      %12 = vector.load %arg6[%c0_10, %c0_11] : memref<8x256xf32, #tpu.memory_space<vmem>>, vector<8x256xf32>
      %c0_12 = arith.constant 0 : index
      %c0_13 = arith.constant 0 : index
      %13 = vector.load %arg5[%c0_12, %c0_13] : memref<8x256xf32, #tpu.memory_space<vmem>>, vector<8x256xf32>
      tpu.vector_store %arg5[%c0_12, %c0_13], %12 {strides = array<i32>} : memref<8x256xf32, #tpu.memory_space<vmem>>, vector<8x256xf32>,
    } else {
    }
    return
  }
  func.func @transform_0(%arg0: i32, %arg1: i32, %arg2: i32) -> (i32, i32) {
    %c0_i32 = arith.constant 0 : i32
    return %arg0, %arg2 : i32, i32
  }
  func.func @transform_1(%arg0: i32, %arg1: i32, %arg2: i32) -> (i32, i32) {
    %c0_i32 = arith.constant 0 : i32
    return %arg2, %arg1 : i32, i32
  }
  func.func @transform_2(%arg0: i32, %arg1: i32, %arg2: i32) -> (i32, i32) {
    %c0_i32 = arith.constant 0 : i32
    return %arg0, %arg1 : i32, i32
  }
}

module attributes {stable_mosaic.version = 11 : i64} {
  func.func @_matmul_kernel(%arg0: i32, %arg1: i32, %arg2: i32, %arg3: memref<32x128xbf16, #tpu.memory_space<vmem>>, %arg4: memref<128x128xbf16, #tpu.memory_space<vmem>>, %arg5: memref<32x128xf32, #tpu.memory_space<vmem>>, %arg6: memref<32x128xf32, #tpu.memory_space<vmem>>) attributes {dimension_semantics = [#tpu.dimension_semantics<parallel>, #tpu.dimension_semantics<parallel>, #tpu.dimension_semantics<arbitrary>], iteration_bounds = array<i64: 1, 1, 5>, scalar_prefetch = 0 : i64, scratch_operands = 1 : i64, tpu.core_type = #tpu.core_type<tc>, window_params = [{transform_indices = @transform_0, window_bounds = array<i64: 32, 128>}, {transform_indices = @transform_1, window_bounds = array<i64: 128, 128>}, {transform_indices = @transform_2, window_bounds = array<i64: 32, 128>}]} {
    %c0_i32 = arith.constant 0 : i32
    %0 = arith.cmpi eq, %arg2, %c0_i32 : i32
    %1 = arith.extui %0 : i1 to i32
    %c0_i32_0 = arith.constant 0 : i32
    %2 = arith.cmpi ne, %1, %c0_i32_0 : i32
    scf.if %2 {
      %cst_9 = arith.constant 0.000000e+00 : f32
      %12 = vector.broadcast %cst_9 : f32 to vector<32x128xf32>
      %c0_10 = arith.constant 0 : index
      %c0_11 = arith.constant 0 : index
      %13 = vector.load %arg6[%c0_10, %c0_11] : memref<32x128xf32, #tpu.memory_space<vmem>>, vector<32x128xf32>
      tpu.vector_store %arg6[%c0_10, %c0_11], %12 {strides = array<i32>} : memref<32x128xf32, #tpu.memory_space<vmem>>, vector<32x128xf32>,
    } else {
    }
    %c0 = arith.constant 0 : index
    %c0_1 = arith.constant 0 : index
    %3 = vector.load %arg6[%c0, %c0_1] : memref<32x128xf32, #tpu.memory_space<vmem>>, vector<32x128xf32>
    %c0_2 = arith.constant 0 : index
    %c0_3 = arith.constant 0 : index
    %4 = vector.load %arg3[%c0_2, %c0_3] : memref<32x128xbf16, #tpu.memory_space<vmem>>, vector<32x128xbf16>
    %c0_4 = arith.constant 0 : index
    %c0_5 = arith.constant 0 : index
    %5 = vector.load %arg4[%c0_4, %c0_5] : memref<128x128xbf16, #tpu.memory_space<vmem>>, vector<128x128xbf16>
    %cst = arith.constant dense<0.000000e+00> : vector<32x128xf32>
    %6 = tpu.matmul %4, %5, %cst {dimension_numbers = #tpu.dot_dimension_numbers<[1], [0], [0], [1], [0, 0, 1, 1], [], []>} : vector<32x128xbf16>, vector<128x128xbf16>, vector<32x128xf32> -> vector<32x128xf32>
    %7 = arith.addf %3, %6 : vector<32x128xf32>
    %c0_6 = arith.constant 0 : index
    %c0_7 = arith.constant 0 : index
    %8 = vector.load %arg6[%c0_6, %c0_7] : memref<32x128xf32, #tpu.memory_space<vmem>>, vector<32x128xf32>
    tpu.vector_store %arg6[%c0_6, %c0_7], %7 {strides = array<i32>} : memref<32x128xf32, #tpu.memory_space<vmem>>, vector<32x128xf32>,
    %c4_i32 = arith.constant 4 : i32
    %9 = arith.cmpi eq, %arg2, %c4_i32 : i32
    %10 = arith.extui %9 : i1 to i32
    %c0_i32_8 = arith.constant 0 : i32
    %11 = arith.cmpi ne, %10, %c0_i32_8 : i32
    scf.if %11 {
      %c0_9 = arith.constant 0 : index
      %c0_10 = arith.constant 0 : index
      %12 = vector.load %arg6[%c0_9, %c0_10] : memref<32x128xf32, #tpu.memory_space<vmem>>, vector<32x128xf32>
      %c0_11 = arith.constant 0 : index
      %c0_12 = arith.constant 0 : index
      %13 = vector.load %arg5[%c0_11, %c0_12] : memref<32x128xf32, #tpu.memory_space<vmem>>, vector<32x128xf32>
      tpu.vector_store %arg5[%c0_11, %c0_12], %12 {strides = array<i32>} : memref<32x128xf32, #tpu.memory_space<vmem>>, vector<32x128xf32>,
    } else {
    }
    return
  }
  func.func @transform_0(%arg0: i32, %arg1: i32, %arg2: i32) -> (i32, i32) {
    %c0_i32 = arith.constant 0 : i32
    return %arg0, %arg2 : i32, i32
  }
  func.func @transform_1(%arg0: i32, %arg1: i32, %arg2: i32) -> (i32, i32) {
    %c0_i32 = arith.constant 0 : i32
    return %arg2, %arg1 : i32, i32
  }
  func.func @transform_2(%arg0: i32, %arg1: i32, %arg2: i32) -> (i32, i32) {
    %c0_i32 = arith.constant 0 : i32
    return %arg0, %arg1 : i32, i32
  }
}

module attributes {stable_mosaic.version = 11 : i64} {
  func.func @_bn_relu_kernel(%arg0: i32, %arg1: memref<128x32xf32, #tpu.memory_space<vmem>>, %arg2: memref<1x32xf32, #tpu.memory_space<vmem>>, %arg3: memref<1x32xf32, #tpu.memory_space<vmem>>, %arg4: memref<128x32xf32, #tpu.memory_space<vmem>>) attributes {dimension_semantics = [#tpu.dimension_semantics<parallel>], iteration_bounds = array<i64: 1>, scalar_prefetch = 0 : i64, scratch_operands = 0 : i64, tpu.core_type = #tpu.core_type<tc>, window_params = [{transform_indices = @transform_0, window_bounds = array<i64: 128, 32>}, {transform_indices = @transform_1, window_bounds = array<i64: 1, 32>}, {transform_indices = @transform_2, window_bounds = array<i64: 1, 32>}, {transform_indices = @transform_3, window_bounds = array<i64: 128, 32>}]} {
    %c0 = arith.constant 0 : index
    %c0_0 = arith.constant 0 : index
    %0 = vector.load %arg1[%c0, %c0_0] : memref<128x32xf32, #tpu.memory_space<vmem>>, vector<128x32xf32>
    %cst = arith.constant dense<0.000000e+00> : vector<32xf32>
    %1 = vector.multi_reduction <add>, %0, %cst [0] : vector<128x32xf32> to vector<32xf32>
    %2 = vector.shape_cast %1 : vector<32xf32> to vector<1x32xf32>
    %cst_1 = arith.constant 1.280000e+02 : f32
    %3 = vector.broadcast %cst_1 : f32 to vector<1x32xf32>
    %4 = arith.divf %2, %3 : vector<1x32xf32>
    %5 = vector.broadcast %4 : vector<1x32xf32> to vector<128x32xf32>
    %6 = arith.subf %0, %5 : vector<128x32xf32>
    %7 = arith.mulf %6, %6 : vector<128x32xf32>
    %cst_2 = arith.constant dense<0.000000e+00> : vector<32xf32>
    %8 = vector.multi_reduction <add>, %7, %cst_2 [0] : vector<128x32xf32> to vector<32xf32>
    %9 = vector.shape_cast %8 : vector<32xf32> to vector<1x32xf32>
    %cst_3 = arith.constant 1.280000e+02 : f32
    %10 = vector.broadcast %cst_3 : f32 to vector<1x32xf32>
    %11 = arith.divf %9, %10 : vector<1x32xf32>
    %12 = vector.broadcast %4 : vector<1x32xf32> to vector<128x32xf32>
    %13 = arith.subf %0, %12 : vector<128x32xf32>
    %cst_4 = arith.constant 9.99999974E-6 : f32
    %14 = vector.broadcast %cst_4 : f32 to vector<1x32xf32>
    %15 = arith.addf %11, %14 : vector<1x32xf32>
    %16 = math.rsqrt %15 : vector<1x32xf32>
    %17 = vector.broadcast %16 : vector<1x32xf32> to vector<128x32xf32>
    %18 = arith.mulf %13, %17 : vector<128x32xf32>
    %c0_5 = arith.constant 0 : index
    %c0_6 = arith.constant 0 : index
    %19 = vector.load %arg2[%c0_5, %c0_6] : memref<1x32xf32, #tpu.memory_space<vmem>>, vector<1x32xf32>
    %20 = vector.broadcast %19 : vector<1x32xf32> to vector<128x32xf32>
    %21 = arith.mulf %18, %20 : vector<128x32xf32>
    %c0_7 = arith.constant 0 : index
    %c0_8 = arith.constant 0 : index
    %22 = vector.load %arg3[%c0_7, %c0_8] : memref<1x32xf32, #tpu.memory_space<vmem>>, vector<1x32xf32>
    %23 = vector.broadcast %22 : vector<1x32xf32> to vector<128x32xf32>
    %24 = arith.addf %21, %23 : vector<128x32xf32>
    %cst_9 = arith.constant 0.000000e+00 : f32
    %25 = vector.broadcast %cst_9 : f32 to vector<128x32xf32>
    %26 = arith.maximumf %24, %25 : vector<128x32xf32>
    %c0_10 = arith.constant 0 : index
    %c0_11 = arith.constant 0 : index
    %27 = vector.load %arg4[%c0_10, %c0_11] : memref<128x32xf32, #tpu.memory_space<vmem>>, vector<128x32xf32>
    tpu.vector_store %arg4[%c0_10, %c0_11], %26 {strides = array<i32>} : memref<128x32xf32, #tpu.memory_space<vmem>>, vector<128x32xf32>,
    return
  }
  func.func @transform_0(%arg0: i32) -> (i32, i32) {
    %c0_i32 = arith.constant 0 : i32
    %c0_i32_0 = arith.constant 0 : i32
    return %c0_i32, %arg0 : i32, i32
  }
  func.func @transform_1(%arg0: i32) -> (i32, i32) {
    %c0_i32 = arith.constant 0 : i32
    %c0_i32_0 = arith.constant 0 : i32
    return %c0_i32, %arg0 : i32, i32
  }
  func.func @transform_2(%arg0: i32) -> (i32, i32) {
    %c0_i32 = arith.constant 0 : i32
    %c0_i32_0 = arith.constant 0 : i32
    return %c0_i32, %arg0 : i32, i32
  }
  func.func @transform_3(%arg0: i32) -> (i32, i32) {
    %c0_i32 = arith.constant 0 : i32
    %c0_i32_0 = arith.constant 0 : i32
    return %c0_i32, %arg0 : i32, i32
  }
}

module attributes {stable_mosaic.version = 11 : i64} {
  func.func @_matmul_kernel(%arg0: i32, %arg1: i32, %arg2: i32, %arg3: memref<128x128xbf16, #tpu.memory_space<vmem>>, %arg4: memref<128x128xbf16, #tpu.memory_space<vmem>>, %arg5: memref<128x128xf32, #tpu.memory_space<vmem>>, %arg6: memref<128x128xf32, #tpu.memory_space<vmem>>) attributes {dimension_semantics = [#tpu.dimension_semantics<parallel>, #tpu.dimension_semantics<parallel>, #tpu.dimension_semantics<arbitrary>], iteration_bounds = array<i64: 1, 1, 3>, scalar_prefetch = 0 : i64, scratch_operands = 1 : i64, tpu.core_type = #tpu.core_type<tc>, window_params = [{transform_indices = @transform_0, window_bounds = array<i64: 128, 128>}, {transform_indices = @transform_1, window_bounds = array<i64: 128, 128>}, {transform_indices = @transform_2, window_bounds = array<i64: 128, 128>}]} {
    %c0_i32 = arith.constant 0 : i32
    %0 = arith.cmpi eq, %arg2, %c0_i32 : i32
    %1 = arith.extui %0 : i1 to i32
    %c0_i32_0 = arith.constant 0 : i32
    %2 = arith.cmpi ne, %1, %c0_i32_0 : i32
    scf.if %2 {
      %cst_9 = arith.constant 0.000000e+00 : f32
      %12 = vector.broadcast %cst_9 : f32 to vector<128x128xf32>
      %c0_10 = arith.constant 0 : index
      %c0_11 = arith.constant 0 : index
      %13 = vector.load %arg6[%c0_10, %c0_11] : memref<128x128xf32, #tpu.memory_space<vmem>>, vector<128x128xf32>
      tpu.vector_store %arg6[%c0_10, %c0_11], %12 {strides = array<i32>} : memref<128x128xf32, #tpu.memory_space<vmem>>, vector<128x128xf32>,
    } else {
    }
    %c0 = arith.constant 0 : index
    %c0_1 = arith.constant 0 : index
    %3 = vector.load %arg6[%c0, %c0_1] : memref<128x128xf32, #tpu.memory_space<vmem>>, vector<128x128xf32>
    %c0_2 = arith.constant 0 : index
    %c0_3 = arith.constant 0 : index
    %4 = vector.load %arg3[%c0_2, %c0_3] : memref<128x128xbf16, #tpu.memory_space<vmem>>, vector<128x128xbf16>
    %c0_4 = arith.constant 0 : index
    %c0_5 = arith.constant 0 : index
    %5 = vector.load %arg4[%c0_4, %c0_5] : memref<128x128xbf16, #tpu.memory_space<vmem>>, vector<128x128xbf16>
    %cst = arith.constant dense<0.000000e+00> : vector<128x128xf32>
    %6 = tpu.matmul %4, %5, %cst {dimension_numbers = #tpu.dot_dimension_numbers<[1], [0], [0], [1], [0, 0, 1, 1], [], []>} : vector<128x128xbf16>, vector<128x128xbf16>, vector<128x128xf32> -> vector<128x128xf32>
    %7 = arith.addf %3, %6 : vector<128x128xf32>
    %c0_6 = arith.constant 0 : index
    %c0_7 = arith.constant 0 : index
    %8 = vector.load %arg6[%c0_6, %c0_7] : memref<128x128xf32, #tpu.memory_space<vmem>>, vector<128x128xf32>
    tpu.vector_store %arg6[%c0_6, %c0_7], %7 {strides = array<i32>} : memref<128x128xf32, #tpu.memory_space<vmem>>, vector<128x128xf32>,
    %c2_i32 = arith.constant 2 : i32
    %9 = arith.cmpi eq, %arg2, %c2_i32 : i32
    %10 = arith.extui %9 : i1 to i32
    %c0_i32_8 = arith.constant 0 : i32
    %11 = arith.cmpi ne, %10, %c0_i32_8 : i32
    scf.if %11 {
      %c0_9 = arith.constant 0 : index
      %c0_10 = arith.constant 0 : index
      %12 = vector.load %arg6[%c0_9, %c0_10] : memref<128x128xf32, #tpu.memory_space<vmem>>, vector<128x128xf32>
      %c0_11 = arith.constant 0 : index
      %c0_12 = arith.constant 0 : index
      %13 = vector.load %arg5[%c0_11, %c0_12] : memref<128x128xf32, #tpu.memory_space<vmem>>, vector<128x128xf32>
      tpu.vector_store %arg5[%c0_11, %c0_12], %12 {strides = array<i32>} : memref<128x128xf32, #tpu.memory_space<vmem>>, vector<128x128xf32>,
    } else {
    }
    return
  }
  func.func @transform_0(%arg0: i32, %arg1: i32, %arg2: i32) -> (i32, i32) {
    %c0_i32 = arith.constant 0 : i32
    return %arg0, %arg2 : i32, i32
  }
  func.func @transform_1(%arg0: i32, %arg1: i32, %arg2: i32) -> (i32, i32) {
    %c0_i32 = arith.constant 0 : i32
    return %arg2, %arg1 : i32, i32
  }
  func.func @transform_2(%arg0: i32, %arg1: i32, %arg2: i32) -> (i32, i32) {
    %c0_i32 = arith.constant 0 : i32
    return %arg0, %arg1 : i32, i32
  }
}

module attributes {stable_mosaic.version = 11 : i64} {
  func.func @_bn_relu_kernel(%arg0: i32, %arg1: memref<512x16xf32, #tpu.memory_space<vmem>>, %arg2: memref<1x16xf32, #tpu.memory_space<vmem>>, %arg3: memref<1x16xf32, #tpu.memory_space<vmem>>, %arg4: memref<512x16xf32, #tpu.memory_space<vmem>>) attributes {dimension_semantics = [#tpu.dimension_semantics<parallel>], iteration_bounds = array<i64: 1>, scalar_prefetch = 0 : i64, scratch_operands = 0 : i64, tpu.core_type = #tpu.core_type<tc>, window_params = [{transform_indices = @transform_0, window_bounds = array<i64: 512, 16>}, {transform_indices = @transform_1, window_bounds = array<i64: 1, 16>}, {transform_indices = @transform_2, window_bounds = array<i64: 1, 16>}, {transform_indices = @transform_3, window_bounds = array<i64: 512, 16>}]} {
    %c0 = arith.constant 0 : index
    %c0_0 = arith.constant 0 : index
    %0 = vector.load %arg1[%c0, %c0_0] : memref<512x16xf32, #tpu.memory_space<vmem>>, vector<512x16xf32>
    %cst = arith.constant dense<0.000000e+00> : vector<16xf32>
    %1 = vector.multi_reduction <add>, %0, %cst [0] : vector<512x16xf32> to vector<16xf32>
    %2 = vector.shape_cast %1 : vector<16xf32> to vector<1x16xf32>
    %cst_1 = arith.constant 5.120000e+02 : f32
    %3 = vector.broadcast %cst_1 : f32 to vector<1x16xf32>
    %4 = arith.divf %2, %3 : vector<1x16xf32>
    %5 = vector.broadcast %4 : vector<1x16xf32> to vector<512x16xf32>
    %6 = arith.subf %0, %5 : vector<512x16xf32>
    %7 = arith.mulf %6, %6 : vector<512x16xf32>
    %cst_2 = arith.constant dense<0.000000e+00> : vector<16xf32>
    %8 = vector.multi_reduction <add>, %7, %cst_2 [0] : vector<512x16xf32> to vector<16xf32>
    %9 = vector.shape_cast %8 : vector<16xf32> to vector<1x16xf32>
    %cst_3 = arith.constant 5.120000e+02 : f32
    %10 = vector.broadcast %cst_3 : f32 to vector<1x16xf32>
    %11 = arith.divf %9, %10 : vector<1x16xf32>
    %12 = vector.broadcast %4 : vector<1x16xf32> to vector<512x16xf32>
    %13 = arith.subf %0, %12 : vector<512x16xf32>
    %cst_4 = arith.constant 9.99999974E-6 : f32
    %14 = vector.broadcast %cst_4 : f32 to vector<1x16xf32>
    %15 = arith.addf %11, %14 : vector<1x16xf32>
    %16 = math.rsqrt %15 : vector<1x16xf32>
    %17 = vector.broadcast %16 : vector<1x16xf32> to vector<512x16xf32>
    %18 = arith.mulf %13, %17 : vector<512x16xf32>
    %c0_5 = arith.constant 0 : index
    %c0_6 = arith.constant 0 : index
    %19 = vector.load %arg2[%c0_5, %c0_6] : memref<1x16xf32, #tpu.memory_space<vmem>>, vector<1x16xf32>
    %20 = vector.broadcast %19 : vector<1x16xf32> to vector<512x16xf32>
    %21 = arith.mulf %18, %20 : vector<512x16xf32>
    %c0_7 = arith.constant 0 : index
    %c0_8 = arith.constant 0 : index
    %22 = vector.load %arg3[%c0_7, %c0_8] : memref<1x16xf32, #tpu.memory_space<vmem>>, vector<1x16xf32>
    %23 = vector.broadcast %22 : vector<1x16xf32> to vector<512x16xf32>
    %24 = arith.addf %21, %23 : vector<512x16xf32>
    %cst_9 = arith.constant 0.000000e+00 : f32
    %25 = vector.broadcast %cst_9 : f32 to vector<512x16xf32>
    %26 = arith.maximumf %24, %25 : vector<512x16xf32>
    %c0_10 = arith.constant 0 : index
    %c0_11 = arith.constant 0 : index
    %27 = vector.load %arg4[%c0_10, %c0_11] : memref<512x16xf32, #tpu.memory_space<vmem>>, vector<512x16xf32>
    tpu.vector_store %arg4[%c0_10, %c0_11], %26 {strides = array<i32>} : memref<512x16xf32, #tpu.memory_space<vmem>>, vector<512x16xf32>,
    return
  }
  func.func @transform_0(%arg0: i32) -> (i32, i32) {
    %c0_i32 = arith.constant 0 : i32
    %c0_i32_0 = arith.constant 0 : i32
    return %c0_i32, %arg0 : i32, i32
  }
  func.func @transform_1(%arg0: i32) -> (i32, i32) {
    %c0_i32 = arith.constant 0 : i32
    %c0_i32_0 = arith.constant 0 : i32
    return %c0_i32, %arg0 : i32, i32
  }
  func.func @transform_2(%arg0: i32) -> (i32, i32) {
    %c0_i32 = arith.constant 0 : i32
    %c0_i32_0 = arith.constant 0 : i32
    return %c0_i32, %arg0 : i32, i32
  }
  func.func @transform_3(%arg0: i32) -> (i32, i32) {
    %c0_i32 = arith.constant 0 : i32
    %c0_i32_0 = arith.constant 0 : i32
    return %c0_i32, %arg0 : i32, i32
  }
}

module attributes {stable_mosaic.version = 11 : i64} {
  func.func @_matmul_kernel(%arg0: i32, %arg1: i32, %arg2: i32, %arg3: memref<256x256xbf16, #tpu.memory_space<vmem>>, %arg4: memref<256x128xbf16, #tpu.memory_space<vmem>>, %arg5: memref<256x128xf32, #tpu.memory_space<vmem>>, %arg6: memref<256x128xf32, #tpu.memory_space<vmem>>) attributes {dimension_semantics = [#tpu.dimension_semantics<parallel>, #tpu.dimension_semantics<parallel>, #tpu.dimension_semantics<arbitrary>], iteration_bounds = array<i64: 2, 1, 1>, scalar_prefetch = 0 : i64, scratch_operands = 1 : i64, tpu.core_type = #tpu.core_type<tc>, window_params = [{transform_indices = @transform_0, window_bounds = array<i64: 256, 256>}, {transform_indices = @transform_1, window_bounds = array<i64: 256, 128>}, {transform_indices = @transform_2, window_bounds = array<i64: 256, 128>}]} {
    %c0_i32 = arith.constant 0 : i32
    %0 = arith.cmpi eq, %arg2, %c0_i32 : i32
    %1 = arith.extui %0 : i1 to i32
    %c0_i32_0 = arith.constant 0 : i32
    %2 = arith.cmpi ne, %1, %c0_i32_0 : i32
    scf.if %2 {
      %cst_10 = arith.constant 0.000000e+00 : f32
      %12 = vector.broadcast %cst_10 : f32 to vector<256x128xf32>
      %c0_11 = arith.constant 0 : index
      %c0_12 = arith.constant 0 : index
      %13 = vector.load %arg6[%c0_11, %c0_12] : memref<256x128xf32, #tpu.memory_space<vmem>>, vector<256x128xf32>
      tpu.vector_store %arg6[%c0_11, %c0_12], %12 {strides = array<i32>} : memref<256x128xf32, #tpu.memory_space<vmem>>, vector<256x128xf32>,
    } else {
    }
    %c0 = arith.constant 0 : index
    %c0_1 = arith.constant 0 : index
    %3 = vector.load %arg6[%c0, %c0_1] : memref<256x128xf32, #tpu.memory_space<vmem>>, vector<256x128xf32>
    %c0_2 = arith.constant 0 : index
    %c0_3 = arith.constant 0 : index
    %4 = vector.load %arg3[%c0_2, %c0_3] : memref<256x256xbf16, #tpu.memory_space<vmem>>, vector<256x256xbf16>
    %c0_4 = arith.constant 0 : index
    %c0_5 = arith.constant 0 : index
    %5 = vector.load %arg4[%c0_4, %c0_5] : memref<256x128xbf16, #tpu.memory_space<vmem>>, vector<256x128xbf16>
    %cst = arith.constant dense<0.000000e+00> : vector<256x128xf32>
    %6 = tpu.matmul %4, %5, %cst {dimension_numbers = #tpu.dot_dimension_numbers<[1], [0], [0], [1], [0, 0, 1, 1], [], []>} : vector<256x256xbf16>, vector<256x128xbf16>, vector<256x128xf32> -> vector<256x128xf32>
    %7 = arith.addf %3, %6 : vector<256x128xf32>
    %c0_6 = arith.constant 0 : index
    %c0_7 = arith.constant 0 : index
    %8 = vector.load %arg6[%c0_6, %c0_7] : memref<256x128xf32, #tpu.memory_space<vmem>>, vector<256x128xf32>
    tpu.vector_store %arg6[%c0_6, %c0_7], %7 {strides = array<i32>} : memref<256x128xf32, #tpu.memory_space<vmem>>, vector<256x128xf32>,
    %c0_i32_8 = arith.constant 0 : i32
    %9 = arith.cmpi eq, %arg2, %c0_i32_8 : i32
    %10 = arith.extui %9 : i1 to i32
    %c0_i32_9 = arith.constant 0 : i32
    %11 = arith.cmpi ne, %10, %c0_i32_9 : i32
    scf.if %11 {
      %c0_10 = arith.constant 0 : index
      %c0_11 = arith.constant 0 : index
      %12 = vector.load %arg6[%c0_10, %c0_11] : memref<256x128xf32, #tpu.memory_space<vmem>>, vector<256x128xf32>
      %c0_12 = arith.constant 0 : index
      %c0_13 = arith.constant 0 : index
      %13 = vector.load %arg5[%c0_12, %c0_13] : memref<256x128xf32, #tpu.memory_space<vmem>>, vector<256x128xf32>
      tpu.vector_store %arg5[%c0_12, %c0_13], %12 {strides = array<i32>} : memref<256x128xf32, #tpu.memory_space<vmem>>, vector<256x128xf32>,
    } else {
    }
    return
  }
  func.func @transform_0(%arg0: i32, %arg1: i32, %arg2: i32) -> (i32, i32) {
    %c0_i32 = arith.constant 0 : i32
    return %arg0, %arg2 : i32, i32
  }
  func.func @transform_1(%arg0: i32, %arg1: i32, %arg2: i32) -> (i32, i32) {
    %c0_i32 = arith.constant 0 : i32
    return %arg2, %arg1 : i32, i32
  }
  func.func @transform_2(%arg0: i32, %arg1: i32, %arg2: i32) -> (i32, i32) {
    %c0_i32 = arith.constant 0 : i32
    return %arg0, %arg1 : i32, i32
  }
}

module attributes {stable_mosaic.version = 11 : i64} {
  func.func @_bn_relu_kernel(%arg0: i32, %arg1: memref<2048x8xf32, #tpu.memory_space<vmem>>, %arg2: memref<1x8xf32, #tpu.memory_space<vmem>>, %arg3: memref<1x8xf32, #tpu.memory_space<vmem>>, %arg4: memref<2048x8xf32, #tpu.memory_space<vmem>>) attributes {dimension_semantics = [#tpu.dimension_semantics<parallel>], iteration_bounds = array<i64: 1>, scalar_prefetch = 0 : i64, scratch_operands = 0 : i64, tpu.core_type = #tpu.core_type<tc>, window_params = [{transform_indices = @transform_0, window_bounds = array<i64: 2048, 8>}, {transform_indices = @transform_1, window_bounds = array<i64: 1, 8>}, {transform_indices = @transform_2, window_bounds = array<i64: 1, 8>}, {transform_indices = @transform_3, window_bounds = array<i64: 2048, 8>}]} {
    %c0 = arith.constant 0 : index
    %c0_0 = arith.constant 0 : index
    %0 = vector.load %arg1[%c0, %c0_0] : memref<2048x8xf32, #tpu.memory_space<vmem>>, vector<2048x8xf32>
    %cst = arith.constant dense<0.000000e+00> : vector<8xf32>
    %1 = vector.multi_reduction <add>, %0, %cst [0] : vector<2048x8xf32> to vector<8xf32>
    %2 = vector.shape_cast %1 : vector<8xf32> to vector<1x8xf32>
    %cst_1 = arith.constant 2.048000e+03 : f32
    %3 = vector.broadcast %cst_1 : f32 to vector<1x8xf32>
    %4 = arith.divf %2, %3 : vector<1x8xf32>
    %5 = vector.broadcast %4 : vector<1x8xf32> to vector<2048x8xf32>
    %6 = arith.subf %0, %5 : vector<2048x8xf32>
    %7 = arith.mulf %6, %6 : vector<2048x8xf32>
    %cst_2 = arith.constant dense<0.000000e+00> : vector<8xf32>
    %8 = vector.multi_reduction <add>, %7, %cst_2 [0] : vector<2048x8xf32> to vector<8xf32>
    %9 = vector.shape_cast %8 : vector<8xf32> to vector<1x8xf32>
    %cst_3 = arith.constant 2.048000e+03 : f32
    %10 = vector.broadcast %cst_3 : f32 to vector<1x8xf32>
    %11 = arith.divf %9, %10 : vector<1x8xf32>
    %12 = vector.broadcast %4 : vector<1x8xf32> to vector<2048x8xf32>
    %13 = arith.subf %0, %12 : vector<2048x8xf32>
    %cst_4 = arith.constant 9.99999974E-6 : f32
    %14 = vector.broadcast %cst_4 : f32 to vector<1x8xf32>
    %15 = arith.addf %11, %14 : vector<1x8xf32>
    %16 = math.rsqrt %15 : vector<1x8xf32>
    %17 = vector.broadcast %16 : vector<1x8xf32> to vector<2048x8xf32>
    %18 = arith.mulf %13, %17 : vector<2048x8xf32>
    %c0_5 = arith.constant 0 : index
    %c0_6 = arith.constant 0 : index
    %19 = vector.load %arg2[%c0_5, %c0_6] : memref<1x8xf32, #tpu.memory_space<vmem>>, vector<1x8xf32>
    %20 = vector.broadcast %19 : vector<1x8xf32> to vector<2048x8xf32>
    %21 = arith.mulf %18, %20 : vector<2048x8xf32>
    %c0_7 = arith.constant 0 : index
    %c0_8 = arith.constant 0 : index
    %22 = vector.load %arg3[%c0_7, %c0_8] : memref<1x8xf32, #tpu.memory_space<vmem>>, vector<1x8xf32>
    %23 = vector.broadcast %22 : vector<1x8xf32> to vector<2048x8xf32>
    %24 = arith.addf %21, %23 : vector<2048x8xf32>
    %cst_9 = arith.constant 0.000000e+00 : f32
    %25 = vector.broadcast %cst_9 : f32 to vector<2048x8xf32>
    %26 = arith.maximumf %24, %25 : vector<2048x8xf32>
    %c0_10 = arith.constant 0 : index
    %c0_11 = arith.constant 0 : index
    %27 = vector.load %arg4[%c0_10, %c0_11] : memref<2048x8xf32, #tpu.memory_space<vmem>>, vector<2048x8xf32>
    tpu.vector_store %arg4[%c0_10, %c0_11], %26 {strides = array<i32>} : memref<2048x8xf32, #tpu.memory_space<vmem>>, vector<2048x8xf32>,
    return
  }
  func.func @transform_0(%arg0: i32) -> (i32, i32) {
    %c0_i32 = arith.constant 0 : i32
    %c0_i32_0 = arith.constant 0 : i32
    return %c0_i32, %arg0 : i32, i32
  }
  func.func @transform_1(%arg0: i32) -> (i32, i32) {
    %c0_i32 = arith.constant 0 : i32
    %c0_i32_0 = arith.constant 0 : i32
    return %c0_i32, %arg0 : i32, i32
  }
  func.func @transform_2(%arg0: i32) -> (i32, i32) {
    %c0_i32 = arith.constant 0 : i32
    %c0_i32_0 = arith.constant 0 : i32
    return %c0_i32, %arg0 : i32, i32
  }
  func.func @transform_3(%arg0: i32) -> (i32, i32) {
    %c0_i32 = arith.constant 0 : i32
    %c0_i32_0 = arith.constant 0 : i32
    return %c0_i32, %arg0 : i32, i32
  }
}

module attributes {stable_mosaic.version = 11 : i64} {
  func.func @_matmul_kernel(%arg0: i32, %arg1: i32, %arg2: i32, %arg3: memref<256x128xbf16, #tpu.memory_space<vmem>>, %arg4: memref<128x128xbf16, #tpu.memory_space<vmem>>, %arg5: memref<256x128xf32, #tpu.memory_space<vmem>>, %arg6: memref<256x128xf32, #tpu.memory_space<vmem>>) attributes {dimension_semantics = [#tpu.dimension_semantics<parallel>, #tpu.dimension_semantics<parallel>, #tpu.dimension_semantics<arbitrary>], iteration_bounds = array<i64: 8, 1, 1>, scalar_prefetch = 0 : i64, scratch_operands = 1 : i64, tpu.core_type = #tpu.core_type<tc>, window_params = [{transform_indices = @transform_0, window_bounds = array<i64: 256, 128>}, {transform_indices = @transform_1, window_bounds = array<i64: 128, 128>}, {transform_indices = @transform_2, window_bounds = array<i64: 256, 128>}]} {
    %c0_i32 = arith.constant 0 : i32
    %0 = arith.cmpi eq, %arg2, %c0_i32 : i32
    %1 = arith.extui %0 : i1 to i32
    %c0_i32_0 = arith.constant 0 : i32
    %2 = arith.cmpi ne, %1, %c0_i32_0 : i32
    scf.if %2 {
      %cst_10 = arith.constant 0.000000e+00 : f32
      %12 = vector.broadcast %cst_10 : f32 to vector<256x128xf32>
      %c0_11 = arith.constant 0 : index
      %c0_12 = arith.constant 0 : index
      %13 = vector.load %arg6[%c0_11, %c0_12] : memref<256x128xf32, #tpu.memory_space<vmem>>, vector<256x128xf32>
      tpu.vector_store %arg6[%c0_11, %c0_12], %12 {strides = array<i32>} : memref<256x128xf32, #tpu.memory_space<vmem>>, vector<256x128xf32>,
    } else {
    }
    %c0 = arith.constant 0 : index
    %c0_1 = arith.constant 0 : index
    %3 = vector.load %arg6[%c0, %c0_1] : memref<256x128xf32, #tpu.memory_space<vmem>>, vector<256x128xf32>
    %c0_2 = arith.constant 0 : index
    %c0_3 = arith.constant 0 : index
    %4 = vector.load %arg3[%c0_2, %c0_3] : memref<256x128xbf16, #tpu.memory_space<vmem>>, vector<256x128xbf16>
    %c0_4 = arith.constant 0 : index
    %c0_5 = arith.constant 0 : index
    %5 = vector.load %arg4[%c0_4, %c0_5] : memref<128x128xbf16, #tpu.memory_space<vmem>>, vector<128x128xbf16>
    %cst = arith.constant dense<0.000000e+00> : vector<256x128xf32>
    %6 = tpu.matmul %4, %5, %cst {dimension_numbers = #tpu.dot_dimension_numbers<[1], [0], [0], [1], [0, 0, 1, 1], [], []>} : vector<256x128xbf16>, vector<128x128xbf16>, vector<256x128xf32> -> vector<256x128xf32>
    %7 = arith.addf %3, %6 : vector<256x128xf32>
    %c0_6 = arith.constant 0 : index
    %c0_7 = arith.constant 0 : index
    %8 = vector.load %arg6[%c0_6, %c0_7] : memref<256x128xf32, #tpu.memory_space<vmem>>, vector<256x128xf32>
    tpu.vector_store %arg6[%c0_6, %c0_7], %7 {strides = array<i32>} : memref<256x128xf32, #tpu.memory_space<vmem>>, vector<256x128xf32>,
    %c0_i32_8 = arith.constant 0 : i32
    %9 = arith.cmpi eq, %arg2, %c0_i32_8 : i32
    %10 = arith.extui %9 : i1 to i32
    %c0_i32_9 = arith.constant 0 : i32
    %11 = arith.cmpi ne, %10, %c0_i32_9 : i32
    scf.if %11 {
      %c0_10 = arith.constant 0 : index
      %c0_11 = arith.constant 0 : index
      %12 = vector.load %arg6[%c0_10, %c0_11] : memref<256x128xf32, #tpu.memory_space<vmem>>, vector<256x128xf32>
      %13 = math.tanh %12 : vector<256x128xf32>
      %c0_12 = arith.constant 0 : index
      %c0_13 = arith.constant 0 : index
      %14 = vector.load %arg5[%c0_12, %c0_13] : memref<256x128xf32, #tpu.memory_space<vmem>>, vector<256x128xf32>
      tpu.vector_store %arg5[%c0_12, %c0_13], %13 {strides = array<i32>} : memref<256x128xf32, #tpu.memory_space<vmem>>, vector<256x128xf32>,
    } else {
    }
    return
  }
  func.func @transform_0(%arg0: i32, %arg1: i32, %arg2: i32) -> (i32, i32) {
    %c0_i32 = arith.constant 0 : i32
    return %arg0, %arg2 : i32, i32
  }
  func.func @transform_1(%arg0: i32, %arg1: i32, %arg2: i32) -> (i32, i32) {
    %c0_i32 = arith.constant 0 : i32
    return %arg2, %arg1 : i32, i32
  }
  func.func @transform_2(%arg0: i32, %arg1: i32, %arg2: i32) -> (i32, i32) {
    %c0_i32 = arith.constant 0 : i32
    return %arg0, %arg1 : i32, i32
  }
}

</mosaic_0001>

<llo_original>
// kernel: _generator_forward.10
$region0: #{_generator_forward.10}
  #allocation0 [shape = 'u32[]', space=smem, size = 0x4, offset = 0x4, fixed_abs, tag = 'smem constant byte address 0x4 - core index']
  #allocation1 [shape = 'u32[144,128]{1,0:T(1,128)}', space=vmem, size = 0x12000, scoped, tag = 'internal scratch']
  %s0 = inlined_call_operand.vmem [shape: f32[2,1024], index: 0, kind: input, shape index: {}]
  %s1 = inlined_call_operand.hbm [shape: f32[1,1024], index: 1, kind: input, shape index: {}]
  %s2 = inlined_call_operand.hbm [shape: f32[1,1024], index: 2, kind: input, shape index: {}]
  %s3 = inlined_call_operand.vmem [shape: f32[2,1024], index: 3, kind: output, shape index: {}]
  %s4 = sld [smem:[#allocation0]]
  $region53: #{_generator_forward.10} parent=0
    _
  %s6 = ssub.s32 1, %s4
  %s7 = scalar_select 0, %s6, %s4
  $region1: #{_generator_forward.10} parent=0
    #allocation2 [shape = 'u8[1024]{0}', space=vmem, size = 0x400, scoped, tag = 'input window, operand 1']
    #allocation3 [shape = 's32[2]{0}', space=sflag, size = 0x8, scoped, tag = 'scoped memory for _generator_forward.10']
    #allocation4 [shape = 'u8[1024]{0}', space=vmem, size = 0x400, scoped, tag = 'input window, operand 2']
    #allocation5 [shape = 's32[2]{0}', space=sflag, size = 0x8, scoped, tag = 'scoped memory for _generator_forward.10']
    %8 = vsyncpa [#allocation3], 0
    %s9 = scalar_lea.sflag [#allocation3], 1
    %10 = vsyncpa %s9, 0
    %11 = vsyncpa [#allocation5], 0
    %s12 = scalar_lea.sflag [#allocation5], 1
    %13 = vsyncpa %s12, 0
    loop: start=0, step=1, limit=10
    $region2: #{_generator_forward.10} parent=1 // loop_pre_header
      _
    $region3: #{_generator_forward.10} parent=1 // loop_header
      %s15 = sphi 0, %s19
      %p16 = scmp.ge.s32.totalorder %s15, 10
      %s25 = sphi 0, %s27
      %s28 = sphi 0, %s25
      %s29 = sphi 0, %s28
      %s45 = sphi 0, %s29
      %s51 = sphi 0, %s53
      %s54 = sphi 0, %s51
      %s55 = sphi 0, %s54
      %s71 = sphi 0, %s55
      %s77 = sphi 0, %s79
      %s80 = sphi 0, %s77
      %s81 = sphi 0, %s80
      %s97 = sphi 0, %s81
      %s103 = sphi 0, %s105
      %s106 = sphi 0, %s103
      %s107 = sphi 0, %s106
      %s123 = sphi 0, %s107
    $region4: #{_generator_forward.10} parent=1 // loop_header_branch
      %18 = sbr.rel (%p16) target = $region8
    $region5: #{_generator_forward.10} parent=1 // loop_body
      %s20 = ssub.s32 %s15, 1
      %s21 = ssub.s32 %s15, 2
      %s22 = sadd.s32 %s15, 1
      %s23 = ssub.s32 %s15, %s22
      %p24 = scmp.eq.s32.totalorder %s23, 0
      %s26 = sadd.s32 %s25, 1
      %s27 = scalar_select %p24, %s25, %s26
      %p30 = pneg %p24
      %p31 = scmp.eq.s32.totalorder %s15, 7
      %p32 = por %p30, %p31
      %p33 = scmp.ne.s32.totalorder %s25, %s28
      %p34 = scmp.eq.s32.totalorder %s15, 0
      %p35 = por %p33, %p34
      %p36 = scmp.ne.s32.totalorder %s25, %s28
      %p37 = scmp.eq.s32.totalorder %s20, 7
      %p38 = por %p36, %p37
      %p39 = scmp.ne.s32.totalorder %s28, %s29
      %p40 = scmp.eq.s32.totalorder %s20, 0
      %p41 = por %p39, %p40
      %p42 = scmp.ne.s32.totalorder %s28, %s29
      %p43 = scmp.eq.s32.totalorder %s21, 7
      %p44 = por %p42, %p43
      %p46 = scmp.ne.s32.totalorder %s29, %s45
      %p47 = scmp.eq.s32.totalorder %s21, 0
      %p48 = por %p46, %p47
      %s49 = ssub.s32 %s15, %s22
      %p50 = scmp.eq.s32.totalorder %s49, 0
      %s52 = sadd.s32 %s51, 1
      %s53 = scalar_select %p50, %s51, %s52
      %p56 = pneg %p50
      %p57 = scmp.eq.s32.totalorder %s15, 7
      %p58 = por %p56, %p57
      %p59 = scmp.ne.s32.totalorder %s51, %s54
      %p60 = scmp.eq.s32.totalorder %s15, 0
      %p61 = por %p59, %p60
      %p62 = scmp.ne.s32.totalorder %s51, %s54
      %p63 = scmp.eq.s32.totalorder %s20, 7
      %p64 = por %p62, %p63
      %p65 = scmp.ne.s32.totalorder %s54, %s55
      %p66 = scmp.eq.s32.totalorder %s20, 0
      %p67 = por %p65, %p66
      %p68 = scmp.ne.s32.totalorder %s54, %s55
      %p69 = scmp.eq.s32.totalorder %s21, 7
      %p70 = por %p68, %p69
      %p72 = scmp.ne.s32.totalorder %s55, %s71
      %p73 = scmp.eq.s32.totalorder %s21, 0
      %p74 = por %p72, %p73
      %s75 = ssub.s32 %s15, %s22
      %p76 = scmp.eq.s32.totalorder %s75, 0
      %s78 = sadd.s32 %s77, 1
      %s79 = scalar_select %p76, %s77, %s78
      %p82 = pneg %p76
      %p83 = scmp.eq.s32.totalorder %s15, 7
      %p84 = por %p82, %p83
      %p85 = scmp.ne.s32.totalorder %s77, %s80
      %p86 = scmp.eq.s32.totalorder %s15, 0
      %p87 = por %p85, %p86
      %p88 = scmp.ne.s32.totalorder %s77, %s80
      %p89 = scmp.eq.s32.totalorder %s20, 7
      %p90 = por %p88, %p89
      %p91 = scmp.ne.s32.totalorder %s80, %s81
      %p92 = scmp.eq.s32.totalorder %s20, 0
      %p93 = por %p91, %p92
      %p94 = scmp.ne.s32.totalorder %s80, %s81
      %p95 = scmp.eq.s32.totalorder %s21, 7
      %p96 = por %p94, %p95
      %p98 = scmp.ne.s32.totalorder %s81, %s97
      %p99 = scmp.eq.s32.totalorder %s21, 0
      %p100 = por %p98, %p99
      %s101 = ssub.s32 %s15, %s22
      %p102 = scmp.eq.s32.totalorder %s101, 0
      %s104 = sadd.s32 %s103, 1
      %s105 = scalar_select %p102, %s103, %s104
      %p108 = pneg %p102
      %p109 = scmp.eq.s32.totalorder %s15, 7
      %p110 = por %p108, %p109
      %p111 = scmp.ne.s32.totalorder %s103, %s106
      %p112 = scmp.eq.s32.totalorder %s15, 0
      %p113 = por %p111, %p112
      %p114 = scmp.ne.s32.totalorder %s103, %s106
      %p115 = scmp.eq.s32.totalorder %s20, 7
      %p116 = por %p114, %p115
      %p117 = scmp.ne.s32.totalorder %s106, %s107
      %p118 = scmp.eq.s32.totalorder %s20, 0
      %p119 = por %p117, %p118
      %p120 = scmp.ne.s32.totalorder %s106, %s107
      %p121 = scmp.eq.s32.totalorder %s21, 7
      %p122 = por %p120, %p121
      %p124 = scmp.ne.s32.totalorder %s107, %s123
      %p125 = scmp.eq.s32.totalorder %s21, 0
      %p126 = por %p124, %p125
      %p127 = scmp.le.s32.totalorder 1, %s15
      %p128 = scmp.lt.s32.totalorder %s15, 9
      %p129 = pnand %p127, %p128
      %p130 = pneg %p129
      // Predicated region
      $region9: #{_generator_forward.10} parent=5 // pred_check
        _
      $region10: #{_generator_forward.10} parent=5 // pred_check_branch
        %132 = sbr.rel (%p129) target = $region12
      $region11: #{_generator_forward.10} parent=5 // pred_region
        %s133 = ssub.s32 %s15, 1
      $region12: #{_generator_forward.10} parent=5 // pred_fallthru
        _
      %p134 = scmp.lt.s32.totalorder %s15, 8
      // Predicated region
      $region13: #{_generator_forward.10} parent=5 // pred_check
        %p135 = pneg %p134
      $region14: #{_generator_forward.10} parent=5 // pred_check_branch
        %137 = sbr.rel (%p135) target = $region16
      $region15: #{_generator_forward.10} parent=5 // pred_region
        // Predicated region
        $region17: #{_generator_forward.10} parent=15 // pred_check
          %p138 = pneg %p35
        $region18: #{_generator_forward.10} parent=15 // pred_check_branch
          %140 = sbr.rel (%p138) target = $region20
        $region19: #{_generator_forward.10} parent=15 // pred_region
          %p141 = scmp.lt.s32.totalorder %s15, 7
          %s142 = scalar_select %p141, %s15, 7
          %s143 = smul.addr %s142, 2
          %s144 = scalar_lea.vmem %s0, %s143
        $region20: #{_generator_forward.10} parent=15 // pred_fallthru
          _
        // Predicated region
        $region21: #{_generator_forward.10} parent=15 // pred_check
          %p145 = pneg %p61
        $region22: #{_generator_forward.10} parent=15 // pred_check_branch
          %147 = sbr.rel (%p145) target = $region24
        $region23: #{_generator_forward.10} parent=15 // pred_region
          %s148 = sand.u32 %s51, 1
          %s149 = scalar_lea.sflag [#allocation3], %s148
          %s150 = sand.u32 %s51, 1
          %s151 = scalar_lea.vmem [#allocation2], %s150
          %s153 = ssub.s32 16, 16
          %154 = vsyncadd %s149, %s153
          %s155 = smul.addr %s15, 16
          %s156 = scalar_lea.hbm %s1, %s155
          %s158 = sshll.u32 %s151, 4
          %s159 = int_to_ptr.vmem [resolvable:$true] %s158
          %161 = dma.hbm_to_vmem [thread:$0]  %s156, 16, %s159, %s149
        $region24: #{_generator_forward.10} parent=15 // pred_fallthru
          _
        // Predicated region
        $region25: #{_generator_forward.10} parent=15 // pred_check
          %p162 = pneg %p87
        $region26: #{_generator_forward.10} parent=15 // pred_check_branch
          %164 = sbr.rel (%p162) target = $region28
        $region27: #{_generator_forward.10} parent=15 // pred_region
          %s165 = sand.u32 %s77, 1
          %s166 = scalar_lea.sflag [#allocation5], %s165
          %s167 = sand.u32 %s77, 1
          %s168 = scalar_lea.vmem [#allocation4], %s167
          %s170 = ssub.s32 16, 16
          %171 = vsyncadd %s166, %s170
          %s172 = smul.addr %s15, 16
          %s173 = scalar_lea.hbm %s2, %s172
          %s175 = sshll.u32 %s168, 4
          %s176 = int_to_ptr.vmem [resolvable:$true] %s175
          %178 = dma.hbm_to_vmem [thread:$0]  %s173, 16, %s176, %s166
        $region28: #{_generator_forward.10} parent=15 // pred_fallthru
          _
      $region16: #{_generator_forward.10} parent=5 // pred_fallthru
        _
      %p179 = scmp.le.s32.totalorder 1, %s15
      %p180 = scmp.lt.s32.totalorder %s15, 9
      %p181 = pnand %p179, %p180
      %p182 = pneg %p181
      // Predicated region
      $region29: #{_generator_forward.10} parent=5 // pred_check
        _
      $region30: #{_generator_forward.10} parent=5 // pred_check_branch
        %184 = sbr.rel (%p181) target = $region32
      $region31: #{_generator_forward.10} parent=5 // pred_region
        %s185 = ssub.s32 %s15, 1
        %s186 = sand.u32 %s54, 1
        %s187 = scalar_lea.sflag [#allocation3], %s186
        %s188 = sand.u32 %s54, 1
        %s189 = scalar_lea.vmem [#allocation2], %s188
        // Predicated region
        $region33: #{_generator_forward.10} parent=31 // pred_check
          %p190 = pneg %p67
        $region34: #{_generator_forward.10} parent=31 // pred_check_branch
          %192 = sbr.rel (%p190) target = $region36
        $region35: #{_generator_forward.10} parent=31 // pred_region
          %193 = dma.done %s187, 16
        $region36: #{_generator_forward.10} parent=31 // pred_fallthru
          _
        %s194 = sand.u32 %s80, 1
        %s195 = scalar_lea.sflag [#allocation5], %s194
        %s196 = sand.u32 %s80, 1
        %s197 = scalar_lea.vmem [#allocation4], %s196
        // Predicated region
        $region37: #{_generator_forward.10} parent=31 // pred_check
          %p198 = pneg %p93
        $region38: #{_generator_forward.10} parent=31 // pred_check_branch
          %200 = sbr.rel (%p198) target = $region40
        $region39: #{_generator_forward.10} parent=31 // pred_region
          %201 = dma.done %s195, 16
        $region40: #{_generator_forward.10} parent=31 // pred_fallthru
          _
        %p202 = scmp.lt.s32.totalorder %s20, 7
        %s203 = scalar_select %p202, %s20, 7
        %s204 = smul.addr %s203, 2
        %s205 = scalar_lea.vmem %s0, %s204
        %p206 = pneg %p41
        %p207 = pneg %p38
        %s208 = sand.u32 %s54, 1
        %s209 = scalar_lea.sflag [#allocation3], %s208
        %s210 = sand.u32 %s54, 1
        %s211 = scalar_lea.vmem [#allocation2], %s210
        %p212 = pneg %p67
        %p213 = pneg %p64
        %s214 = sand.u32 %s80, 1
        %s215 = scalar_lea.sflag [#allocation5], %s214
        %s216 = sand.u32 %s80, 1
        %s217 = scalar_lea.vmem [#allocation4], %s216
        %p218 = pneg %p93
        %p219 = pneg %p90
        %p220 = pneg %p119
        %p221 = pneg %p116
        %p222 = scmp.lt.s32.totalorder %s20, 7
        %s223 = scalar_select %p222, %s20, 7
        %s224 = smul.addr %s223, 2
        %s225 = scalar_lea.vmem %s3, %s224
        %p226 = scmp.lt.s32.totalorder %s20, 7
        %s227 = scalar_select %p226, %s20, 7
        %s228 = smul.addr %s227, 2
        %s229 = scalar_lea.vmem %s0, %s228
        %p230 = scmp.lt.s32.totalorder %s20, 7
        %s231 = scalar_select %p230, %s20, 7
        %s232 = smul.addr %s231, 2
        %s233 = scalar_lea.vmem %s3, %s232
        %v234 = vld [vmem:[%s229] sm:$0x3]
        %vm235 = vcmask 1041408
        %v236 = vsel %vm235, %v234, 0.0
        %v237 = vrot.slane %v236, 4
        %v238 = vadd.f32 %v236, %v237
        %v239 = vrot.slane %v238, 2
        %v240 = vadd.f32 %v238, %v239
        %v241 = vrot.slane %v240, 1
        %v242 = vadd.f32 %v240, %v241
        %v243 = vrcp.pop 2.0
        %v244 = vmul.f32 %v242, %v243
        %v245 = vsub.f32 %v234, %v244
        %v246 = vmul.f32 %v245, %v245
        %v247 = vsel %vm235, %v246, 0.0
        %v248 = vrot.slane %v247, 4
        %v249 = vadd.f32 %v247, %v248
        %v250 = vrot.slane %v249, 2
        %v251 = vadd.f32 %v249, %v250
        %v252 = vrot.slane %v251, 1
        %v253 = vadd.f32 %v251, %v252
        %v254 = vmul.f32 %v253, %v243
        %v255 = vadd.f32 %v254, 1e-05
        %v256 = vrsqrt.pop %v255
        %v257 = vmul.f32 %v245, %v256
        %v258 = vld [vmem:[%s189] sm:$0x1]
        %v260 = vlaneseq
        %v261 = vshrl.u32 %v260, 7
        %v262 = vsub.s32 0, %v261
        %v263 = vrot.slane %v258, %v262
        %v265 = vmul.f32 %v257, %v263
        %v266 = vld [vmem:[%s197] sm:$0x1]
        %v268 = vlaneseq
        %v269 = vshrl.u32 %v268, 7
        %v270 = vsub.s32 0, %v269
        %v271 = vrot.slane %v266, %v270
        %v273 = vadd.f32 %v265, %v271
        %v274 = vmax.f32 %v273, 0.0
        %275 = vst [vmem:[%s233] sm:$0x3] %v274
        %p276 = scmp.lt.s32.totalorder %s20, 7
        %s277 = scalar_select %p276, %s20, 7
        %s278 = smul.addr %s277, 2
        %s279 = scalar_lea.vmem %s3, %s278
        // Predicated region
        $region41: #{_generator_forward.10} parent=31 // pred_check
          %p280 = pneg %p116
        $region42: #{_generator_forward.10} parent=31 // pred_check_branch
          %282 = sbr.rel (%p280) target = $region44
        $region43: #{_generator_forward.10} parent=31 // pred_region
          _
        $region44: #{_generator_forward.10} parent=31 // pred_fallthru
          _
      $region32: #{_generator_forward.10} parent=5 // pred_fallthru
        _
      %p283 = scmp.le.s32.totalorder 2, %s15
      // Predicated region
      $region45: #{_generator_forward.10} parent=5 // pred_check
        %p284 = pneg %p283
      $region46: #{_generator_forward.10} parent=5 // pred_check_branch
        %286 = sbr.rel (%p284) target = $region48
      $region47: #{_generator_forward.10} parent=5 // pred_region
        %s287 = ssub.s32 %s15, 2
        // Predicated region
        $region49: #{_generator_forward.10} parent=47 // pred_check
          %p288 = pneg %p122
        $region50: #{_generator_forward.10} parent=47 // pred_check_branch
          %290 = sbr.rel (%p288) target = $region52
        $region51: #{_generator_forward.10} parent=47 // pred_region
          %p291 = scmp.lt.s32.totalorder %s21, 7
          %s292 = scalar_select %p291, %s21, 7
          %s293 = smul.addr %s292, 2
          %s294 = scalar_lea.vmem %s3, %s293
        $region52: #{_generator_forward.10} parent=47 // pred_fallthru
          _
      $region48: #{_generator_forward.10} parent=5 // pred_fallthru
        _
    $region6: #{_generator_forward.10} parent=1 // loop_footer
      %s19 = sadd.s32 1, %s15
    $region7: #{_generator_forward.10} parent=1 // loop_footer_branch
      %14 = sbr.rel target = $region3
    $region8: #{_generator_forward.10} parent=1 // loop_exit
      _
    %295 = vsyncpa [#allocation3], 1
    %s296 = scalar_lea.sflag [#allocation3], 1
    %297 = vsyncpa %s296, 1
    %298 = vsyncpa [#allocation5], 1
    %s299 = scalar_lea.sflag [#allocation5], 1
    %300 = vsyncpa %s299, 1

// kernel: _generator_forward.9
$region0: #{_generator_forward.9}
  #allocation0 [shape = 'u32[]', space=smem, size = 0x4, offset = 0x4, fixed_abs, tag = 'smem constant byte address 0x4 - core index']
  #allocation1 [shape = 'u32[144,128]{1,0:T(1,128)}', space=vmem, size = 0x12000, scoped, tag = 'internal scratch']
  #allocation2 [shape = 'f32[8,256]{1,0:T(8,128)}', space=vmem, size = 0x2000, scoped, tag = 'scratch operand']
  %s0 = inlined_call_operand.vmem [shape: bf16[8,128], index: 0, kind: input, shape index: {}]
  %s1 = inlined_call_operand.vmem [shape: bf16[128,1024], index: 1, kind: input, shape index: {}]
  %s2 = inlined_call_operand.vmem [shape: f32[8,1024], index: 2, kind: output, shape index: {}]
  %s3 = sld [smem:[#allocation0]]
  $region87: #{_generator_forward.9} parent=0
    _
  %s5 = ssub.s32 1, %s3
  %s6 = scalar_select 0, %s5, %s3
  $region1: #{_generator_forward.9} parent=0
    #allocation3 [shape = 'u8[131072]{0}', space=vmem, size = 0x20000, scoped, tag = 'input window, operand 1']
    loop: start=0, step=1, limit=6
    $region2: #{_generator_forward.9} parent=1 // loop_pre_header
      _
    $region3: #{_generator_forward.9} parent=1 // loop_header
      %s8 = sphi 0, %s12
      %p9 = scmp.ge.s32.totalorder %s8, 6
      %s15 = sphi 0, %s34
      %s16 = sphi 0, %s30
      %s17 = sphi 0, %s26
      %s18 = sphi 0, %s15
      %s19 = sphi 0, %s16
      %s20 = sphi 0, %s17
      %s21 = sphi 0, %s18
      %s22 = sphi 0, %s19
      %s23 = sphi 0, %s20
      %s39 = sphi 0, %s41
      %s42 = sphi 0, %s39
      %s43 = sphi 0, %s42
      %s59 = sphi 0, %s43
      %s67 = sphi 0, %s69
      %s70 = sphi 0, %s67
      %s71 = sphi 0, %s70
      %s87 = sphi 0, %s71
      %s95 = sphi 0, %s97
      %s98 = sphi 0, %s95
      %s99 = sphi 0, %s98
      %s115 = sphi 0, %s99
    $region4: #{_generator_forward.9} parent=1 // loop_header_branch
      %11 = sbr.rel (%p9) target = $region8
    $region5: #{_generator_forward.9} parent=1 // loop_body
      %s13 = ssub.s32 %s8, 1
      %s14 = ssub.s32 %s8, 2
      %s24 = sadd.s32 1, %s17
      %p25 = scmp.ge.s32.totalorder %s24, 1
      %s26 = scalar_select %p25, 0, %s24
      %s27 = sadd.s32 1, %s16
      %s28 = scalar_select %p25, %s27, %s16
      %p29 = scmp.ge.s32.totalorder %s28, 4
      %s30 = scalar_select %p29, 0, %s28
      %s31 = sadd.s32 1, %s15
      %s32 = scalar_select %p29, %s31, %s15
      %p33 = scmp.ge.s32.totalorder %s32, 1
      %s34 = scalar_select %p33, 0, %s32
      %s35 = ssub.s32 %s15, %s34
      %s36 = ssub.s32 %s17, %s26
      %s37 = sor.u32 %s35, %s36
      %p38 = scmp.eq.s32.totalorder %s37, 0
      %s40 = sadd.s32 %s39, 1
      %s41 = scalar_select %p38, %s39, %s40
      %p44 = pneg %p38
      %p45 = scmp.eq.s32.totalorder %s8, 3
      %p46 = por %p44, %p45
      %p47 = scmp.ne.s32.totalorder %s39, %s42
      %p48 = scmp.eq.s32.totalorder %s8, 0
      %p49 = por %p47, %p48
      %p50 = scmp.ne.s32.totalorder %s39, %s42
      %p51 = scmp.eq.s32.totalorder %s13, 3
      %p52 = por %p50, %p51
      %p53 = scmp.ne.s32.totalorder %s42, %s43
      %p54 = scmp.eq.s32.totalorder %s13, 0
      %p55 = por %p53, %p54
      %p56 = scmp.ne.s32.totalorder %s42, %s43
      %p57 = scmp.eq.s32.totalorder %s14, 3
      %p58 = por %p56, %p57
      %p60 = scmp.ne.s32.totalorder %s43, %s59
      %p61 = scmp.eq.s32.totalorder %s14, 0
      %p62 = por %p60, %p61
      %s63 = ssub.s32 %s17, %s26
      %s64 = ssub.s32 %s16, %s30
      %s65 = sor.u32 %s63, %s64
      %p66 = scmp.eq.s32.totalorder %s65, 0
      %s68 = sadd.s32 %s67, 1
      %s69 = scalar_select %p66, %s67, %s68
      %p72 = pneg %p66
      %p73 = scmp.eq.s32.totalorder %s8, 3
      %p74 = por %p72, %p73
      %p75 = scmp.ne.s32.totalorder %s67, %s70
      %p76 = scmp.eq.s32.totalorder %s8, 0
      %p77 = por %p75, %p76
      %p78 = scmp.ne.s32.totalorder %s67, %s70
      %p79 = scmp.eq.s32.totalorder %s13, 3
      %p80 = por %p78, %p79
      %p81 = scmp.ne.s32.totalorder %s70, %s71
      %p82 = scmp.eq.s32.totalorder %s13, 0
      %p83 = por %p81, %p82
      %p84 = scmp.ne.s32.totalorder %s70, %s71
      %p85 = scmp.eq.s32.totalorder %s14, 3
      %p86 = por %p84, %p85
      %p88 = scmp.ne.s32.totalorder %s71, %s87
      %p89 = scmp.eq.s32.totalorder %s14, 0
      %p90 = por %p88, %p89
      %s91 = ssub.s32 %s15, %s34
      %s92 = ssub.s32 %s16, %s30
      %s93 = sor.u32 %s91, %s92
      %p94 = scmp.eq.s32.totalorder %s93, 0
      %s96 = sadd.s32 %s95, 1
      %s97 = scalar_select %p94, %s95, %s96
      %p100 = pneg %p94
      %p101 = scmp.eq.s32.totalorder %s8, 3
      %p102 = por %p100, %p101
      %p103 = scmp.ne.s32.totalorder %s95, %s98
      %p104 = scmp.eq.s32.totalorder %s8, 0
      %p105 = por %p103, %p104
      %p106 = scmp.ne.s32.totalorder %s95, %s98
      %p107 = scmp.eq.s32.totalorder %s13, 3
      %p108 = por %p106, %p107
      %p109 = scmp.ne.s32.totalorder %s98, %s99
      %p110 = scmp.eq.s32.totalorder %s13, 0
      %p111 = por %p109, %p110
      %p112 = scmp.ne.s32.totalorder %s98, %s99
      %p113 = scmp.eq.s32.totalorder %s14, 3
      %p114 = por %p112, %p113
      %p116 = scmp.ne.s32.totalorder %s99, %s115
      %p117 = scmp.eq.s32.totalorder %s14, 0
      %p118 = por %p116, %p117
      %p119 = scmp.le.s32.totalorder 1, %s8
      %p120 = scmp.lt.s32.totalorder %s8, 5
      %p121 = pnand %p119, %p120
      %p122 = pneg %p121
      // Predicated region
      $region9: #{_generator_forward.9} parent=5 // pred_check
        _
      $region10: #{_generator_forward.9} parent=5 // pred_check_branch
        %124 = sbr.rel (%p121) target = $region12
      $region11: #{_generator_forward.9} parent=5 // pred_region
        %s125 = ssub.s32 %s8, 1
        // Predicated region
        $region13: #{_generator_forward.9} parent=11 // pred_check
          %p126 = pneg %p55
        $region14: #{_generator_forward.9} parent=11 // pred_check_branch
          %128 = sbr.rel (%p126) target = $region16
        $region15: #{_generator_forward.9} parent=11 // pred_region
          %p129 = scmp.lt.s32.totalorder %s18, 0
          %s130 = scalar_select %p129, %s18, 0
          %p131 = scmp.lt.s32.totalorder %s20, 0
          %s132 = scalar_select %p131, %s20, 0
          %s133 = sadd.s32 %s132, %s130
          %s134 = smul.addr %s133, 4
          %s135 = scalar_lea.vmem %s0, %s134
        $region16: #{_generator_forward.9} parent=11 // pred_fallthru
          _
      $region12: #{_generator_forward.9} parent=5 // pred_fallthru
        _
      %p136 = scmp.lt.s32.totalorder %s8, 4
      // Predicated region
      $region17: #{_generator_forward.9} parent=5 // pred_check
        %p137 = pneg %p136
      $region18: #{_generator_forward.9} parent=5 // pred_check_branch
        %139 = sbr.rel (%p137) target = $region20
      $region19: #{_generator_forward.9} parent=5 // pred_region
        // Predicated region
        $region21: #{_generator_forward.9} parent=19 // pred_check
          %p140 = pneg %p77
        $region22: #{_generator_forward.9} parent=19 // pred_check_branch
          %142 = sbr.rel (%p140) target = $region24
        $region23: #{_generator_forward.9} parent=19 // pred_region
          %s143 = sand.u32 %s67, 1
          %s144 = sand.u32 %s67, 1
          %s145 = smul.addr %s144, 128
          %s146 = scalar_lea.vmem [#allocation3], %s145
          %s147 = smul.u32 16, %s17
          %s148 = smul.u32 2, %s16
          %s149 = smul.addr %s147, 8
          %s150 = sadd.s32 %s148, %s149
          %s151 = smul.addr %s150, 4
          %s152 = scalar_lea.vmem %s1, %s151
          // Predicated region
          $region25: #{_generator_forward.9} parent=23 // pred_check
            _
          $region26: #{_generator_forward.9} parent=23 // pred_check_branch
            %154 = sbr.rel (0) target = $region28
          $region27: #{_generator_forward.9} parent=23 // pred_region
            // Predicated region
            $region29: #{_generator_forward.9} parent=27 // pred_check
              _
            $region30: #{_generator_forward.9} parent=27 // pred_check_branch
              %156 = sbr.rel (0) target = $region32
            $region31: #{_generator_forward.9} parent=27 // pred_region
              // Predicated region
              $region44: #{_generator_forward.9} parent=31 // pred_check
                _
              $region45: #{_generator_forward.9} parent=31 // pred_check_branch
                %201 = sbr.rel (0) target = $region47
              $region46: #{_generator_forward.9} parent=31 // pred_region
                loop: start=0, step=1, limit=1
                $region48: #{_generator_forward.9} parent=46 // loop_pre_header
                  _
                $region49: #{_generator_forward.9} parent=46 // loop_header
                  %s203 = sphi 0, %s207
                  %p204 = scmp.ge.s32.totalorder %s203, 1
                  %s208 = sphi %s152, %s152
                  %s209 = sphi %s146, %s146
                $region50: #{_generator_forward.9} parent=46 // loop_header_branch
                  %206 = sbr.rel (%p204) target = $region54
                $region51: #{_generator_forward.9} parent=46 // loop_body
                  %v210 = vld [vmem:[%s208] sm:$0xff]
                  %211 = vst [vmem:[%s209] sm:$0xff] %v210
                  %v212 = vld [vmem:[%s208 + $0x20] sm:$0xff]
                  %213 = vst [vmem:[%s209 + $0x8] sm:$0xff] %v212
                  %v214 = vld [vmem:[%s208 + $0x40] sm:$0xff]
                  %215 = vst [vmem:[%s209 + $0x10] sm:$0xff] %v214
                  %v216 = vld [vmem:[%s208 + $0x60] sm:$0xff]
                  %217 = vst [vmem:[%s209 + $0x18] sm:$0xff] %v216
                  %v218 = vld [vmem:[%s208 + $0x80] sm:$0xff]
                  %219 = vst [vmem:[%s209 + $0x20] sm:$0xff] %v218
                  %v220 = vld [vmem:[%s208 + $0xa0] sm:$0xff]
                  %221 = vst [vmem:[%s209 + $0x28] sm:$0xff] %v220
                  %v222 = vld [vmem:[%s208 + $0xc0] sm:$0xff]
                  %223 = vst [vmem:[%s209 + $0x30] sm:$0xff] %v222
                  %v224 = vld [vmem:[%s208 + $0xe0] sm:$0xff]
                  %225 = vst [vmem:[%s209 + $0x38] sm:$0xff] %v224
                  %v226 = vld [vmem:[%s208 + $0x100] sm:$0xff]
                  %227 = vst [vmem:[%s209 + $0x40] sm:$0xff] %v226
                  %v228 = vld [vmem:[%s208 + $0x120] sm:$0xff]
                  %229 = vst [vmem:[%s209 + $0x48] sm:$0xff] %v228
                  %v230 = vld [vmem:[%s208 + $0x140] sm:$0xff]
                  %231 = vst [vmem:[%s209 + $0x50] sm:$0xff] %v230
                  %v232 = vld [vmem:[%s208 + $0x160] sm:$0xff]
                  %233 = vst [vmem:[%s209 + $0x58] sm:$0xff] %v232
                  %v234 = vld [vmem:[%s208 + $0x180] sm:$0xff]
                  %235 = vst [vmem:[%s209 + $0x60] sm:$0xff] %v234
                  %v236 = vld [vmem:[%s208 + $0x1a0] sm:$0xff]
                  %237 = vst [vmem:[%s209 + $0x68] sm:$0xff] %v236
                  %v238 = vld [vmem:[%s208 + $0x1c0] sm:$0xff]
                  %239 = vst [vmem:[%s209 + $0x70] sm:$0xff] %v238
                  %v240 = vld [vmem:[%s208 + $0x1e0] sm:$0xff]
                  %241 = vst [vmem:[%s209 + $0x78] sm:$0xff] %v240
                $region52: #{_generator_forward.9} parent=46 // loop_footer
                  %s207 = sadd.s32 1, %s203
                $region53: #{_generator_forward.9} parent=46 // loop_footer_branch
                  %202 = sbr.rel target = $region49
                $region54: #{_generator_forward.9} parent=46 // loop_exit
                  _
              $region47: #{_generator_forward.9} parent=31 // pred_fallthru
                _
              // Predicated region
              $region55: #{_generator_forward.9} parent=31 // pred_check
                _
              $region56: #{_generator_forward.9} parent=31 // pred_check_branch
                %243 = sbr.rel target = $region58
              $region57: #{_generator_forward.9} parent=31 // pred_region
                _
              $region58: #{_generator_forward.9} parent=31 // pred_fallthru
                _
            $region32: #{_generator_forward.9} parent=27 // pred_fallthru
              _
            // Predicated region
            $region33: #{_generator_forward.9} parent=27 // pred_check
              _
            $region34: #{_generator_forward.9} parent=27 // pred_check_branch
              %158 = sbr.rel target = $region36
            $region35: #{_generator_forward.9} parent=27 // pred_region
              loop: start=0, step=1, limit=1
              $region37: #{_generator_forward.9} parent=35 // loop_pre_header
                _
              $region38: #{_generator_forward.9} parent=35 // loop_header
                %s161 = sphi 0, %s165
                %p162 = scmp.ge.s32.totalorder %s161, 1
                %s166 = sphi %s152, %s152
                %s167 = sphi %s146, %s146
              $region39: #{_generator_forward.9} parent=35 // loop_header_branch
                %164 = sbr.rel (%p162) target = $region43
              $region40: #{_generator_forward.9} parent=35 // loop_body
                %v168 = vld [vmem:[%s166] sm:$0xff]
                %169 = vst [vmem:[%s167] sm:$0xff] %v168
                %v170 = vld [vmem:[%s166 + $0x20] sm:$0xff]
                %171 = vst [vmem:[%s167 + $0x8] sm:$0xff] %v170
                %v172 = vld [vmem:[%s166 + $0x40] sm:$0xff]
                %173 = vst [vmem:[%s167 + $0x10] sm:$0xff] %v172
                %v174 = vld [vmem:[%s166 + $0x60] sm:$0xff]
                %175 = vst [vmem:[%s167 + $0x18] sm:$0xff] %v174
                %v176 = vld [vmem:[%s166 + $0x80] sm:$0xff]
                %177 = vst [vmem:[%s167 + $0x20] sm:$0xff] %v176
                %v178 = vld [vmem:[%s166 + $0xa0] sm:$0xff]
                %179 = vst [vmem:[%s167 + $0x28] sm:$0xff] %v178
                %v180 = vld [vmem:[%s166 + $0xc0] sm:$0xff]
                %181 = vst [vmem:[%s167 + $0x30] sm:$0xff] %v180
                %v182 = vld [vmem:[%s166 + $0xe0] sm:$0xff]
                %183 = vst [vmem:[%s167 + $0x38] sm:$0xff] %v182
                %v184 = vld [vmem:[%s166 + $0x100] sm:$0xff]
                %185 = vst [vmem:[%s167 + $0x40] sm:$0xff] %v184
                %v186 = vld [vmem:[%s166 + $0x120] sm:$0xff]
                %187 = vst [vmem:[%s167 + $0x48] sm:$0xff] %v186
                %v188 = vld [vmem:[%s166 + $0x140] sm:$0xff]
                %189 = vst [vmem:[%s167 + $0x50] sm:$0xff] %v188
                %v190 = vld [vmem:[%s166 + $0x160] sm:$0xff]
                %191 = vst [vmem:[%s167 + $0x58] sm:$0xff] %v190
                %v192 = vld [vmem:[%s166 + $0x180] sm:$0xff]
                %193 = vst [vmem:[%s167 + $0x60] sm:$0xff] %v192
                %v194 = vld [vmem:[%s166 + $0x1a0] sm:$0xff]
                %195 = vst [vmem:[%s167 + $0x68] sm:$0xff] %v194
                %v196 = vld [vmem:[%s166 + $0x1c0] sm:$0xff]
                %197 = vst [vmem:[%s167 + $0x70] sm:$0xff] %v196
                %v198 = vld [vmem:[%s166 + $0x1e0] sm:$0xff]
                %199 = vst [vmem:[%s167 + $0x78] sm:$0xff] %v198
              $region41: #{_generator_forward.9} parent=35 // loop_footer
                %s165 = sadd.s32 1, %s161
              $region42: #{_generator_forward.9} parent=35 // loop_footer_branch
                %160 = sbr.rel target = $region38
              $region43: #{_generator_forward.9} parent=35 // loop_exit
                _
            $region36: #{_generator_forward.9} parent=27 // pred_fallthru
              _
          $region28: #{_generator_forward.9} parent=23 // pred_fallthru
            _
          %244 = vnop
        $region24: #{_generator_forward.9} parent=19 // pred_fallthru
          _
      $region20: #{_generator_forward.9} parent=5 // pred_fallthru
        _
      %p245 = scmp.le.s32.totalorder 1, %s8
      %p246 = scmp.lt.s32.totalorder %s8, 5
      %p247 = pnand %p245, %p246
      %p248 = pneg %p247
      // Predicated region
      $region59: #{_generator_forward.9} parent=5 // pred_check
        _
      $region60: #{_generator_forward.9} parent=5 // pred_check_branch
        %250 = sbr.rel (%p247) target = $region62
      $region61: #{_generator_forward.9} parent=5 // pred_region
        %s251 = ssub.s32 %s8, 1
        %s252 = sand.u32 %s70, 1
        %s253 = sand.u32 %s70, 1
        %s254 = smul.addr %s253, 128
        %s255 = scalar_lea.vmem [#allocation3], %s254
        // Predicated region
        $region63: #{_generator_forward.9} parent=61 // pred_check
          %p256 = pneg %p83
        $region64: #{_generator_forward.9} parent=61 // pred_check_branch
          %258 = sbr.rel (%p256) target = $region66
        $region65: #{_generator_forward.9} parent=61 // pred_region
          _
        $region66: #{_generator_forward.9} parent=61 // pred_fallthru
          _
        %p259 = scmp.lt.s32.totalorder %s18, 0
        %s260 = scalar_select %p259, %s18, 0
        %p261 = scmp.lt.s32.totalorder %s20, 0
        %s262 = scalar_select %p261, %s20, 0
        %s263 = sadd.s32 %s262, %s260
        %s264 = smul.addr %s263, 4
        %s265 = scalar_lea.vmem %s0, %s264
        %p266 = pneg %p55
        %p267 = pneg %p52
        %s268 = sand.u32 %s70, 1
        %s269 = sand.u32 %s70, 1
        %s270 = smul.addr %s269, 128
        %s271 = scalar_lea.vmem [#allocation3], %s270
        %p272 = pneg %p83
        %p273 = pneg %p80
        %p274 = pneg %p111
        %p275 = pneg %p108
        %s276 = smul.u32 2, %s19
        %p277 = scmp.lt.s32.totalorder %s18, 0
        %s278 = scalar_select %p277, %s18, 0
        %p279 = scmp.lt.s32.totalorder %s276, 7
        %s280 = scalar_select %p279, %s276, 7
        %s281 = smul.addr %s278, 8
        %s282 = sadd.s32 %s280, %s281
        %s283 = smul.addr %s282, 8
        %s284 = scalar_lea.vmem %s2, %s283
        %p285 = scmp.lt.s32.totalorder %s18, 0
        %s286 = scalar_select %p285, %s18, 0
        %p287 = scmp.lt.s32.totalorder %s20, 0
        %s288 = scalar_select %p287, %s20, 0
        %s289 = sadd.s32 %s288, %s286
        %s290 = smul.addr %s289, 4
        %s291 = scalar_lea.vmem %s0, %s290
        %s292 = smul.u32 16, %s20
        %s293 = smul.u32 2, %s19
        %s294 = smul.u32 2, %s19
        %p295 = scmp.lt.s32.totalorder %s18, 0
        %s296 = scalar_select %p295, %s18, 0
        %p297 = scmp.lt.s32.totalorder %s294, 7
        %s298 = scalar_select %p297, %s294, 7
        %s299 = smul.addr %s296, 8
        %s300 = sadd.s32 %s298, %s299
        %s301 = smul.addr %s300, 8
        %s302 = scalar_lea.vmem %s2, %s301
        %s303 = smul.u32 2, %s19
        %p305 = scmp.eq.s32.totalorder %s20, 0
        // Predicated region
        $region67: #{_generator_forward.9} parent=61 // pred_check
          %p306 = pneg %p305
        $region68: #{_generator_forward.9} parent=61 // pred_check_branch
          %308 = sbr.rel (%p306) target = $region70
        $region69: #{_generator_forward.9} parent=61 // pred_region
          %309 = vst [vmem:[#allocation2] sm:$0xff] 0.0
          %310 = vst [vmem:[#allocation2 + $0x8] sm:$0xff] 0.0
        $region70: #{_generator_forward.9} parent=61 // pred_fallthru
          _
        %v311 = vld [vmem:[#allocation2] sm:$0xff]
        %v312 = vld [vmem:[#allocation2 + $0x8] sm:$0xff]
        %v313 = vld [vmem:[%s291] sm:$0xf]
        %v314 = vld [vmem:[%s255] sm:$0xff]
        %v315 = vld [vmem:[%s255 + $0x8] sm:$0xff]
        %v316 = vld [vmem:[%s255 + $0x10] sm:$0xff]
        %v317 = vld [vmem:[%s255 + $0x18] sm:$0xff]
        %v318 = vld [vmem:[%s255 + $0x20] sm:$0xff]
        %v319 = vld [vmem:[%s255 + $0x28] sm:$0xff]
        %v320 = vld [vmem:[%s255 + $0x30] sm:$0xff]
        %v321 = vld [vmem:[%s255 + $0x38] sm:$0xff]
        %v322 = vld [vmem:[%s255 + $0x40] sm:$0xff]
        %v323 = vld [vmem:[%s255 + $0x48] sm:$0xff]
        %v324 = vld [vmem:[%s255 + $0x50] sm:$0xff]
        %v325 = vld [vmem:[%s255 + $0x58] sm:$0xff]
        %v326 = vld [vmem:[%s255 + $0x60] sm:$0xff]
        %v327 = vld [vmem:[%s255 + $0x68] sm:$0xff]
        %v328 = vld [vmem:[%s255 + $0x70] sm:$0xff]
        %v329 = vld [vmem:[%s255 + $0x78] sm:$0xff]
        %v346 = vunpack.c.l.b16 %v314
        %v347 = vunpack.c.h.b16 %v314
        %v348 = vunpack.c.l.b16 %v315
        %v349 = vunpack.c.h.b16 %v315
        %v350 = vunpack.c.l.b16 %v316
        %v351 = vunpack.c.h.b16 %v316
        %v352 = vunpack.c.l.b16 %v317
        %v353 = vunpack.c.h.b16 %v317
        %v354 = vunpack.c.l.b16 %v318
        %v355 = vunpack.c.h.b16 %v318
        %v356 = vunpack.c.l.b16 %v319
        %v357 = vunpack.c.h.b16 %v319
        %v358 = vunpack.c.l.b16 %v320
        %v359 = vunpack.c.h.b16 %v320
        %v360 = vunpack.c.l.b16 %v321
        %v361 = vunpack.c.h.b16 %v321
        %v362 = vunpack.c.l.b16 %v322
        %v363 = vunpack.c.h.b16 %v322
        %v364 = vunpack.c.l.b16 %v323
        %v365 = vunpack.c.h.b16 %v323
        %v366 = vunpack.c.l.b16 %v324
        %v367 = vunpack.c.h.b16 %v324
        %v368 = vunpack.c.l.b16 %v325
        %v369 = vunpack.c.h.b16 %v325
        %v370 = vunpack.c.l.b16 %v326
        %v371 = vunpack.c.h.b16 %v326
        %v372 = vunpack.c.l.b16 %v327
        %v373 = vunpack.c.h.b16 %v327
        %v374 = vunpack.c.l.b16 %v328
        %v375 = vunpack.c.h.b16 %v328
        %v376 = vunpack.c.l.b16 %v329
        %v377 = vunpack.c.h.b16 %v329
        %v378 = vpack.c.b16 %v348, %v346
        %v379 = vpack.c.b16 %v349, %v347
        %v380 = vpack.c.b16 %v352, %v350
        %v381 = vpack.c.b16 %v353, %v351
        %v382 = vpack.c.b16 %v356, %v354
        %v383 = vpack.c.b16 %v357, %v355
        %v384 = vpack.c.b16 %v360, %v358
        %v385 = vpack.c.b16 %v361, %v359
        %v386 = vpack.c.b16 %v364, %v362
        %v387 = vpack.c.b16 %v365, %v363
        %v388 = vpack.c.b16 %v368, %v366
        %v389 = vpack.c.b16 %v369, %v367
        %v390 = vpack.c.b16 %v372, %v370
        %v391 = vpack.c.b16 %v373, %v371
        %v392 = vpack.c.b16 %v376, %v374
        %v393 = vpack.c.b16 %v377, %v375
        %410 = vmatprep.subr.bf16.mxu0 %v379
        %411 = vmatpush1.bf16.msra.mxu0 %v378
        %412 = vmatprep.subr.bf16.mxu0 %v381
        %413 = vmatpush1.bf16.msra.mxu0 %v380
        %414 = vmatprep.subr.bf16.mxu0 %v383
        %415 = vmatpush1.bf16.msra.mxu0 %v382
        %416 = vmatprep.subr.bf16.mxu0 %v385
        %417 = vmatpush1.bf16.msra.mxu0 %v384
        %418 = vmatprep.subr.bf16.mxu0 %v387
        %419 = vmatpush1.bf16.msra.mxu0 %v386
        %420 = vmatprep.subr.bf16.mxu0 %v389
        %421 = vmatpush1.bf16.msra.mxu0 %v388
        %422 = vmatprep.subr.bf16.mxu0 %v391
        %423 = vmatpush1.bf16.msra.mxu0 %v390
        %424 = vmatprep.subr.bf16.mxu0 %v393
        %425 = vmatpush1.bf16.msra.mxu0 %v392
        %426 = vmatprep.subr.bf16.mxu0 0
        %427 = vmatpush1.bf16.msra.mxu0 0
        %428 = vmatprep.subr.bf16.mxu0 0
        %429 = vmatpush1.bf16.msra.mxu0 0
        %430 = vmatprep.subr.bf16.mxu0 0
        %431 = vmatpush1.bf16.msra.mxu0 0
        %432 = vmatprep.subr.bf16.mxu0 0
        %433 = vmatpush1.bf16.msra.mxu0 0
        %434 = vmatprep.subr.bf16.mxu0 0
        %435 = vmatpush1.bf16.msra.mxu0 0
        %436 = vmatprep.subr.bf16.mxu0 0
        %437 = vmatpush1.bf16.msra.mxu0 0
        %438 = vmatprep.subr.bf16.mxu0 0
        %439 = vmatpush1.bf16.msra.mxu0 0
        %440 = vmatprep.subr.bf16.mxu0 0
        %441 = vmatpush1.bf16.msra.mxu0 0
        %442 = vmatprep.mubr.bf16.mxu0 0
        %443 = vmatmul.mubr.bf16.gmra.mrb[0].mxu0 %v313
        %v444 = vpop.f32.mrb[0].mxu0
        %v445 = vadd.f32 0.0, %v444
        %v446 = vpop.f32.mrb[0].mxu0
        %v447 = vadd.f32 0.0, %v446
        %v448 = vpop.f32.mrb[0].mxu0
        %v449 = vpop.f32.mrb[0].mxu0
        %450 = vdwg.mxu0
        %v451 = vadd.f32 %v311, %v445
        %v452 = vadd.f32 %v312, %v447
        %453 = vst [vmem:[#allocation2] sm:$0xff] %v451
        %454 = vst [vmem:[#allocation2 + $0x8] sm:$0xff] %v452
        // Predicated region
        $region71: #{_generator_forward.9} parent=61 // pred_check
          %p455 = pneg %p305
        $region72: #{_generator_forward.9} parent=61 // pred_check_branch
          %457 = sbr.rel (%p455) target = $region74
        $region73: #{_generator_forward.9} parent=61 // pred_region
          %v458 = vld [vmem:[#allocation2] sm:$0xff]
          %v459 = vld [vmem:[#allocation2 + $0x8] sm:$0xff]
          %460 = vst [vmem:[%s302] sm:$0xff] %v458
          %461 = vst [vmem:[%s302 + $0x8] sm:$0xff] %v459
        $region74: #{_generator_forward.9} parent=61 // pred_fallthru
          _
        %s462 = smul.u32 2, %s19
        %p463 = scmp.lt.s32.totalorder %s18, 0
        %s464 = scalar_select %p463, %s18, 0
        %p465 = scmp.lt.s32.totalorder %s462, 7
        %s466 = scalar_select %p465, %s462, 7
        %s467 = smul.addr %s464, 8
        %s468 = sadd.s32 %s466, %s467
        %s469 = smul.addr %s468, 8
        %s470 = scalar_lea.vmem %s2, %s469
        // Predicated region
        $region75: #{_generator_forward.9} parent=61 // pred_check
          %p471 = pneg %p108
        $region76: #{_generator_forward.9} parent=61 // pred_check_branch
          %473 = sbr.rel (%p471) target = $region78
        $region77: #{_generator_forward.9} parent=61 // pred_region
          %s474 = smul.u32 2, %s19
        $region78: #{_generator_forward.9} parent=61 // pred_fallthru
          _
      $region62: #{_generator_forward.9} parent=5 // pred_fallthru
        _
      %p475 = scmp.le.s32.totalorder 2, %s8
      // Predicated region
      $region79: #{_generator_forward.9} parent=5 // pred_check
        %p476 = pneg %p475
      $region80: #{_generator_forward.9} parent=5 // pred_check_branch
        %478 = sbr.rel (%p476) target = $region82
      $region81: #{_generator_forward.9} parent=5 // pred_region
        %s479 = ssub.s32 %s8, 2
        // Predicated region
        $region83: #{_generator_forward.9} parent=81 // pred_check
          %p480 = pneg %p114
        $region84: #{_generator_forward.9} parent=81 // pred_check_branch
          %482 = sbr.rel (%p480) target = $region86
        $region85: #{_generator_forward.9} parent=81 // pred_region
          %s483 = smul.u32 2, %s22
          %p484 = scmp.lt.s32.totalorder %s21, 0
          %s485 = scalar_select %p484, %s21, 0
          %p486 = scmp.lt.s32.totalorder %s483, 7
          %s487 = scalar_select %p486, %s483, 7
          %s488 = smul.addr %s485, 8
          %s489 = sadd.s32 %s487, %s488
          %s490 = smul.addr %s489, 8
          %s491 = scalar_lea.vmem %s2, %s490
        $region86: #{_generator_forward.9} parent=81 // pred_fallthru
          _
      $region82: #{_generator_forward.9} parent=5 // pred_fallthru
        _
    $region6: #{_generator_forward.9} parent=1 // loop_footer
      %s12 = sadd.s32 1, %s8
    $region7: #{_generator_forward.9} parent=1 // loop_footer_branch
      %7 = sbr.rel target = $region3
    $region8: #{_generator_forward.9} parent=1 // loop_exit
      _

// kernel: _generator_forward.11
$region0: #{_generator_forward.11}
  #allocation0 [shape = 'u32[]', space=smem, size = 0x4, offset = 0x4, fixed_abs, tag = 'smem constant byte address 0x4 - core index']
  #allocation1 [shape = 'u32[144,128]{1,0:T(1,128)}', space=vmem, size = 0x12000, scoped, tag = 'internal scratch']
  #allocation2 [shape = 'f32[32,128]{1,0:T(8,128)}', space=vmem, size = 0x4000, scoped, tag = 'scratch operand']
  %s0 = inlined_call_operand.vmem [shape: bf16[32,640], index: 0, kind: input, shape index: {}]
  %s1 = inlined_call_operand.vmem [shape: bf16[640,128], index: 1, kind: input, shape index: {}]
  %s2 = inlined_call_operand.vmem [shape: f32[32,128], index: 2, kind: output, shape index: {}]
  %s3 = sld [smem:[#allocation0]]
  $region90: #{_generator_forward.11} parent=0
    _
  %s5 = ssub.s32 1, %s3
  %s6 = scalar_select 0, %s5, %s3
  $region1: #{_generator_forward.11} parent=0
    #allocation3 [shape = 'u8[16384]{0}', space=vmem, size = 0x4000, scoped, tag = 'input window, operand 0']
    loop: start=0, step=1, limit=7
    $region2: #{_generator_forward.11} parent=1 // loop_pre_header
      _
    $region3: #{_generator_forward.11} parent=1 // loop_header
      %s8 = sphi 0, %s12
      %p9 = scmp.ge.s32.totalorder %s8, 7
      %s15 = sphi 0, %s34
      %s16 = sphi 0, %s30
      %s17 = sphi 0, %s26
      %s18 = sphi 0, %s15
      %s19 = sphi 0, %s16
      %s20 = sphi 0, %s17
      %s21 = sphi 0, %s18
      %s22 = sphi 0, %s19
      %s23 = sphi 0, %s20
      %s39 = sphi 0, %s41
      %s42 = sphi 0, %s39
      %s43 = sphi 0, %s42
      %s59 = sphi 0, %s43
      %s67 = sphi 0, %s69
      %s70 = sphi 0, %s67
      %s71 = sphi 0, %s70
      %s87 = sphi 0, %s71
      %s95 = sphi 0, %s97
      %s98 = sphi 0, %s95
      %s99 = sphi 0, %s98
      %s115 = sphi 0, %s99
    $region4: #{_generator_forward.11} parent=1 // loop_header_branch
      %11 = sbr.rel (%p9) target = $region8
    $region5: #{_generator_forward.11} parent=1 // loop_body
      %s13 = ssub.s32 %s8, 1
      %s14 = ssub.s32 %s8, 2
      %s24 = sadd.s32 1, %s17
      %p25 = scmp.ge.s32.totalorder %s24, 5
      %s26 = scalar_select %p25, 0, %s24
      %s27 = sadd.s32 1, %s16
      %s28 = scalar_select %p25, %s27, %s16
      %p29 = scmp.ge.s32.totalorder %s28, 1
      %s30 = scalar_select %p29, 0, %s28
      %s31 = sadd.s32 1, %s15
      %s32 = scalar_select %p29, %s31, %s15
      %p33 = scmp.ge.s32.totalorder %s32, 1
      %s34 = scalar_select %p33, 0, %s32
      %s35 = ssub.s32 %s15, %s34
      %s36 = ssub.s32 %s17, %s26
      %s37 = sor.u32 %s35, %s36
      %p38 = scmp.eq.s32.totalorder %s37, 0
      %s40 = sadd.s32 %s39, 1
      %s41 = scalar_select %p38, %s39, %s40
      %p44 = pneg %p38
      %p45 = scmp.eq.s32.totalorder %s8, 4
      %p46 = por %p44, %p45
      %p47 = scmp.ne.s32.totalorder %s39, %s42
      %p48 = scmp.eq.s32.totalorder %s8, 0
      %p49 = por %p47, %p48
      %p50 = scmp.ne.s32.totalorder %s39, %s42
      %p51 = scmp.eq.s32.totalorder %s13, 4
      %p52 = por %p50, %p51
      %p53 = scmp.ne.s32.totalorder %s42, %s43
      %p54 = scmp.eq.s32.totalorder %s13, 0
      %p55 = por %p53, %p54
      %p56 = scmp.ne.s32.totalorder %s42, %s43
      %p57 = scmp.eq.s32.totalorder %s14, 4
      %p58 = por %p56, %p57
      %p60 = scmp.ne.s32.totalorder %s43, %s59
      %p61 = scmp.eq.s32.totalorder %s14, 0
      %p62 = por %p60, %p61
      %s63 = ssub.s32 %s17, %s26
      %s64 = ssub.s32 %s16, %s30
      %s65 = sor.u32 %s63, %s64
      %p66 = scmp.eq.s32.totalorder %s65, 0
      %s68 = sadd.s32 %s67, 1
      %s69 = scalar_select %p66, %s67, %s68
      %p72 = pneg %p66
      %p73 = scmp.eq.s32.totalorder %s8, 4
      %p74 = por %p72, %p73
      %p75 = scmp.ne.s32.totalorder %s67, %s70
      %p76 = scmp.eq.s32.totalorder %s8, 0
      %p77 = por %p75, %p76
      %p78 = scmp.ne.s32.totalorder %s67, %s70
      %p79 = scmp.eq.s32.totalorder %s13, 4
      %p80 = por %p78, %p79
      %p81 = scmp.ne.s32.totalorder %s70, %s71
      %p82 = scmp.eq.s32.totalorder %s13, 0
      %p83 = por %p81, %p82
      %p84 = scmp.ne.s32.totalorder %s70, %s71
      %p85 = scmp.eq.s32.totalorder %s14, 4
      %p86 = por %p84, %p85
      %p88 = scmp.ne.s32.totalorder %s71, %s87
      %p89 = scmp.eq.s32.totalorder %s14, 0
      %p90 = por %p88, %p89
      %s91 = ssub.s32 %s15, %s34
      %s92 = ssub.s32 %s16, %s30
      %s93 = sor.u32 %s91, %s92
      %p94 = scmp.eq.s32.totalorder %s93, 0
      %s96 = sadd.s32 %s95, 1
      %s97 = scalar_select %p94, %s95, %s96
      %p100 = pneg %p94
      %p101 = scmp.eq.s32.totalorder %s8, 4
      %p102 = por %p100, %p101
      %p103 = scmp.ne.s32.totalorder %s95, %s98
      %p104 = scmp.eq.s32.totalorder %s8, 0
      %p105 = por %p103, %p104
      %p106 = scmp.ne.s32.totalorder %s95, %s98
      %p107 = scmp.eq.s32.totalorder %s13, 4
      %p108 = por %p106, %p107
      %p109 = scmp.ne.s32.totalorder %s98, %s99
      %p110 = scmp.eq.s32.totalorder %s13, 0
      %p111 = por %p109, %p110
      %p112 = scmp.ne.s32.totalorder %s98, %s99
      %p113 = scmp.eq.s32.totalorder %s14, 4
      %p114 = por %p112, %p113
      %p116 = scmp.ne.s32.totalorder %s99, %s115
      %p117 = scmp.eq.s32.totalorder %s14, 0
      %p118 = por %p116, %p117
      %p119 = scmp.le.s32.totalorder 1, %s8
      %p120 = scmp.lt.s32.totalorder %s8, 6
      %p121 = pnand %p119, %p120
      %p122 = pneg %p121
      // Predicated region
      $region9: #{_generator_forward.11} parent=5 // pred_check
        _
      $region10: #{_generator_forward.11} parent=5 // pred_check_branch
        %124 = sbr.rel (%p121) target = $region12
      $region11: #{_generator_forward.11} parent=5 // pred_region
        %s125 = ssub.s32 %s8, 1
      $region12: #{_generator_forward.11} parent=5 // pred_fallthru
        _
      %p126 = scmp.lt.s32.totalorder %s8, 5
      // Predicated region
      $region13: #{_generator_forward.11} parent=5 // pred_check
        %p127 = pneg %p126
      $region14: #{_generator_forward.11} parent=5 // pred_check_branch
        %129 = sbr.rel (%p127) target = $region16
      $region15: #{_generator_forward.11} parent=5 // pred_region
        // Predicated region
        $region17: #{_generator_forward.11} parent=15 // pred_check
          %p130 = pneg %p49
        $region18: #{_generator_forward.11} parent=15 // pred_check_branch
          %132 = sbr.rel (%p130) target = $region20
        $region19: #{_generator_forward.11} parent=15 // pred_region
          %s133 = sand.u32 %s39, 1
          %s134 = sand.u32 %s39, 1
          %s135 = smul.addr %s134, 16
          %s136 = scalar_lea.vmem [#allocation3], %s135
          %s137 = smul.u32 4, %s15
          %s138 = smul.addr %s137, 5
          %s139 = sadd.s32 %s17, %s138
          %s140 = smul.addr %s139, 4
          %s141 = scalar_lea.vmem %s0, %s140
          // Predicated region
          $region21: #{_generator_forward.11} parent=19 // pred_check
            _
          $region22: #{_generator_forward.11} parent=19 // pred_check_branch
            %143 = sbr.rel (0) target = $region24
          $region23: #{_generator_forward.11} parent=19 // pred_region
            // Predicated region
            $region25: #{_generator_forward.11} parent=23 // pred_check
              _
            $region26: #{_generator_forward.11} parent=23 // pred_check_branch
              %145 = sbr.rel target = $region28
            $region27: #{_generator_forward.11} parent=23 // pred_region
              // Predicated region
              $region40: #{_generator_forward.11} parent=27 // pred_check
                _
              $region41: #{_generator_forward.11} parent=27 // pred_check_branch
                %166 = sbr.rel (0) target = $region43
              $region42: #{_generator_forward.11} parent=27 // pred_region
                loop: start=0, step=1, limit=1
                $region44: #{_generator_forward.11} parent=42 // loop_pre_header
                  _
                $region45: #{_generator_forward.11} parent=42 // loop_header
                  %s168 = sphi 0, %s172
                  %p169 = scmp.ge.s32.totalorder %s168, 1
                  %s173 = sphi %s141, %s141
                  %s174 = sphi %s136, %s136
                $region46: #{_generator_forward.11} parent=42 // loop_header_branch
                  %171 = sbr.rel (%p169) target = $region50
                $region47: #{_generator_forward.11} parent=42 // loop_body
                  _
                $region48: #{_generator_forward.11} parent=42 // loop_footer
                  %s172 = sadd.s32 1, %s168
                $region49: #{_generator_forward.11} parent=42 // loop_footer_branch
                  %167 = sbr.rel target = $region45
                $region50: #{_generator_forward.11} parent=42 // loop_exit
                  _
                loop: start=0, step=1, limit=1
                $region51: #{_generator_forward.11} parent=42 // loop_pre_header
                  _
                $region52: #{_generator_forward.11} parent=42 // loop_header
                  %s177 = sphi 0, %s181
                  %p178 = scmp.ge.s32.totalorder %s177, 1
                  %s182 = sphi %s141, %s141
                  %s183 = sphi %s136, %s136
                $region53: #{_generator_forward.11} parent=42 // loop_header_branch
                  %180 = sbr.rel (%p178) target = $region57
                $region54: #{_generator_forward.11} parent=42 // loop_body
                  %v184 = vld [vmem:[%s182] sm:$0xf]
                  %185 = vst [vmem:[%s183] sm:$0xf] %v184
                  %v186 = vld [vmem:[%s182 + $0x14] sm:$0xf]
                  %187 = vst [vmem:[%s183 + $0x4] sm:$0xf] %v186
                  %v188 = vld [vmem:[%s182 + $0x28] sm:$0xf]
                  %189 = vst [vmem:[%s183 + $0x8] sm:$0xf] %v188
                  %v190 = vld [vmem:[%s182 + $0x3c] sm:$0xf]
                  %191 = vst [vmem:[%s183 + $0xc] sm:$0xf] %v190
                $region55: #{_generator_forward.11} parent=42 // loop_footer
                  %s181 = sadd.s32 1, %s177
                $region56: #{_generator_forward.11} parent=42 // loop_footer_branch
                  %176 = sbr.rel target = $region52
                $region57: #{_generator_forward.11} parent=42 // loop_exit
                  _
              $region43: #{_generator_forward.11} parent=27 // pred_fallthru
                _
            $region28: #{_generator_forward.11} parent=23 // pred_fallthru
              _
            // Predicated region
            $region29: #{_generator_forward.11} parent=23 // pred_check
              _
            $region30: #{_generator_forward.11} parent=23 // pred_check_branch
              %147 = sbr.rel (0) target = $region32
            $region31: #{_generator_forward.11} parent=23 // pred_region
              loop: start=0, step=1, limit=1
              $region33: #{_generator_forward.11} parent=31 // loop_pre_header
                _
              $region34: #{_generator_forward.11} parent=31 // loop_header
                %s150 = sphi 0, %s154
                %p151 = scmp.ge.s32.totalorder %s150, 1
                %s155 = sphi %s141, %s141
                %s156 = sphi %s136, %s136
              $region35: #{_generator_forward.11} parent=31 // loop_header_branch
                %153 = sbr.rel (%p151) target = $region39
              $region36: #{_generator_forward.11} parent=31 // loop_body
                %v157 = vld [vmem:[%s155] sm:$0xf]
                %158 = vst [vmem:[%s156] sm:$0xf] %v157
                %v159 = vld [vmem:[%s155 + $0x14] sm:$0xf]
                %160 = vst [vmem:[%s156 + $0x4] sm:$0xf] %v159
                %v161 = vld [vmem:[%s155 + $0x28] sm:$0xf]
                %162 = vst [vmem:[%s156 + $0x8] sm:$0xf] %v161
                %v163 = vld [vmem:[%s155 + $0x3c] sm:$0xf]
                %164 = vst [vmem:[%s156 + $0xc] sm:$0xf] %v163
              $region37: #{_generator_forward.11} parent=31 // loop_footer
                %s154 = sadd.s32 1, %s150
              $region38: #{_generator_forward.11} parent=31 // loop_footer_branch
                %149 = sbr.rel target = $region34
              $region39: #{_generator_forward.11} parent=31 // loop_exit
                _
            $region32: #{_generator_forward.11} parent=23 // pred_fallthru
              _
          $region24: #{_generator_forward.11} parent=19 // pred_fallthru
            _
          %192 = vnop
        $region20: #{_generator_forward.11} parent=15 // pred_fallthru
          _
        // Predicated region
        $region58: #{_generator_forward.11} parent=15 // pred_check
          %p193 = pneg %p77
        $region59: #{_generator_forward.11} parent=15 // pred_check_branch
          %195 = sbr.rel (%p193) target = $region61
        $region60: #{_generator_forward.11} parent=15 // pred_region
          %s196 = smul.u32 16, %s17
          %p197 = scmp.lt.s32.totalorder %s196, 79
          %s198 = scalar_select %p197, %s196, 79
          %p199 = scmp.lt.s32.totalorder %s16, 0
          %s200 = scalar_select %p199, %s16, 0
          %s201 = sadd.s32 %s200, %s198
          %s202 = smul.addr %s201, 4
          %s203 = scalar_lea.vmem %s1, %s202
          %s204 = smul.u32 16, %s17
        $region61: #{_generator_forward.11} parent=15 // pred_fallthru
          _
      $region16: #{_generator_forward.11} parent=5 // pred_fallthru
        _
      %p205 = scmp.le.s32.totalorder 1, %s8
      %p206 = scmp.lt.s32.totalorder %s8, 6
      %p207 = pnand %p205, %p206
      %p208 = pneg %p207
      // Predicated region
      $region62: #{_generator_forward.11} parent=5 // pred_check
        _
      $region63: #{_generator_forward.11} parent=5 // pred_check_branch
        %210 = sbr.rel (%p207) target = $region65
      $region64: #{_generator_forward.11} parent=5 // pred_region
        %s211 = ssub.s32 %s8, 1
        %s212 = sand.u32 %s42, 1
        %s213 = sand.u32 %s42, 1
        %s214 = smul.addr %s213, 16
        %s215 = scalar_lea.vmem [#allocation3], %s214
        // Predicated region
        $region66: #{_generator_forward.11} parent=64 // pred_check
          %p216 = pneg %p55
        $region67: #{_generator_forward.11} parent=64 // pred_check_branch
          %218 = sbr.rel (%p216) target = $region69
        $region68: #{_generator_forward.11} parent=64 // pred_region
          _
        $region69: #{_generator_forward.11} parent=64 // pred_fallthru
          _
        %s219 = sand.u32 %s42, 1
        %s220 = sand.u32 %s42, 1
        %s221 = smul.addr %s220, 16
        %s222 = scalar_lea.vmem [#allocation3], %s221
        %p223 = pneg %p55
        %p224 = pneg %p52
        %s225 = smul.u32 16, %s20
        %p226 = scmp.lt.s32.totalorder %s225, 79
        %s227 = scalar_select %p226, %s225, 79
        %p228 = scmp.lt.s32.totalorder %s19, 0
        %s229 = scalar_select %p228, %s19, 0
        %s230 = sadd.s32 %s229, %s227
        %s231 = smul.addr %s230, 4
        %s232 = scalar_lea.vmem %s1, %s231
        %p233 = pneg %p83
        %p234 = pneg %p80
        %p235 = pneg %p111
        %p236 = pneg %p108
        %s237 = smul.u32 4, %s18
        %p238 = scmp.lt.s32.totalorder %s237, 3
        %s239 = scalar_select %p238, %s237, 3
        %p240 = scmp.lt.s32.totalorder %s19, 0
        %s241 = scalar_select %p240, %s19, 0
        %s242 = sadd.s32 %s241, %s239
        %s243 = smul.addr %s242, 8
        %s244 = scalar_lea.vmem %s2, %s243
        %s245 = smul.u32 4, %s18
        %s246 = smul.u32 16, %s20
        %p247 = scmp.lt.s32.totalorder %s246, 79
        %s248 = scalar_select %p247, %s246, 79
        %p249 = scmp.lt.s32.totalorder %s19, 0
        %s250 = scalar_select %p249, %s19, 0
        %s251 = sadd.s32 %s250, %s248
        %s252 = smul.addr %s251, 4
        %s253 = scalar_lea.vmem %s1, %s252
        %s254 = smul.u32 16, %s20
        %s255 = smul.u32 4, %s18
        %p256 = scmp.lt.s32.totalorder %s255, 3
        %s257 = scalar_select %p256, %s255, 3
        %p258 = scmp.lt.s32.totalorder %s19, 0
        %s259 = scalar_select %p258, %s19, 0
        %s260 = sadd.s32 %s259, %s257
        %s261 = smul.addr %s260, 8
        %s262 = scalar_lea.vmem %s2, %s261
        %s263 = smul.u32 4, %s18
        %p265 = scmp.eq.s32.totalorder %s20, 0
        // Predicated region
        $region70: #{_generator_forward.11} parent=64 // pred_check
          %p266 = pneg %p265
        $region71: #{_generator_forward.11} parent=64 // pred_check_branch
          %268 = sbr.rel (%p266) target = $region73
        $region72: #{_generator_forward.11} parent=64 // pred_region
          %269 = vst [vmem:[#allocation2] sm:$0xff] 0.0
          %270 = vst [vmem:[#allocation2 + $0x8] sm:$0xff] 0.0
          %271 = vst [vmem:[#allocation2 + $0x10] sm:$0xff] 0.0
          %272 = vst [vmem:[#allocation2 + $0x18] sm:$0xff] 0.0
        $region73: #{_generator_forward.11} parent=64 // pred_fallthru
          _
        %v273 = vld [vmem:[#allocation2] sm:$0xff]
        %v274 = vld [vmem:[#allocation2 + $0x8] sm:$0xff]
        %v275 = vld [vmem:[#allocation2 + $0x10] sm:$0xff]
        %v276 = vld [vmem:[#allocation2 + $0x18] sm:$0xff]
        %v277 = vld [vmem:[%s215] sm:$0xf]
        %v278 = vld [vmem:[%s215 + $0x4] sm:$0xf]
        %v279 = vld [vmem:[%s215 + $0x8] sm:$0xf]
        %v280 = vld [vmem:[%s215 + $0xc] sm:$0xf]
        %v281 = vld [vmem:[%s253] sm:$0xf]
        %v282 = vld [vmem:[%s253 + $0x4] sm:$0xf]
        %v283 = vld [vmem:[%s253 + $0x8] sm:$0xf]
        %v284 = vld [vmem:[%s253 + $0xc] sm:$0xf]
        %v285 = vld [vmem:[%s253 + $0x10] sm:$0xf]
        %v286 = vld [vmem:[%s253 + $0x14] sm:$0xf]
        %v287 = vld [vmem:[%s253 + $0x18] sm:$0xf]
        %v288 = vld [vmem:[%s253 + $0x1c] sm:$0xf]
        %v289 = vld [vmem:[%s253 + $0x20] sm:$0xf]
        %v290 = vld [vmem:[%s253 + $0x24] sm:$0xf]
        %v291 = vld [vmem:[%s253 + $0x28] sm:$0xf]
        %v292 = vld [vmem:[%s253 + $0x2c] sm:$0xf]
        %v293 = vld [vmem:[%s253 + $0x30] sm:$0xf]
        %v294 = vld [vmem:[%s253 + $0x34] sm:$0xf]
        %v295 = vld [vmem:[%s253 + $0x38] sm:$0xf]
        %v296 = vld [vmem:[%s253 + $0x3c] sm:$0xf]
        %v301 = vunpack.c.l.b16 %v277
        %v302 = vunpack.c.l.b16 %v278
        %v303 = vunpack.c.l.b16 %v279
        %v304 = vunpack.c.l.b16 %v280
        %v305 = vpack.c.b16 %v302, %v301
        %v306 = vpack.c.b16 %v304, %v303
        %v325 = vunpack.c.l.b16 %v281
        %v326 = vunpack.c.l.b16 %v282
        %v327 = vunpack.c.l.b16 %v283
        %v328 = vunpack.c.l.b16 %v284
        %v329 = vunpack.c.l.b16 %v285
        %v330 = vunpack.c.l.b16 %v286
        %v331 = vunpack.c.l.b16 %v287
        %v332 = vunpack.c.l.b16 %v288
        %v333 = vunpack.c.l.b16 %v289
        %v334 = vunpack.c.l.b16 %v290
        %v335 = vunpack.c.l.b16 %v291
        %v336 = vunpack.c.l.b16 %v292
        %v337 = vunpack.c.l.b16 %v293
        %v338 = vunpack.c.l.b16 %v294
        %v339 = vunpack.c.l.b16 %v295
        %v340 = vunpack.c.l.b16 %v296
        %v341 = vpack.c.b16 %v326, %v325
        %v342 = vpack.c.b16 %v328, %v327
        %v343 = vpack.c.b16 %v330, %v329
        %v344 = vpack.c.b16 %v332, %v331
        %v345 = vpack.c.b16 %v334, %v333
        %v346 = vpack.c.b16 %v336, %v335
        %v347 = vpack.c.b16 %v338, %v337
        %v348 = vpack.c.b16 %v340, %v339
        %357 = vmatprep.subr.bf16.mxu0 0
        %358 = vmatpush1.bf16.msra.mxu0 %v341
        %359 = vmatprep.subr.bf16.mxu0 0
        %360 = vmatpush1.bf16.msra.mxu0 %v342
        %361 = vmatprep.subr.bf16.mxu0 0
        %362 = vmatpush1.bf16.msra.mxu0 %v343
        %363 = vmatprep.subr.bf16.mxu0 0
        %364 = vmatpush1.bf16.msra.mxu0 %v344
        %365 = vmatprep.subr.bf16.mxu0 0
        %366 = vmatpush1.bf16.msra.mxu0 %v345
        %367 = vmatprep.subr.bf16.mxu0 0
        %368 = vmatpush1.bf16.msra.mxu0 %v346
        %369 = vmatprep.subr.bf16.mxu0 0
        %370 = vmatpush1.bf16.msra.mxu0 %v347
        %371 = vmatprep.subr.bf16.mxu0 0
        %372 = vmatpush1.bf16.msra.mxu0 %v348
        %373 = vmatprep.subr.bf16.mxu0 0
        %374 = vmatpush1.bf16.msra.mxu0 0
        %375 = vmatprep.subr.bf16.mxu0 0
        %376 = vmatpush1.bf16.msra.mxu0 0
        %377 = vmatprep.subr.bf16.mxu0 0
        %378 = vmatpush1.bf16.msra.mxu0 0
        %379 = vmatprep.subr.bf16.mxu0 0
        %380 = vmatpush1.bf16.msra.mxu0 0
        %381 = vmatprep.subr.bf16.mxu0 0
        %382 = vmatpush1.bf16.msra.mxu0 0
        %383 = vmatprep.subr.bf16.mxu0 0
        %384 = vmatpush1.bf16.msra.mxu0 0
        %385 = vmatprep.subr.bf16.mxu0 0
        %386 = vmatpush1.bf16.msra.mxu0 0
        %387 = vmatprep.subr.bf16.mxu0 0
        %388 = vmatpush1.bf16.msra.mxu0 0
        %389 = vmatprep.mubr.bf16.mxu0 0
        %390 = vmatmul.mubr.bf16.gmra.mrb[0].mxu0 %v305
        %v391 = vpop.f32.mrb[0].mxu0
        %v392 = vadd.f32 0.0, %v391
        %v393 = vpop.f32.mrb[0].mxu0
        %v394 = vpop.f32.mrb[0].mxu0
        %v395 = vadd.f32 0.0, %v394
        %v396 = vpop.f32.mrb[0].mxu0
        %397 = vmatprep.mubr.bf16.mxu0 0
        %398 = vmatmul.mubr.bf16.gmra.mrb[0].mxu0 %v306
        %v399 = vpop.f32.mrb[0].mxu0
        %v400 = vadd.f32 0.0, %v399
        %v401 = vpop.f32.mrb[0].mxu0
        %v402 = vpop.f32.mrb[0].mxu0
        %v403 = vadd.f32 0.0, %v402
        %v404 = vpop.f32.mrb[0].mxu0
        %405 = vdwg.mxu0
        %v406 = vadd.f32 %v273, %v392
        %v407 = vadd.f32 %v274, %v395
        %v408 = vadd.f32 %v275, %v400
        %v409 = vadd.f32 %v276, %v403
        %410 = vst [vmem:[#allocation2] sm:$0xff] %v406
        %411 = vst [vmem:[#allocation2 + $0x8] sm:$0xff] %v407
        %412 = vst [vmem:[#allocation2 + $0x10] sm:$0xff] %v408
        %413 = vst [vmem:[#allocation2 + $0x18] sm:$0xff] %v409
        %p414 = scmp.eq.s32.totalorder %s20, 4
        // Predicated region
        $region74: #{_generator_forward.11} parent=64 // pred_check
          %p415 = pneg %p414
        $region75: #{_generator_forward.11} parent=64 // pred_check_branch
          %417 = sbr.rel (%p415) target = $region77
        $region76: #{_generator_forward.11} parent=64 // pred_region
          %v418 = vld [vmem:[#allocation2] sm:$0xff]
          %v419 = vld [vmem:[#allocation2 + $0x8] sm:$0xff]
          %v420 = vld [vmem:[#allocation2 + $0x10] sm:$0xff]
          %v421 = vld [vmem:[#allocation2 + $0x18] sm:$0xff]
          %422 = vst [vmem:[%s262] sm:$0xff] %v418
          %423 = vst [vmem:[%s262 + $0x8] sm:$0xff] %v419
          %424 = vst [vmem:[%s262 + $0x10] sm:$0xff] %v420
          %425 = vst [vmem:[%s262 + $0x18] sm:$0xff] %v421
        $region77: #{_generator_forward.11} parent=64 // pred_fallthru
          _
        %s426 = smul.u32 4, %s18
        %p427 = scmp.lt.s32.totalorder %s426, 3
        %s428 = scalar_select %p427, %s426, 3
        %p429 = scmp.lt.s32.totalorder %s19, 0
        %s430 = scalar_select %p429, %s19, 0
        %s431 = sadd.s32 %s430, %s428
        %s432 = smul.addr %s431, 8
        %s433 = scalar_lea.vmem %s2, %s432
        // Predicated region
        $region78: #{_generator_forward.11} parent=64 // pred_check
          %p434 = pneg %p108
        $region79: #{_generator_forward.11} parent=64 // pred_check_branch
          %436 = sbr.rel (%p434) target = $region81
        $region80: #{_generator_forward.11} parent=64 // pred_region
          %s437 = smul.u32 4, %s18
        $region81: #{_generator_forward.11} parent=64 // pred_fallthru
          _
        // Predicated region
        $region82: #{_generator_forward.11} parent=64 // pred_check
          %p438 = pneg %p108
        $region83: #{_generator_forward.11} parent=64 // pred_check_branch
          %440 = sbr.rel (%p438) target = $region85
        $region84: #{_generator_forward.11} parent=64 // pred_region
          %s441 = smul.u32 4, %s18
          %p442 = scmp.lt.s32.totalorder %s441, 3
          %s443 = scalar_select %p442, %s441, 3
          %p444 = scmp.lt.s32.totalorder %s19, 0
          %s445 = scalar_select %p444, %s19, 0
          %s446 = sadd.s32 %s445, %s443
          %s447 = smul.addr %s446, 8
          %s448 = scalar_lea.vmem %s2, %s447
        $region85: #{_generator_forward.11} parent=64 // pred_fallthru
          _
      $region65: #{_generator_forward.11} parent=5 // pred_fallthru
        _
      %p449 = scmp.le.s32.totalorder 2, %s8
      // Predicated region
      $region86: #{_generator_forward.11} parent=5 // pred_check
        %p450 = pneg %p449
      $region87: #{_generator_forward.11} parent=5 // pred_check_branch
        %452 = sbr.rel (%p450) target = $region89
      $region88: #{_generator_forward.11} parent=5 // pred_region
        %s453 = ssub.s32 %s8, 2
      $region89: #{_generator_forward.11} parent=5 // pred_fallthru
        _
    $region6: #{_generator_forward.11} parent=1 // loop_footer
      %s12 = sadd.s32 1, %s8
    $region7: #{_generator_forward.11} parent=1 // loop_footer_branch
      %7 = sbr.rel target = $region3
    $region8: #{_generator_forward.11} parent=1 // loop_exit
      _

// kernel: _generator_forward.12
$region0: #{_generator_forward.12}
  #allocation0 [shape = 'u32[]', space=smem, size = 0x4, offset = 0x4, fixed_abs, tag = 'smem constant byte address 0x4 - core index']
  #allocation1 [shape = 'u32[144,128]{1,0:T(1,128)}', space=vmem, size = 0x12000, scoped, tag = 'internal scratch']
  %s0 = inlined_call_operand.vmem [shape: f32[128,32], index: 0, kind: input, shape index: {}]
  %s1 = inlined_call_operand.hbm [shape: f32[1,32], index: 1, kind: input, shape index: {}]
  %s2 = inlined_call_operand.hbm [shape: f32[1,32], index: 2, kind: input, shape index: {}]
  %s3 = inlined_call_operand.vmem [shape: f32[128,32], index: 3, kind: output, shape index: {}]
  %s4 = sld [smem:[#allocation0]]
  $region30: #{_generator_forward.12} parent=0
    _
  %s6 = ssub.s32 1, %s4
  %s7 = scalar_select 0, %s6, %s4
  $region1: #{_generator_forward.12} parent=0
    #allocation2 [shape = 'u8[512]{0}', space=vmem, size = 0x400, scoped, tag = 'input window, operand 1, single buffered']
    #allocation3 [shape = 's32[1]{0}', space=sflag, size = 0x4, scoped, tag = 'scoped memory for _generator_forward.12']
    #allocation4 [shape = 'u8[512]{0}', space=vmem, size = 0x400, scoped, tag = 'input window, operand 2, single buffered']
    #allocation5 [shape = 's32[1]{0}', space=sflag, size = 0x4, scoped, tag = 'scoped memory for _generator_forward.12']
    %8 = vsyncpa [#allocation3], 0
    %9 = vsyncpa [#allocation5], 0
    // Predicated region
    $region2: #{_generator_forward.12} parent=1 // pred_check
      _
    $region3: #{_generator_forward.12} parent=1 // pred_check_branch
      %11 = sbr.rel (0) target = $region5
    $region4: #{_generator_forward.12} parent=1 // pred_region
      _
    $region5: #{_generator_forward.12} parent=1 // pred_fallthru
      _
    // Predicated region
    $region6: #{_generator_forward.12} parent=1 // pred_check
      _
    $region7: #{_generator_forward.12} parent=1 // pred_check_branch
      %13 = sbr.rel (0) target = $region9
    $region8: #{_generator_forward.12} parent=1 // pred_region
      %s15 = ssub.s32 16, 16
      %16 = vsyncadd [#allocation3], %s15
      %s18 = sshll.u32 [#allocation2], 4
      %s19 = int_to_ptr.vmem [resolvable:$true] %s18
      %21 = dma.hbm_to_vmem [thread:$0]  %s1, 16, %s19, [#allocation3]
    $region9: #{_generator_forward.12} parent=1 // pred_fallthru
      _
    // Predicated region
    $region10: #{_generator_forward.12} parent=1 // pred_check
      _
    $region11: #{_generator_forward.12} parent=1 // pred_check_branch
      %23 = sbr.rel (0) target = $region13
    $region12: #{_generator_forward.12} parent=1 // pred_region
      %s25 = ssub.s32 16, 16
      %26 = vsyncadd [#allocation5], %s25
      %s28 = sshll.u32 [#allocation4], 4
      %s29 = int_to_ptr.vmem [resolvable:$true] %s28
      %31 = dma.hbm_to_vmem [thread:$0]  %s2, 16, %s29, [#allocation5]
    $region13: #{_generator_forward.12} parent=1 // pred_fallthru
      _
    // Predicated region
    $region14: #{_generator_forward.12} parent=1 // pred_check
      _
    $region15: #{_generator_forward.12} parent=1 // pred_check_branch
      %33 = sbr.rel (0) target = $region17
    $region16: #{_generator_forward.12} parent=1 // pred_region
      %34 = dma.done [#allocation3], 16
    $region17: #{_generator_forward.12} parent=1 // pred_fallthru
      _
    // Predicated region
    $region18: #{_generator_forward.12} parent=1 // pred_check
      _
    $region19: #{_generator_forward.12} parent=1 // pred_check_branch
      %36 = sbr.rel (0) target = $region21
    $region20: #{_generator_forward.12} parent=1 // pred_region
      %37 = dma.done [#allocation5], 16
    $region21: #{_generator_forward.12} parent=1 // pred_fallthru
      _
    %v38 = vld [vmem:[%s0] sm:$0xff]
    %v39 = vld [vmem:[%s0 + $0x8] sm:$0xff]
    %v40 = vld [vmem:[%s0 + $0x10] sm:$0xff]
    %v41 = vld [vmem:[%s0 + $0x18] sm:$0xff]
    %v42 = vld [vmem:[%s0 + $0x20] sm:$0xff]
    %v43 = vld [vmem:[%s0 + $0x28] sm:$0xff]
    %v44 = vld [vmem:[%s0 + $0x30] sm:$0xff]
    %v45 = vld [vmem:[%s0 + $0x38] sm:$0xff]
    %v46 = vld [vmem:[%s0 + $0x40] sm:$0xff]
    %v47 = vld [vmem:[%s0 + $0x48] sm:$0xff]
    %v48 = vld [vmem:[%s0 + $0x50] sm:$0xff]
    %v49 = vld [vmem:[%s0 + $0x58] sm:$0xff]
    %v50 = vld [vmem:[%s0 + $0x60] sm:$0xff]
    %v51 = vld [vmem:[%s0 + $0x68] sm:$0xff]
    %v52 = vld [vmem:[%s0 + $0x70] sm:$0xff]
    %v53 = vld [vmem:[%s0 + $0x78] sm:$0xff]
    %vm54 = vcmask 261120
    %v55 = vsel %vm54, %v38, 0.0
    %v56 = vsel %vm54, %v39, 0.0
    %v57 = vadd.f32 %v55, %v56
    %v58 = vsel %vm54, %v40, 0.0
    %v59 = vadd.f32 %v57, %v58
    %v60 = vsel %vm54, %v41, 0.0
    %v61 = vadd.f32 %v59, %v60
    %v62 = vsel %vm54, %v42, 0.0
    %v63 = vadd.f32 %v61, %v62
    %v64 = vsel %vm54, %v43, 0.0
    %v65 = vadd.f32 %v63, %v64
    %v66 = vsel %vm54, %v44, 0.0
    %v67 = vadd.f32 %v65, %v66
    %v68 = vsel %vm54, %v45, 0.0
    %v69 = vadd.f32 %v67, %v68
    %v70 = vsel %vm54, %v46, 0.0
    %v71 = vadd.f32 %v69, %v70
    %v72 = vsel %vm54, %v47, 0.0
    %v73 = vadd.f32 %v71, %v72
    %v74 = vsel %vm54, %v48, 0.0
    %v75 = vadd.f32 %v73, %v74
    %v76 = vsel %vm54, %v49, 0.0
    %v77 = vadd.f32 %v75, %v76
    %v78 = vsel %vm54, %v50, 0.0
    %v79 = vadd.f32 %v77, %v78
    %v80 = vsel %vm54, %v51, 0.0
    %v81 = vadd.f32 %v79, %v80
    %v82 = vsel %vm54, %v52, 0.0
    %v83 = vadd.f32 %v81, %v82
    %v84 = vsel %vm54, %v53, 0.0
    %v85 = vadd.f32 %v83, %v84
    %v86 = vrot.slane %v85, 4
    %v87 = vadd.f32 %v85, %v86
    %v88 = vrot.slane %v87, 2
    %v89 = vadd.f32 %v87, %v88
    %v90 = vrot.slane %v89, 1
    %v91 = vadd.f32 %v89, %v90
    %v92 = vrcp.pop 128.0
    %v93 = vmul.f32 %v91, %v92
    %v94 = vsub.f32 %v38, %v93
    %v95 = vsub.f32 %v39, %v93
    %v96 = vsub.f32 %v40, %v93
    %v97 = vsub.f32 %v41, %v93
    %v98 = vsub.f32 %v42, %v93
    %v99 = vsub.f32 %v43, %v93
    %v100 = vsub.f32 %v44, %v93
    %v101 = vsub.f32 %v45, %v93
    %v102 = vsub.f32 %v46, %v93
    %v103 = vsub.f32 %v47, %v93
    %v104 = vsub.f32 %v48, %v93
    %v105 = vsub.f32 %v49, %v93
    %v106 = vsub.f32 %v50, %v93
    %v107 = vsub.f32 %v51, %v93
    %v108 = vsub.f32 %v52, %v93
    %v109 = vsub.f32 %v53, %v93
    %v110 = vmul.f32 %v94, %v94
    %v111 = vmul.f32 %v95, %v95
    %v112 = vmul.f32 %v96, %v96
    %v113 = vmul.f32 %v97, %v97
    %v114 = vmul.f32 %v98, %v98
    %v115 = vmul.f32 %v99, %v99
    %v116 = vmul.f32 %v100, %v100
    %v117 = vmul.f32 %v101, %v101
    %v118 = vmul.f32 %v102, %v102
    %v119 = vmul.f32 %v103, %v103
    %v120 = vmul.f32 %v104, %v104
    %v121 = vmul.f32 %v105, %v105
    %v122 = vmul.f32 %v106, %v106
    %v123 = vmul.f32 %v107, %v107
    %v124 = vmul.f32 %v108, %v108
    %v125 = vmul.f32 %v109, %v109
    %v126 = vsel %vm54, %v110, 0.0
    %v127 = vsel %vm54, %v111, 0.0
    %v128 = vadd.f32 %v126, %v127
    %v129 = vsel %vm54, %v112, 0.0
    %v130 = vadd.f32 %v128, %v129
    %v131 = vsel %vm54, %v113, 0.0
    %v132 = vadd.f32 %v130, %v131
    %v133 = vsel %vm54, %v114, 0.0
    %v134 = vadd.f32 %v132, %v133
    %v135 = vsel %vm54, %v115, 0.0
    %v136 = vadd.f32 %v134, %v135
    %v137 = vsel %vm54, %v116, 0.0
    %v138 = vadd.f32 %v136, %v137
    %v139 = vsel %vm54, %v117, 0.0
    %v140 = vadd.f32 %v138, %v139
    %v141 = vsel %vm54, %v118, 0.0
    %v142 = vadd.f32 %v140, %v141
    %v143 = vsel %vm54, %v119, 0.0
    %v144 = vadd.f32 %v142, %v143
    %v145 = vsel %vm54, %v120, 0.0
    %v146 = vadd.f32 %v144, %v145
    %v147 = vsel %vm54, %v121, 0.0
    %v148 = vadd.f32 %v146, %v147
    %v149 = vsel %vm54, %v122, 0.0
    %v150 = vadd.f32 %v148, %v149
    %v151 = vsel %vm54, %v123, 0.0
    %v152 = vadd.f32 %v150, %v151
    %v153 = vsel %vm54, %v124, 0.0
    %v154 = vadd.f32 %v152, %v153
    %v155 = vsel %vm54, %v125, 0.0
    %v156 = vadd.f32 %v154, %v155
    %v157 = vrot.slane %v156, 4
    %v158 = vadd.f32 %v156, %v157
    %v159 = vrot.slane %v158, 2
    %v160 = vadd.f32 %v158, %v159
    %v161 = vrot.slane %v160, 1
    %v162 = vadd.f32 %v160, %v161
    %v163 = vmul.f32 %v162, %v92
    %v164 = vadd.f32 %v163, 1e-05
    %v165 = vrsqrt.pop %v164
    %v166 = vmul.f32 %v94, %v165
    %v167 = vmul.f32 %v95, %v165
    %v168 = vmul.f32 %v96, %v165
    %v169 = vmul.f32 %v97, %v165
    %v170 = vmul.f32 %v98, %v165
    %v171 = vmul.f32 %v99, %v165
    %v172 = vmul.f32 %v100, %v165
    %v173 = vmul.f32 %v101, %v165
    %v174 = vmul.f32 %v102, %v165
    %v175 = vmul.f32 %v103, %v165
    %v176 = vmul.f32 %v104, %v165
    %v177 = vmul.f32 %v105, %v165
    %v178 = vmul.f32 %v106, %v165
    %v179 = vmul.f32 %v107, %v165
    %v180 = vmul.f32 %v108, %v165
    %v181 = vmul.f32 %v109, %v165
    %v182 = vld [vmem:[#allocation2] sm:$0x1]
    %v184 = vlaneseq
    %v185 = vshrl.u32 %v184, 7
    %v186 = vsub.s32 0, %v185
    %v187 = vrot.slane %v182, %v186
    %v189 = vmul.f32 %v166, %v187
    %v190 = vmul.f32 %v167, %v187
    %v191 = vmul.f32 %v168, %v187
    %v192 = vmul.f32 %v169, %v187
    %v193 = vmul.f32 %v170, %v187
    %v194 = vmul.f32 %v171, %v187
    %v195 = vmul.f32 %v172, %v187
    %v196 = vmul.f32 %v173, %v187
    %v197 = vmul.f32 %v174, %v187
    %v198 = vmul.f32 %v175, %v187
    %v199 = vmul.f32 %v176, %v187
    %v200 = vmul.f32 %v177, %v187
    %v201 = vmul.f32 %v178, %v187
    %v202 = vmul.f32 %v179, %v187
    %v203 = vmul.f32 %v180, %v187
    %v204 = vmul.f32 %v181, %v187
    %v205 = vld [vmem:[#allocation4] sm:$0x1]
    %v207 = vlaneseq
    %v208 = vshrl.u32 %v207, 7
    %v209 = vsub.s32 0, %v208
    %v210 = vrot.slane %v205, %v209
    %v212 = vadd.f32 %v189, %v210
    %v213 = vadd.f32 %v190, %v210
    %v214 = vadd.f32 %v191, %v210
    %v215 = vadd.f32 %v192, %v210
    %v216 = vadd.f32 %v193, %v210
    %v217 = vadd.f32 %v194, %v210
    %v218 = vadd.f32 %v195, %v210
    %v219 = vadd.f32 %v196, %v210
    %v220 = vadd.f32 %v197, %v210
    %v221 = vadd.f32 %v198, %v210
    %v222 = vadd.f32 %v199, %v210
    %v223 = vadd.f32 %v200, %v210
    %v224 = vadd.f32 %v201, %v210
    %v225 = vadd.f32 %v202, %v210
    %v226 = vadd.f32 %v203, %v210
    %v227 = vadd.f32 %v204, %v210
    %v228 = vmax.f32 %v212, 0.0
    %v229 = vmax.f32 %v213, 0.0
    %v230 = vmax.f32 %v214, 0.0
    %v231 = vmax.f32 %v215, 0.0
    %v232 = vmax.f32 %v216, 0.0
    %v233 = vmax.f32 %v217, 0.0
    %v234 = vmax.f32 %v218, 0.0
    %v235 = vmax.f32 %v219, 0.0
    %v236 = vmax.f32 %v220, 0.0
    %v237 = vmax.f32 %v221, 0.0
    %v238 = vmax.f32 %v222, 0.0
    %v239 = vmax.f32 %v223, 0.0
    %v240 = vmax.f32 %v224, 0.0
    %v241 = vmax.f32 %v225, 0.0
    %v242 = vmax.f32 %v226, 0.0
    %v243 = vmax.f32 %v227, 0.0
    %244 = vst.msk [vmem:[%s3] sm:$0xff] %vm54, %v228
    %245 = vst.msk [vmem:[%s3 + $0x8] sm:$0xff] %vm54, %v229
    %246 = vst.msk [vmem:[%s3 + $0x10] sm:$0xff] %vm54, %v230
    %247 = vst.msk [vmem:[%s3 + $0x18] sm:$0xff] %vm54, %v231
    %248 = vst.msk [vmem:[%s3 + $0x20] sm:$0xff] %vm54, %v232
    %249 = vst.msk [vmem:[%s3 + $0x28] sm:$0xff] %vm54, %v233
    %250 = vst.msk [vmem:[%s3 + $0x30] sm:$0xff] %vm54, %v234
    %251 = vst.msk [vmem:[%s3 + $0x38] sm:$0xff] %vm54, %v235
    %252 = vst.msk [vmem:[%s3 + $0x40] sm:$0xff] %vm54, %v236
    %253 = vst.msk [vmem:[%s3 + $0x48] sm:$0xff] %vm54, %v237
    %254 = vst.msk [vmem:[%s3 + $0x50] sm:$0xff] %vm54, %v238
    %255 = vst.msk [vmem:[%s3 + $0x58] sm:$0xff] %vm54, %v239
    %256 = vst.msk [vmem:[%s3 + $0x60] sm:$0xff] %vm54, %v240
    %257 = vst.msk [vmem:[%s3 + $0x68] sm:$0xff] %vm54, %v241
    %258 = vst.msk [vmem:[%s3 + $0x70] sm:$0xff] %vm54, %v242
    %259 = vst.msk [vmem:[%s3 + $0x78] sm:$0xff] %vm54, %v243
    // Predicated region
    $region22: #{_generator_forward.12} parent=1 // pred_check
      _
    $region23: #{_generator_forward.12} parent=1 // pred_check_branch
      %261 = sbr.rel (0) target = $region25
    $region24: #{_generator_forward.12} parent=1 // pred_region
      _
    $region25: #{_generator_forward.12} parent=1 // pred_fallthru
      _
    // Predicated region
    $region26: #{_generator_forward.12} parent=1 // pred_check
      _
    $region27: #{_generator_forward.12} parent=1 // pred_check_branch
      %263 = sbr.rel (0) target = $region29
    $region28: #{_generator_forward.12} parent=1 // pred_region
      _
    $region29: #{_generator_forward.12} parent=1 // pred_fallthru
      _
    %264 = vsyncpa [#allocation3], 1
    %265 = vsyncpa [#allocation5], 1

// kernel: _generator_forward.13
$region0: #{_generator_forward.13}
  #allocation0 [shape = 'u32[]', space=smem, size = 0x4, offset = 0x4, fixed_abs, tag = 'smem constant byte address 0x4 - core index']
  #allocation1 [shape = 'u32[144,128]{1,0:T(1,128)}', space=vmem, size = 0x12000, scoped, tag = 'internal scratch']
  #allocation2 [shape = 'f32[128,128]{1,0:T(8,128)}', space=vmem, size = 0x10000, scoped, tag = 'scratch operand']
  %s0 = inlined_call_operand.vmem [shape: bf16[128,384], index: 0, kind: input, shape index: {}]
  %s1 = inlined_call_operand.vmem [shape: bf16[384,128], index: 1, kind: input, shape index: {}]
  %s2 = inlined_call_operand.vmem [shape: f32[128,128], index: 2, kind: output, shape index: {}]
  %s3 = sld [smem:[#allocation0]]
  $region90: #{_generator_forward.13} parent=0
    _
  %s5 = ssub.s32 1, %s3
  %s6 = scalar_select 0, %s5, %s3
  $region1: #{_generator_forward.13} parent=0
    #allocation3 [shape = 'u8[65536]{0}', space=vmem, size = 0x10000, scoped, tag = 'input window, operand 0']
    loop: start=0, step=1, limit=5
    $region2: #{_generator_forward.13} parent=1 // loop_pre_header
      _
    $region3: #{_generator_forward.13} parent=1 // loop_header
      %s8 = sphi 0, %s12
      %p9 = scmp.ge.s32.totalorder %s8, 5
      %s15 = sphi 0, %s34
      %s16 = sphi 0, %s30
      %s17 = sphi 0, %s26
      %s18 = sphi 0, %s15
      %s19 = sphi 0, %s16
      %s20 = sphi 0, %s17
      %s21 = sphi 0, %s18
      %s22 = sphi 0, %s19
      %s23 = sphi 0, %s20
      %s39 = sphi 0, %s41
      %s42 = sphi 0, %s39
      %s43 = sphi 0, %s42
      %s59 = sphi 0, %s43
      %s67 = sphi 0, %s69
      %s70 = sphi 0, %s67
      %s71 = sphi 0, %s70
      %s87 = sphi 0, %s71
      %s95 = sphi 0, %s97
      %s98 = sphi 0, %s95
      %s99 = sphi 0, %s98
      %s115 = sphi 0, %s99
    $region4: #{_generator_forward.13} parent=1 // loop_header_branch
      %11 = sbr.rel (%p9) target = $region8
    $region5: #{_generator_forward.13} parent=1 // loop_body
      %s13 = ssub.s32 %s8, 1
      %s14 = ssub.s32 %s8, 2
      %s24 = sadd.s32 1, %s17
      %p25 = scmp.ge.s32.totalorder %s24, 3
      %s26 = scalar_select %p25, 0, %s24
      %s27 = sadd.s32 1, %s16
      %s28 = scalar_select %p25, %s27, %s16
      %p29 = scmp.ge.s32.totalorder %s28, 1
      %s30 = scalar_select %p29, 0, %s28
      %s31 = sadd.s32 1, %s15
      %s32 = scalar_select %p29, %s31, %s15
      %p33 = scmp.ge.s32.totalorder %s32, 1
      %s34 = scalar_select %p33, 0, %s32
      %s35 = ssub.s32 %s15, %s34
      %s36 = ssub.s32 %s17, %s26
      %s37 = sor.u32 %s35, %s36
      %p38 = scmp.eq.s32.totalorder %s37, 0
      %s40 = sadd.s32 %s39, 1
      %s41 = scalar_select %p38, %s39, %s40
      %p44 = pneg %p38
      %p45 = scmp.eq.s32.totalorder %s8, 2
      %p46 = por %p44, %p45
      %p47 = scmp.ne.s32.totalorder %s39, %s42
      %p48 = scmp.eq.s32.totalorder %s8, 0
      %p49 = por %p47, %p48
      %p50 = scmp.ne.s32.totalorder %s39, %s42
      %p51 = scmp.eq.s32.totalorder %s13, 2
      %p52 = por %p50, %p51
      %p53 = scmp.ne.s32.totalorder %s42, %s43
      %p54 = scmp.eq.s32.totalorder %s13, 0
      %p55 = por %p53, %p54
      %p56 = scmp.ne.s32.totalorder %s42, %s43
      %p57 = scmp.eq.s32.totalorder %s14, 2
      %p58 = por %p56, %p57
      %p60 = scmp.ne.s32.totalorder %s43, %s59
      %p61 = scmp.eq.s32.totalorder %s14, 0
      %p62 = por %p60, %p61
      %s63 = ssub.s32 %s17, %s26
      %s64 = ssub.s32 %s16, %s30
      %s65 = sor.u32 %s63, %s64
      %p66 = scmp.eq.s32.totalorder %s65, 0
      %s68 = sadd.s32 %s67, 1
      %s69 = scalar_select %p66, %s67, %s68
      %p72 = pneg %p66
      %p73 = scmp.eq.s32.totalorder %s8, 2
      %p74 = por %p72, %p73
      %p75 = scmp.ne.s32.totalorder %s67, %s70
      %p76 = scmp.eq.s32.totalorder %s8, 0
      %p77 = por %p75, %p76
      %p78 = scmp.ne.s32.totalorder %s67, %s70
      %p79 = scmp.eq.s32.totalorder %s13, 2
      %p80 = por %p78, %p79
      %p81 = scmp.ne.s32.totalorder %s70, %s71
      %p82 = scmp.eq.s32.totalorder %s13, 0
      %p83 = por %p81, %p82
      %p84 = scmp.ne.s32.totalorder %s70, %s71
      %p85 = scmp.eq.s32.totalorder %s14, 2
      %p86 = por %p84, %p85
      %p88 = scmp.ne.s32.totalorder %s71, %s87
      %p89 = scmp.eq.s32.totalorder %s14, 0
      %p90 = por %p88, %p89
      %s91 = ssub.s32 %s15, %s34
      %s92 = ssub.s32 %s16, %s30
      %s93 = sor.u32 %s91, %s92
      %p94 = scmp.eq.s32.totalorder %s93, 0
      %s96 = sadd.s32 %s95, 1
      %s97 = scalar_select %p94, %s95, %s96
      %p100 = pneg %p94
      %p101 = scmp.eq.s32.totalorder %s8, 2
      %p102 = por %p100, %p101
      %p103 = scmp.ne.s32.totalorder %s95, %s98
      %p104 = scmp.eq.s32.totalorder %s8, 0
      %p105 = por %p103, %p104
      %p106 = scmp.ne.s32.totalorder %s95, %s98
      %p107 = scmp.eq.s32.totalorder %s13, 2
      %p108 = por %p106, %p107
      %p109 = scmp.ne.s32.totalorder %s98, %s99
      %p110 = scmp.eq.s32.totalorder %s13, 0
      %p111 = por %p109, %p110
      %p112 = scmp.ne.s32.totalorder %s98, %s99
      %p113 = scmp.eq.s32.totalorder %s14, 2
      %p114 = por %p112, %p113
      %p116 = scmp.ne.s32.totalorder %s99, %s115
      %p117 = scmp.eq.s32.totalorder %s14, 0
      %p118 = por %p116, %p117
      %p119 = scmp.le.s32.totalorder 1, %s8
      %p120 = scmp.lt.s32.totalorder %s8, 4
      %p121 = pnand %p119, %p120
      %p122 = pneg %p121
      // Predicated region
      $region9: #{_generator_forward.13} parent=5 // pred_check
        _
      $region10: #{_generator_forward.13} parent=5 // pred_check_branch
        %124 = sbr.rel (%p121) target = $region12
      $region11: #{_generator_forward.13} parent=5 // pred_region
        %s125 = ssub.s32 %s8, 1
      $region12: #{_generator_forward.13} parent=5 // pred_fallthru
        _
      %p126 = scmp.lt.s32.totalorder %s8, 3
      // Predicated region
      $region13: #{_generator_forward.13} parent=5 // pred_check
        %p127 = pneg %p126
      $region14: #{_generator_forward.13} parent=5 // pred_check_branch
        %129 = sbr.rel (%p127) target = $region16
      $region15: #{_generator_forward.13} parent=5 // pred_region
        // Predicated region
        $region17: #{_generator_forward.13} parent=15 // pred_check
          %p130 = pneg %p49
        $region18: #{_generator_forward.13} parent=15 // pred_check_branch
          %132 = sbr.rel (%p130) target = $region20
        $region19: #{_generator_forward.13} parent=15 // pred_region
          %s133 = sand.u32 %s39, 1
          %s134 = sand.u32 %s39, 1
          %s135 = smul.addr %s134, 64
          %s136 = scalar_lea.vmem [#allocation3], %s135
          %s137 = smul.u32 16, %s15
          %s138 = smul.addr %s137, 3
          %s139 = sadd.s32 %s17, %s138
          %s140 = smul.addr %s139, 4
          %s141 = scalar_lea.vmem %s0, %s140
          // Predicated region
          $region21: #{_generator_forward.13} parent=19 // pred_check
            _
          $region22: #{_generator_forward.13} parent=19 // pred_check_branch
            %143 = sbr.rel (0) target = $region24
          $region23: #{_generator_forward.13} parent=19 // pred_region
            // Predicated region
            $region25: #{_generator_forward.13} parent=23 // pred_check
              _
            $region26: #{_generator_forward.13} parent=23 // pred_check_branch
              %145 = sbr.rel target = $region28
            $region27: #{_generator_forward.13} parent=23 // pred_region
              // Predicated region
              $region40: #{_generator_forward.13} parent=27 // pred_check
                _
              $region41: #{_generator_forward.13} parent=27 // pred_check_branch
                %190 = sbr.rel (0) target = $region43
              $region42: #{_generator_forward.13} parent=27 // pred_region
                loop: start=0, step=1, limit=1
                $region44: #{_generator_forward.13} parent=42 // loop_pre_header
                  _
                $region45: #{_generator_forward.13} parent=42 // loop_header
                  %s192 = sphi 0, %s196
                  %p193 = scmp.ge.s32.totalorder %s192, 1
                  %s197 = sphi %s141, %s141
                  %s198 = sphi %s136, %s136
                $region46: #{_generator_forward.13} parent=42 // loop_header_branch
                  %195 = sbr.rel (%p193) target = $region50
                $region47: #{_generator_forward.13} parent=42 // loop_body
                  _
                $region48: #{_generator_forward.13} parent=42 // loop_footer
                  %s196 = sadd.s32 1, %s192
                $region49: #{_generator_forward.13} parent=42 // loop_footer_branch
                  %191 = sbr.rel target = $region45
                $region50: #{_generator_forward.13} parent=42 // loop_exit
                  _
                loop: start=0, step=1, limit=1
                $region51: #{_generator_forward.13} parent=42 // loop_pre_header
                  _
                $region52: #{_generator_forward.13} parent=42 // loop_header
                  %s201 = sphi 0, %s205
                  %p202 = scmp.ge.s32.totalorder %s201, 1
                  %s206 = sphi %s141, %s141
                  %s207 = sphi %s136, %s136
                $region53: #{_generator_forward.13} parent=42 // loop_header_branch
                  %204 = sbr.rel (%p202) target = $region57
                $region54: #{_generator_forward.13} parent=42 // loop_body
                  %v208 = vld [vmem:[%s206] sm:$0xf]
                  %209 = vst [vmem:[%s207] sm:$0xf] %v208
                  %v210 = vld [vmem:[%s206 + $0xc] sm:$0xf]
                  %211 = vst [vmem:[%s207 + $0x4] sm:$0xf] %v210
                  %v212 = vld [vmem:[%s206 + $0x18] sm:$0xf]
                  %213 = vst [vmem:[%s207 + $0x8] sm:$0xf] %v212
                  %v214 = vld [vmem:[%s206 + $0x24] sm:$0xf]
                  %215 = vst [vmem:[%s207 + $0xc] sm:$0xf] %v214
                  %v216 = vld [vmem:[%s206 + $0x30] sm:$0xf]
                  %217 = vst [vmem:[%s207 + $0x10] sm:$0xf] %v216
                  %v218 = vld [vmem:[%s206 + $0x3c] sm:$0xf]
                  %219 = vst [vmem:[%s207 + $0x14] sm:$0xf] %v218
                  %v220 = vld [vmem:[%s206 + $0x48] sm:$0xf]
                  %221 = vst [vmem:[%s207 + $0x18] sm:$0xf] %v220
                  %v222 = vld [vmem:[%s206 + $0x54] sm:$0xf]
                  %223 = vst [vmem:[%s207 + $0x1c] sm:$0xf] %v222
                  %v224 = vld [vmem:[%s206 + $0x60] sm:$0xf]
                  %225 = vst [vmem:[%s207 + $0x20] sm:$0xf] %v224
                  %v226 = vld [vmem:[%s206 + $0x6c] sm:$0xf]
                  %227 = vst [vmem:[%s207 + $0x24] sm:$0xf] %v226
                  %v228 = vld [vmem:[%s206 + $0x78] sm:$0xf]
                  %229 = vst [vmem:[%s207 + $0x28] sm:$0xf] %v228
                  %v230 = vld [vmem:[%s206 + $0x84] sm:$0xf]
                  %231 = vst [vmem:[%s207 + $0x2c] sm:$0xf] %v230
                  %v232 = vld [vmem:[%s206 + $0x90] sm:$0xf]
                  %233 = vst [vmem:[%s207 + $0x30] sm:$0xf] %v232
                  %v234 = vld [vmem:[%s206 + $0x9c] sm:$0xf]
                  %235 = vst [vmem:[%s207 + $0x34] sm:$0xf] %v234
                  %v236 = vld [vmem:[%s206 + $0xa8] sm:$0xf]
                  %237 = vst [vmem:[%s207 + $0x38] sm:$0xf] %v236
                  %v238 = vld [vmem:[%s206 + $0xb4] sm:$0xf]
                  %239 = vst [vmem:[%s207 + $0x3c] sm:$0xf] %v238
                $region55: #{_generator_forward.13} parent=42 // loop_footer
                  %s205 = sadd.s32 1, %s201
                $region56: #{_generator_forward.13} parent=42 // loop_footer_branch
                  %200 = sbr.rel target = $region52
                $region57: #{_generator_forward.13} parent=42 // loop_exit
                  _
              $region43: #{_generator_forward.13} parent=27 // pred_fallthru
                _
            $region28: #{_generator_forward.13} parent=23 // pred_fallthru
              _
            // Predicated region
            $region29: #{_generator_forward.13} parent=23 // pred_check
              _
            $region30: #{_generator_forward.13} parent=23 // pred_check_branch
              %147 = sbr.rel (0) target = $region32
            $region31: #{_generator_forward.13} parent=23 // pred_region
              loop: start=0, step=1, limit=1
              $region33: #{_generator_forward.13} parent=31 // loop_pre_header
                _
              $region34: #{_generator_forward.13} parent=31 // loop_header
                %s150 = sphi 0, %s154
                %p151 = scmp.ge.s32.totalorder %s150, 1
                %s155 = sphi %s141, %s141
                %s156 = sphi %s136, %s136
              $region35: #{_generator_forward.13} parent=31 // loop_header_branch
                %153 = sbr.rel (%p151) target = $region39
              $region36: #{_generator_forward.13} parent=31 // loop_body
                %v157 = vld [vmem:[%s155] sm:$0xf]
                %158 = vst [vmem:[%s156] sm:$0xf] %v157
                %v159 = vld [vmem:[%s155 + $0xc] sm:$0xf]
                %160 = vst [vmem:[%s156 + $0x4] sm:$0xf] %v159
                %v161 = vld [vmem:[%s155 + $0x18] sm:$0xf]
                %162 = vst [vmem:[%s156 + $0x8] sm:$0xf] %v161
                %v163 = vld [vmem:[%s155 + $0x24] sm:$0xf]
                %164 = vst [vmem:[%s156 + $0xc] sm:$0xf] %v163
                %v165 = vld [vmem:[%s155 + $0x30] sm:$0xf]
                %166 = vst [vmem:[%s156 + $0x10] sm:$0xf] %v165
                %v167 = vld [vmem:[%s155 + $0x3c] sm:$0xf]
                %168 = vst [vmem:[%s156 + $0x14] sm:$0xf] %v167
                %v169 = vld [vmem:[%s155 + $0x48] sm:$0xf]
                %170 = vst [vmem:[%s156 + $0x18] sm:$0xf] %v169
                %v171 = vld [vmem:[%s155 + $0x54] sm:$0xf]
                %172 = vst [vmem:[%s156 + $0x1c] sm:$0xf] %v171
                %v173 = vld [vmem:[%s155 + $0x60] sm:$0xf]
                %174 = vst [vmem:[%s156 + $0x20] sm:$0xf] %v173
                %v175 = vld [vmem:[%s155 + $0x6c] sm:$0xf]
                %176 = vst [vmem:[%s156 + $0x24] sm:$0xf] %v175
                %v177 = vld [vmem:[%s155 + $0x78] sm:$0xf]
                %178 = vst [vmem:[%s156 + $0x28] sm:$0xf] %v177
                %v179 = vld [vmem:[%s155 + $0x84] sm:$0xf]
                %180 = vst [vmem:[%s156 + $0x2c] sm:$0xf] %v179
                %v181 = vld [vmem:[%s155 + $0x90] sm:$0xf]
                %182 = vst [vmem:[%s156 + $0x30] sm:$0xf] %v181
                %v183 = vld [vmem:[%s155 + $0x9c] sm:$0xf]
                %184 = vst [vmem:[%s156 + $0x34] sm:$0xf] %v183
                %v185 = vld [vmem:[%s155 + $0xa8] sm:$0xf]
                %186 = vst [vmem:[%s156 + $0x38] sm:$0xf] %v185
                %v187 = vld [vmem:[%s155 + $0xb4] sm:$0xf]
                %188 = vst [vmem:[%s156 + $0x3c] sm:$0xf] %v187
              $region37: #{_generator_forward.13} parent=31 // loop_footer
                %s154 = sadd.s32 1, %s150
              $region38: #{_generator_forward.13} parent=31 // loop_footer_branch
                %149 = sbr.rel target = $region34
              $region39: #{_generator_forward.13} parent=31 // loop_exit
                _
            $region32: #{_generator_forward.13} parent=23 // pred_fallthru
              _
          $region24: #{_generator_forward.13} parent=19 // pred_fallthru
            _
          %240 = vnop
        $region20: #{_generator_forward.13} parent=15 // pred_fallthru
          _
        // Predicated region
        $region58: #{_generator_forward.13} parent=15 // pred_check
          %p241 = pneg %p77
        $region59: #{_generator_forward.13} parent=15 // pred_check_branch
          %243 = sbr.rel (%p241) target = $region61
        $region60: #{_generator_forward.13} parent=15 // pred_region
          %s244 = smul.u32 16, %s17
          %p245 = scmp.lt.s32.totalorder %s244, 47
          %s246 = scalar_select %p245, %s244, 47
          %p247 = scmp.lt.s32.totalorder %s16, 0
          %s248 = scalar_select %p247, %s16, 0
          %s249 = sadd.s32 %s248, %s246
          %s250 = smul.addr %s249, 4
          %s251 = scalar_lea.vmem %s1, %s250
          %s252 = smul.u32 16, %s17
        $region61: #{_generator_forward.13} parent=15 // pred_fallthru
          _
      $region16: #{_generator_forward.13} parent=5 // pred_fallthru
        _
      %p253 = scmp.le.s32.totalorder 1, %s8
      %p254 = scmp.lt.s32.totalorder %s8, 4
      %p255 = pnand %p253, %p254
      %p256 = pneg %p255
      // Predicated region
      $region62: #{_generator_forward.13} parent=5 // pred_check
        _
      $region63: #{_generator_forward.13} parent=5 // pred_check_branch
        %258 = sbr.rel (%p255) target = $region65
      $region64: #{_generator_forward.13} parent=5 // pred_region
        %s259 = ssub.s32 %s8, 1
        %s260 = sand.u32 %s42, 1
        %s261 = sand.u32 %s42, 1
        %s262 = smul.addr %s261, 64
        %s263 = scalar_lea.vmem [#allocation3], %s262
        // Predicated region
        $region66: #{_generator_forward.13} parent=64 // pred_check
          %p264 = pneg %p55
        $region67: #{_generator_forward.13} parent=64 // pred_check_branch
          %266 = sbr.rel (%p264) target = $region69
        $region68: #{_generator_forward.13} parent=64 // pred_region
          _
        $region69: #{_generator_forward.13} parent=64 // pred_fallthru
          _
        %s267 = sand.u32 %s42, 1
        %s268 = sand.u32 %s42, 1
        %s269 = smul.addr %s268, 64
        %s270 = scalar_lea.vmem [#allocation3], %s269
        %p271 = pneg %p55
        %p272 = pneg %p52
        %s273 = smul.u32 16, %s20
        %p274 = scmp.lt.s32.totalorder %s273, 47
        %s275 = scalar_select %p274, %s273, 47
        %p276 = scmp.lt.s32.totalorder %s19, 0
        %s277 = scalar_select %p276, %s19, 0
        %s278 = sadd.s32 %s277, %s275
        %s279 = smul.addr %s278, 4
        %s280 = scalar_lea.vmem %s1, %s279
        %p281 = pneg %p83
        %p282 = pneg %p80
        %p283 = pneg %p111
        %p284 = pneg %p108
        %s285 = smul.u32 16, %s18
        %p286 = scmp.lt.s32.totalorder %s285, 15
        %s287 = scalar_select %p286, %s285, 15
        %p288 = scmp.lt.s32.totalorder %s19, 0
        %s289 = scalar_select %p288, %s19, 0
        %s290 = sadd.s32 %s289, %s287
        %s291 = smul.addr %s290, 8
        %s292 = scalar_lea.vmem %s2, %s291
        %s293 = smul.u32 16, %s18
        %s294 = smul.u32 16, %s20
        %p295 = scmp.lt.s32.totalorder %s294, 47
        %s296 = scalar_select %p295, %s294, 47
        %p297 = scmp.lt.s32.totalorder %s19, 0
        %s298 = scalar_select %p297, %s19, 0
        %s299 = sadd.s32 %s298, %s296
        %s300 = smul.addr %s299, 4
        %s301 = scalar_lea.vmem %s1, %s300
        %s302 = smul.u32 16, %s20
        %s303 = smul.u32 16, %s18
        %p304 = scmp.lt.s32.totalorder %s303, 15
        %s305 = scalar_select %p304, %s303, 15
        %p306 = scmp.lt.s32.totalorder %s19, 0
        %s307 = scalar_select %p306, %s19, 0
        %s308 = sadd.s32 %s307, %s305
        %s309 = smul.addr %s308, 8
        %s310 = scalar_lea.vmem %s2, %s309
        %s311 = smul.u32 16, %s18
        %p313 = scmp.eq.s32.totalorder %s20, 0
        // Predicated region
        $region70: #{_generator_forward.13} parent=64 // pred_check
          %p314 = pneg %p313
        $region71: #{_generator_forward.13} parent=64 // pred_check_branch
          %316 = sbr.rel (%p314) target = $region73
        $region72: #{_generator_forward.13} parent=64 // pred_region
          %317 = vst [vmem:[#allocation2] sm:$0xff] 0.0
          %318 = vst [vmem:[#allocation2 + $0x8] sm:$0xff] 0.0
          %319 = vst [vmem:[#allocation2 + $0x10] sm:$0xff] 0.0
          %320 = vst [vmem:[#allocation2 + $0x18] sm:$0xff] 0.0
          %321 = vst [vmem:[#allocation2 + $0x20] sm:$0xff] 0.0
          %322 = vst [vmem:[#allocation2 + $0x28] sm:$0xff] 0.0
          %323 = vst [vmem:[#allocation2 + $0x30] sm:$0xff] 0.0
          %324 = vst [vmem:[#allocation2 + $0x38] sm:$0xff] 0.0
          %325 = vst [vmem:[#allocation2 + $0x40] sm:$0xff] 0.0
          %326 = vst [vmem:[#allocation2 + $0x48] sm:$0xff] 0.0
          %327 = vst [vmem:[#allocation2 + $0x50] sm:$0xff] 0.0
          %328 = vst [vmem:[#allocation2 + $0x58] sm:$0xff] 0.0
          %329 = vst [vmem:[#allocation2 + $0x60] sm:$0xff] 0.0
          %330 = vst [vmem:[#allocation2 + $0x68] sm:$0xff] 0.0
          %331 = vst [vmem:[#allocation2 + $0x70] sm:$0xff] 0.0
          %332 = vst [vmem:[#allocation2 + $0x78] sm:$0xff] 0.0
        $region73: #{_generator_forward.13} parent=64 // pred_fallthru
          _
        %v333 = vld [vmem:[#allocation2] sm:$0xff]
        %v334 = vld [vmem:[#allocation2 + $0x8] sm:$0xff]
        %v335 = vld [vmem:[#allocation2 + $0x10] sm:$0xff]
        %v336 = vld [vmem:[#allocation2 + $0x18] sm:$0xff]
        %v337 = vld [vmem:[#allocation2 + $0x20] sm:$0xff]
        %v338 = vld [vmem:[#allocation2 + $0x28] sm:$0xff]
        %v339 = vld [vmem:[#allocation2 + $0x30] sm:$0xff]
        %v340 = vld [vmem:[#allocation2 + $0x38] sm:$0xff]
        %v341 = vld [vmem:[#allocation2 + $0x40] sm:$0xff]
        %v342 = vld [vmem:[#allocation2 + $0x48] sm:$0xff]
        %v343 = vld [vmem:[#allocation2 + $0x50] sm:$0xff]
        %v344 = vld [vmem:[#allocation2 + $0x58] sm:$0xff]
        %v345 = vld [vmem:[#allocation2 + $0x60] sm:$0xff]
        %v346 = vld [vmem:[#allocation2 + $0x68] sm:$0xff]
        %v347 = vld [vmem:[#allocation2 + $0x70] sm:$0xff]
        %v348 = vld [vmem:[#allocation2 + $0x78] sm:$0xff]
        %v349 = vld [vmem:[%s263] sm:$0xf]
        %v350 = vld [vmem:[%s263 + $0x4] sm:$0xf]
        %v351 = vld [vmem:[%s263 + $0x8] sm:$0xf]
        %v352 = vld [vmem:[%s263 + $0xc] sm:$0xf]
        %v353 = vld [vmem:[%s263 + $0x10] sm:$0xf]
        %v354 = vld [vmem:[%s263 + $0x14] sm:$0xf]
        %v355 = vld [vmem:[%s263 + $0x18] sm:$0xf]
        %v356 = vld [vmem:[%s263 + $0x1c] sm:$0xf]
        %v357 = vld [vmem:[%s263 + $0x20] sm:$0xf]
        %v358 = vld [vmem:[%s263 + $0x24] sm:$0xf]
        %v359 = vld [vmem:[%s263 + $0x28] sm:$0xf]
        %v360 = vld [vmem:[%s263 + $0x2c] sm:$0xf]
        %v361 = vld [vmem:[%s263 + $0x30] sm:$0xf]
        %v362 = vld [vmem:[%s263 + $0x34] sm:$0xf]
        %v363 = vld [vmem:[%s263 + $0x38] sm:$0xf]
        %v364 = vld [vmem:[%s263 + $0x3c] sm:$0xf]
        %v365 = vld [vmem:[%s301] sm:$0xf]
        %v366 = vld [vmem:[%s301 + $0x4] sm:$0xf]
        %v367 = vld [vmem:[%s301 + $0x8] sm:$0xf]
        %v368 = vld [vmem:[%s301 + $0xc] sm:$0xf]
        %v369 = vld [vmem:[%s301 + $0x10] sm:$0xf]
        %v370 = vld [vmem:[%s301 + $0x14] sm:$0xf]
        %v371 = vld [vmem:[%s301 + $0x18] sm:$0xf]
        %v372 = vld [vmem:[%s301 + $0x1c] sm:$0xf]
        %v373 = vld [vmem:[%s301 + $0x20] sm:$0xf]
        %v374 = vld [vmem:[%s301 + $0x24] sm:$0xf]
        %v375 = vld [vmem:[%s301 + $0x28] sm:$0xf]
        %v376 = vld [vmem:[%s301 + $0x2c] sm:$0xf]
        %v377 = vld [vmem:[%s301 + $0x30] sm:$0xf]
        %v378 = vld [vmem:[%s301 + $0x34] sm:$0xf]
        %v379 = vld [vmem:[%s301 + $0x38] sm:$0xf]
        %v380 = vld [vmem:[%s301 + $0x3c] sm:$0xf]
        %v397 = vunpack.c.l.b16 %v349
        %v398 = vunpack.c.l.b16 %v350
        %v399 = vunpack.c.l.b16 %v351
        %v400 = vunpack.c.l.b16 %v352
        %v401 = vunpack.c.l.b16 %v353
        %v402 = vunpack.c.l.b16 %v354
        %v403 = vunpack.c.l.b16 %v355
        %v404 = vunpack.c.l.b16 %v356
        %v405 = vunpack.c.l.b16 %v357
        %v406 = vunpack.c.l.b16 %v358
        %v407 = vunpack.c.l.b16 %v359
        %v408 = vunpack.c.l.b16 %v360
        %v409 = vunpack.c.l.b16 %v361
        %v410 = vunpack.c.l.b16 %v362
        %v411 = vunpack.c.l.b16 %v363
        %v412 = vunpack.c.l.b16 %v364
        %v413 = vpack.c.b16 %v398, %v397
        %v414 = vpack.c.b16 %v400, %v399
        %v415 = vpack.c.b16 %v402, %v401
        %v416 = vpack.c.b16 %v404, %v403
        %v417 = vpack.c.b16 %v406, %v405
        %v418 = vpack.c.b16 %v408, %v407
        %v419 = vpack.c.b16 %v410, %v409
        %v420 = vpack.c.b16 %v412, %v411
        %v445 = vunpack.c.l.b16 %v365
        %v446 = vunpack.c.l.b16 %v366
        %v447 = vunpack.c.l.b16 %v367
        %v448 = vunpack.c.l.b16 %v368
        %v449 = vunpack.c.l.b16 %v369
        %v450 = vunpack.c.l.b16 %v370
        %v451 = vunpack.c.l.b16 %v371
        %v452 = vunpack.c.l.b16 %v372
        %v453 = vunpack.c.l.b16 %v373
        %v454 = vunpack.c.l.b16 %v374
        %v455 = vunpack.c.l.b16 %v375
        %v456 = vunpack.c.l.b16 %v376
        %v457 = vunpack.c.l.b16 %v377
        %v458 = vunpack.c.l.b16 %v378
        %v459 = vunpack.c.l.b16 %v379
        %v460 = vunpack.c.l.b16 %v380
        %v461 = vpack.c.b16 %v446, %v445
        %v462 = vpack.c.b16 %v448, %v447
        %v463 = vpack.c.b16 %v450, %v449
        %v464 = vpack.c.b16 %v452, %v451
        %v465 = vpack.c.b16 %v454, %v453
        %v466 = vpack.c.b16 %v456, %v455
        %v467 = vpack.c.b16 %v458, %v457
        %v468 = vpack.c.b16 %v460, %v459
        %477 = vmatprep.subr.bf16.mxu0 0
        %478 = vmatpush1.bf16.msra.mxu0 %v461
        %479 = vmatprep.subr.bf16.mxu0 0
        %480 = vmatpush1.bf16.msra.mxu0 %v462
        %481 = vmatprep.subr.bf16.mxu0 0
        %482 = vmatpush1.bf16.msra.mxu0 %v463
        %483 = vmatprep.subr.bf16.mxu0 0
        %484 = vmatpush1.bf16.msra.mxu0 %v464
        %485 = vmatprep.subr.bf16.mxu0 0
        %486 = vmatpush1.bf16.msra.mxu0 %v465
        %487 = vmatprep.subr.bf16.mxu0 0
        %488 = vmatpush1.bf16.msra.mxu0 %v466
        %489 = vmatprep.subr.bf16.mxu0 0
        %490 = vmatpush1.bf16.msra.mxu0 %v467
        %491 = vmatprep.subr.bf16.mxu0 0
        %492 = vmatpush1.bf16.msra.mxu0 %v468
        %493 = vmatprep.subr.bf16.mxu0 0
        %494 = vmatpush1.bf16.msra.mxu0 0
        %495 = vmatprep.subr.bf16.mxu0 0
        %496 = vmatpush1.bf16.msra.mxu0 0
        %497 = vmatprep.subr.bf16.mxu0 0
        %498 = vmatpush1.bf16.msra.mxu0 0
        %499 = vmatprep.subr.bf16.mxu0 0
        %500 = vmatpush1.bf16.msra.mxu0 0
        %501 = vmatprep.subr.bf16.mxu0 0
        %502 = vmatpush1.bf16.msra.mxu0 0
        %503 = vmatprep.subr.bf16.mxu0 0
        %504 = vmatpush1.bf16.msra.mxu0 0
        %505 = vmatprep.subr.bf16.mxu0 0
        %506 = vmatpush1.bf16.msra.mxu0 0
        %507 = vmatprep.subr.bf16.mxu0 0
        %508 = vmatpush1.bf16.msra.mxu0 0
        %509 = vmatprep.mubr.bf16.mxu0 0
        %510 = vmatmul.mubr.bf16.gmra.mrb[0].mxu0 %v413
        %v511 = vpop.f32.mrb[0].mxu0
        %v512 = vadd.f32 0.0, %v511
        %v513 = vpop.f32.mrb[0].mxu0
        %v514 = vpop.f32.mrb[0].mxu0
        %v515 = vadd.f32 0.0, %v514
        %v516 = vpop.f32.mrb[0].mxu0
        %517 = vmatprep.mubr.bf16.mxu0 0
        %518 = vmatmul.mubr.bf16.gmra.mrb[0].mxu0 %v414
        %v519 = vpop.f32.mrb[0].mxu0
        %v520 = vadd.f32 0.0, %v519
        %v521 = vpop.f32.mrb[0].mxu0
        %v522 = vpop.f32.mrb[0].mxu0
        %v523 = vadd.f32 0.0, %v522
        %v524 = vpop.f32.mrb[0].mxu0
        %525 = vmatprep.mubr.bf16.mxu0 0
        %526 = vmatmul.mubr.bf16.gmra.mrb[0].mxu0 %v415
        %v527 = vpop.f32.mrb[0].mxu0
        %v528 = vadd.f32 0.0, %v527
        %v529 = vpop.f32.mrb[0].mxu0
        %v530 = vpop.f32.mrb[0].mxu0
        %v531 = vadd.f32 0.0, %v530
        %v532 = vpop.f32.mrb[0].mxu0
        %533 = vmatprep.mubr.bf16.mxu0 0
        %534 = vmatmul.mubr.bf16.gmra.mrb[0].mxu0 %v416
        %v535 = vpop.f32.mrb[0].mxu0
        %v536 = vadd.f32 0.0, %v535
        %v537 = vpop.f32.mrb[0].mxu0
        %v538 = vpop.f32.mrb[0].mxu0
        %v539 = vadd.f32 0.0, %v538
        %v540 = vpop.f32.mrb[0].mxu0
        %541 = vmatprep.mubr.bf16.mxu0 0
        %542 = vmatmul.mubr.bf16.gmra.mrb[0].mxu0 %v417
        %v543 = vpop.f32.mrb[0].mxu0
        %v544 = vadd.f32 0.0, %v543
        %v545 = vpop.f32.mrb[0].mxu0
        %v546 = vpop.f32.mrb[0].mxu0
        %v547 = vadd.f32 0.0, %v546
        %v548 = vpop.f32.mrb[0].mxu0
        %549 = vmatprep.mubr.bf16.mxu0 0
        %550 = vmatmul.mubr.bf16.gmra.mrb[0].mxu0 %v418
        %v551 = vpop.f32.mrb[0].mxu0
        %v552 = vadd.f32 0.0, %v551
        %v553 = vpop.f32.mrb[0].mxu0
        %v554 = vpop.f32.mrb[0].mxu0
        %v555 = vadd.f32 0.0, %v554
        %v556 = vpop.f32.mrb[0].mxu0
        %557 = vmatprep.mubr.bf16.mxu0 0
        %558 = vmatmul.mubr.bf16.gmra.mrb[0].mxu0 %v419
        %v559 = vpop.f32.mrb[0].mxu0
        %v560 = vadd.f32 0.0, %v559
        %v561 = vpop.f32.mrb[0].mxu0
        %v562 = vpop.f32.mrb[0].mxu0
        %v563 = vadd.f32 0.0, %v562
        %v564 = vpop.f32.mrb[0].mxu0
        %565 = vmatprep.mubr.bf16.mxu0 0
        %566 = vmatmul.mubr.bf16.gmra.mrb[0].mxu0 %v420
        %v567 = vpop.f32.mrb[0].mxu0
        %v568 = vadd.f32 0.0, %v567
        %v569 = vpop.f32.mrb[0].mxu0
        %v570 = vpop.f32.mrb[0].mxu0
        %v571 = vadd.f32 0.0, %v570
        %v572 = vpop.f32.mrb[0].mxu0
        %573 = vdwg.mxu0
        %v574 = vadd.f32 %v333, %v512
        %v575 = vadd.f32 %v334, %v515
        %v576 = vadd.f32 %v335, %v520
        %v577 = vadd.f32 %v336, %v523
        %v578 = vadd.f32 %v337, %v528
        %v579 = vadd.f32 %v338, %v531
        %v580 = vadd.f32 %v339, %v536
        %v581 = vadd.f32 %v340, %v539
        %v582 = vadd.f32 %v341, %v544
        %v583 = vadd.f32 %v342, %v547
        %v584 = vadd.f32 %v343, %v552
        %v585 = vadd.f32 %v344, %v555
        %v586 = vadd.f32 %v345, %v560
        %v587 = vadd.f32 %v346, %v563
        %v588 = vadd.f32 %v347, %v568
        %v589 = vadd.f32 %v348, %v571
        %590 = vst [vmem:[#allocation2] sm:$0xff] %v574
        %591 = vst [vmem:[#allocation2 + $0x8] sm:$0xff] %v575
        %592 = vst [vmem:[#allocation2 + $0x10] sm:$0xff] %v576
        %593 = vst [vmem:[#allocation2 + $0x18] sm:$0xff] %v577
        %594 = vst [vmem:[#allocation2 + $0x20] sm:$0xff] %v578
        %595 = vst [vmem:[#allocation2 + $0x28] sm:$0xff] %v579
        %596 = vst [vmem:[#allocation2 + $0x30] sm:$0xff] %v580
        %597 = vst [vmem:[#allocation2 + $0x38] sm:$0xff] %v581
        %598 = vst [vmem:[#allocation2 + $0x40] sm:$0xff] %v582
        %599 = vst [vmem:[#allocation2 + $0x48] sm:$0xff] %v583
        %600 = vst [vmem:[#allocation2 + $0x50] sm:$0xff] %v584
        %601 = vst [vmem:[#allocation2 + $0x58] sm:$0xff] %v585
        %602 = vst [vmem:[#allocation2 + $0x60] sm:$0xff] %v586
        %603 = vst [vmem:[#allocation2 + $0x68] sm:$0xff] %v587
        %604 = vst [vmem:[#allocation2 + $0x70] sm:$0xff] %v588
        %605 = vst [vmem:[#allocation2 + $0x78] sm:$0xff] %v589
        %p606 = scmp.eq.s32.totalorder %s20, 2
        // Predicated region
        $region74: #{_generator_forward.13} parent=64 // pred_check
          %p607 = pneg %p606
        $region75: #{_generator_forward.13} parent=64 // pred_check_branch
          %609 = sbr.rel (%p607) target = $region77
        $region76: #{_generator_forward.13} parent=64 // pred_region
          %v610 = vld [vmem:[#allocation2] sm:$0xff]
          %v611 = vld [vmem:[#allocation2 + $0x8] sm:$0xff]
          %v612 = vld [vmem:[#allocation2 + $0x10] sm:$0xff]
          %v613 = vld [vmem:[#allocation2 + $0x18] sm:$0xff]
          %v614 = vld [vmem:[#allocation2 + $0x20] sm:$0xff]
          %v615 = vld [vmem:[#allocation2 + $0x28] sm:$0xff]
          %v616 = vld [vmem:[#allocation2 + $0x30] sm:$0xff]
          %v617 = vld [vmem:[#allocation2 + $0x38] sm:$0xff]
          %v618 = vld [vmem:[#allocation2 + $0x40] sm:$0xff]
          %v619 = vld [vmem:[#allocation2 + $0x48] sm:$0xff]
          %v620 = vld [vmem:[#allocation2 + $0x50] sm:$0xff]
          %v621 = vld [vmem:[#allocation2 + $0x58] sm:$0xff]
          %v622 = vld [vmem:[#allocation2 + $0x60] sm:$0xff]
          %v623 = vld [vmem:[#allocation2 + $0x68] sm:$0xff]
          %v624 = vld [vmem:[#allocation2 + $0x70] sm:$0xff]
          %v625 = vld [vmem:[#allocation2 + $0x78] sm:$0xff]
          %626 = vst [vmem:[%s310] sm:$0xff] %v610
          %627 = vst [vmem:[%s310 + $0x8] sm:$0xff] %v611
          %628 = vst [vmem:[%s310 + $0x10] sm:$0xff] %v612
          %629 = vst [vmem:[%s310 + $0x18] sm:$0xff] %v613
          %630 = vst [vmem:[%s310 + $0x20] sm:$0xff] %v614
          %631 = vst [vmem:[%s310 + $0x28] sm:$0xff] %v615
          %632 = vst [vmem:[%s310 + $0x30] sm:$0xff] %v616
          %633 = vst [vmem:[%s310 + $0x38] sm:$0xff] %v617
          %634 = vst [vmem:[%s310 + $0x40] sm:$0xff] %v618
          %635 = vst [vmem:[%s310 + $0x48] sm:$0xff] %v619
          %636 = vst [vmem:[%s310 + $0x50] sm:$0xff] %v620
          %637 = vst [vmem:[%s310 + $0x58] sm:$0xff] %v621
          %638 = vst [vmem:[%s310 + $0x60] sm:$0xff] %v622
          %639 = vst [vmem:[%s310 + $0x68] sm:$0xff] %v623
          %640 = vst [vmem:[%s310 + $0x70] sm:$0xff] %v624
          %641 = vst [vmem:[%s310 + $0x78] sm:$0xff] %v625
        $region77: #{_generator_forward.13} parent=64 // pred_fallthru
          _
        %s642 = smul.u32 16, %s18
        %p643 = scmp.lt.s32.totalorder %s642, 15
        %s644 = scalar_select %p643, %s642, 15
        %p645 = scmp.lt.s32.totalorder %s19, 0
        %s646 = scalar_select %p645, %s19, 0
        %s647 = sadd.s32 %s646, %s644
        %s648 = smul.addr %s647, 8
        %s649 = scalar_lea.vmem %s2, %s648
        // Predicated region
        $region78: #{_generator_forward.13} parent=64 // pred_check
          %p650 = pneg %p108
        $region79: #{_generator_forward.13} parent=64 // pred_check_branch
          %652 = sbr.rel (%p650) target = $region81
        $region80: #{_generator_forward.13} parent=64 // pred_region
          %s653 = smul.u32 16, %s18
        $region81: #{_generator_forward.13} parent=64 // pred_fallthru
          _
        // Predicated region
        $region82: #{_generator_forward.13} parent=64 // pred_check
          %p654 = pneg %p108
        $region83: #{_generator_forward.13} parent=64 // pred_check_branch
          %656 = sbr.rel (%p654) target = $region85
        $region84: #{_generator_forward.13} parent=64 // pred_region
          %s657 = smul.u32 16, %s18
          %p658 = scmp.lt.s32.totalorder %s657, 15
          %s659 = scalar_select %p658, %s657, 15
          %p660 = scmp.lt.s32.totalorder %s19, 0
          %s661 = scalar_select %p660, %s19, 0
          %s662 = sadd.s32 %s661, %s659
          %s663 = smul.addr %s662, 8
          %s664 = scalar_lea.vmem %s2, %s663
        $region85: #{_generator_forward.13} parent=64 // pred_fallthru
          _
      $region65: #{_generator_forward.13} parent=5 // pred_fallthru
        _
      %p665 = scmp.le.s32.totalorder 2, %s8
      // Predicated region
      $region86: #{_generator_forward.13} parent=5 // pred_check
        %p666 = pneg %p665
      $region87: #{_generator_forward.13} parent=5 // pred_check_branch
        %668 = sbr.rel (%p666) target = $region89
      $region88: #{_generator_forward.13} parent=5 // pred_region
        %s669 = ssub.s32 %s8, 2
      $region89: #{_generator_forward.13} parent=5 // pred_fallthru
        _
    $region6: #{_generator_forward.13} parent=1 // loop_footer
      %s12 = sadd.s32 1, %s8
    $region7: #{_generator_forward.13} parent=1 // loop_footer_branch
      %7 = sbr.rel target = $region3
    $region8: #{_generator_forward.13} parent=1 // loop_exit
      _

// kernel: _generator_forward.14
$region0: #{_generator_forward.14}
  #allocation0 [shape = 'u32[]', space=smem, size = 0x4, offset = 0x4, fixed_abs, tag = 'smem constant byte address 0x4 - core index']
  #allocation1 [shape = 'u32[144,128]{1,0:T(1,128)}', space=vmem, size = 0x12000, scoped, tag = 'internal scratch']
  %s0 = inlined_call_operand.vmem [shape: f32[512,16], index: 0, kind: input, shape index: {}]
  %s1 = inlined_call_operand.hbm [shape: f32[1,16], index: 1, kind: input, shape index: {}]
  %s2 = inlined_call_operand.hbm [shape: f32[1,16], index: 2, kind: input, shape index: {}]
  %s3 = inlined_call_operand.vmem [shape: f32[512,16], index: 3, kind: output, shape index: {}]
  %s4 = sld [smem:[#allocation0]]
  $region30: #{_generator_forward.14} parent=0
    _
  %s6 = ssub.s32 1, %s4
  %s7 = scalar_select 0, %s6, %s4
  $region1: #{_generator_forward.14} parent=0
    #allocation2 [shape = 'u8[512]{0}', space=vmem, size = 0x400, scoped, tag = 'input window, operand 1, single buffered']
    #allocation3 [shape = 's32[1]{0}', space=sflag, size = 0x4, scoped, tag = 'scoped memory for _generator_forward.14']
    #allocation4 [shape = 'u8[512]{0}', space=vmem, size = 0x400, scoped, tag = 'input window, operand 2, single buffered']
    #allocation5 [shape = 's32[1]{0}', space=sflag, size = 0x4, scoped, tag = 'scoped memory for _generator_forward.14']
    %8 = vsyncpa [#allocation3], 0
    %9 = vsyncpa [#allocation5], 0
    // Predicated region
    $region2: #{_generator_forward.14} parent=1 // pred_check
      _
    $region3: #{_generator_forward.14} parent=1 // pred_check_branch
      %11 = sbr.rel (0) target = $region5
    $region4: #{_generator_forward.14} parent=1 // pred_region
      _
    $region5: #{_generator_forward.14} parent=1 // pred_fallthru
      _
    // Predicated region
    $region6: #{_generator_forward.14} parent=1 // pred_check
      _
    $region7: #{_generator_forward.14} parent=1 // pred_check_branch
      %13 = sbr.rel (0) target = $region9
    $region8: #{_generator_forward.14} parent=1 // pred_region
      %s15 = ssub.s32 16, 16
      %16 = vsyncadd [#allocation3], %s15
      %s18 = sshll.u32 [#allocation2], 4
      %s19 = int_to_ptr.vmem [resolvable:$true] %s18
      %21 = dma.hbm_to_vmem [thread:$0]  %s1, 16, %s19, [#allocation3]
    $region9: #{_generator_forward.14} parent=1 // pred_fallthru
      _
    // Predicated region
    $region10: #{_generator_forward.14} parent=1 // pred_check
      _
    $region11: #{_generator_forward.14} parent=1 // pred_check_branch
      %23 = sbr.rel (0) target = $region13
    $region12: #{_generator_forward.14} parent=1 // pred_region
      %s25 = ssub.s32 16, 16
      %26 = vsyncadd [#allocation5], %s25
      %s28 = sshll.u32 [#allocation4], 4
      %s29 = int_to_ptr.vmem [resolvable:$true] %s28
      %31 = dma.hbm_to_vmem [thread:$0]  %s2, 16, %s29, [#allocation5]
    $region13: #{_generator_forward.14} parent=1 // pred_fallthru
      _
    // Predicated region
    $region14: #{_generator_forward.14} parent=1 // pred_check
      _
    $region15: #{_generator_forward.14} parent=1 // pred_check_branch
      %33 = sbr.rel (0) target = $region17
    $region16: #{_generator_forward.14} parent=1 // pred_region
      %34 = dma.done [#allocation3], 16
    $region17: #{_generator_forward.14} parent=1 // pred_fallthru
      _
    // Predicated region
    $region18: #{_generator_forward.14} parent=1 // pred_check
      _
    $region19: #{_generator_forward.14} parent=1 // pred_check_branch
      %36 = sbr.rel (0) target = $region21
    $region20: #{_generator_forward.14} parent=1 // pred_region
      %37 = dma.done [#allocation5], 16
    $region21: #{_generator_forward.14} parent=1 // pred_fallthru
      _
    %v38 = vld [vmem:[%s0] sm:$0xff]
    %v39 = vld [vmem:[%s0 + $0x8] sm:$0xff]
    %v40 = vld [vmem:[%s0 + $0x10] sm:$0xff]
    %v41 = vld [vmem:[%s0 + $0x18] sm:$0xff]
    %v42 = vld [vmem:[%s0 + $0x20] sm:$0xff]
    %v43 = vld [vmem:[%s0 + $0x28] sm:$0xff]
    %v44 = vld [vmem:[%s0 + $0x30] sm:$0xff]
    %v45 = vld [vmem:[%s0 + $0x38] sm:$0xff]
    %v46 = vld [vmem:[%s0 + $0x40] sm:$0xff]
    %v47 = vld [vmem:[%s0 + $0x48] sm:$0xff]
    %v48 = vld [vmem:[%s0 + $0x50] sm:$0xff]
    %v49 = vld [vmem:[%s0 + $0x58] sm:$0xff]
    %v50 = vld [vmem:[%s0 + $0x60] sm:$0xff]
    %v51 = vld [vmem:[%s0 + $0x68] sm:$0xff]
    %v52 = vld [vmem:[%s0 + $0x70] sm:$0xff]
    %v53 = vld [vmem:[%s0 + $0x78] sm:$0xff]
    %v54 = vld [vmem:[%s0 + $0x80] sm:$0xff]
    %v55 = vld [vmem:[%s0 + $0x88] sm:$0xff]
    %v56 = vld [vmem:[%s0 + $0x90] sm:$0xff]
    %v57 = vld [vmem:[%s0 + $0x98] sm:$0xff]
    %v58 = vld [vmem:[%s0 + $0xa0] sm:$0xff]
    %v59 = vld [vmem:[%s0 + $0xa8] sm:$0xff]
    %v60 = vld [vmem:[%s0 + $0xb0] sm:$0xff]
    %v61 = vld [vmem:[%s0 + $0xb8] sm:$0xff]
    %v62 = vld [vmem:[%s0 + $0xc0] sm:$0xff]
    %v63 = vld [vmem:[%s0 + $0xc8] sm:$0xff]
    %v64 = vld [vmem:[%s0 + $0xd0] sm:$0xff]
    %v65 = vld [vmem:[%s0 + $0xd8] sm:$0xff]
    %v66 = vld [vmem:[%s0 + $0xe0] sm:$0xff]
    %v67 = vld [vmem:[%s0 + $0xe8] sm:$0xff]
    %v68 = vld [vmem:[%s0 + $0xf0] sm:$0xff]
    %v69 = vld [vmem:[%s0 + $0xf8] sm:$0xff]
    %v70 = vld [vmem:[%s0 + $0x100] sm:$0xff]
    %v71 = vld [vmem:[%s0 + $0x108] sm:$0xff]
    %v72 = vld [vmem:[%s0 + $0x110] sm:$0xff]
    %v73 = vld [vmem:[%s0 + $0x118] sm:$0xff]
    %v74 = vld [vmem:[%s0 + $0x120] sm:$0xff]
    %v75 = vld [vmem:[%s0 + $0x128] sm:$0xff]
    %v76 = vld [vmem:[%s0 + $0x130] sm:$0xff]
    %v77 = vld [vmem:[%s0 + $0x138] sm:$0xff]
    %v78 = vld [vmem:[%s0 + $0x140] sm:$0xff]
    %v79 = vld [vmem:[%s0 + $0x148] sm:$0xff]
    %v80 = vld [vmem:[%s0 + $0x150] sm:$0xff]
    %v81 = vld [vmem:[%s0 + $0x158] sm:$0xff]
    %v82 = vld [vmem:[%s0 + $0x160] sm:$0xff]
    %v83 = vld [vmem:[%s0 + $0x168] sm:$0xff]
    %v84 = vld [vmem:[%s0 + $0x170] sm:$0xff]
    %v85 = vld [vmem:[%s0 + $0x178] sm:$0xff]
    %v86 = vld [vmem:[%s0 + $0x180] sm:$0xff]
    %v87 = vld [vmem:[%s0 + $0x188] sm:$0xff]
    %v88 = vld [vmem:[%s0 + $0x190] sm:$0xff]
    %v89 = vld [vmem:[%s0 + $0x198] sm:$0xff]
    %v90 = vld [vmem:[%s0 + $0x1a0] sm:$0xff]
    %v91 = vld [vmem:[%s0 + $0x1a8] sm:$0xff]
    %v92 = vld [vmem:[%s0 + $0x1b0] sm:$0xff]
    %v93 = vld [vmem:[%s0 + $0x1b8] sm:$0xff]
    %v94 = vld [vmem:[%s0 + $0x1c0] sm:$0xff]
    %v95 = vld [vmem:[%s0 + $0x1c8] sm:$0xff]
    %v96 = vld [vmem:[%s0 + $0x1d0] sm:$0xff]
    %v97 = vld [vmem:[%s0 + $0x1d8] sm:$0xff]
    %v98 = vld [vmem:[%s0 + $0x1e0] sm:$0xff]
    %v99 = vld [vmem:[%s0 + $0x1e8] sm:$0xff]
    %v100 = vld [vmem:[%s0 + $0x1f0] sm:$0xff]
    %v101 = vld [vmem:[%s0 + $0x1f8] sm:$0xff]
    %vm102 = vcmask 130048
    %v103 = vsel %vm102, %v38, 0.0
    %v104 = vsel %vm102, %v39, 0.0
    %v105 = vadd.f32 %v103, %v104
    %v106 = vsel %vm102, %v40, 0.0
    %v107 = vadd.f32 %v105, %v106
    %v108 = vsel %vm102, %v41, 0.0
    %v109 = vadd.f32 %v107, %v108
    %v110 = vsel %vm102, %v42, 0.0
    %v111 = vadd.f32 %v109, %v110
    %v112 = vsel %vm102, %v43, 0.0
    %v113 = vadd.f32 %v111, %v112
    %v114 = vsel %vm102, %v44, 0.0
    %v115 = vadd.f32 %v113, %v114
    %v116 = vsel %vm102, %v45, 0.0
    %v117 = vadd.f32 %v115, %v116
    %v118 = vsel %vm102, %v46, 0.0
    %v119 = vadd.f32 %v117, %v118
    %v120 = vsel %vm102, %v47, 0.0
    %v121 = vadd.f32 %v119, %v120
    %v122 = vsel %vm102, %v48, 0.0
    %v123 = vadd.f32 %v121, %v122
    %v124 = vsel %vm102, %v49, 0.0
    %v125 = vadd.f32 %v123, %v124
    %v126 = vsel %vm102, %v50, 0.0
    %v127 = vadd.f32 %v125, %v126
    %v128 = vsel %vm102, %v51, 0.0
    %v129 = vadd.f32 %v127, %v128
    %v130 = vsel %vm102, %v52, 0.0
    %v131 = vadd.f32 %v129, %v130
    %v132 = vsel %vm102, %v53, 0.0
    %v133 = vadd.f32 %v131, %v132
    %v134 = vsel %vm102, %v54, 0.0
    %v135 = vadd.f32 %v133, %v134
    %v136 = vsel %vm102, %v55, 0.0
    %v137 = vadd.f32 %v135, %v136
    %v138 = vsel %vm102, %v56, 0.0
    %v139 = vadd.f32 %v137, %v138
    %v140 = vsel %vm102, %v57, 0.0
    %v141 = vadd.f32 %v139, %v140
    %v142 = vsel %vm102, %v58, 0.0
    %v143 = vadd.f32 %v141, %v142
    %v144 = vsel %vm102, %v59, 0.0
    %v145 = vadd.f32 %v143, %v144
    %v146 = vsel %vm102, %v60, 0.0
    %v147 = vadd.f32 %v145, %v146
    %v148 = vsel %vm102, %v61, 0.0
    %v149 = vadd.f32 %v147, %v148
    %v150 = vsel %vm102, %v62, 0.0
    %v151 = vadd.f32 %v149, %v150
    %v152 = vsel %vm102, %v63, 0.0
    %v153 = vadd.f32 %v151, %v152
    %v154 = vsel %vm102, %v64, 0.0
    %v155 = vadd.f32 %v153, %v154
    %v156 = vsel %vm102, %v65, 0.0
    %v157 = vadd.f32 %v155, %v156
    %v158 = vsel %vm102, %v66, 0.0
    %v159 = vadd.f32 %v157, %v158
    %v160 = vsel %vm102, %v67, 0.0
    %v161 = vadd.f32 %v159, %v160
    %v162 = vsel %vm102, %v68, 0.0
    %v163 = vadd.f32 %v161, %v162
    %v164 = vsel %vm102, %v69, 0.0
    %v165 = vadd.f32 %v163, %v164
    %v166 = vsel %vm102, %v70, 0.0
    %v167 = vadd.f32 %v165, %v166
    %v168 = vsel %vm102, %v71, 0.0
    %v169 = vadd.f32 %v167, %v168
    %v170 = vsel %vm102, %v72, 0.0
    %v171 = vadd.f32 %v169, %v170
    %v172 = vsel %vm102, %v73, 0.0
    %v173 = vadd.f32 %v171, %v172
    %v174 = vsel %vm102, %v74, 0.0
    %v175 = vadd.f32 %v173, %v174
    %v176 = vsel %vm102, %v75, 0.0
    %v177 = vadd.f32 %v175, %v176
    %v178 = vsel %vm102, %v76, 0.0
    %v179 = vadd.f32 %v177, %v178
    %v180 = vsel %vm102, %v77, 0.0
    %v181 = vadd.f32 %v179, %v180
    %v182 = vsel %vm102, %v78, 0.0
    %v183 = vadd.f32 %v181, %v182
    %v184 = vsel %vm102, %v79, 0.0
    %v185 = vadd.f32 %v183, %v184
    %v186 = vsel %vm102, %v80, 0.0
    %v187 = vadd.f32 %v185, %v186
    %v188 = vsel %vm102, %v81, 0.0
    %v189 = vadd.f32 %v187, %v188
    %v190 = vsel %vm102, %v82, 0.0
    %v191 = vadd.f32 %v189, %v190
    %v192 = vsel %vm102, %v83, 0.0
    %v193 = vadd.f32 %v191, %v192
    %v194 = vsel %vm102, %v84, 0.0
    %v195 = vadd.f32 %v193, %v194
    %v196 = vsel %vm102, %v85, 0.0
    %v197 = vadd.f32 %v195, %v196
    %v198 = vsel %vm102, %v86, 0.0
    %v199 = vadd.f32 %v197, %v198
    %v200 = vsel %vm102, %v87, 0.0
    %v201 = vadd.f32 %v199, %v200
    %v202 = vsel %vm102, %v88, 0.0
    %v203 = vadd.f32 %v201, %v202
    %v204 = vsel %vm102, %v89, 0.0
    %v205 = vadd.f32 %v203, %v204
    %v206 = vsel %vm102, %v90, 0.0
    %v207 = vadd.f32 %v205, %v206
    %v208 = vsel %vm102, %v91, 0.0
    %v209 = vadd.f32 %v207, %v208
    %v210 = vsel %vm102, %v92, 0.0
    %v211 = vadd.f32 %v209, %v210
    %v212 = vsel %vm102, %v93, 0.0
    %v213 = vadd.f32 %v211, %v212
    %v214 = vsel %vm102, %v94, 0.0
    %v215 = vadd.f32 %v213, %v214
    %v216 = vsel %vm102, %v95, 0.0
    %v217 = vadd.f32 %v215, %v216
    %v218 = vsel %vm102, %v96, 0.0
    %v219 = vadd.f32 %v217, %v218
    %v220 = vsel %vm102, %v97, 0.0
    %v221 = vadd.f32 %v219, %v220
    %v222 = vsel %vm102, %v98, 0.0
    %v223 = vadd.f32 %v221, %v222
    %v224 = vsel %vm102, %v99, 0.0
    %v225 = vadd.f32 %v223, %v224
    %v226 = vsel %vm102, %v100, 0.0
    %v227 = vadd.f32 %v225, %v226
    %v228 = vsel %vm102, %v101, 0.0
    %v229 = vadd.f32 %v227, %v228
    %v230 = vrot.slane %v229, 4
    %v231 = vadd.f32 %v229, %v230
    %v232 = vrot.slane %v231, 2
    %v233 = vadd.f32 %v231, %v232
    %v234 = vrot.slane %v233, 1
    %v235 = vadd.f32 %v233, %v234
    %v236 = vrcp.pop 512.0
    %v237 = vmul.f32 %v235, %v236
    %v238 = vsub.f32 %v38, %v237
    %v239 = vsub.f32 %v39, %v237
    %v240 = vsub.f32 %v40, %v237
    %v241 = vsub.f32 %v41, %v237
    %v242 = vsub.f32 %v42, %v237
    %v243 = vsub.f32 %v43, %v237
    %v244 = vsub.f32 %v44, %v237
    %v245 = vsub.f32 %v45, %v237
    %v246 = vsub.f32 %v46, %v237
    %v247 = vsub.f32 %v47, %v237
    %v248 = vsub.f32 %v48, %v237
    %v249 = vsub.f32 %v49, %v237
    %v250 = vsub.f32 %v50, %v237
    %v251 = vsub.f32 %v51, %v237
    %v252 = vsub.f32 %v52, %v237
    %v253 = vsub.f32 %v53, %v237
    %v254 = vsub.f32 %v54, %v237
    %v255 = vsub.f32 %v55, %v237
    %v256 = vsub.f32 %v56, %v237
    %v257 = vsub.f32 %v57, %v237
    %v258 = vsub.f32 %v58, %v237
    %v259 = vsub.f32 %v59, %v237
    %v260 = vsub.f32 %v60, %v237
    %v261 = vsub.f32 %v61, %v237
    %v262 = vsub.f32 %v62, %v237
    %v263 = vsub.f32 %v63, %v237
    %v264 = vsub.f32 %v64, %v237
    %v265 = vsub.f32 %v65, %v237
    %v266 = vsub.f32 %v66, %v237
    %v267 = vsub.f32 %v67, %v237
    %v268 = vsub.f32 %v68, %v237
    %v269 = vsub.f32 %v69, %v237
    %v270 = vsub.f32 %v70, %v237
    %v271 = vsub.f32 %v71, %v237
    %v272 = vsub.f32 %v72, %v237
    %v273 = vsub.f32 %v73, %v237
    %v274 = vsub.f32 %v74, %v237
    %v275 = vsub.f32 %v75, %v237
    %v276 = vsub.f32 %v76, %v237
    %v277 = vsub.f32 %v77, %v237
    %v278 = vsub.f32 %v78, %v237
    %v279 = vsub.f32 %v79, %v237
    %v280 = vsub.f32 %v80, %v237
    %v281 = vsub.f32 %v81, %v237
    %v282 = vsub.f32 %v82, %v237
    %v283 = vsub.f32 %v83, %v237
    %v284 = vsub.f32 %v84, %v237
    %v285 = vsub.f32 %v85, %v237
    %v286 = vsub.f32 %v86, %v237
    %v287 = vsub.f32 %v87, %v237
    %v288 = vsub.f32 %v88, %v237
    %v289 = vsub.f32 %v89, %v237
    %v290 = vsub.f32 %v90, %v237
    %v291 = vsub.f32 %v91, %v237
    %v292 = vsub.f32 %v92, %v237
    %v293 = vsub.f32 %v93, %v237
    %v294 = vsub.f32 %v94, %v237
    %v295 = vsub.f32 %v95, %v237
    %v296 = vsub.f32 %v96, %v237
    %v297 = vsub.f32 %v97, %v237
    %v298 = vsub.f32 %v98, %v237
    %v299 = vsub.f32 %v99, %v237
    %v300 = vsub.f32 %v100, %v237
    %v301 = vsub.f32 %v101, %v237
    %v302 = vmul.f32 %v238, %v238
    %v303 = vmul.f32 %v239, %v239
    %v304 = vmul.f32 %v240, %v240
    %v305 = vmul.f32 %v241, %v241
    %v306 = vmul.f32 %v242, %v242
    %v307 = vmul.f32 %v243, %v243
    %v308 = vmul.f32 %v244, %v244
    %v309 = vmul.f32 %v245, %v245
    %v310 = vmul.f32 %v246, %v246
    %v311 = vmul.f32 %v247, %v247
    %v312 = vmul.f32 %v248, %v248
    %v313 = vmul.f32 %v249, %v249
    %v314 = vmul.f32 %v250, %v250
    %v315 = vmul.f32 %v251, %v251
    %v316 = vmul.f32 %v252, %v252
    %v317 = vmul.f32 %v253, %v253
    %v318 = vmul.f32 %v254, %v254
    %v319 = vmul.f32 %v255, %v255
    %v320 = vmul.f32 %v256, %v256
    %v321 = vmul.f32 %v257, %v257
    %v322 = vmul.f32 %v258, %v258
    %v323 = vmul.f32 %v259, %v259
    %v324 = vmul.f32 %v260, %v260
    %v325 = vmul.f32 %v261, %v261
    %v326 = vmul.f32 %v262, %v262
    %v327 = vmul.f32 %v263, %v263
    %v328 = vmul.f32 %v264, %v264
    %v329 = vmul.f32 %v265, %v265
    %v330 = vmul.f32 %v266, %v266
    %v331 = vmul.f32 %v267, %v267
    %v332 = vmul.f32 %v268, %v268
    %v333 = vmul.f32 %v269, %v269
    %v334 = vmul.f32 %v270, %v270
    %v335 = vmul.f32 %v271, %v271
    %v336 = vmul.f32 %v272, %v272
    %v337 = vmul.f32 %v273, %v273
    %v338 = vmul.f32 %v274, %v274
    %v339 = vmul.f32 %v275, %v275
    %v340 = vmul.f32 %v276, %v276
    %v341 = vmul.f32 %v277, %v277
    %v342 = vmul.f32 %v278, %v278
    %v343 = vmul.f32 %v279, %v279
    %v344 = vmul.f32 %v280, %v280
    %v345 = vmul.f32 %v281, %v281
    %v346 = vmul.f32 %v282, %v282
    %v347 = vmul.f32 %v283, %v283
    %v348 = vmul.f32 %v284, %v284
    %v349 = vmul.f32 %v285, %v285
    %v350 = vmul.f32 %v286, %v286
    %v351 = vmul.f32 %v287, %v287
    %v352 = vmul.f32 %v288, %v288
    %v353 = vmul.f32 %v289, %v289
    %v354 = vmul.f32 %v290, %v290
    %v355 = vmul.f32 %v291, %v291
    %v356 = vmul.f32 %v292, %v292
    %v357 = vmul.f32 %v293, %v293
    %v358 = vmul.f32 %v294, %v294
    %v359 = vmul.f32 %v295, %v295
    %v360 = vmul.f32 %v296, %v296
    %v361 = vmul.f32 %v297, %v297
    %v362 = vmul.f32 %v298, %v298
    %v363 = vmul.f32 %v299, %v299
    %v364 = vmul.f32 %v300, %v300
    %v365 = vmul.f32 %v301, %v301
    %v366 = vsel %vm102, %v302, 0.0
    %v367 = vsel %vm102, %v303, 0.0
    %v368 = vadd.f32 %v366, %v367
    %v369 = vsel %vm102, %v304, 0.0
    %v370 = vadd.f32 %v368, %v369
    %v371 = vsel %vm102, %v305, 0.0
    %v372 = vadd.f32 %v370, %v371
    %v373 = vsel %vm102, %v306, 0.0
    %v374 = vadd.f32 %v372, %v373
    %v375 = vsel %vm102, %v307, 0.0
    %v376 = vadd.f32 %v374, %v375
    %v377 = vsel %vm102, %v308, 0.0
    %v378 = vadd.f32 %v376, %v377
    %v379 = vsel %vm102, %v309, 0.0
    %v380 = vadd.f32 %v378, %v379
    %v381 = vsel %vm102, %v310, 0.0
    %v382 = vadd.f32 %v380, %v381
    %v383 = vsel %vm102, %v311, 0.0
    %v384 = vadd.f32 %v382, %v383
    %v385 = vsel %vm102, %v312, 0.0
    %v386 = vadd.f32 %v384, %v385
    %v387 = vsel %vm102, %v313, 0.0
    %v388 = vadd.f32 %v386, %v387
    %v389 = vsel %vm102, %v314, 0.0
    %v390 = vadd.f32 %v388, %v389
    %v391 = vsel %vm102, %v315, 0.0
    %v392 = vadd.f32 %v390, %v391
    %v393 = vsel %vm102, %v316, 0.0
    %v394 = vadd.f32 %v392, %v393
    %v395 = vsel %vm102, %v317, 0.0
    %v396 = vadd.f32 %v394, %v395
    %v397 = vsel %vm102, %v318, 0.0
    %v398 = vadd.f32 %v396, %v397
    %v399 = vsel %vm102, %v319, 0.0
    %v400 = vadd.f32 %v398, %v399
    %v401 = vsel %vm102, %v320, 0.0
    %v402 = vadd.f32 %v400, %v401
    %v403 = vsel %vm102, %v321, 0.0
    %v404 = vadd.f32 %v402, %v403
    %v405 = vsel %vm102, %v322, 0.0
    %v406 = vadd.f32 %v404, %v405
    %v407 = vsel %vm102, %v323, 0.0
    %v408 = vadd.f32 %v406, %v407
    %v409 = vsel %vm102, %v324, 0.0
    %v410 = vadd.f32 %v408, %v409
    %v411 = vsel %vm102, %v325, 0.0
    %v412 = vadd.f32 %v410, %v411
    %v413 = vsel %vm102, %v326, 0.0
    %v414 = vadd.f32 %v412, %v413
    %v415 = vsel %vm102, %v327, 0.0
    %v416 = vadd.f32 %v414, %v415
    %v417 = vsel %vm102, %v328, 0.0
    %v418 = vadd.f32 %v416, %v417
    %v419 = vsel %vm102, %v329, 0.0
    %v420 = vadd.f32 %v418, %v419
    %v421 = vsel %vm102, %v330, 0.0
    %v422 = vadd.f32 %v420, %v421
    %v423 = vsel %vm102, %v331, 0.0
    %v424 = vadd.f32 %v422, %v423
    %v425 = vsel %vm102, %v332, 0.0
    %v426 = vadd.f32 %v424, %v425
    %v427 = vsel %vm102, %v333, 0.0
    %v428 = vadd.f32 %v426, %v427
    %v429 = vsel %vm102, %v334, 0.0
    %v430 = vadd.f32 %v428, %v429
    %v431 = vsel %vm102, %v335, 0.0
    %v432 = vadd.f32 %v430, %v431
    %v433 = vsel %vm102, %v336, 0.0
    %v434 = vadd.f32 %v432, %v433
    %v435 = vsel %vm102, %v337, 0.0
    %v436 = vadd.f32 %v434, %v435
    %v437 = vsel %vm102, %v338, 0.0
    %v438 = vadd.f32 %v436, %v437
    %v439 = vsel %vm102, %v339, 0.0
    %v440 = vadd.f32 %v438, %v439
    %v441 = vsel %vm102, %v340, 0.0
    %v442 = vadd.f32 %v440, %v441
    %v443 = vsel %vm102, %v341, 0.0
    %v444 = vadd.f32 %v442, %v443
    %v445 = vsel %vm102, %v342, 0.0
    %v446 = vadd.f32 %v444, %v445
    %v447 = vsel %vm102, %v343, 0.0
    %v448 = vadd.f32 %v446, %v447
    %v449 = vsel %vm102, %v344, 0.0
    %v450 = vadd.f32 %v448, %v449
    %v451 = vsel %vm102, %v345, 0.0
    %v452 = vadd.f32 %v450, %v451
    %v453 = vsel %vm102, %v346, 0.0
    %v454 = vadd.f32 %v452, %v453
    %v455 = vsel %vm102, %v347, 0.0
    %v456 = vadd.f32 %v454, %v455
    %v457 = vsel %vm102, %v348, 0.0
    %v458 = vadd.f32 %v456, %v457
    %v459 = vsel %vm102, %v349, 0.0
    %v460 = vadd.f32 %v458, %v459
    %v461 = vsel %vm102, %v350, 0.0
    %v462 = vadd.f32 %v460, %v461
    %v463 = vsel %vm102, %v351, 0.0
    %v464 = vadd.f32 %v462, %v463
    %v465 = vsel %vm102, %v352, 0.0
    %v466 = vadd.f32 %v464, %v465
    %v467 = vsel %vm102, %v353, 0.0
    %v468 = vadd.f32 %v466, %v467
    %v469 = vsel %vm102, %v354, 0.0
    %v470 = vadd.f32 %v468, %v469
    %v471 = vsel %vm102, %v355, 0.0
    %v472 = vadd.f32 %v470, %v471
    %v473 = vsel %vm102, %v356, 0.0
    %v474 = vadd.f32 %v472, %v473
    %v475 = vsel %vm102, %v357, 0.0
    %v476 = vadd.f32 %v474, %v475
    %v477 = vsel %vm102, %v358, 0.0
    %v478 = vadd.f32 %v476, %v477
    %v479 = vsel %vm102, %v359, 0.0
    %v480 = vadd.f32 %v478, %v479
    %v481 = vsel %vm102, %v360, 0.0
    %v482 = vadd.f32 %v480, %v481
    %v483 = vsel %vm102, %v361, 0.0
    %v484 = vadd.f32 %v482, %v483
    %v485 = vsel %vm102, %v362, 0.0
    %v486 = vadd.f32 %v484, %v485
    %v487 = vsel %vm102, %v363, 0.0
    %v488 = vadd.f32 %v486, %v487
    %v489 = vsel %vm102, %v364, 0.0
    %v490 = vadd.f32 %v488, %v489
    %v491 = vsel %vm102, %v365, 0.0
    %v492 = vadd.f32 %v490, %v491
    %v493 = vrot.slane %v492, 4
    %v494 = vadd.f32 %v492, %v493
    %v495 = vrot.slane %v494, 2
    %v496 = vadd.f32 %v494, %v495
    %v497 = vrot.slane %v496, 1
    %v498 = vadd.f32 %v496, %v497
    %v499 = vmul.f32 %v498, %v236
    %v500 = vadd.f32 %v499, 1e-05
    %v501 = vrsqrt.pop %v500
    %v502 = vmul.f32 %v238, %v501
    %v503 = vmul.f32 %v239, %v501
    %v504 = vmul.f32 %v240, %v501
    %v505 = vmul.f32 %v241, %v501
    %v506 = vmul.f32 %v242, %v501
    %v507 = vmul.f32 %v243, %v501
    %v508 = vmul.f32 %v244, %v501
    %v509 = vmul.f32 %v245, %v501
    %v510 = vmul.f32 %v246, %v501
    %v511 = vmul.f32 %v247, %v501
    %v512 = vmul.f32 %v248, %v501
    %v513 = vmul.f32 %v249, %v501
    %v514 = vmul.f32 %v250, %v501
    %v515 = vmul.f32 %v251, %v501
    %v516 = vmul.f32 %v252, %v501
    %v517 = vmul.f32 %v253, %v501
    %v518 = vmul.f32 %v254, %v501
    %v519 = vmul.f32 %v255, %v501
    %v520 = vmul.f32 %v256, %v501
    %v521 = vmul.f32 %v257, %v501
    %v522 = vmul.f32 %v258, %v501
    %v523 = vmul.f32 %v259, %v501
    %v524 = vmul.f32 %v260, %v501
    %v525 = vmul.f32 %v261, %v501
    %v526 = vmul.f32 %v262, %v501
    %v527 = vmul.f32 %v263, %v501
    %v528 = vmul.f32 %v264, %v501
    %v529 = vmul.f32 %v265, %v501
    %v530 = vmul.f32 %v266, %v501
    %v531 = vmul.f32 %v267, %v501
    %v532 = vmul.f32 %v268, %v501
    %v533 = vmul.f32 %v269, %v501
    %v534 = vmul.f32 %v270, %v501
    %v535 = vmul.f32 %v271, %v501
    %v536 = vmul.f32 %v272, %v501
    %v537 = vmul.f32 %v273, %v501
    %v538 = vmul.f32 %v274, %v501
    %v539 = vmul.f32 %v275, %v501
    %v540 = vmul.f32 %v276, %v501
    %v541 = vmul.f32 %v277, %v501
    %v542 = vmul.f32 %v278, %v501
    %v543 = vmul.f32 %v279, %v501
    %v544 = vmul.f32 %v280, %v501
    %v545 = vmul.f32 %v281, %v501
    %v546 = vmul.f32 %v282, %v501
    %v547 = vmul.f32 %v283, %v501
    %v548 = vmul.f32 %v284, %v501
    %v549 = vmul.f32 %v285, %v501
    %v550 = vmul.f32 %v286, %v501
    %v551 = vmul.f32 %v287, %v501
    %v552 = vmul.f32 %v288, %v501
    %v553 = vmul.f32 %v289, %v501
    %v554 = vmul.f32 %v290, %v501
    %v555 = vmul.f32 %v291, %v501
    %v556 = vmul.f32 %v292, %v501
    %v557 = vmul.f32 %v293, %v501
    %v558 = vmul.f32 %v294, %v501
    %v559 = vmul.f32 %v295, %v501
    %v560 = vmul.f32 %v296, %v501
    %v561 = vmul.f32 %v297, %v501
    %v562 = vmul.f32 %v298, %v501
    %v563 = vmul.f32 %v299, %v501
    %v564 = vmul.f32 %v300, %v501
    %v565 = vmul.f32 %v301, %v501
    %v566 = vld [vmem:[#allocation2] sm:$0x1]
    %v568 = vlaneseq
    %v569 = vshrl.u32 %v568, 7
    %v570 = vsub.s32 0, %v569
    %v571 = vrot.slane %v566, %v570
    %v573 = vmul.f32 %v502, %v571
    %v574 = vmul.f32 %v503, %v571
    %v575 = vmul.f32 %v504, %v571
    %v576 = vmul.f32 %v505, %v571
    %v577 = vmul.f32 %v506, %v571
    %v578 = vmul.f32 %v507, %v571
    %v579 = vmul.f32 %v508, %v571
    %v580 = vmul.f32 %v509, %v571
    %v581 = vmul.f32 %v510, %v571
    %v582 = vmul.f32 %v511, %v571
    %v583 = vmul.f32 %v512, %v571
    %v584 = vmul.f32 %v513, %v571
    %v585 = vmul.f32 %v514, %v571
    %v586 = vmul.f32 %v515, %v571
    %v587 = vmul.f32 %v516, %v571
    %v588 = vmul.f32 %v517, %v571
    %v589 = vmul.f32 %v518, %v571
    %v590 = vmul.f32 %v519, %v571
    %v591 = vmul.f32 %v520, %v571
    %v592 = vmul.f32 %v521, %v571
    %v593 = vmul.f32 %v522, %v571
    %v594 = vmul.f32 %v523, %v571
    %v595 = vmul.f32 %v524, %v571
    %v596 = vmul.f32 %v525, %v571
    %v597 = vmul.f32 %v526, %v571
    %v598 = vmul.f32 %v527, %v571
    %v599 = vmul.f32 %v528, %v571
    %v600 = vmul.f32 %v529, %v571
    %v601 = vmul.f32 %v530, %v571
    %v602 = vmul.f32 %v531, %v571
    %v603 = vmul.f32 %v532, %v571
    %v604 = vmul.f32 %v533, %v571
    %v605 = vmul.f32 %v534, %v571
    %v606 = vmul.f32 %v535, %v571
    %v607 = vmul.f32 %v536, %v571
    %v608 = vmul.f32 %v537, %v571
    %v609 = vmul.f32 %v538, %v571
    %v610 = vmul.f32 %v539, %v571
    %v611 = vmul.f32 %v540, %v571
    %v612 = vmul.f32 %v541, %v571
    %v613 = vmul.f32 %v542, %v571
    %v614 = vmul.f32 %v543, %v571
    %v615 = vmul.f32 %v544, %v571
    %v616 = vmul.f32 %v545, %v571
    %v617 = vmul.f32 %v546, %v571
    %v618 = vmul.f32 %v547, %v571
    %v619 = vmul.f32 %v548, %v571
    %v620 = vmul.f32 %v549, %v571
    %v621 = vmul.f32 %v550, %v571
    %v622 = vmul.f32 %v551, %v571
    %v623 = vmul.f32 %v552, %v571
    %v624 = vmul.f32 %v553, %v571
    %v625 = vmul.f32 %v554, %v571
    %v626 = vmul.f32 %v555, %v571
    %v627 = vmul.f32 %v556, %v571
    %v628 = vmul.f32 %v557, %v571
    %v629 = vmul.f32 %v558, %v571
    %v630 = vmul.f32 %v559, %v571
    %v631 = vmul.f32 %v560, %v571
    %v632 = vmul.f32 %v561, %v571
    %v633 = vmul.f32 %v562, %v571
    %v634 = vmul.f32 %v563, %v571
    %v635 = vmul.f32 %v564, %v571
    %v636 = vmul.f32 %v565, %v571
    %v637 = vld [vmem:[#allocation4] sm:$0x1]
    %v639 = vlaneseq
    %v640 = vshrl.u32 %v639, 7
    %v641 = vsub.s32 0, %v640
    %v642 = vrot.slane %v637, %v641
    %v644 = vadd.f32 %v573, %v642
    %v645 = vadd.f32 %v574, %v642
    %v646 = vadd.f32 %v575, %v642
    %v647 = vadd.f32 %v576, %v642
    %v648 = vadd.f32 %v577, %v642
    %v649 = vadd.f32 %v578, %v642
    %v650 = vadd.f32 %v579, %v642
    %v651 = vadd.f32 %v580, %v642
    %v652 = vadd.f32 %v581, %v642
    %v653 = vadd.f32 %v582, %v642
    %v654 = vadd.f32 %v583, %v642
    %v655 = vadd.f32 %v584, %v642
    %v656 = vadd.f32 %v585, %v642
    %v657 = vadd.f32 %v586, %v642
    %v658 = vadd.f32 %v587, %v642
    %v659 = vadd.f32 %v588, %v642
    %v660 = vadd.f32 %v589, %v642
    %v661 = vadd.f32 %v590, %v642
    %v662 = vadd.f32 %v591, %v642
    %v663 = vadd.f32 %v592, %v642
    %v664 = vadd.f32 %v593, %v642
    %v665 = vadd.f32 %v594, %v642
    %v666 = vadd.f32 %v595, %v642
    %v667 = vadd.f32 %v596, %v642
    %v668 = vadd.f32 %v597, %v642
    %v669 = vadd.f32 %v598, %v642
    %v670 = vadd.f32 %v599, %v642
    %v671 = vadd.f32 %v600, %v642
    %v672 = vadd.f32 %v601, %v642
    %v673 = vadd.f32 %v602, %v642
    %v674 = vadd.f32 %v603, %v642
    %v675 = vadd.f32 %v604, %v642
    %v676 = vadd.f32 %v605, %v642
    %v677 = vadd.f32 %v606, %v642
    %v678 = vadd.f32 %v607, %v642
    %v679 = vadd.f32 %v608, %v642
    %v680 = vadd.f32 %v609, %v642
    %v681 = vadd.f32 %v610, %v642
    %v682 = vadd.f32 %v611, %v642
    %v683 = vadd.f32 %v612, %v642
    %v684 = vadd.f32 %v613, %v642
    %v685 = vadd.f32 %v614, %v642
    %v686 = vadd.f32 %v615, %v642
    %v687 = vadd.f32 %v616, %v642
    %v688 = vadd.f32 %v617, %v642
    %v689 = vadd.f32 %v618, %v642
    %v690 = vadd.f32 %v619, %v642
    %v691 = vadd.f32 %v620, %v642
    %v692 = vadd.f32 %v621, %v642
    %v693 = vadd.f32 %v622, %v642
    %v694 = vadd.f32 %v623, %v642
    %v695 = vadd.f32 %v624, %v642
    %v696 = vadd.f32 %v625, %v642
    %v697 = vadd.f32 %v626, %v642
    %v698 = vadd.f32 %v627, %v642
    %v699 = vadd.f32 %v628, %v642
    %v700 = vadd.f32 %v629, %v642
    %v701 = vadd.f32 %v630, %v642
    %v702 = vadd.f32 %v631, %v642
    %v703 = vadd.f32 %v632, %v642
    %v704 = vadd.f32 %v633, %v642
    %v705 = vadd.f32 %v634, %v642
    %v706 = vadd.f32 %v635, %v642
    %v707 = vadd.f32 %v636, %v642
    %v708 = vmax.f32 %v644, 0.0
    %v709 = vmax.f32 %v645, 0.0
    %v710 = vmax.f32 %v646, 0.0
    %v711 = vmax.f32 %v647, 0.0
    %v712 = vmax.f32 %v648, 0.0
    %v713 = vmax.f32 %v649, 0.0
    %v714 = vmax.f32 %v650, 0.0
    %v715 = vmax.f32 %v651, 0.0
    %v716 = vmax.f32 %v652, 0.0
    %v717 = vmax.f32 %v653, 0.0
    %v718 = vmax.f32 %v654, 0.0
    %v719 = vmax.f32 %v655, 0.0
    %v720 = vmax.f32 %v656, 0.0
    %v721 = vmax.f32 %v657, 0.0
    %v722 = vmax.f32 %v658, 0.0
    %v723 = vmax.f32 %v659, 0.0
    %v724 = vmax.f32 %v660, 0.0
    %v725 = vmax.f32 %v661, 0.0
    %v726 = vmax.f32 %v662, 0.0
    %v727 = vmax.f32 %v663, 0.0
    %v728 = vmax.f32 %v664, 0.0
    %v729 = vmax.f32 %v665, 0.0
    %v730 = vmax.f32 %v666, 0.0
    %v731 = vmax.f32 %v667, 0.0
    %v732 = vmax.f32 %v668, 0.0
    %v733 = vmax.f32 %v669, 0.0
    %v734 = vmax.f32 %v670, 0.0
    %v735 = vmax.f32 %v671, 0.0
    %v736 = vmax.f32 %v672, 0.0
    %v737 = vmax.f32 %v673, 0.0
    %v738 = vmax.f32 %v674, 0.0
    %v739 = vmax.f32 %v675, 0.0
    %v740 = vmax.f32 %v676, 0.0
    %v741 = vmax.f32 %v677, 0.0
    %v742 = vmax.f32 %v678, 0.0
    %v743 = vmax.f32 %v679, 0.0
    %v744 = vmax.f32 %v680, 0.0
    %v745 = vmax.f32 %v681, 0.0
    %v746 = vmax.f32 %v682, 0.0
    %v747 = vmax.f32 %v683, 0.0
    %v748 = vmax.f32 %v684, 0.0
    %v749 = vmax.f32 %v685, 0.0
    %v750 = vmax.f32 %v686, 0.0
    %v751 = vmax.f32 %v687, 0.0
    %v752 = vmax.f32 %v688, 0.0
    %v753 = vmax.f32 %v689, 0.0
    %v754 = vmax.f32 %v690, 0.0
    %v755 = vmax.f32 %v691, 0.0
    %v756 = vmax.f32 %v692, 0.0
    %v757 = vmax.f32 %v693, 0.0
    %v758 = vmax.f32 %v694, 0.0
    %v759 = vmax.f32 %v695, 0.0
    %v760 = vmax.f32 %v696, 0.0
    %v761 = vmax.f32 %v697, 0.0
    %v762 = vmax.f32 %v698, 0.0
    %v763 = vmax.f32 %v699, 0.0
    %v764 = vmax.f32 %v700, 0.0
    %v765 = vmax.f32 %v701, 0.0
    %v766 = vmax.f32 %v702, 0.0
    %v767 = vmax.f32 %v703, 0.0
    %v768 = vmax.f32 %v704, 0.0
    %v769 = vmax.f32 %v705, 0.0
    %v770 = vmax.f32 %v706, 0.0
    %v771 = vmax.f32 %v707, 0.0
    %772 = vst.msk [vmem:[%s3] sm:$0xff] %vm102, %v708
    %773 = vst.msk [vmem:[%s3 + $0x8] sm:$0xff] %vm102, %v709
    %774 = vst.msk [vmem:[%s3 + $0x10] sm:$0xff] %vm102, %v710
    %775 = vst.msk [vmem:[%s3 + $0x18] sm:$0xff] %vm102, %v711
    %776 = vst.msk [vmem:[%s3 + $0x20] sm:$0xff] %vm102, %v712
    %777 = vst.msk [vmem:[%s3 + $0x28] sm:$0xff] %vm102, %v713
    %778 = vst.msk [vmem:[%s3 + $0x30] sm:$0xff] %vm102, %v714
    %779 = vst.msk [vmem:[%s3 + $0x38] sm:$0xff] %vm102, %v715
    %780 = vst.msk [vmem:[%s3 + $0x40] sm:$0xff] %vm102, %v716
    %781 = vst.msk [vmem:[%s3 + $0x48] sm:$0xff] %vm102, %v717
    %782 = vst.msk [vmem:[%s3 + $0x50] sm:$0xff] %vm102, %v718
    %783 = vst.msk [vmem:[%s3 + $0x58] sm:$0xff] %vm102, %v719
    %784 = vst.msk [vmem:[%s3 + $0x60] sm:$0xff] %vm102, %v720
    %785 = vst.msk [vmem:[%s3 + $0x68] sm:$0xff] %vm102, %v721
    %786 = vst.msk [vmem:[%s3 + $0x70] sm:$0xff] %vm102, %v722
    %787 = vst.msk [vmem:[%s3 + $0x78] sm:$0xff] %vm102, %v723
    %788 = vst.msk [vmem:[%s3 + $0x80] sm:$0xff] %vm102, %v724
    %789 = vst.msk [vmem:[%s3 + $0x88] sm:$0xff] %vm102, %v725
    %790 = vst.msk [vmem:[%s3 + $0x90] sm:$0xff] %vm102, %v726
    %791 = vst.msk [vmem:[%s3 + $0x98] sm:$0xff] %vm102, %v727
    %792 = vst.msk [vmem:[%s3 + $0xa0] sm:$0xff] %vm102, %v728
    %793 = vst.msk [vmem:[%s3 + $0xa8] sm:$0xff] %vm102, %v729
    %794 = vst.msk [vmem:[%s3 + $0xb0] sm:$0xff] %vm102, %v730
    %795 = vst.msk [vmem:[%s3 + $0xb8] sm:$0xff] %vm102, %v731
    %796 = vst.msk [vmem:[%s3 + $0xc0] sm:$0xff] %vm102, %v732
    %797 = vst.msk [vmem:[%s3 + $0xc8] sm:$0xff] %vm102, %v733
    %798 = vst.msk [vmem:[%s3 + $0xd0] sm:$0xff] %vm102, %v734
    %799 = vst.msk [vmem:[%s3 + $0xd8] sm:$0xff] %vm102, %v735
    %800 = vst.msk [vmem:[%s3 + $0xe0] sm:$0xff] %vm102, %v736
    %801 = vst.msk [vmem:[%s3 + $0xe8] sm:$0xff] %vm102, %v737
    %802 = vst.msk [vmem:[%s3 + $0xf0] sm:$0xff] %vm102, %v738
    %803 = vst.msk [vmem:[%s3 + $0xf8] sm:$0xff] %vm102, %v739
    %804 = vst.msk [vmem:[%s3 + $0x100] sm:$0xff] %vm102, %v740
    %805 = vst.msk [vmem:[%s3 + $0x108] sm:$0xff] %vm102, %v741
    %806 = vst.msk [vmem:[%s3 + $0x110] sm:$0xff] %vm102, %v742
    %807 = vst.msk [vmem:[%s3 + $0x118] sm:$0xff] %vm102, %v743
    %808 = vst.msk [vmem:[%s3 + $0x120] sm:$0xff] %vm102, %v744
    %809 = vst.msk [vmem:[%s3 + $0x128] sm:$0xff] %vm102, %v745
    %810 = vst.msk [vmem:[%s3 + $0x130] sm:$0xff] %vm102, %v746
    %811 = vst.msk [vmem:[%s3 + $0x138] sm:$0xff] %vm102, %v747
    %812 = vst.msk [vmem:[%s3 + $0x140] sm:$0xff] %vm102, %v748
    %813 = vst.msk [vmem:[%s3 + $0x148] sm:$0xff] %vm102, %v749
    %814 = vst.msk [vmem:[%s3 + $0x150] sm:$0xff] %vm102, %v750
    %815 = vst.msk [vmem:[%s3 + $0x158] sm:$0xff] %vm102, %v751
    %816 = vst.msk [vmem:[%s3 + $0x160] sm:$0xff] %vm102, %v752
    %817 = vst.msk [vmem:[%s3 + $0x168] sm:$0xff] %vm102, %v753
    %818 = vst.msk [vmem:[%s3 + $0x170] sm:$0xff] %vm102, %v754
    %819 = vst.msk [vmem:[%s3 + $0x178] sm:$0xff] %vm102, %v755
    %820 = vst.msk [vmem:[%s3 + $0x180] sm:$0xff] %vm102, %v756
    %821 = vst.msk [vmem:[%s3 + $0x188] sm:$0xff] %vm102, %v757
    %822 = vst.msk [vmem:[%s3 + $0x190] sm:$0xff] %vm102, %v758
    %823 = vst.msk [vmem:[%s3 + $0x198] sm:$0xff] %vm102, %v759
    %824 = vst.msk [vmem:[%s3 + $0x1a0] sm:$0xff] %vm102, %v760
    %825 = vst.msk [vmem:[%s3 + $0x1a8] sm:$0xff] %vm102, %v761
    %826 = vst.msk [vmem:[%s3 + $0x1b0] sm:$0xff] %vm102, %v762
    %827 = vst.msk [vmem:[%s3 + $0x1b8] sm:$0xff] %vm102, %v763
    %828 = vst.msk [vmem:[%s3 + $0x1c0] sm:$0xff] %vm102, %v764
    %829 = vst.msk [vmem:[%s3 + $0x1c8] sm:$0xff] %vm102, %v765
    %830 = vst.msk [vmem:[%s3 + $0x1d0] sm:$0xff] %vm102, %v766
    %831 = vst.msk [vmem:[%s3 + $0x1d8] sm:$0xff] %vm102, %v767
    %832 = vst.msk [vmem:[%s3 + $0x1e0] sm:$0xff] %vm102, %v768
    %833 = vst.msk [vmem:[%s3 + $0x1e8] sm:$0xff] %vm102, %v769
    %834 = vst.msk [vmem:[%s3 + $0x1f0] sm:$0xff] %vm102, %v770
    %835 = vst.msk [vmem:[%s3 + $0x1f8] sm:$0xff] %vm102, %v771
    // Predicated region
    $region22: #{_generator_forward.14} parent=1 // pred_check
      _
    $region23: #{_generator_forward.14} parent=1 // pred_check_branch
      %837 = sbr.rel (0) target = $region25
    $region24: #{_generator_forward.14} parent=1 // pred_region
      _
    $region25: #{_generator_forward.14} parent=1 // pred_fallthru
      _
    // Predicated region
    $region26: #{_generator_forward.14} parent=1 // pred_check
      _
    $region27: #{_generator_forward.14} parent=1 // pred_check_branch
      %839 = sbr.rel (0) target = $region29
    $region28: #{_generator_forward.14} parent=1 // pred_region
      _
    $region29: #{_generator_forward.14} parent=1 // pred_fallthru
      _
    %840 = vsyncpa [#allocation3], 1
    %841 = vsyncpa [#allocation5], 1

// kernel: _generator_forward.15
$region0: #{_generator_forward.15}
  #allocation0 [shape = 'u32[]', space=smem, size = 0x4, offset = 0x4, fixed_abs, tag = 'smem constant byte address 0x4 - core index']
  #allocation1 [shape = 'u32[144,128]{1,0:T(1,128)}', space=vmem, size = 0x12000, scoped, tag = 'internal scratch']
  #allocation2 [shape = 'f32[256,128]{1,0:T(8,128)}', space=vmem, size = 0x20000, scoped, tag = 'scratch operand']
  %s0 = inlined_call_operand.vmem [shape: bf16[512,256], index: 0, kind: input, shape index: {}]
  %s1 = inlined_call_operand.vmem [shape: bf16[256,128], index: 1, kind: input, shape index: {}]
  %s2 = inlined_call_operand.vmem [shape: f32[512,128], index: 2, kind: output, shape index: {}]
  %s3 = sld [smem:[#allocation0]]
  $region49: #{_generator_forward.15} parent=0
    _
  %s5 = ssub.s32 1, %s3
  %s6 = scalar_select 0, %s5, %s3
  loop: start=0, step=1, limit=4
  $region2: #{_generator_forward.15} parent=0 // loop_pre_header
    _
  $region3: #{_generator_forward.15} parent=0 // loop_header
    %s8 = sphi 0, %s12
    %p9 = scmp.ge.s32.totalorder %s8, 4
    %s15 = sphi 0, %s34
    %s16 = sphi 0, %s30
    %s17 = sphi 0, %s26
    %s18 = sphi 0, %s15
    %s19 = sphi 0, %s16
    %s20 = sphi 0, %s17
    %s21 = sphi 0, %s18
    %s22 = sphi 0, %s19
    %s23 = sphi 0, %s20
    %s39 = sphi 0, %s41
    %s42 = sphi 0, %s39
    %s43 = sphi 0, %s42
    %s59 = sphi 0, %s43
    %s67 = sphi 0, %s69
    %s70 = sphi 0, %s67
    %s71 = sphi 0, %s70
    %s87 = sphi 0, %s71
    %s95 = sphi 0, %s97
    %s98 = sphi 0, %s95
    %s99 = sphi 0, %s98
    %s115 = sphi 0, %s99
  $region4: #{_generator_forward.15} parent=0 // loop_header_branch
    %11 = sbr.rel (%p9) target = $region8
  $region5: #{_generator_forward.15} parent=0 // loop_body
    %s13 = ssub.s32 %s8, 1
    %s14 = ssub.s32 %s8, 2
    %s24 = sadd.s32 1, %s17
    %p25 = scmp.ge.s32.totalorder %s24, 1
    %s26 = scalar_select %p25, 0, %s24
    %s27 = sadd.s32 1, %s16
    %s28 = scalar_select %p25, %s27, %s16
    %p29 = scmp.ge.s32.totalorder %s28, 1
    %s30 = scalar_select %p29, 0, %s28
    %s31 = sadd.s32 1, %s15
    %s32 = scalar_select %p29, %s31, %s15
    %p33 = scmp.ge.s32.totalorder %s32, 2
    %s34 = scalar_select %p33, 0, %s32
    %s35 = ssub.s32 %s15, %s34
    %s36 = ssub.s32 %s17, %s26
    %s37 = sor.u32 %s35, %s36
    %p38 = scmp.eq.s32.totalorder %s37, 0
    %s40 = sadd.s32 %s39, 1
    %s41 = scalar_select %p38, %s39, %s40
    %p44 = pneg %p38
    %p45 = scmp.eq.s32.totalorder %s8, 1
    %p46 = por %p44, %p45
    %p47 = scmp.ne.s32.totalorder %s39, %s42
    %p48 = scmp.eq.s32.totalorder %s8, 0
    %p49 = por %p47, %p48
    %p50 = scmp.ne.s32.totalorder %s39, %s42
    %p51 = scmp.eq.s32.totalorder %s13, 1
    %p52 = por %p50, %p51
    %p53 = scmp.ne.s32.totalorder %s42, %s43
    %p54 = scmp.eq.s32.totalorder %s13, 0
    %p55 = por %p53, %p54
    %p56 = scmp.ne.s32.totalorder %s42, %s43
    %p57 = scmp.eq.s32.totalorder %s14, 1
    %p58 = por %p56, %p57
    %p60 = scmp.ne.s32.totalorder %s43, %s59
    %p61 = scmp.eq.s32.totalorder %s14, 0
    %p62 = por %p60, %p61
    %s63 = ssub.s32 %s17, %s26
    %s64 = ssub.s32 %s16, %s30
    %s65 = sor.u32 %s63, %s64
    %p66 = scmp.eq.s32.totalorder %s65, 0
    %s68 = sadd.s32 %s67, 1
    %s69 = scalar_select %p66, %s67, %s68
    %p72 = pneg %p66
    %p73 = scmp.eq.s32.totalorder %s8, 1
    %p74 = por %p72, %p73
    %p75 = scmp.ne.s32.totalorder %s67, %s70
    %p76 = scmp.eq.s32.totalorder %s8, 0
    %p77 = por %p75, %p76
    %p78 = scmp.ne.s32.totalorder %s67, %s70
    %p79 = scmp.eq.s32.totalorder %s13, 1
    %p80 = por %p78, %p79
    %p81 = scmp.ne.s32.totalorder %s70, %s71
    %p82 = scmp.eq.s32.totalorder %s13, 0
    %p83 = por %p81, %p82
    %p84 = scmp.ne.s32.totalorder %s70, %s71
    %p85 = scmp.eq.s32.totalorder %s14, 1
    %p86 = por %p84, %p85
    %p88 = scmp.ne.s32.totalorder %s71, %s87
    %p89 = scmp.eq.s32.totalorder %s14, 0
    %p90 = por %p88, %p89
    %s91 = ssub.s32 %s15, %s34
    %s92 = ssub.s32 %s16, %s30
    %s93 = sor.u32 %s91, %s92
    %p94 = scmp.eq.s32.totalorder %s93, 0
    %s96 = sadd.s32 %s95, 1
    %s97 = scalar_select %p94, %s95, %s96
    %p100 = pneg %p94
    %p101 = scmp.eq.s32.totalorder %s8, 1
    %p102 = por %p100, %p101
    %p103 = scmp.ne.s32.totalorder %s95, %s98
    %p104 = scmp.eq.s32.totalorder %s8, 0
    %p105 = por %p103, %p104
    %p106 = scmp.ne.s32.totalorder %s95, %s98
    %p107 = scmp.eq.s32.totalorder %s13, 1
    %p108 = por %p106, %p107
    %p109 = scmp.ne.s32.totalorder %s98, %s99
    %p110 = scmp.eq.s32.totalorder %s13, 0
    %p111 = por %p109, %p110
    %p112 = scmp.ne.s32.totalorder %s98, %s99
    %p113 = scmp.eq.s32.totalorder %s14, 1
    %p114 = por %p112, %p113
    %p116 = scmp.ne.s32.totalorder %s99, %s115
    %p117 = scmp.eq.s32.totalorder %s14, 0
    %p118 = por %p116, %p117
    %p119 = scmp.le.s32.totalorder 1, %s8
    %p120 = scmp.lt.s32.totalorder %s8, 3
    %p121 = pnand %p119, %p120
    %p122 = pneg %p121
    // Predicated region
    $region9: #{_generator_forward.15} parent=5 // pred_check
      _
    $region10: #{_generator_forward.15} parent=5 // pred_check_branch
      %124 = sbr.rel (%p121) target = $region12
    $region11: #{_generator_forward.15} parent=5 // pred_region
      %s125 = ssub.s32 %s8, 1
      // Predicated region
      $region13: #{_generator_forward.15} parent=11 // pred_check
        %p126 = pneg %p83
      $region14: #{_generator_forward.15} parent=11 // pred_check_branch
        %128 = sbr.rel (%p126) target = $region16
      $region15: #{_generator_forward.15} parent=11 // pred_region
        %s129 = smul.u32 32, %s20
        %p130 = scmp.lt.s32.totalorder %s129, 31
        %s131 = scalar_select %p130, %s129, 31
        %p132 = scmp.lt.s32.totalorder %s19, 0
        %s133 = scalar_select %p132, %s19, 0
        %s134 = sadd.s32 %s133, %s131
        %s135 = smul.addr %s134, 4
        %s136 = scalar_lea.vmem %s1, %s135
        %s137 = smul.u32 32, %s20
      $region16: #{_generator_forward.15} parent=11 // pred_fallthru
        _
    $region12: #{_generator_forward.15} parent=5 // pred_fallthru
      _
    %p138 = scmp.lt.s32.totalorder %s8, 2
    // Predicated region
    $region17: #{_generator_forward.15} parent=5 // pred_check
      %p139 = pneg %p138
    $region18: #{_generator_forward.15} parent=5 // pred_check_branch
      %141 = sbr.rel (%p139) target = $region20
    $region19: #{_generator_forward.15} parent=5 // pred_region
      // Predicated region
      $region21: #{_generator_forward.15} parent=19 // pred_check
        %p142 = pneg %p49
      $region22: #{_generator_forward.15} parent=19 // pred_check_branch
        %144 = sbr.rel (%p142) target = $region24
      $region23: #{_generator_forward.15} parent=19 // pred_region
        %s145 = smul.u32 32, %s15
        %s146 = smul.u32 2, %s17
        %p147 = scmp.lt.s32.totalorder %s145, 63
        %s148 = scalar_select %p147, %s145, 63
        %p149 = scmp.lt.s32.totalorder %s146, 1
        %s150 = scalar_select %p149, %s146, 1
        %s151 = smul.addr %s148, 2
        %s152 = sadd.s32 %s150, %s151
        %s153 = smul.addr %s152, 4
        %s154 = scalar_lea.vmem %s0, %s153
        %s155 = smul.u32 32, %s15
        %s156 = smul.u32 2, %s17
      $region24: #{_generator_forward.15} parent=19 // pred_fallthru
        _
    $region20: #{_generator_forward.15} parent=5 // pred_fallthru
      _
    %p157 = scmp.le.s32.totalorder 1, %s8
    %p158 = scmp.lt.s32.totalorder %s8, 3
    %p159 = pnand %p157, %p158
    %p160 = pneg %p159
    // Predicated region
    $region25: #{_generator_forward.15} parent=5 // pred_check
      _
    $region26: #{_generator_forward.15} parent=5 // pred_check_branch
      %162 = sbr.rel (%p159) target = $region28
    $region27: #{_generator_forward.15} parent=5 // pred_region
      %s163 = ssub.s32 %s8, 1
      %s164 = smul.u32 32, %s18
      %s165 = smul.u32 2, %s20
      %p166 = scmp.lt.s32.totalorder %s164, 63
      %s167 = scalar_select %p166, %s164, 63
      %p168 = scmp.lt.s32.totalorder %s165, 1
      %s169 = scalar_select %p168, %s165, 1
      %s170 = smul.addr %s167, 2
      %s171 = sadd.s32 %s169, %s170
      %s172 = smul.addr %s171, 4
      %s173 = scalar_lea.vmem %s0, %s172
      %p174 = pneg %p55
      %p175 = pneg %p52
      %s176 = smul.u32 32, %s20
      %p177 = scmp.lt.s32.totalorder %s176, 31
      %s178 = scalar_select %p177, %s176, 31
      %p179 = scmp.lt.s32.totalorder %s19, 0
      %s180 = scalar_select %p179, %s19, 0
      %s181 = sadd.s32 %s180, %s178
      %s182 = smul.addr %s181, 4
      %s183 = scalar_lea.vmem %s1, %s182
      %p184 = pneg %p83
      %p185 = pneg %p80
      %p186 = pneg %p111
      %p187 = pneg %p108
      %s188 = smul.u32 32, %s18
      %p189 = scmp.lt.s32.totalorder %s188, 63
      %s190 = scalar_select %p189, %s188, 63
      %p191 = scmp.lt.s32.totalorder %s19, 0
      %s192 = scalar_select %p191, %s19, 0
      %s193 = sadd.s32 %s192, %s190
      %s194 = smul.addr %s193, 8
      %s195 = scalar_lea.vmem %s2, %s194
      %s196 = smul.u32 32, %s18
      %s197 = smul.u32 2, %s20
      %p198 = scmp.lt.s32.totalorder %s196, 63
      %s199 = scalar_select %p198, %s196, 63
      %p200 = scmp.lt.s32.totalorder %s197, 1
      %s201 = scalar_select %p200, %s197, 1
      %s202 = smul.addr %s199, 2
      %s203 = sadd.s32 %s201, %s202
      %s204 = smul.addr %s203, 4
      %s205 = scalar_lea.vmem %s0, %s204
      %s206 = smul.u32 32, %s18
      %s207 = smul.u32 2, %s20
      %s208 = smul.u32 32, %s20
      %p209 = scmp.lt.s32.totalorder %s208, 31
      %s210 = scalar_select %p209, %s208, 31
      %p211 = scmp.lt.s32.totalorder %s19, 0
      %s212 = scalar_select %p211, %s19, 0
      %s213 = sadd.s32 %s212, %s210
      %s214 = smul.addr %s213, 4
      %s215 = scalar_lea.vmem %s1, %s214
      %s216 = smul.u32 32, %s20
      %s217 = smul.u32 32, %s18
      %p218 = scmp.lt.s32.totalorder %s217, 63
      %s219 = scalar_select %p218, %s217, 63
      %p220 = scmp.lt.s32.totalorder %s19, 0
      %s221 = scalar_select %p220, %s19, 0
      %s222 = sadd.s32 %s221, %s219
      %s223 = smul.addr %s222, 8
      %s224 = scalar_lea.vmem %s2, %s223
      %s225 = smul.u32 32, %s18
      %p227 = scmp.eq.s32.totalorder %s20, 0
      // Predicated region
      $region29: #{_generator_forward.15} parent=27 // pred_check
        %p228 = pneg %p227
      $region30: #{_generator_forward.15} parent=27 // pred_check_branch
        %230 = sbr.rel (%p228) target = $region32
      $region31: #{_generator_forward.15} parent=27 // pred_region
        %231 = vst [vmem:[#allocation2] sm:$0xff] 0.0
        %232 = vst [vmem:[#allocation2 + $0x8] sm:$0xff] 0.0
        %233 = vst [vmem:[#allocation2 + $0x10] sm:$0xff] 0.0
        %234 = vst [vmem:[#allocation2 + $0x18] sm:$0xff] 0.0
        %235 = vst [vmem:[#allocation2 + $0x20] sm:$0xff] 0.0
        %236 = vst [vmem:[#allocation2 + $0x28] sm:$0xff] 0.0
        %237 = vst [vmem:[#allocation2 + $0x30] sm:$0xff] 0.0
        %238 = vst [vmem:[#allocation2 + $0x38] sm:$0xff] 0.0
        %239 = vst [vmem:[#allocation2 + $0x40] sm:$0xff] 0.0
        %240 = vst [vmem:[#allocation2 + $0x48] sm:$0xff] 0.0
        %241 = vst [vmem:[#allocation2 + $0x50] sm:$0xff] 0.0
        %242 = vst [vmem:[#allocation2 + $0x58] sm:$0xff] 0.0
        %243 = vst [vmem:[#allocation2 + $0x60] sm:$0xff] 0.0
        %244 = vst [vmem:[#allocation2 + $0x68] sm:$0xff] 0.0
        %245 = vst [vmem:[#allocation2 + $0x70] sm:$0xff] 0.0
        %246 = vst [vmem:[#allocation2 + $0x78] sm:$0xff] 0.0
        %247 = vst [vmem:[#allocation2 + $0x80] sm:$0xff] 0.0
        %248 = vst [vmem:[#allocation2 + $0x88] sm:$0xff] 0.0
        %249 = vst [vmem:[#allocation2 + $0x90] sm:$0xff] 0.0
        %250 = vst [vmem:[#allocation2 + $0x98] sm:$0xff] 0.0
        %251 = vst [vmem:[#allocation2 + $0xa0] sm:$0xff] 0.0
        %252 = vst [vmem:[#allocation2 + $0xa8] sm:$0xff] 0.0
        %253 = vst [vmem:[#allocation2 + $0xb0] sm:$0xff] 0.0
        %254 = vst [vmem:[#allocation2 + $0xb8] sm:$0xff] 0.0
        %255 = vst [vmem:[#allocation2 + $0xc0] sm:$0xff] 0.0
        %256 = vst [vmem:[#allocation2 + $0xc8] sm:$0xff] 0.0
        %257 = vst [vmem:[#allocation2 + $0xd0] sm:$0xff] 0.0
        %258 = vst [vmem:[#allocation2 + $0xd8] sm:$0xff] 0.0
        %259 = vst [vmem:[#allocation2 + $0xe0] sm:$0xff] 0.0
        %260 = vst [vmem:[#allocation2 + $0xe8] sm:$0xff] 0.0
        %261 = vst [vmem:[#allocation2 + $0xf0] sm:$0xff] 0.0
        %262 = vst [vmem:[#allocation2 + $0xf8] sm:$0xff] 0.0
      $region32: #{_generator_forward.15} parent=27 // pred_fallthru
        _
      %v263 = vld [vmem:[#allocation2] sm:$0xff]
      %v264 = vld [vmem:[#allocation2 + $0x8] sm:$0xff]
      %v265 = vld [vmem:[#allocation2 + $0x10] sm:$0xff]
      %v266 = vld [vmem:[#allocation2 + $0x18] sm:$0xff]
      %v267 = vld [vmem:[#allocation2 + $0x20] sm:$0xff]
      %v268 = vld [vmem:[#allocation2 + $0x28] sm:$0xff]
      %v269 = vld [vmem:[#allocation2 + $0x30] sm:$0xff]
      %v270 = vld [vmem:[#allocation2 + $0x38] sm:$0xff]
      %v271 = vld [vmem:[#allocation2 + $0x40] sm:$0xff]
      %v272 = vld [vmem:[#allocation2 + $0x48] sm:$0xff]
      %v273 = vld [vmem:[#allocation2 + $0x50] sm:$0xff]
      %v274 = vld [vmem:[#allocation2 + $0x58] sm:$0xff]
      %v275 = vld [vmem:[#allocation2 + $0x60] sm:$0xff]
      %v276 = vld [vmem:[#allocation2 + $0x68] sm:$0xff]
      %v277 = vld [vmem:[#allocation2 + $0x70] sm:$0xff]
      %v278 = vld [vmem:[#allocation2 + $0x78] sm:$0xff]
      %v279 = vld [vmem:[#allocation2 + $0x80] sm:$0xff]
      %v280 = vld [vmem:[#allocation2 + $0x88] sm:$0xff]
      %v281 = vld [vmem:[#allocation2 + $0x90] sm:$0xff]
      %v282 = vld [vmem:[#allocation2 + $0x98] sm:$0xff]
      %v283 = vld [vmem:[#allocation2 + $0xa0] sm:$0xff]
      %v284 = vld [vmem:[#allocation2 + $0xa8] sm:$0xff]
      %v285 = vld [vmem:[#allocation2 + $0xb0] sm:$0xff]
      %v286 = vld [vmem:[#allocation2 + $0xb8] sm:$0xff]
      %v287 = vld [vmem:[#allocation2 + $0xc0] sm:$0xff]
      %v288 = vld [vmem:[#allocation2 + $0xc8] sm:$0xff]
      %v289 = vld [vmem:[#allocation2 + $0xd0] sm:$0xff]
      %v290 = vld [vmem:[#allocation2 + $0xd8] sm:$0xff]
      %v291 = vld [vmem:[#allocation2 + $0xe0] sm:$0xff]
      %v292 = vld [vmem:[#allocation2 + $0xe8] sm:$0xff]
      %v293 = vld [vmem:[#allocation2 + $0xf0] sm:$0xff]
      %v294 = vld [vmem:[#allocation2 + $0xf8] sm:$0xff]
      %v295 = vld [vmem:[%s205] sm:$0xff]
      %v296 = vld [vmem:[%s205 + $0x8] sm:$0xff]
      %v297 = vld [vmem:[%s205 + $0x10] sm:$0xff]
      %v298 = vld [vmem:[%s205 + $0x18] sm:$0xff]
      %v299 = vld [vmem:[%s205 + $0x20] sm:$0xff]
      %v300 = vld [vmem:[%s205 + $0x28] sm:$0xff]
      %v301 = vld [vmem:[%s205 + $0x30] sm:$0xff]
      %v302 = vld [vmem:[%s205 + $0x38] sm:$0xff]
      %v303 = vld [vmem:[%s205 + $0x40] sm:$0xff]
      %v304 = vld [vmem:[%s205 + $0x48] sm:$0xff]
      %v305 = vld [vmem:[%s205 + $0x50] sm:$0xff]
      %v306 = vld [vmem:[%s205 + $0x58] sm:$0xff]
      %v307 = vld [vmem:[%s205 + $0x60] sm:$0xff]
      %v308 = vld [vmem:[%s205 + $0x68] sm:$0xff]
      %v309 = vld [vmem:[%s205 + $0x70] sm:$0xff]
      %v310 = vld [vmem:[%s205 + $0x78] sm:$0xff]
      %v311 = vld [vmem:[%s205 + $0x80] sm:$0xff]
      %v312 = vld [vmem:[%s205 + $0x88] sm:$0xff]
      %v313 = vld [vmem:[%s205 + $0x90] sm:$0xff]
      %v314 = vld [vmem:[%s205 + $0x98] sm:$0xff]
      %v315 = vld [vmem:[%s205 + $0xa0] sm:$0xff]
      %v316 = vld [vmem:[%s205 + $0xa8] sm:$0xff]
      %v317 = vld [vmem:[%s205 + $0xb0] sm:$0xff]
      %v318 = vld [vmem:[%s205 + $0xb8] sm:$0xff]
      %v319 = vld [vmem:[%s205 + $0xc0] sm:$0xff]
      %v320 = vld [vmem:[%s205 + $0xc8] sm:$0xff]
      %v321 = vld [vmem:[%s205 + $0xd0] sm:$0xff]
      %v322 = vld [vmem:[%s205 + $0xd8] sm:$0xff]
      %v323 = vld [vmem:[%s205 + $0xe0] sm:$0xff]
      %v324 = vld [vmem:[%s205 + $0xe8] sm:$0xff]
      %v325 = vld [vmem:[%s205 + $0xf0] sm:$0xff]
      %v326 = vld [vmem:[%s205 + $0xf8] sm:$0xff]
      %v327 = vld [vmem:[%s215] sm:$0xf]
      %v328 = vld [vmem:[%s215 + $0x4] sm:$0xf]
      %v329 = vld [vmem:[%s215 + $0x8] sm:$0xf]
      %v330 = vld [vmem:[%s215 + $0xc] sm:$0xf]
      %v331 = vld [vmem:[%s215 + $0x10] sm:$0xf]
      %v332 = vld [vmem:[%s215 + $0x14] sm:$0xf]
      %v333 = vld [vmem:[%s215 + $0x18] sm:$0xf]
      %v334 = vld [vmem:[%s215 + $0x1c] sm:$0xf]
      %v335 = vld [vmem:[%s215 + $0x20] sm:$0xf]
      %v336 = vld [vmem:[%s215 + $0x24] sm:$0xf]
      %v337 = vld [vmem:[%s215 + $0x28] sm:$0xf]
      %v338 = vld [vmem:[%s215 + $0x2c] sm:$0xf]
      %v339 = vld [vmem:[%s215 + $0x30] sm:$0xf]
      %v340 = vld [vmem:[%s215 + $0x34] sm:$0xf]
      %v341 = vld [vmem:[%s215 + $0x38] sm:$0xf]
      %v342 = vld [vmem:[%s215 + $0x3c] sm:$0xf]
      %v343 = vld [vmem:[%s215 + $0x40] sm:$0xf]
      %v344 = vld [vmem:[%s215 + $0x44] sm:$0xf]
      %v345 = vld [vmem:[%s215 + $0x48] sm:$0xf]
      %v346 = vld [vmem:[%s215 + $0x4c] sm:$0xf]
      %v347 = vld [vmem:[%s215 + $0x50] sm:$0xf]
      %v348 = vld [vmem:[%s215 + $0x54] sm:$0xf]
      %v349 = vld [vmem:[%s215 + $0x58] sm:$0xf]
      %v350 = vld [vmem:[%s215 + $0x5c] sm:$0xf]
      %v351 = vld [vmem:[%s215 + $0x60] sm:$0xf]
      %v352 = vld [vmem:[%s215 + $0x64] sm:$0xf]
      %v353 = vld [vmem:[%s215 + $0x68] sm:$0xf]
      %v354 = vld [vmem:[%s215 + $0x6c] sm:$0xf]
      %v355 = vld [vmem:[%s215 + $0x70] sm:$0xf]
      %v356 = vld [vmem:[%s215 + $0x74] sm:$0xf]
      %v357 = vld [vmem:[%s215 + $0x78] sm:$0xf]
      %v358 = vld [vmem:[%s215 + $0x7c] sm:$0xf]
      %v391 = vunpack.c.l.b16 %v295
      %v392 = vunpack.c.h.b16 %v295
      %v393 = vunpack.c.l.b16 %v296
      %v394 = vunpack.c.h.b16 %v296
      %v395 = vunpack.c.l.b16 %v297
      %v396 = vunpack.c.h.b16 %v297
      %v397 = vunpack.c.l.b16 %v298
      %v398 = vunpack.c.h.b16 %v298
      %v399 = vunpack.c.l.b16 %v299
      %v400 = vunpack.c.h.b16 %v299
      %v401 = vunpack.c.l.b16 %v300
      %v402 = vunpack.c.h.b16 %v300
      %v403 = vunpack.c.l.b16 %v301
      %v404 = vunpack.c.h.b16 %v301
      %v405 = vunpack.c.l.b16 %v302
      %v406 = vunpack.c.h.b16 %v302
      %v407 = vunpack.c.l.b16 %v303
      %v408 = vunpack.c.h.b16 %v303
      %v409 = vunpack.c.l.b16 %v304
      %v410 = vunpack.c.h.b16 %v304
      %v411 = vunpack.c.l.b16 %v305
      %v412 = vunpack.c.h.b16 %v305
      %v413 = vunpack.c.l.b16 %v306
      %v414 = vunpack.c.h.b16 %v306
      %v415 = vunpack.c.l.b16 %v307
      %v416 = vunpack.c.h.b16 %v307
      %v417 = vunpack.c.l.b16 %v308
      %v418 = vunpack.c.h.b16 %v308
      %v419 = vunpack.c.l.b16 %v309
      %v420 = vunpack.c.h.b16 %v309
      %v421 = vunpack.c.l.b16 %v310
      %v422 = vunpack.c.h.b16 %v310
      %v423 = vunpack.c.l.b16 %v311
      %v424 = vunpack.c.h.b16 %v311
      %v425 = vunpack.c.l.b16 %v312
      %v426 = vunpack.c.h.b16 %v312
      %v427 = vunpack.c.l.b16 %v313
      %v428 = vunpack.c.h.b16 %v313
      %v429 = vunpack.c.l.b16 %v314
      %v430 = vunpack.c.h.b16 %v314
      %v431 = vunpack.c.l.b16 %v315
      %v432 = vunpack.c.h.b16 %v315
      %v433 = vunpack.c.l.b16 %v316
      %v434 = vunpack.c.h.b16 %v316
      %v435 = vunpack.c.l.b16 %v317
      %v436 = vunpack.c.h.b16 %v317
      %v437 = vunpack.c.l.b16 %v318
      %v438 = vunpack.c.h.b16 %v318
      %v439 = vunpack.c.l.b16 %v319
      %v440 = vunpack.c.h.b16 %v319
      %v441 = vunpack.c.l.b16 %v320
      %v442 = vunpack.c.h.b16 %v320
      %v443 = vunpack.c.l.b16 %v321
      %v444 = vunpack.c.h.b16 %v321
      %v445 = vunpack.c.l.b16 %v322
      %v446 = vunpack.c.h.b16 %v322
      %v447 = vunpack.c.l.b16 %v323
      %v448 = vunpack.c.h.b16 %v323
      %v449 = vunpack.c.l.b16 %v324
      %v450 = vunpack.c.h.b16 %v324
      %v451 = vunpack.c.l.b16 %v325
      %v452 = vunpack.c.h.b16 %v325
      %v453 = vunpack.c.l.b16 %v326
      %v454 = vunpack.c.h.b16 %v326
      %v455 = vpack.c.b16 %v393, %v391
      %v456 = vpack.c.b16 %v394, %v392
      %v457 = vpack.c.b16 %v397, %v395
      %v458 = vpack.c.b16 %v398, %v396
      %v459 = vpack.c.b16 %v401, %v399
      %v460 = vpack.c.b16 %v402, %v400
      %v461 = vpack.c.b16 %v405, %v403
      %v462 = vpack.c.b16 %v406, %v404
      %v463 = vpack.c.b16 %v409, %v407
      %v464 = vpack.c.b16 %v410, %v408
      %v465 = vpack.c.b16 %v413, %v411
      %v466 = vpack.c.b16 %v414, %v412
      %v467 = vpack.c.b16 %v417, %v415
      %v468 = vpack.c.b16 %v418, %v416
      %v469 = vpack.c.b16 %v421, %v419
      %v470 = vpack.c.b16 %v422, %v420
      %v471 = vpack.c.b16 %v425, %v423
      %v472 = vpack.c.b16 %v426, %v424
      %v473 = vpack.c.b16 %v429, %v427
      %v474 = vpack.c.b16 %v430, %v428
      %v475 = vpack.c.b16 %v433, %v431
      %v476 = vpack.c.b16 %v434, %v432
      %v477 = vpack.c.b16 %v437, %v435
      %v478 = vpack.c.b16 %v438, %v436
      %v479 = vpack.c.b16 %v441, %v439
      %v480 = vpack.c.b16 %v442, %v440
      %v481 = vpack.c.b16 %v445, %v443
      %v482 = vpack.c.b16 %v446, %v444
      %v483 = vpack.c.b16 %v449, %v447
      %v484 = vpack.c.b16 %v450, %v448
      %v485 = vpack.c.b16 %v453, %v451
      %v486 = vpack.c.b16 %v454, %v452
      %v551 = vunpack.c.l.b16 %v327
      %v552 = vunpack.c.l.b16 %v328
      %v553 = vunpack.c.l.b16 %v329
      %v554 = vunpack.c.l.b16 %v330
      %v555 = vunpack.c.l.b16 %v331
      %v556 = vunpack.c.l.b16 %v332
      %v557 = vunpack.c.l.b16 %v333
      %v558 = vunpack.c.l.b16 %v334
      %v559 = vunpack.c.l.b16 %v335
      %v560 = vunpack.c.l.b16 %v336
      %v561 = vunpack.c.l.b16 %v337
      %v562 = vunpack.c.l.b16 %v338
      %v563 = vunpack.c.l.b16 %v339
      %v564 = vunpack.c.l.b16 %v340
      %v565 = vunpack.c.l.b16 %v341
      %v566 = vunpack.c.l.b16 %v342
      %v567 = vunpack.c.l.b16 %v343
      %v568 = vunpack.c.l.b16 %v344
      %v569 = vunpack.c.l.b16 %v345
      %v570 = vunpack.c.l.b16 %v346
      %v571 = vunpack.c.l.b16 %v347
      %v572 = vunpack.c.l.b16 %v348
      %v573 = vunpack.c.l.b16 %v349
      %v574 = vunpack.c.l.b16 %v350
      %v575 = vunpack.c.l.b16 %v351
      %v576 = vunpack.c.l.b16 %v352
      %v577 = vunpack.c.l.b16 %v353
      %v578 = vunpack.c.l.b16 %v354
      %v579 = vunpack.c.l.b16 %v355
      %v580 = vunpack.c.l.b16 %v356
      %v581 = vunpack.c.l.b16 %v357
      %v582 = vunpack.c.l.b16 %v358
      %v583 = vpack.c.b16 %v552, %v551
      %v584 = vpack.c.b16 %v554, %v553
      %v585 = vpack.c.b16 %v556, %v555
      %v586 = vpack.c.b16 %v558, %v557
      %v587 = vpack.c.b16 %v560, %v559
      %v588 = vpack.c.b16 %v562, %v561
      %v589 = vpack.c.b16 %v564, %v563
      %v590 = vpack.c.b16 %v566, %v565
      %v591 = vpack.c.b16 %v568, %v567
      %v592 = vpack.c.b16 %v570, %v569
      %v593 = vpack.c.b16 %v572, %v571
      %v594 = vpack.c.b16 %v574, %v573
      %v595 = vpack.c.b16 %v576, %v575
      %v596 = vpack.c.b16 %v578, %v577
      %v597 = vpack.c.b16 %v580, %v579
      %v598 = vpack.c.b16 %v582, %v581
      %615 = vmatprep.subr.bf16.mxu0 0
      %616 = vmatpush1.bf16.msra.mxu0 %v583
      %617 = vmatprep.subr.bf16.mxu0 0
      %618 = vmatpush1.bf16.msra.mxu0 %v584
      %619 = vmatprep.subr.bf16.mxu0 0
      %620 = vmatpush1.bf16.msra.mxu0 %v585
      %621 = vmatprep.subr.bf16.mxu0 0
      %622 = vmatpush1.bf16.msra.mxu0 %v586
      %623 = vmatprep.subr.bf16.mxu0 0
      %624 = vmatpush1.bf16.msra.mxu0 %v587
      %625 = vmatprep.subr.bf16.mxu0 0
      %626 = vmatpush1.bf16.msra.mxu0 %v588
      %627 = vmatprep.subr.bf16.mxu0 0
      %628 = vmatpush1.bf16.msra.mxu0 %v589
      %629 = vmatprep.subr.bf16.mxu0 0
      %630 = vmatpush1.bf16.msra.mxu0 %v590
      %631 = vmatprep.subr.bf16.mxu0 0
      %632 = vmatpush1.bf16.msra.mxu0 %v591
      %633 = vmatprep.subr.bf16.mxu0 0
      %634 = vmatpush1.bf16.msra.mxu0 %v592
      %635 = vmatprep.subr.bf16.mxu0 0
      %636 = vmatpush1.bf16.msra.mxu0 %v593
      %637 = vmatprep.subr.bf16.mxu0 0
      %638 = vmatpush1.bf16.msra.mxu0 %v594
      %639 = vmatprep.subr.bf16.mxu0 0
      %640 = vmatpush1.bf16.msra.mxu0 %v595
      %641 = vmatprep.subr.bf16.mxu0 0
      %642 = vmatpush1.bf16.msra.mxu0 %v596
      %643 = vmatprep.subr.bf16.mxu0 0
      %644 = vmatpush1.bf16.msra.mxu0 %v597
      %645 = vmatprep.subr.bf16.mxu0 0
      %646 = vmatpush1.bf16.msra.mxu0 %v598
      %647 = vmatprep.mubr.bf16.mxu0 %v456
      %648 = vmatmul.mubr.bf16.gmra.mrb[0].mxu0 %v455
      %v649 = vpop.f32.mrb[0].mxu0
      %v650 = vadd.f32 0.0, %v649
      %v651 = vpop.f32.mrb[0].mxu0
      %v652 = vpop.f32.mrb[0].mxu0
      %v653 = vadd.f32 0.0, %v652
      %v654 = vpop.f32.mrb[0].mxu0
      %655 = vmatprep.mubr.bf16.mxu0 %v458
      %656 = vmatmul.mubr.bf16.gmra.mrb[0].mxu0 %v457
      %v657 = vpop.f32.mrb[0].mxu0
      %v658 = vadd.f32 0.0, %v657
      %v659 = vpop.f32.mrb[0].mxu0
      %v660 = vpop.f32.mrb[0].mxu0
      %v661 = vadd.f32 0.0, %v660
      %v662 = vpop.f32.mrb[0].mxu0
      %663 = vmatprep.mubr.bf16.mxu0 %v460
      %664 = vmatmul.mubr.bf16.gmra.mrb[0].mxu0 %v459
      %v665 = vpop.f32.mrb[0].mxu0
      %v666 = vadd.f32 0.0, %v665
      %v667 = vpop.f32.mrb[0].mxu0
      %v668 = vpop.f32.mrb[0].mxu0
      %v669 = vadd.f32 0.0, %v668
      %v670 = vpop.f32.mrb[0].mxu0
      %671 = vmatprep.mubr.bf16.mxu0 %v462
      %672 = vmatmul.mubr.bf16.gmra.mrb[0].mxu0 %v461
      %v673 = vpop.f32.mrb[0].mxu0
      %v674 = vadd.f32 0.0, %v673
      %v675 = vpop.f32.mrb[0].mxu0
      %v676 = vpop.f32.mrb[0].mxu0
      %v677 = vadd.f32 0.0, %v676
      %v678 = vpop.f32.mrb[0].mxu0
      %679 = vmatprep.mubr.bf16.mxu0 %v464
      %680 = vmatmul.mubr.bf16.gmra.mrb[0].mxu0 %v463
      %v681 = vpop.f32.mrb[0].mxu0
      %v682 = vadd.f32 0.0, %v681
      %v683 = vpop.f32.mrb[0].mxu0
      %v684 = vpop.f32.mrb[0].mxu0
      %v685 = vadd.f32 0.0, %v684
      %v686 = vpop.f32.mrb[0].mxu0
      %687 = vmatprep.mubr.bf16.mxu0 %v466
      %688 = vmatmul.mubr.bf16.gmra.mrb[0].mxu0 %v465
      %v689 = vpop.f32.mrb[0].mxu0
      %v690 = vadd.f32 0.0, %v689
      %v691 = vpop.f32.mrb[0].mxu0
      %v692 = vpop.f32.mrb[0].mxu0
      %v693 = vadd.f32 0.0, %v692
      %v694 = vpop.f32.mrb[0].mxu0
      %695 = vmatprep.mubr.bf16.mxu0 %v468
      %696 = vmatmul.mubr.bf16.gmra.mrb[0].mxu0 %v467
      %v697 = vpop.f32.mrb[0].mxu0
      %v698 = vadd.f32 0.0, %v697
      %v699 = vpop.f32.mrb[0].mxu0
      %v700 = vpop.f32.mrb[0].mxu0
      %v701 = vadd.f32 0.0, %v700
      %v702 = vpop.f32.mrb[0].mxu0
      %703 = vmatprep.mubr.bf16.mxu0 %v470
      %704 = vmatmul.mubr.bf16.gmra.mrb[0].mxu0 %v469
      %v705 = vpop.f32.mrb[0].mxu0
      %v706 = vadd.f32 0.0, %v705
      %v707 = vpop.f32.mrb[0].mxu0
      %v708 = vpop.f32.mrb[0].mxu0
      %v709 = vadd.f32 0.0, %v708
      %v710 = vpop.f32.mrb[0].mxu0
      %711 = vmatprep.mubr.bf16.mxu0 %v472
      %712 = vmatmul.mubr.bf16.gmra.mrb[0].mxu0 %v471
      %v713 = vpop.f32.mrb[0].mxu0
      %v714 = vadd.f32 0.0, %v713
      %v715 = vpop.f32.mrb[0].mxu0
      %v716 = vpop.f32.mrb[0].mxu0
      %v717 = vadd.f32 0.0, %v716
      %v718 = vpop.f32.mrb[0].mxu0
      %719 = vmatprep.mubr.bf16.mxu0 %v474
      %720 = vmatmul.mubr.bf16.gmra.mrb[0].mxu0 %v473
      %v721 = vpop.f32.mrb[0].mxu0
      %v722 = vadd.f32 0.0, %v721
      %v723 = vpop.f32.mrb[0].mxu0
      %v724 = vpop.f32.mrb[0].mxu0
      %v725 = vadd.f32 0.0, %v724
      %v726 = vpop.f32.mrb[0].mxu0
      %727 = vmatprep.mubr.bf16.mxu0 %v476
      %728 = vmatmul.mubr.bf16.gmra.mrb[0].mxu0 %v475
      %v729 = vpop.f32.mrb[0].mxu0
      %v730 = vadd.f32 0.0, %v729
      %v731 = vpop.f32.mrb[0].mxu0
      %v732 = vpop.f32.mrb[0].mxu0
      %v733 = vadd.f32 0.0, %v732
      %v734 = vpop.f32.mrb[0].mxu0
      %735 = vmatprep.mubr.bf16.mxu0 %v478
      %736 = vmatmul.mubr.bf16.gmra.mrb[0].mxu0 %v477
      %v737 = vpop.f32.mrb[0].mxu0
      %v738 = vadd.f32 0.0, %v737
      %v739 = vpop.f32.mrb[0].mxu0
      %v740 = vpop.f32.mrb[0].mxu0
      %v741 = vadd.f32 0.0, %v740
      %v742 = vpop.f32.mrb[0].mxu0
      %743 = vmatprep.mubr.bf16.mxu0 %v480
      %744 = vmatmul.mubr.bf16.gmra.mrb[0].mxu0 %v479
      %v745 = vpop.f32.mrb[0].mxu0
      %v746 = vadd.f32 0.0, %v745
      %v747 = vpop.f32.mrb[0].mxu0
      %v748 = vpop.f32.mrb[0].mxu0
      %v749 = vadd.f32 0.0, %v748
      %v750 = vpop.f32.mrb[0].mxu0
      %751 = vmatprep.mubr.bf16.mxu0 %v482
      %752 = vmatmul.mubr.bf16.gmra.mrb[0].mxu0 %v481
      %v753 = vpop.f32.mrb[0].mxu0
      %v754 = vadd.f32 0.0, %v753
      %v755 = vpop.f32.mrb[0].mxu0
      %v756 = vpop.f32.mrb[0].mxu0
      %v757 = vadd.f32 0.0, %v756
      %v758 = vpop.f32.mrb[0].mxu0
      %759 = vmatprep.mubr.bf16.mxu0 %v484
      %760 = vmatmul.mubr.bf16.gmra.mrb[0].mxu0 %v483
      %v761 = vpop.f32.mrb[0].mxu0
      %v762 = vadd.f32 0.0, %v761
      %v763 = vpop.f32.mrb[0].mxu0
      %v764 = vpop.f32.mrb[0].mxu0
      %v765 = vadd.f32 0.0, %v764
      %v766 = vpop.f32.mrb[0].mxu0
      %767 = vmatprep.mubr.bf16.mxu0 %v486
      %768 = vmatmul.mubr.bf16.gmra.mrb[0].mxu0 %v485
      %v769 = vpop.f32.mrb[0].mxu0
      %v770 = vadd.f32 0.0, %v769
      %v771 = vpop.f32.mrb[0].mxu0
      %v772 = vpop.f32.mrb[0].mxu0
      %v773 = vadd.f32 0.0, %v772
      %v774 = vpop.f32.mrb[0].mxu0
      %775 = vdwg.mxu0
      %v776 = vadd.f32 %v263, %v650
      %v777 = vadd.f32 %v264, %v653
      %v778 = vadd.f32 %v265, %v658
      %v779 = vadd.f32 %v266, %v661
      %v780 = vadd.f32 %v267, %v666
      %v781 = vadd.f32 %v268, %v669
      %v782 = vadd.f32 %v269, %v674
      %v783 = vadd.f32 %v270, %v677
      %v784 = vadd.f32 %v271, %v682
      %v785 = vadd.f32 %v272, %v685
      %v786 = vadd.f32 %v273, %v690
      %v787 = vadd.f32 %v274, %v693
      %v788 = vadd.f32 %v275, %v698
      %v789 = vadd.f32 %v276, %v701
      %v790 = vadd.f32 %v277, %v706
      %v791 = vadd.f32 %v278, %v709
      %v792 = vadd.f32 %v279, %v714
      %v793 = vadd.f32 %v280, %v717
      %v794 = vadd.f32 %v281, %v722
      %v795 = vadd.f32 %v282, %v725
      %v796 = vadd.f32 %v283, %v730
      %v797 = vadd.f32 %v284, %v733
      %v798 = vadd.f32 %v285, %v738
      %v799 = vadd.f32 %v286, %v741
      %v800 = vadd.f32 %v287, %v746
      %v801 = vadd.f32 %v288, %v749
      %v802 = vadd.f32 %v289, %v754
      %v803 = vadd.f32 %v290, %v757
      %v804 = vadd.f32 %v291, %v762
      %v805 = vadd.f32 %v292, %v765
      %v806 = vadd.f32 %v293, %v770
      %v807 = vadd.f32 %v294, %v773
      %808 = vst [vmem:[#allocation2] sm:$0xff] %v776
      %809 = vst [vmem:[#allocation2 + $0x8] sm:$0xff] %v777
      %810 = vst [vmem:[#allocation2 + $0x10] sm:$0xff] %v778
      %811 = vst [vmem:[#allocation2 + $0x18] sm:$0xff] %v779
      %812 = vst [vmem:[#allocation2 + $0x20] sm:$0xff] %v780
      %813 = vst [vmem:[#allocation2 + $0x28] sm:$0xff] %v781
      %814 = vst [vmem:[#allocation2 + $0x30] sm:$0xff] %v782
      %815 = vst [vmem:[#allocation2 + $0x38] sm:$0xff] %v783
      %816 = vst [vmem:[#allocation2 + $0x40] sm:$0xff] %v784
      %817 = vst [vmem:[#allocation2 + $0x48] sm:$0xff] %v785
      %818 = vst [vmem:[#allocation2 + $0x50] sm:$0xff] %v786
      %819 = vst [vmem:[#allocation2 + $0x58] sm:$0xff] %v787
      %820 = vst [vmem:[#allocation2 + $0x60] sm:$0xff] %v788
      %821 = vst [vmem:[#allocation2 + $0x68] sm:$0xff] %v789
      %822 = vst [vmem:[#allocation2 + $0x70] sm:$0xff] %v790
      %823 = vst [vmem:[#allocation2 + $0x78] sm:$0xff] %v791
      %824 = vst [vmem:[#allocation2 + $0x80] sm:$0xff] %v792
      %825 = vst [vmem:[#allocation2 + $0x88] sm:$0xff] %v793
      %826 = vst [vmem:[#allocation2 + $0x90] sm:$0xff] %v794
      %827 = vst [vmem:[#allocation2 + $0x98] sm:$0xff] %v795
      %828 = vst [vmem:[#allocation2 + $0xa0] sm:$0xff] %v796
      %829 = vst [vmem:[#allocation2 + $0xa8] sm:$0xff] %v797
      %830 = vst [vmem:[#allocation2 + $0xb0] sm:$0xff] %v798
      %831 = vst [vmem:[#allocation2 + $0xb8] sm:$0xff] %v799
      %832 = vst [vmem:[#allocation2 + $0xc0] sm:$0xff] %v800
      %833 = vst [vmem:[#allocation2 + $0xc8] sm:$0xff] %v801
      %834 = vst [vmem:[#allocation2 + $0xd0] sm:$0xff] %v802
      %835 = vst [vmem:[#allocation2 + $0xd8] sm:$0xff] %v803
      %836 = vst [vmem:[#allocation2 + $0xe0] sm:$0xff] %v804
      %837 = vst [vmem:[#allocation2 + $0xe8] sm:$0xff] %v805
      %838 = vst [vmem:[#allocation2 + $0xf0] sm:$0xff] %v806
      %839 = vst [vmem:[#allocation2 + $0xf8] sm:$0xff] %v807
      // Predicated region
      $region33: #{_generator_forward.15} parent=27 // pred_check
        %p840 = pneg %p227
      $region34: #{_generator_forward.15} parent=27 // pred_check_branch
        %842 = sbr.rel (%p840) target = $region36
      $region35: #{_generator_forward.15} parent=27 // pred_region
        %v843 = vld [vmem:[#allocation2] sm:$0xff]
        %v844 = vld [vmem:[#allocation2 + $0x8] sm:$0xff]
        %v845 = vld [vmem:[#allocation2 + $0x10] sm:$0xff]
        %v846 = vld [vmem:[#allocation2 + $0x18] sm:$0xff]
        %v847 = vld [vmem:[#allocation2 + $0x20] sm:$0xff]
        %v848 = vld [vmem:[#allocation2 + $0x28] sm:$0xff]
        %v849 = vld [vmem:[#allocation2 + $0x30] sm:$0xff]
        %v850 = vld [vmem:[#allocation2 + $0x38] sm:$0xff]
        %v851 = vld [vmem:[#allocation2 + $0x40] sm:$0xff]
        %v852 = vld [vmem:[#allocation2 + $0x48] sm:$0xff]
        %v853 = vld [vmem:[#allocation2 + $0x50] sm:$0xff]
        %v854 = vld [vmem:[#allocation2 + $0x58] sm:$0xff]
        %v855 = vld [vmem:[#allocation2 + $0x60] sm:$0xff]
        %v856 = vld [vmem:[#allocation2 + $0x68] sm:$0xff]
        %v857 = vld [vmem:[#allocation2 + $0x70] sm:$0xff]
        %v858 = vld [vmem:[#allocation2 + $0x78] sm:$0xff]
        %v859 = vld [vmem:[#allocation2 + $0x80] sm:$0xff]
        %v860 = vld [vmem:[#allocation2 + $0x88] sm:$0xff]
        %v861 = vld [vmem:[#allocation2 + $0x90] sm:$0xff]
        %v862 = vld [vmem:[#allocation2 + $0x98] sm:$0xff]
        %v863 = vld [vmem:[#allocation2 + $0xa0] sm:$0xff]
        %v864 = vld [vmem:[#allocation2 + $0xa8] sm:$0xff]
        %v865 = vld [vmem:[#allocation2 + $0xb0] sm:$0xff]
        %v866 = vld [vmem:[#allocation2 + $0xb8] sm:$0xff]
        %v867 = vld [vmem:[#allocation2 + $0xc0] sm:$0xff]
        %v868 = vld [vmem:[#allocation2 + $0xc8] sm:$0xff]
        %v869 = vld [vmem:[#allocation2 + $0xd0] sm:$0xff]
        %v870 = vld [vmem:[#allocation2 + $0xd8] sm:$0xff]
        %v871 = vld [vmem:[#allocation2 + $0xe0] sm:$0xff]
        %v872 = vld [vmem:[#allocation2 + $0xe8] sm:$0xff]
        %v873 = vld [vmem:[#allocation2 + $0xf0] sm:$0xff]
        %v874 = vld [vmem:[#allocation2 + $0xf8] sm:$0xff]
        %875 = vst [vmem:[%s224] sm:$0xff] %v843
        %876 = vst [vmem:[%s224 + $0x8] sm:$0xff] %v844
        %877 = vst [vmem:[%s224 + $0x10] sm:$0xff] %v845
        %878 = vst [vmem:[%s224 + $0x18] sm:$0xff] %v846
        %879 = vst [vmem:[%s224 + $0x20] sm:$0xff] %v847
        %880 = vst [vmem:[%s224 + $0x28] sm:$0xff] %v848
        %881 = vst [vmem:[%s224 + $0x30] sm:$0xff] %v849
        %882 = vst [vmem:[%s224 + $0x38] sm:$0xff] %v850
        %883 = vst [vmem:[%s224 + $0x40] sm:$0xff] %v851
        %884 = vst [vmem:[%s224 + $0x48] sm:$0xff] %v852
        %885 = vst [vmem:[%s224 + $0x50] sm:$0xff] %v853
        %886 = vst [vmem:[%s224 + $0x58] sm:$0xff] %v854
        %887 = vst [vmem:[%s224 + $0x60] sm:$0xff] %v855
        %888 = vst [vmem:[%s224 + $0x68] sm:$0xff] %v856
        %889 = vst [vmem:[%s224 + $0x70] sm:$0xff] %v857
        %890 = vst [vmem:[%s224 + $0x78] sm:$0xff] %v858
        %891 = vst [vmem:[%s224 + $0x80] sm:$0xff] %v859
        %892 = vst [vmem:[%s224 + $0x88] sm:$0xff] %v860
        %893 = vst [vmem:[%s224 + $0x90] sm:$0xff] %v861
        %894 = vst [vmem:[%s224 + $0x98] sm:$0xff] %v862
        %895 = vst [vmem:[%s224 + $0xa0] sm:$0xff] %v863
        %896 = vst [vmem:[%s224 + $0xa8] sm:$0xff] %v864
        %897 = vst [vmem:[%s224 + $0xb0] sm:$0xff] %v865
        %898 = vst [vmem:[%s224 + $0xb8] sm:$0xff] %v866
        %899 = vst [vmem:[%s224 + $0xc0] sm:$0xff] %v867
        %900 = vst [vmem:[%s224 + $0xc8] sm:$0xff] %v868
        %901 = vst [vmem:[%s224 + $0xd0] sm:$0xff] %v869
        %902 = vst [vmem:[%s224 + $0xd8] sm:$0xff] %v870
        %903 = vst [vmem:[%s224 + $0xe0] sm:$0xff] %v871
        %904 = vst [vmem:[%s224 + $0xe8] sm:$0xff] %v872
        %905 = vst [vmem:[%s224 + $0xf0] sm:$0xff] %v873
        %906 = vst [vmem:[%s224 + $0xf8] sm:$0xff] %v874
      $region36: #{_generator_forward.15} parent=27 // pred_fallthru
        _
      %s907 = smul.u32 32, %s18
      %p908 = scmp.lt.s32.totalorder %s907, 63
      %s909 = scalar_select %p908, %s907, 63
      %p910 = scmp.lt.s32.totalorder %s19, 0
      %s911 = scalar_select %p910, %s19, 0
      %s912 = sadd.s32 %s911, %s909
      %s913 = smul.addr %s912, 8
      %s914 = scalar_lea.vmem %s2, %s913
      // Predicated region
      $region37: #{_generator_forward.15} parent=27 // pred_check
        %p915 = pneg %p108
      $region38: #{_generator_forward.15} parent=27 // pred_check_branch
        %917 = sbr.rel (%p915) target = $region40
      $region39: #{_generator_forward.15} parent=27 // pred_region
        %s918 = smul.u32 32, %s18
      $region40: #{_generator_forward.15} parent=27 // pred_fallthru
        _
    $region28: #{_generator_forward.15} parent=5 // pred_fallthru
      _
    %p919 = scmp.le.s32.totalorder 2, %s8
    // Predicated region
    $region41: #{_generator_forward.15} parent=5 // pred_check
      %p920 = pneg %p919
    $region42: #{_generator_forward.15} parent=5 // pred_check_branch
      %922 = sbr.rel (%p920) target = $region44
    $region43: #{_generator_forward.15} parent=5 // pred_region
      %s923 = ssub.s32 %s8, 2
      // Predicated region
      $region45: #{_generator_forward.15} parent=43 // pred_check
        %p924 = pneg %p114
      $region46: #{_generator_forward.15} parent=43 // pred_check_branch
        %926 = sbr.rel (%p924) target = $region48
      $region47: #{_generator_forward.15} parent=43 // pred_region
        %s927 = smul.u32 32, %s21
        %p928 = scmp.lt.s32.totalorder %s927, 63
        %s929 = scalar_select %p928, %s927, 63
        %p930 = scmp.lt.s32.totalorder %s22, 0
        %s931 = scalar_select %p930, %s22, 0
        %s932 = sadd.s32 %s931, %s929
        %s933 = smul.addr %s932, 8
        %s934 = scalar_lea.vmem %s2, %s933
      $region48: #{_generator_forward.15} parent=43 // pred_fallthru
        _
    $region44: #{_generator_forward.15} parent=5 // pred_fallthru
      _
  $region6: #{_generator_forward.15} parent=0 // loop_footer
    %s12 = sadd.s32 1, %s8
  $region7: #{_generator_forward.15} parent=0 // loop_footer_branch
    %7 = sbr.rel target = $region3
  $region8: #{_generator_forward.15} parent=0 // loop_exit
    _

// kernel: _generator_forward.16
$region0: #{_generator_forward.16}
  #allocation0 [shape = 'u32[]', space=smem, size = 0x4, offset = 0x4, fixed_abs, tag = 'smem constant byte address 0x4 - core index']
  #allocation1 [shape = 'u32[144,128]{1,0:T(1,128)}', space=vmem, size = 0x12000, scoped, tag = 'internal scratch']
  %s0 = inlined_call_operand.vmem [shape: f32[2048,8], index: 0, kind: input, shape index: {}]
  %s1 = inlined_call_operand.vmem [shape: f32[1,8], index: 1, kind: input, shape index: {}]
  %s2 = inlined_call_operand.vmem [shape: f32[1,8], index: 2, kind: input, shape index: {}]
  %s3 = inlined_call_operand.vmem [shape: f32[2048,8], index: 3, kind: output, shape index: {}]
  %s4 = sld [smem:[#allocation0]]
  $region22: #{_generator_forward.16} parent=0
    _
  %s6 = ssub.s32 1, %s4
  %s7 = scalar_select 0, %s6, %s4
  // Predicated region
  $region2: #{_generator_forward.16} parent=0 // pred_check
    _
  $region3: #{_generator_forward.16} parent=0 // pred_check_branch
    %9 = sbr.rel (0) target = $region5
  $region4: #{_generator_forward.16} parent=0 // pred_region
    _
  $region5: #{_generator_forward.16} parent=0 // pred_fallthru
    _
  // Predicated region
  $region6: #{_generator_forward.16} parent=0 // pred_check
    _
  $region7: #{_generator_forward.16} parent=0 // pred_check_branch
    %11 = sbr.rel (0) target = $region9
  $region8: #{_generator_forward.16} parent=0 // pred_region
    _
  $region9: #{_generator_forward.16} parent=0 // pred_fallthru
    _
  // Predicated region
  $region10: #{_generator_forward.16} parent=0 // pred_check
    _
  $region11: #{_generator_forward.16} parent=0 // pred_check_branch
    %13 = sbr.rel (0) target = $region13
  $region12: #{_generator_forward.16} parent=0 // pred_region
    _
  $region13: #{_generator_forward.16} parent=0 // pred_fallthru
    _
  %v14 = vld [vmem:[%s0] sm:$0xff]
  %v15 = vld [vmem:[%s0 + $0x8] sm:$0xff]
  %v16 = vld [vmem:[%s0 + $0x10] sm:$0xff]
  %v17 = vld [vmem:[%s0 + $0x18] sm:$0xff]
  %v18 = vld [vmem:[%s0 + $0x20] sm:$0xff]
  %v19 = vld [vmem:[%s0 + $0x28] sm:$0xff]
  %v20 = vld [vmem:[%s0 + $0x30] sm:$0xff]
  %v21 = vld [vmem:[%s0 + $0x38] sm:$0xff]
  %v22 = vld [vmem:[%s0 + $0x40] sm:$0xff]
  %v23 = vld [vmem:[%s0 + $0x48] sm:$0xff]
  %v24 = vld [vmem:[%s0 + $0x50] sm:$0xff]
  %v25 = vld [vmem:[%s0 + $0x58] sm:$0xff]
  %v26 = vld [vmem:[%s0 + $0x60] sm:$0xff]
  %v27 = vld [vmem:[%s0 + $0x68] sm:$0xff]
  %v28 = vld [vmem:[%s0 + $0x70] sm:$0xff]
  %v29 = vld [vmem:[%s0 + $0x78] sm:$0xff]
  %v30 = vld [vmem:[%s0 + $0x80] sm:$0xff]
  %v31 = vld [vmem:[%s0 + $0x88] sm:$0xff]
  %v32 = vld [vmem:[%s0 + $0x90] sm:$0xff]
  %v33 = vld [vmem:[%s0 + $0x98] sm:$0xff]
  %v34 = vld [vmem:[%s0 + $0xa0] sm:$0xff]
  %v35 = vld [vmem:[%s0 + $0xa8] sm:$0xff]
  %v36 = vld [vmem:[%s0 + $0xb0] sm:$0xff]
  %v37 = vld [vmem:[%s0 + $0xb8] sm:$0xff]
  %v38 = vld [vmem:[%s0 + $0xc0] sm:$0xff]
  %v39 = vld [vmem:[%s0 + $0xc8] sm:$0xff]
  %v40 = vld [vmem:[%s0 + $0xd0] sm:$0xff]
  %v41 = vld [vmem:[%s0 + $0xd8] sm:$0xff]
  %v42 = vld [vmem:[%s0 + $0xe0] sm:$0xff]
  %v43 = vld [vmem:[%s0 + $0xe8] sm:$0xff]
  %v44 = vld [vmem:[%s0 + $0xf0] sm:$0xff]
  %v45 = vld [vmem:[%s0 + $0xf8] sm:$0xff]
  %v46 = vld [vmem:[%s0 + $0x100] sm:$0xff]
  %v47 = vld [vmem:[%s0 + $0x108] sm:$0xff]
  %v48 = vld [vmem:[%s0 + $0x110] sm:$0xff]
  %v49 = vld [vmem:[%s0 + $0x118] sm:$0xff]
  %v50 = vld [vmem:[%s0 + $0x120] sm:$0xff]
  %v51 = vld [vmem:[%s0 + $0x128] sm:$0xff]
  %v52 = vld [vmem:[%s0 + $0x130] sm:$0xff]
  %v53 = vld [vmem:[%s0 + $0x138] sm:$0xff]
  %v54 = vld [vmem:[%s0 + $0x140] sm:$0xff]
  %v55 = vld [vmem:[%s0 + $0x148] sm:$0xff]
  %v56 = vld [vmem:[%s0 + $0x150] sm:$0xff]
  %v57 = vld [vmem:[%s0 + $0x158] sm:$0xff]
  %v58 = vld [vmem:[%s0 + $0x160] sm:$0xff]
  %v59 = vld [vmem:[%s0 + $0x168] sm:$0xff]
  %v60 = vld [vmem:[%s0 + $0x170] sm:$0xff]
  %v61 = vld [vmem:[%s0 + $0x178] sm:$0xff]
  %v62 = vld [vmem:[%s0 + $0x180] sm:$0xff]
  %v63 = vld [vmem:[%s0 + $0x188] sm:$0xff]
  %v64 = vld [vmem:[%s0 + $0x190] sm:$0xff]
  %v65 = vld [vmem:[%s0 + $0x198] sm:$0xff]
  %v66 = vld [vmem:[%s0 + $0x1a0] sm:$0xff]
  %v67 = vld [vmem:[%s0 + $0x1a8] sm:$0xff]
  %v68 = vld [vmem:[%s0 + $0x1b0] sm:$0xff]
  %v69 = vld [vmem:[%s0 + $0x1b8] sm:$0xff]
  %v70 = vld [vmem:[%s0 + $0x1c0] sm:$0xff]
  %v71 = vld [vmem:[%s0 + $0x1c8] sm:$0xff]
  %v72 = vld [vmem:[%s0 + $0x1d0] sm:$0xff]
  %v73 = vld [vmem:[%s0 + $0x1d8] sm:$0xff]
  %v74 = vld [vmem:[%s0 + $0x1e0] sm:$0xff]
  %v75 = vld [vmem:[%s0 + $0x1e8] sm:$0xff]
  %v76 = vld [vmem:[%s0 + $0x1f0] sm:$0xff]
  %v77 = vld [vmem:[%s0 + $0x1f8] sm:$0xff]
  %v78 = vld [vmem:[%s0 + $0x200] sm:$0xff]
  %v79 = vld [vmem:[%s0 + $0x208] sm:$0xff]
  %v80 = vld [vmem:[%s0 + $0x210] sm:$0xff]
  %v81 = vld [vmem:[%s0 + $0x218] sm:$0xff]
  %v82 = vld [vmem:[%s0 + $0x220] sm:$0xff]
  %v83 = vld [vmem:[%s0 + $0x228] sm:$0xff]
  %v84 = vld [vmem:[%s0 + $0x230] sm:$0xff]
  %v85 = vld [vmem:[%s0 + $0x238] sm:$0xff]
  %v86 = vld [vmem:[%s0 + $0x240] sm:$0xff]
  %v87 = vld [vmem:[%s0 + $0x248] sm:$0xff]
  %v88 = vld [vmem:[%s0 + $0x250] sm:$0xff]
  %v89 = vld [vmem:[%s0 + $0x258] sm:$0xff]
  %v90 = vld [vmem:[%s0 + $0x260] sm:$0xff]
  %v91 = vld [vmem:[%s0 + $0x268] sm:$0xff]
  %v92 = vld [vmem:[%s0 + $0x270] sm:$0xff]
  %v93 = vld [vmem:[%s0 + $0x278] sm:$0xff]
  %v94 = vld [vmem:[%s0 + $0x280] sm:$0xff]
  %v95 = vld [vmem:[%s0 + $0x288] sm:$0xff]
  %v96 = vld [vmem:[%s0 + $0x290] sm:$0xff]
  %v97 = vld [vmem:[%s0 + $0x298] sm:$0xff]
  %v98 = vld [vmem:[%s0 + $0x2a0] sm:$0xff]
  %v99 = vld [vmem:[%s0 + $0x2a8] sm:$0xff]
  %v100 = vld [vmem:[%s0 + $0x2b0] sm:$0xff]
  %v101 = vld [vmem:[%s0 + $0x2b8] sm:$0xff]
  %v102 = vld [vmem:[%s0 + $0x2c0] sm:$0xff]
  %v103 = vld [vmem:[%s0 + $0x2c8] sm:$0xff]
  %v104 = vld [vmem:[%s0 + $0x2d0] sm:$0xff]
  %v105 = vld [vmem:[%s0 + $0x2d8] sm:$0xff]
  %v106 = vld [vmem:[%s0 + $0x2e0] sm:$0xff]
  %v107 = vld [vmem:[%s0 + $0x2e8] sm:$0xff]
  %v108 = vld [vmem:[%s0 + $0x2f0] sm:$0xff]
  %v109 = vld [vmem:[%s0 + $0x2f8] sm:$0xff]
  %v110 = vld [vmem:[%s0 + $0x300] sm:$0xff]
  %v111 = vld [vmem:[%s0 + $0x308] sm:$0xff]
  %v112 = vld [vmem:[%s0 + $0x310] sm:$0xff]
  %v113 = vld [vmem:[%s0 + $0x318] sm:$0xff]
  %v114 = vld [vmem:[%s0 + $0x320] sm:$0xff]
  %v115 = vld [vmem:[%s0 + $0x328] sm:$0xff]
  %v116 = vld [vmem:[%s0 + $0x330] sm:$0xff]
  %v117 = vld [vmem:[%s0 + $0x338] sm:$0xff]
  %v118 = vld [vmem:[%s0 + $0x340] sm:$0xff]
  %v119 = vld [vmem:[%s0 + $0x348] sm:$0xff]
  %v120 = vld [vmem:[%s0 + $0x350] sm:$0xff]
  %v121 = vld [vmem:[%s0 + $0x358] sm:$0xff]
  %v122 = vld [vmem:[%s0 + $0x360] sm:$0xff]
  %v123 = vld [vmem:[%s0 + $0x368] sm:$0xff]
  %v124 = vld [vmem:[%s0 + $0x370] sm:$0xff]
  %v125 = vld [vmem:[%s0 + $0x378] sm:$0xff]
  %v126 = vld [vmem:[%s0 + $0x380] sm:$0xff]
  %v127 = vld [vmem:[%s0 + $0x388] sm:$0xff]
  %v128 = vld [vmem:[%s0 + $0x390] sm:$0xff]
  %v129 = vld [vmem:[%s0 + $0x398] sm:$0xff]
  %v130 = vld [vmem:[%s0 + $0x3a0] sm:$0xff]
  %v131 = vld [vmem:[%s0 + $0x3a8] sm:$0xff]
  %v132 = vld [vmem:[%s0 + $0x3b0] sm:$0xff]
  %v133 = vld [vmem:[%s0 + $0x3b8] sm:$0xff]
  %v134 = vld [vmem:[%s0 + $0x3c0] sm:$0xff]
  %v135 = vld [vmem:[%s0 + $0x3c8] sm:$0xff]
  %v136 = vld [vmem:[%s0 + $0x3d0] sm:$0xff]
  %v137 = vld [vmem:[%s0 + $0x3d8] sm:$0xff]
  %v138 = vld [vmem:[%s0 + $0x3e0] sm:$0xff]
  %v139 = vld [vmem:[%s0 + $0x3e8] sm:$0xff]
  %v140 = vld [vmem:[%s0 + $0x3f0] sm:$0xff]
  %v141 = vld [vmem:[%s0 + $0x3f8] sm:$0xff]
  %v142 = vld [vmem:[%s0 + $0x400] sm:$0xff]
  %v143 = vld [vmem:[%s0 + $0x408] sm:$0xff]
  %v144 = vld [vmem:[%s0 + $0x410] sm:$0xff]
  %v145 = vld [vmem:[%s0 + $0x418] sm:$0xff]
  %v146 = vld [vmem:[%s0 + $0x420] sm:$0xff]
  %v147 = vld [vmem:[%s0 + $0x428] sm:$0xff]
  %v148 = vld [vmem:[%s0 + $0x430] sm:$0xff]
  %v149 = vld [vmem:[%s0 + $0x438] sm:$0xff]
  %v150 = vld [vmem:[%s0 + $0x440] sm:$0xff]
  %v151 = vld [vmem:[%s0 + $0x448] sm:$0xff]
  %v152 = vld [vmem:[%s0 + $0x450] sm:$0xff]
  %v153 = vld [vmem:[%s0 + $0x458] sm:$0xff]
  %v154 = vld [vmem:[%s0 + $0x460] sm:$0xff]
  %v155 = vld [vmem:[%s0 + $0x468] sm:$0xff]
  %v156 = vld [vmem:[%s0 + $0x470] sm:$0xff]
  %v157 = vld [vmem:[%s0 + $0x478] sm:$0xff]
  %v158 = vld [vmem:[%s0 + $0x480] sm:$0xff]
  %v159 = vld [vmem:[%s0 + $0x488] sm:$0xff]
  %v160 = vld [vmem:[%s0 + $0x490] sm:$0xff]
  %v161 = vld [vmem:[%s0 + $0x498] sm:$0xff]
  %v162 = vld [vmem:[%s0 + $0x4a0] sm:$0xff]
  %v163 = vld [vmem:[%s0 + $0x4a8] sm:$0xff]
  %v164 = vld [vmem:[%s0 + $0x4b0] sm:$0xff]
  %v165 = vld [vmem:[%s0 + $0x4b8] sm:$0xff]
  %v166 = vld [vmem:[%s0 + $0x4c0] sm:$0xff]
  %v167 = vld [vmem:[%s0 + $0x4c8] sm:$0xff]
  %v168 = vld [vmem:[%s0 + $0x4d0] sm:$0xff]
  %v169 = vld [vmem:[%s0 + $0x4d8] sm:$0xff]
  %v170 = vld [vmem:[%s0 + $0x4e0] sm:$0xff]
  %v171 = vld [vmem:[%s0 + $0x4e8] sm:$0xff]
  %v172 = vld [vmem:[%s0 + $0x4f0] sm:$0xff]
  %v173 = vld [vmem:[%s0 + $0x4f8] sm:$0xff]
  %v174 = vld [vmem:[%s0 + $0x500] sm:$0xff]
  %v175 = vld [vmem:[%s0 + $0x508] sm:$0xff]
  %v176 = vld [vmem:[%s0 + $0x510] sm:$0xff]
  %v177 = vld [vmem:[%s0 + $0x518] sm:$0xff]
  %v178 = vld [vmem:[%s0 + $0x520] sm:$0xff]
  %v179 = vld [vmem:[%s0 + $0x528] sm:$0xff]
  %v180 = vld [vmem:[%s0 + $0x530] sm:$0xff]
  %v181 = vld [vmem:[%s0 + $0x538] sm:$0xff]
  %v182 = vld [vmem:[%s0 + $0x540] sm:$0xff]
  %v183 = vld [vmem:[%s0 + $0x548] sm:$0xff]
  %v184 = vld [vmem:[%s0 + $0x550] sm:$0xff]
  %v185 = vld [vmem:[%s0 + $0x558] sm:$0xff]
  %v186 = vld [vmem:[%s0 + $0x560] sm:$0xff]
  %v187 = vld [vmem:[%s0 + $0x568] sm:$0xff]
  %v188 = vld [vmem:[%s0 + $0x570] sm:$0xff]
  %v189 = vld [vmem:[%s0 + $0x578] sm:$0xff]
  %v190 = vld [vmem:[%s0 + $0x580] sm:$0xff]
  %v191 = vld [vmem:[%s0 + $0x588] sm:$0xff]
  %v192 = vld [vmem:[%s0 + $0x590] sm:$0xff]
  %v193 = vld [vmem:[%s0 + $0x598] sm:$0xff]
  %v194 = vld [vmem:[%s0 + $0x5a0] sm:$0xff]
  %v195 = vld [vmem:[%s0 + $0x5a8] sm:$0xff]
  %v196 = vld [vmem:[%s0 + $0x5b0] sm:$0xff]
  %v197 = vld [vmem:[%s0 + $0x5b8] sm:$0xff]
  %v198 = vld [vmem:[%s0 + $0x5c0] sm:$0xff]
  %v199 = vld [vmem:[%s0 + $0x5c8] sm:$0xff]
  %v200 = vld [vmem:[%s0 + $0x5d0] sm:$0xff]
  %v201 = vld [vmem:[%s0 + $0x5d8] sm:$0xff]
  %v202 = vld [vmem:[%s0 + $0x5e0] sm:$0xff]
  %v203 = vld [vmem:[%s0 + $0x5e8] sm:$0xff]
  %v204 = vld [vmem:[%s0 + $0x5f0] sm:$0xff]
  %v205 = vld [vmem:[%s0 + $0x5f8] sm:$0xff]
  %v206 = vld [vmem:[%s0 + $0x600] sm:$0xff]
  %v207 = vld [vmem:[%s0 + $0x608] sm:$0xff]
  %v208 = vld [vmem:[%s0 + $0x610] sm:$0xff]
  %v209 = vld [vmem:[%s0 + $0x618] sm:$0xff]
  %v210 = vld [vmem:[%s0 + $0x620] sm:$0xff]
  %v211 = vld [vmem:[%s0 + $0x628] sm:$0xff]
  %v212 = vld [vmem:[%s0 + $0x630] sm:$0xff]
  %v213 = vld [vmem:[%s0 + $0x638] sm:$0xff]
  %v214 = vld [vmem:[%s0 + $0x640] sm:$0xff]
  %v215 = vld [vmem:[%s0 + $0x648] sm:$0xff]
  %v216 = vld [vmem:[%s0 + $0x650] sm:$0xff]
  %v217 = vld [vmem:[%s0 + $0x658] sm:$0xff]
  %v218 = vld [vmem:[%s0 + $0x660] sm:$0xff]
  %v219 = vld [vmem:[%s0 + $0x668] sm:$0xff]
  %v220 = vld [vmem:[%s0 + $0x670] sm:$0xff]
  %v221 = vld [vmem:[%s0 + $0x678] sm:$0xff]
  %v222 = vld [vmem:[%s0 + $0x680] sm:$0xff]
  %v223 = vld [vmem:[%s0 + $0x688] sm:$0xff]
  %v224 = vld [vmem:[%s0 + $0x690] sm:$0xff]
  %v225 = vld [vmem:[%s0 + $0x698] sm:$0xff]
  %v226 = vld [vmem:[%s0 + $0x6a0] sm:$0xff]
  %v227 = vld [vmem:[%s0 + $0x6a8] sm:$0xff]
  %v228 = vld [vmem:[%s0 + $0x6b0] sm:$0xff]
  %v229 = vld [vmem:[%s0 + $0x6b8] sm:$0xff]
  %v230 = vld [vmem:[%s0 + $0x6c0] sm:$0xff]
  %v231 = vld [vmem:[%s0 + $0x6c8] sm:$0xff]
  %v232 = vld [vmem:[%s0 + $0x6d0] sm:$0xff]
  %v233 = vld [vmem:[%s0 + $0x6d8] sm:$0xff]
  %v234 = vld [vmem:[%s0 + $0x6e0] sm:$0xff]
  %v235 = vld [vmem:[%s0 + $0x6e8] sm:$0xff]
  %v236 = vld [vmem:[%s0 + $0x6f0] sm:$0xff]
  %v237 = vld [vmem:[%s0 + $0x6f8] sm:$0xff]
  %v238 = vld [vmem:[%s0 + $0x700] sm:$0xff]
  %v239 = vld [vmem:[%s0 + $0x708] sm:$0xff]
  %v240 = vld [vmem:[%s0 + $0x710] sm:$0xff]
  %v241 = vld [vmem:[%s0 + $0x718] sm:$0xff]
  %v242 = vld [vmem:[%s0 + $0x720] sm:$0xff]
  %v243 = vld [vmem:[%s0 + $0x728] sm:$0xff]
  %v244 = vld [vmem:[%s0 + $0x730] sm:$0xff]
  %v245 = vld [vmem:[%s0 + $0x738] sm:$0xff]
  %v246 = vld [vmem:[%s0 + $0x740] sm:$0xff]
  %v247 = vld [vmem:[%s0 + $0x748] sm:$0xff]
  %v248 = vld [vmem:[%s0 + $0x750] sm:$0xff]
  %v249 = vld [vmem:[%s0 + $0x758] sm:$0xff]
  %v250 = vld [vmem:[%s0 + $0x760] sm:$0xff]
  %v251 = vld [vmem:[%s0 + $0x768] sm:$0xff]
  %v252 = vld [vmem:[%s0 + $0x770] sm:$0xff]
  %v253 = vld [vmem:[%s0 + $0x778] sm:$0xff]
  %v254 = vld [vmem:[%s0 + $0x780] sm:$0xff]
  %v255 = vld [vmem:[%s0 + $0x788] sm:$0xff]
  %v256 = vld [vmem:[%s0 + $0x790] sm:$0xff]
  %v257 = vld [vmem:[%s0 + $0x798] sm:$0xff]
  %v258 = vld [vmem:[%s0 + $0x7a0] sm:$0xff]
  %v259 = vld [vmem:[%s0 + $0x7a8] sm:$0xff]
  %v260 = vld [vmem:[%s0 + $0x7b0] sm:$0xff]
  %v261 = vld [vmem:[%s0 + $0x7b8] sm:$0xff]
  %v262 = vld [vmem:[%s0 + $0x7c0] sm:$0xff]
  %v263 = vld [vmem:[%s0 + $0x7c8] sm:$0xff]
  %v264 = vld [vmem:[%s0 + $0x7d0] sm:$0xff]
  %v265 = vld [vmem:[%s0 + $0x7d8] sm:$0xff]
  %v266 = vld [vmem:[%s0 + $0x7e0] sm:$0xff]
  %v267 = vld [vmem:[%s0 + $0x7e8] sm:$0xff]
  %v268 = vld [vmem:[%s0 + $0x7f0] sm:$0xff]
  %v269 = vld [vmem:[%s0 + $0x7f8] sm:$0xff]
  %vm270 = vcmask 64512
  %v271 = vsel %vm270, %v14, 0.0
  %v272 = vsel %vm270, %v15, 0.0
  %v273 = vadd.f32 %v271, %v272
  %v274 = vsel %vm270, %v16, 0.0
  %v275 = vadd.f32 %v273, %v274
  %v276 = vsel %vm270, %v17, 0.0
  %v277 = vadd.f32 %v275, %v276
  %v278 = vsel %vm270, %v18, 0.0
  %v279 = vadd.f32 %v277, %v278
  %v280 = vsel %vm270, %v19, 0.0
  %v281 = vadd.f32 %v279, %v280
  %v282 = vsel %vm270, %v20, 0.0
  %v283 = vadd.f32 %v281, %v282
  %v284 = vsel %vm270, %v21, 0.0
  %v285 = vadd.f32 %v283, %v284
  %v286 = vsel %vm270, %v22, 0.0
  %v287 = vadd.f32 %v285, %v286
  %v288 = vsel %vm270, %v23, 0.0
  %v289 = vadd.f32 %v287, %v288
  %v290 = vsel %vm270, %v24, 0.0
  %v291 = vadd.f32 %v289, %v290
  %v292 = vsel %vm270, %v25, 0.0
  %v293 = vadd.f32 %v291, %v292
  %v294 = vsel %vm270, %v26, 0.0
  %v295 = vadd.f32 %v293, %v294
  %v296 = vsel %vm270, %v27, 0.0
  %v297 = vadd.f32 %v295, %v296
  %v298 = vsel %vm270, %v28, 0.0
  %v299 = vadd.f32 %v297, %v298
  %v300 = vsel %vm270, %v29, 0.0
  %v301 = vadd.f32 %v299, %v300
  %v302 = vsel %vm270, %v30, 0.0
  %v303 = vadd.f32 %v301, %v302
  %v304 = vsel %vm270, %v31, 0.0
  %v305 = vadd.f32 %v303, %v304
  %v306 = vsel %vm270, %v32, 0.0
  %v307 = vadd.f32 %v305, %v306
  %v308 = vsel %vm270, %v33, 0.0
  %v309 = vadd.f32 %v307, %v308
  %v310 = vsel %vm270, %v34, 0.0
  %v311 = vadd.f32 %v309, %v310
  %v312 = vsel %vm270, %v35, 0.0
  %v313 = vadd.f32 %v311, %v312
  %v314 = vsel %vm270, %v36, 0.0
  %v315 = vadd.f32 %v313, %v314
  %v316 = vsel %vm270, %v37, 0.0
  %v317 = vadd.f32 %v315, %v316
  %v318 = vsel %vm270, %v38, 0.0
  %v319 = vadd.f32 %v317, %v318
  %v320 = vsel %vm270, %v39, 0.0
  %v321 = vadd.f32 %v319, %v320
  %v322 = vsel %vm270, %v40, 0.0
  %v323 = vadd.f32 %v321, %v322
  %v324 = vsel %vm270, %v41, 0.0
  %v325 = vadd.f32 %v323, %v324
  %v326 = vsel %vm270, %v42, 0.0
  %v327 = vadd.f32 %v325, %v326
  %v328 = vsel %vm270, %v43, 0.0
  %v329 = vadd.f32 %v327, %v328
  %v330 = vsel %vm270, %v44, 0.0
  %v331 = vadd.f32 %v329, %v330
  %v332 = vsel %vm270, %v45, 0.0
  %v333 = vadd.f32 %v331, %v332
  %v334 = vsel %vm270, %v46, 0.0
  %v335 = vadd.f32 %v333, %v334
  %v336 = vsel %vm270, %v47, 0.0
  %v337 = vadd.f32 %v335, %v336
  %v338 = vsel %vm270, %v48, 0.0
  %v339 = vadd.f32 %v337, %v338
  %v340 = vsel %vm270, %v49, 0.0
  %v341 = vadd.f32 %v339, %v340
  %v342 = vsel %vm270, %v50, 0.0
  %v343 = vadd.f32 %v341, %v342
  %v344 = vsel %vm270, %v51, 0.0
  %v345 = vadd.f32 %v343, %v344
  %v346 = vsel %vm270, %v52, 0.0
  %v347 = vadd.f32 %v345, %v346
  %v348 = vsel %vm270, %v53, 0.0
  %v349 = vadd.f32 %v347, %v348
  %v350 = vsel %vm270, %v54, 0.0
  %v351 = vadd.f32 %v349, %v350
  %v352 = vsel %vm270, %v55, 0.0
  %v353 = vadd.f32 %v351, %v352
  %v354 = vsel %vm270, %v56, 0.0
  %v355 = vadd.f32 %v353, %v354
  %v356 = vsel %vm270, %v57, 0.0
  %v357 = vadd.f32 %v355, %v356
  %v358 = vsel %vm270, %v58, 0.0
  %v359 = vadd.f32 %v357, %v358
  %v360 = vsel %vm270, %v59, 0.0
  %v361 = vadd.f32 %v359, %v360
  %v362 = vsel %vm270, %v60, 0.0
  %v363 = vadd.f32 %v361, %v362
  %v364 = vsel %vm270, %v61, 0.0
  %v365 = vadd.f32 %v363, %v364
  %v366 = vsel %vm270, %v62, 0.0
  %v367 = vadd.f32 %v365, %v366
  %v368 = vsel %vm270, %v63, 0.0
  %v369 = vadd.f32 %v367, %v368
  %v370 = vsel %vm270, %v64, 0.0
  %v371 = vadd.f32 %v369, %v370
  %v372 = vsel %vm270, %v65, 0.0
  %v373 = vadd.f32 %v371, %v372
  %v374 = vsel %vm270, %v66, 0.0
  %v375 = vadd.f32 %v373, %v374
  %v376 = vsel %vm270, %v67, 0.0
  %v377 = vadd.f32 %v375, %v376
  %v378 = vsel %vm270, %v68, 0.0
  %v379 = vadd.f32 %v377, %v378
  %v380 = vsel %vm270, %v69, 0.0
  %v381 = vadd.f32 %v379, %v380
  %v382 = vsel %vm270, %v70, 0.0
  %v383 = vadd.f32 %v381, %v382
  %v384 = vsel %vm270, %v71, 0.0
  %v385 = vadd.f32 %v383, %v384
  %v386 = vsel %vm270, %v72, 0.0
  %v387 = vadd.f32 %v385, %v386
  %v388 = vsel %vm270, %v73, 0.0
  %v389 = vadd.f32 %v387, %v388
  %v390 = vsel %vm270, %v74, 0.0
  %v391 = vadd.f32 %v389, %v390
  %v392 = vsel %vm270, %v75, 0.0
  %v393 = vadd.f32 %v391, %v392
  %v394 = vsel %vm270, %v76, 0.0
  %v395 = vadd.f32 %v393, %v394
  %v396 = vsel %vm270, %v77, 0.0
  %v397 = vadd.f32 %v395, %v396
  %v398 = vsel %vm270, %v78, 0.0
  %v399 = vadd.f32 %v397, %v398
  %v400 = vsel %vm270, %v79, 0.0
  %v401 = vadd.f32 %v399, %v400
  %v402 = vsel %vm270, %v80, 0.0
  %v403 = vadd.f32 %v401, %v402
  %v404 = vsel %vm270, %v81, 0.0
  %v405 = vadd.f32 %v403, %v404
  %v406 = vsel %vm270, %v82, 0.0
  %v407 = vadd.f32 %v405, %v406
  %v408 = vsel %vm270, %v83, 0.0
  %v409 = vadd.f32 %v407, %v408
  %v410 = vsel %vm270, %v84, 0.0
  %v411 = vadd.f32 %v409, %v410
  %v412 = vsel %vm270, %v85, 0.0
  %v413 = vadd.f32 %v411, %v412
  %v414 = vsel %vm270, %v86, 0.0
  %v415 = vadd.f32 %v413, %v414
  %v416 = vsel %vm270, %v87, 0.0
  %v417 = vadd.f32 %v415, %v416
  %v418 = vsel %vm270, %v88, 0.0
  %v419 = vadd.f32 %v417, %v418
  %v420 = vsel %vm270, %v89, 0.0
  %v421 = vadd.f32 %v419, %v420
  %v422 = vsel %vm270, %v90, 0.0
  %v423 = vadd.f32 %v421, %v422
  %v424 = vsel %vm270, %v91, 0.0
  %v425 = vadd.f32 %v423, %v424
  %v426 = vsel %vm270, %v92, 0.0
  %v427 = vadd.f32 %v425, %v426
  %v428 = vsel %vm270, %v93, 0.0
  %v429 = vadd.f32 %v427, %v428
  %v430 = vsel %vm270, %v94, 0.0
  %v431 = vadd.f32 %v429, %v430
  %v432 = vsel %vm270, %v95, 0.0
  %v433 = vadd.f32 %v431, %v432
  %v434 = vsel %vm270, %v96, 0.0
  %v435 = vadd.f32 %v433, %v434
  %v436 = vsel %vm270, %v97, 0.0
  %v437 = vadd.f32 %v435, %v436
  %v438 = vsel %vm270, %v98, 0.0
  %v439 = vadd.f32 %v437, %v438
  %v440 = vsel %vm270, %v99, 0.0
  %v441 = vadd.f32 %v439, %v440
  %v442 = vsel %vm270, %v100, 0.0
  %v443 = vadd.f32 %v441, %v442
  %v444 = vsel %vm270, %v101, 0.0
  %v445 = vadd.f32 %v443, %v444
  %v446 = vsel %vm270, %v102, 0.0
  %v447 = vadd.f32 %v445, %v446
  %v448 = vsel %vm270, %v103, 0.0
  %v449 = vadd.f32 %v447, %v448
  %v450 = vsel %vm270, %v104, 0.0
  %v451 = vadd.f32 %v449, %v450
  %v452 = vsel %vm270, %v105, 0.0
  %v453 = vadd.f32 %v451, %v452
  %v454 = vsel %vm270, %v106, 0.0
  %v455 = vadd.f32 %v453, %v454
  %v456 = vsel %vm270, %v107, 0.0
  %v457 = vadd.f32 %v455, %v456
  %v458 = vsel %vm270, %v108, 0.0
  %v459 = vadd.f32 %v457, %v458
  %v460 = vsel %vm270, %v109, 0.0
  %v461 = vadd.f32 %v459, %v460
  %v462 = vsel %vm270, %v110, 0.0
  %v463 = vadd.f32 %v461, %v462
  %v464 = vsel %vm270, %v111, 0.0
  %v465 = vadd.f32 %v463, %v464
  %v466 = vsel %vm270, %v112, 0.0
  %v467 = vadd.f32 %v465, %v466
  %v468 = vsel %vm270, %v113, 0.0
  %v469 = vadd.f32 %v467, %v468
  %v470 = vsel %vm270, %v114, 0.0
  %v471 = vadd.f32 %v469, %v470
  %v472 = vsel %vm270, %v115, 0.0
  %v473 = vadd.f32 %v471, %v472
  %v474 = vsel %vm270, %v116, 0.0
  %v475 = vadd.f32 %v473, %v474
  %v476 = vsel %vm270, %v117, 0.0
  %v477 = vadd.f32 %v475, %v476
  %v478 = vsel %vm270, %v118, 0.0
  %v479 = vadd.f32 %v477, %v478
  %v480 = vsel %vm270, %v119, 0.0
  %v481 = vadd.f32 %v479, %v480
  %v482 = vsel %vm270, %v120, 0.0
  %v483 = vadd.f32 %v481, %v482
  %v484 = vsel %vm270, %v121, 0.0
  %v485 = vadd.f32 %v483, %v484
  %v486 = vsel %vm270, %v122, 0.0
  %v487 = vadd.f32 %v485, %v486
  %v488 = vsel %vm270, %v123, 0.0
  %v489 = vadd.f32 %v487, %v488
  %v490 = vsel %vm270, %v124, 0.0
  %v491 = vadd.f32 %v489, %v490
  %v492 = vsel %vm270, %v125, 0.0
  %v493 = vadd.f32 %v491, %v492
  %v494 = vsel %vm270, %v126, 0.0
  %v495 = vadd.f32 %v493, %v494
  %v496 = vsel %vm270, %v127, 0.0
  %v497 = vadd.f32 %v495, %v496
  %v498 = vsel %vm270, %v128, 0.0
  %v499 = vadd.f32 %v497, %v498
  %v500 = vsel %vm270, %v129, 0.0
  %v501 = vadd.f32 %v499, %v500
  %v502 = vsel %vm270, %v130, 0.0
  %v503 = vadd.f32 %v501, %v502
  %v504 = vsel %vm270, %v131, 0.0
  %v505 = vadd.f32 %v503, %v504
  %v506 = vsel %vm270, %v132, 0.0
  %v507 = vadd.f32 %v505, %v506
  %v508 = vsel %vm270, %v133, 0.0
  %v509 = vadd.f32 %v507, %v508
  %v510 = vsel %vm270, %v134, 0.0
  %v511 = vadd.f32 %v509, %v510
  %v512 = vsel %vm270, %v135, 0.0
  %v513 = vadd.f32 %v511, %v512
  %v514 = vsel %vm270, %v136, 0.0
  %v515 = vadd.f32 %v513, %v514
  %v516 = vsel %vm270, %v137, 0.0
  %v517 = vadd.f32 %v515, %v516
  %v518 = vsel %vm270, %v138, 0.0
  %v519 = vadd.f32 %v517, %v518
  %v520 = vsel %vm270, %v139, 0.0
  %v521 = vadd.f32 %v519, %v520
  %v522 = vsel %vm270, %v140, 0.0
  %v523 = vadd.f32 %v521, %v522
  %v524 = vsel %vm270, %v141, 0.0
  %v525 = vadd.f32 %v523, %v524
  %v526 = vsel %vm270, %v142, 0.0
  %v527 = vadd.f32 %v525, %v526
  %v528 = vsel %vm270, %v143, 0.0
  %v529 = vadd.f32 %v527, %v528
  %v530 = vsel %vm270, %v144, 0.0
  %v531 = vadd.f32 %v529, %v530
  %v532 = vsel %vm270, %v145, 0.0
  %v533 = vadd.f32 %v531, %v532
  %v534 = vsel %vm270, %v146, 0.0
  %v535 = vadd.f32 %v533, %v534
  %v536 = vsel %vm270, %v147, 0.0
  %v537 = vadd.f32 %v535, %v536
  %v538 = vsel %vm270, %v148, 0.0
  %v539 = vadd.f32 %v537, %v538
  %v540 = vsel %vm270, %v149, 0.0
  %v541 = vadd.f32 %v539, %v540
  %v542 = vsel %vm270, %v150, 0.0
  %v543 = vadd.f32 %v541, %v542
  %v544 = vsel %vm270, %v151, 0.0
  %v545 = vadd.f32 %v543, %v544
  %v546 = vsel %vm270, %v152, 0.0
  %v547 = vadd.f32 %v545, %v546
  %v548 = vsel %vm270, %v153, 0.0
  %v549 = vadd.f32 %v547, %v548
  %v550 = vsel %vm270, %v154, 0.0
  %v551 = vadd.f32 %v549, %v550
  %v552 = vsel %vm270, %v155, 0.0
  %v553 = vadd.f32 %v551, %v552
  %v554 = vsel %vm270, %v156, 0.0
  %v555 = vadd.f32 %v553, %v554
  %v556 = vsel %vm270, %v157, 0.0
  %v557 = vadd.f32 %v555, %v556
  %v558 = vsel %vm270, %v158, 0.0
  %v559 = vadd.f32 %v557, %v558
  %v560 = vsel %vm270, %v159, 0.0
  %v561 = vadd.f32 %v559, %v560
  %v562 = vsel %vm270, %v160, 0.0
  %v563 = vadd.f32 %v561, %v562
  %v564 = vsel %vm270, %v161, 0.0
  %v565 = vadd.f32 %v563, %v564
  %v566 = vsel %vm270, %v162, 0.0
  %v567 = vadd.f32 %v565, %v566
  %v568 = vsel %vm270, %v163, 0.0
  %v569 = vadd.f32 %v567, %v568
  %v570 = vsel %vm270, %v164, 0.0
  %v571 = vadd.f32 %v569, %v570
  %v572 = vsel %vm270, %v165, 0.0
  %v573 = vadd.f32 %v571, %v572
  %v574 = vsel %vm270, %v166, 0.0
  %v575 = vadd.f32 %v573, %v574
  %v576 = vsel %vm270, %v167, 0.0
  %v577 = vadd.f32 %v575, %v576
  %v578 = vsel %vm270, %v168, 0.0
  %v579 = vadd.f32 %v577, %v578
  %v580 = vsel %vm270, %v169, 0.0
  %v581 = vadd.f32 %v579, %v580
  %v582 = vsel %vm270, %v170, 0.0
  %v583 = vadd.f32 %v581, %v582
  %v584 = vsel %vm270, %v171, 0.0
  %v585 = vadd.f32 %v583, %v584
  %v586 = vsel %vm270, %v172, 0.0
  %v587 = vadd.f32 %v585, %v586
  %v588 = vsel %vm270, %v173, 0.0
  %v589 = vadd.f32 %v587, %v588
  %v590 = vsel %vm270, %v174, 0.0
  %v591 = vadd.f32 %v589, %v590
  %v592 = vsel %vm270, %v175, 0.0
  %v593 = vadd.f32 %v591, %v592
  %v594 = vsel %vm270, %v176, 0.0
  %v595 = vadd.f32 %v593, %v594
  %v596 = vsel %vm270, %v177, 0.0
  %v597 = vadd.f32 %v595, %v596
  %v598 = vsel %vm270, %v178, 0.0
  %v599 = vadd.f32 %v597, %v598
  %v600 = vsel %vm270, %v179, 0.0
  %v601 = vadd.f32 %v599, %v600
  %v602 = vsel %vm270, %v180, 0.0
  %v603 = vadd.f32 %v601, %v602
  %v604 = vsel %vm270, %v181, 0.0
  %v605 = vadd.f32 %v603, %v604
  %v606 = vsel %vm270, %v182, 0.0
  %v607 = vadd.f32 %v605, %v606
  %v608 = vsel %vm270, %v183, 0.0
  %v609 = vadd.f32 %v607, %v608
  %v610 = vsel %vm270, %v184, 0.0
  %v611 = vadd.f32 %v609, %v610
  %v612 = vsel %vm270, %v185, 0.0
  %v613 = vadd.f32 %v611, %v612
  %v614 = vsel %vm270, %v186, 0.0
  %v615 = vadd.f32 %v613, %v614
  %v616 = vsel %vm270, %v187, 0.0
  %v617 = vadd.f32 %v615, %v616
  %v618 = vsel %vm270, %v188, 0.0
  %v619 = vadd.f32 %v617, %v618
  %v620 = vsel %vm270, %v189, 0.0
  %v621 = vadd.f32 %v619, %v620
  %v622 = vsel %vm270, %v190, 0.0
  %v623 = vadd.f32 %v621, %v622
  %v624 = vsel %vm270, %v191, 0.0
  %v625 = vadd.f32 %v623, %v624
  %v626 = vsel %vm270, %v192, 0.0
  %v627 = vadd.f32 %v625, %v626
  %v628 = vsel %vm270, %v193, 0.0
  %v629 = vadd.f32 %v627, %v628
  %v630 = vsel %vm270, %v194, 0.0
  %v631 = vadd.f32 %v629, %v630
  %v632 = vsel %vm270, %v195, 0.0
  %v633 = vadd.f32 %v631, %v632
  %v634 = vsel %vm270, %v196, 0.0
  %v635 = vadd.f32 %v633, %v634
  %v636 = vsel %vm270, %v197, 0.0
  %v637 = vadd.f32 %v635, %v636
  %v638 = vsel %vm270, %v198, 0.0
  %v639 = vadd.f32 %v637, %v638
  %v640 = vsel %vm270, %v199, 0.0
  %v641 = vadd.f32 %v639, %v640
  %v642 = vsel %vm270, %v200, 0.0
  %v643 = vadd.f32 %v641, %v642
  %v644 = vsel %vm270, %v201, 0.0
  %v645 = vadd.f32 %v643, %v644
  %v646 = vsel %vm270, %v202, 0.0
  %v647 = vadd.f32 %v645, %v646
  %v648 = vsel %vm270, %v203, 0.0
  %v649 = vadd.f32 %v647, %v648
  %v650 = vsel %vm270, %v204, 0.0
  %v651 = vadd.f32 %v649, %v650
  %v652 = vsel %vm270, %v205, 0.0
  %v653 = vadd.f32 %v651, %v652
  %v654 = vsel %vm270, %v206, 0.0
  %v655 = vadd.f32 %v653, %v654
  %v656 = vsel %vm270, %v207, 0.0
  %v657 = vadd.f32 %v655, %v656
  %v658 = vsel %vm270, %v208, 0.0
  %v659 = vadd.f32 %v657, %v658
  %v660 = vsel %vm270, %v209, 0.0
  %v661 = vadd.f32 %v659, %v660
  %v662 = vsel %vm270, %v210, 0.0
  %v663 = vadd.f32 %v661, %v662
  %v664 = vsel %vm270, %v211, 0.0
  %v665 = vadd.f32 %v663, %v664
  %v666 = vsel %vm270, %v212, 0.0
  %v667 = vadd.f32 %v665, %v666
  %v668 = vsel %vm270, %v213, 0.0
  %v669 = vadd.f32 %v667, %v668
  %v670 = vsel %vm270, %v214, 0.0
  %v671 = vadd.f32 %v669, %v670
  %v672 = vsel %vm270, %v215, 0.0
  %v673 = vadd.f32 %v671, %v672
  %v674 = vsel %vm270, %v216, 0.0
  %v675 = vadd.f32 %v673, %v674
  %v676 = vsel %vm270, %v217, 0.0
  %v677 = vadd.f32 %v675, %v676
  %v678 = vsel %vm270, %v218, 0.0
  %v679 = vadd.f32 %v677, %v678
  %v680 = vsel %vm270, %v219, 0.0
  %v681 = vadd.f32 %v679, %v680
  %v682 = vsel %vm270, %v220, 0.0
  %v683 = vadd.f32 %v681, %v682
  %v684 = vsel %vm270, %v221, 0.0
  %v685 = vadd.f32 %v683, %v684
  %v686 = vsel %vm270, %v222, 0.0
  %v687 = vadd.f32 %v685, %v686
  %v688 = vsel %vm270, %v223, 0.0
  %v689 = vadd.f32 %v687, %v688
  %v690 = vsel %vm270, %v224, 0.0
  %v691 = vadd.f32 %v689, %v690
  %v692 = vsel %vm270, %v225, 0.0
  %v693 = vadd.f32 %v691, %v692
  %v694 = vsel %vm270, %v226, 0.0
  %v695 = vadd.f32 %v693, %v694
  %v696 = vsel %vm270, %v227, 0.0
  %v697 = vadd.f32 %v695, %v696
  %v698 = vsel %vm270, %v228, 0.0
  %v699 = vadd.f32 %v697, %v698
  %v700 = vsel %vm270, %v229, 0.0
  %v701 = vadd.f32 %v699, %v700
  %v702 = vsel %vm270, %v230, 0.0
  %v703 = vadd.f32 %v701, %v702
  %v704 = vsel %vm270, %v231, 0.0
  %v705 = vadd.f32 %v703, %v704
  %v706 = vsel %vm270, %v232, 0.0
  %v707 = vadd.f32 %v705, %v706
  %v708 = vsel %vm270, %v233, 0.0
  %v709 = vadd.f32 %v707, %v708
  %v710 = vsel %vm270, %v234, 0.0
  %v711 = vadd.f32 %v709, %v710
  %v712 = vsel %vm270, %v235, 0.0
  %v713 = vadd.f32 %v711, %v712
  %v714 = vsel %vm270, %v236, 0.0
  %v715 = vadd.f32 %v713, %v714
  %v716 = vsel %vm270, %v237, 0.0
  %v717 = vadd.f32 %v715, %v716
  %v718 = vsel %vm270, %v238, 0.0
  %v719 = vadd.f32 %v717, %v718
  %v720 = vsel %vm270, %v239, 0.0
  %v721 = vadd.f32 %v719, %v720
  %v722 = vsel %vm270, %v240, 0.0
  %v723 = vadd.f32 %v721, %v722
  %v724 = vsel %vm270, %v241, 0.0
  %v725 = vadd.f32 %v723, %v724
  %v726 = vsel %vm270, %v242, 0.0
  %v727 = vadd.f32 %v725, %v726
  %v728 = vsel %vm270, %v243, 0.0
  %v729 = vadd.f32 %v727, %v728
  %v730 = vsel %vm270, %v244, 0.0
  %v731 = vadd.f32 %v729, %v730
  %v732 = vsel %vm270, %v245, 0.0
  %v733 = vadd.f32 %v731, %v732
  %v734 = vsel %vm270, %v246, 0.0
  %v735 = vadd.f32 %v733, %v734
  %v736 = vsel %vm270, %v247, 0.0
  %v737 = vadd.f32 %v735, %v736
  %v738 = vsel %vm270, %v248, 0.0
  %v739 = vadd.f32 %v737, %v738
  %v740 = vsel %vm270, %v249, 0.0
  %v741 = vadd.f32 %v739, %v740
  %v742 = vsel %vm270, %v250, 0.0
  %v743 = vadd.f32 %v741, %v742
  %v744 = vsel %vm270, %v251, 0.0
  %v745 = vadd.f32 %v743, %v744
  %v746 = vsel %vm270, %v252, 0.0
  %v747 = vadd.f32 %v745, %v746
  %v748 = vsel %vm270, %v253, 0.0
  %v749 = vadd.f32 %v747, %v748
  %v750 = vsel %vm270, %v254, 0.0
  %v751 = vadd.f32 %v749, %v750
  %v752 = vsel %vm270, %v255, 0.0
  %v753 = vadd.f32 %v751, %v752
  %v754 = vsel %vm270, %v256, 0.0
  %v755 = vadd.f32 %v753, %v754
  %v756 = vsel %vm270, %v257, 0.0
  %v757 = vadd.f32 %v755, %v756
  %v758 = vsel %vm270, %v258, 0.0
  %v759 = vadd.f32 %v757, %v758
  %v760 = vsel %vm270, %v259, 0.0
  %v761 = vadd.f32 %v759, %v760
  %v762 = vsel %vm270, %v260, 0.0
  %v763 = vadd.f32 %v761, %v762
  %v764 = vsel %vm270, %v261, 0.0
  %v765 = vadd.f32 %v763, %v764
  %v766 = vsel %vm270, %v262, 0.0
  %v767 = vadd.f32 %v765, %v766
  %v768 = vsel %vm270, %v263, 0.0
  %v769 = vadd.f32 %v767, %v768
  %v770 = vsel %vm270, %v264, 0.0
  %v771 = vadd.f32 %v769, %v770
  %v772 = vsel %vm270, %v265, 0.0
  %v773 = vadd.f32 %v771, %v772
  %v774 = vsel %vm270, %v266, 0.0
  %v775 = vadd.f32 %v773, %v774
  %v776 = vsel %vm270, %v267, 0.0
  %v777 = vadd.f32 %v775, %v776
  %v778 = vsel %vm270, %v268, 0.0
  %v779 = vadd.f32 %v777, %v778
  %v780 = vsel %vm270, %v269, 0.0
  %v781 = vadd.f32 %v779, %v780
  %v782 = vrot.slane %v781, 4
  %v783 = vadd.f32 %v781, %v782
  %v784 = vrot.slane %v783, 2
  %v785 = vadd.f32 %v783, %v784
  %v786 = vrot.slane %v785, 1
  %v787 = vadd.f32 %v785, %v786
  %v788 = vrcp.pop 2048.0
  %v789 = vmul.f32 %v787, %v788
  %v790 = vsub.f32 %v14, %v789
  %v791 = vsub.f32 %v15, %v789
  %v792 = vsub.f32 %v16, %v789
  %v793 = vsub.f32 %v17, %v789
  %v794 = vsub.f32 %v18, %v789
  %v795 = vsub.f32 %v19, %v789
  %v796 = vsub.f32 %v20, %v789
  %v797 = vsub.f32 %v21, %v789
  %v798 = vsub.f32 %v22, %v789
  %v799 = vsub.f32 %v23, %v789
  %v800 = vsub.f32 %v24, %v789
  %v801 = vsub.f32 %v25, %v789
  %v802 = vsub.f32 %v26, %v789
  %v803 = vsub.f32 %v27, %v789
  %v804 = vsub.f32 %v28, %v789
  %v805 = vsub.f32 %v29, %v789
  %v806 = vsub.f32 %v30, %v789
  %v807 = vsub.f32 %v31, %v789
  %v808 = vsub.f32 %v32, %v789
  %v809 = vsub.f32 %v33, %v789
  %v810 = vsub.f32 %v34, %v789
  %v811 = vsub.f32 %v35, %v789
  %v812 = vsub.f32 %v36, %v789
  %v813 = vsub.f32 %v37, %v789
  %v814 = vsub.f32 %v38, %v789
  %v815 = vsub.f32 %v39, %v789
  %v816 = vsub.f32 %v40, %v789
  %v817 = vsub.f32 %v41, %v789
  %v818 = vsub.f32 %v42, %v789
  %v819 = vsub.f32 %v43, %v789
  %v820 = vsub.f32 %v44, %v789
  %v821 = vsub.f32 %v45, %v789
  %v822 = vsub.f32 %v46, %v789
  %v823 = vsub.f32 %v47, %v789
  %v824 = vsub.f32 %v48, %v789
  %v825 = vsub.f32 %v49, %v789
  %v826 = vsub.f32 %v50, %v789
  %v827 = vsub.f32 %v51, %v789
  %v828 = vsub.f32 %v52, %v789
  %v829 = vsub.f32 %v53, %v789
  %v830 = vsub.f32 %v54, %v789
  %v831 = vsub.f32 %v55, %v789
  %v832 = vsub.f32 %v56, %v789
  %v833 = vsub.f32 %v57, %v789
  %v834 = vsub.f32 %v58, %v789
  %v835 = vsub.f32 %v59, %v789
  %v836 = vsub.f32 %v60, %v789
  %v837 = vsub.f32 %v61, %v789
  %v838 = vsub.f32 %v62, %v789
  %v839 = vsub.f32 %v63, %v789
  %v840 = vsub.f32 %v64, %v789
  %v841 = vsub.f32 %v65, %v789
  %v842 = vsub.f32 %v66, %v789
  %v843 = vsub.f32 %v67, %v789
  %v844 = vsub.f32 %v68, %v789
  %v845 = vsub.f32 %v69, %v789
  %v846 = vsub.f32 %v70, %v789
  %v847 = vsub.f32 %v71, %v789
  %v848 = vsub.f32 %v72, %v789
  %v849 = vsub.f32 %v73, %v789
  %v850 = vsub.f32 %v74, %v789
  %v851 = vsub.f32 %v75, %v789
  %v852 = vsub.f32 %v76, %v789
  %v853 = vsub.f32 %v77, %v789
  %v854 = vsub.f32 %v78, %v789
  %v855 = vsub.f32 %v79, %v789
  %v856 = vsub.f32 %v80, %v789
  %v857 = vsub.f32 %v81, %v789
  %v858 = vsub.f32 %v82, %v789
  %v859 = vsub.f32 %v83, %v789
  %v860 = vsub.f32 %v84, %v789
  %v861 = vsub.f32 %v85, %v789
  %v862 = vsub.f32 %v86, %v789
  %v863 = vsub.f32 %v87, %v789
  %v864 = vsub.f32 %v88, %v789
  %v865 = vsub.f32 %v89, %v789
  %v866 = vsub.f32 %v90, %v789
  %v867 = vsub.f32 %v91, %v789
  %v868 = vsub.f32 %v92, %v789
  %v869 = vsub.f32 %v93, %v789
  %v870 = vsub.f32 %v94, %v789
  %v871 = vsub.f32 %v95, %v789
  %v872 = vsub.f32 %v96, %v789
  %v873 = vsub.f32 %v97, %v789
  %v874 = vsub.f32 %v98, %v789
  %v875 = vsub.f32 %v99, %v789
  %v876 = vsub.f32 %v100, %v789
  %v877 = vsub.f32 %v101, %v789
  %v878 = vsub.f32 %v102, %v789
  %v879 = vsub.f32 %v103, %v789
  %v880 = vsub.f32 %v104, %v789
  %v881 = vsub.f32 %v105, %v789
  %v882 = vsub.f32 %v106, %v789
  %v883 = vsub.f32 %v107, %v789
  %v884 = vsub.f32 %v108, %v789
  %v885 = vsub.f32 %v109, %v789
  %v886 = vsub.f32 %v110, %v789
  %v887 = vsub.f32 %v111, %v789
  %v888 = vsub.f32 %v112, %v789
  %v889 = vsub.f32 %v113, %v789
  %v890 = vsub.f32 %v114, %v789
  %v891 = vsub.f32 %v115, %v789
  %v892 = vsub.f32 %v116, %v789
  %v893 = vsub.f32 %v117, %v789
  %v894 = vsub.f32 %v118, %v789
  %v895 = vsub.f32 %v119, %v789
  %v896 = vsub.f32 %v120, %v789
  %v897 = vsub.f32 %v121, %v789
  %v898 = vsub.f32 %v122, %v789
  %v899 = vsub.f32 %v123, %v789
  %v900 = vsub.f32 %v124, %v789
  %v901 = vsub.f32 %v125, %v789
  %v902 = vsub.f32 %v126, %v789
  %v903 = vsub.f32 %v127, %v789
  %v904 = vsub.f32 %v128, %v789
  %v905 = vsub.f32 %v129, %v789
  %v906 = vsub.f32 %v130, %v789
  %v907 = vsub.f32 %v131, %v789
  %v908 = vsub.f32 %v132, %v789
  %v909 = vsub.f32 %v133, %v789
  %v910 = vsub.f32 %v134, %v789
  %v911 = vsub.f32 %v135, %v789
  %v912 = vsub.f32 %v136, %v789
  %v913 = vsub.f32 %v137, %v789
  %v914 = vsub.f32 %v138, %v789
  %v915 = vsub.f32 %v139, %v789
  %v916 = vsub.f32 %v140, %v789
  %v917 = vsub.f32 %v141, %v789
  %v918 = vsub.f32 %v142, %v789
  %v919 = vsub.f32 %v143, %v789
  %v920 = vsub.f32 %v144, %v789
  %v921 = vsub.f32 %v145, %v789
  %v922 = vsub.f32 %v146, %v789
  %v923 = vsub.f32 %v147, %v789
  %v924 = vsub.f32 %v148, %v789
  %v925 = vsub.f32 %v149, %v789
  %v926 = vsub.f32 %v150, %v789
  %v927 = vsub.f32 %v151, %v789
  %v928 = vsub.f32 %v152, %v789
  %v929 = vsub.f32 %v153, %v789
  %v930 = vsub.f32 %v154, %v789
  %v931 = vsub.f32 %v155, %v789
  %v932 = vsub.f32 %v156, %v789
  %v933 = vsub.f32 %v157, %v789
  %v934 = vsub.f32 %v158, %v789
  %v935 = vsub.f32 %v159, %v789
  %v936 = vsub.f32 %v160, %v789
  %v937 = vsub.f32 %v161, %v789
  %v938 = vsub.f32 %v162, %v789
  %v939 = vsub.f32 %v163, %v789
  %v940 = vsub.f32 %v164, %v789
  %v941 = vsub.f32 %v165, %v789
  %v942 = vsub.f32 %v166, %v789
  %v943 = vsub.f32 %v167, %v789
  %v944 = vsub.f32 %v168, %v789
  %v945 = vsub.f32 %v169, %v789
  %v946 = vsub.f32 %v170, %v789
  %v947 = vsub.f32 %v171, %v789
  %v948 = vsub.f32 %v172, %v789
  %v949 = vsub.f32 %v173, %v789
  %v950 = vsub.f32 %v174, %v789
  %v951 = vsub.f32 %v175, %v789
  %v952 = vsub.f32 %v176, %v789
  %v953 = vsub.f32 %v177, %v789
  %v954 = vsub.f32 %v178, %v789
  %v955 = vsub.f32 %v179, %v789
  %v956 = vsub.f32 %v180, %v789
  %v957 = vsub.f32 %v181, %v789
  %v958 = vsub.f32 %v182, %v789
  %v959 = vsub.f32 %v183, %v789
  %v960 = vsub.f32 %v184, %v789
  %v961 = vsub.f32 %v185, %v789
  %v962 = vsub.f32 %v186, %v789
  %v963 = vsub.f32 %v187, %v789
  %v964 = vsub.f32 %v188, %v789
  %v965 = vsub.f32 %v189, %v789
  %v966 = vsub.f32 %v190, %v789
  %v967 = vsub.f32 %v191, %v789
  %v968 = vsub.f32 %v192, %v789
  %v969 = vsub.f32 %v193, %v789
  %v970 = vsub.f32 %v194, %v789
  %v971 = vsub.f32 %v195, %v789
  %v972 = vsub.f32 %v196, %v789
  %v973 = vsub.f32 %v197, %v789
  %v974 = vsub.f32 %v198, %v789
  %v975 = vsub.f32 %v199, %v789
  %v976 = vsub.f32 %v200, %v789
  %v977 = vsub.f32 %v201, %v789
  %v978 = vsub.f32 %v202, %v789
  %v979 = vsub.f32 %v203, %v789
  %v980 = vsub.f32 %v204, %v789
  %v981 = vsub.f32 %v205, %v789
  %v982 = vsub.f32 %v206, %v789
  %v983 = vsub.f32 %v207, %v789
  %v984 = vsub.f32 %v208, %v789
  %v985 = vsub.f32 %v209, %v789
  %v986 = vsub.f32 %v210, %v789
  %v987 = vsub.f32 %v211, %v789
  %v988 = vsub.f32 %v212, %v789
  %v989 = vsub.f32 %v213, %v789
  %v990 = vsub.f32 %v214, %v789
  %v991 = vsub.f32 %v215, %v789
  %v992 = vsub.f32 %v216, %v789
  %v993 = vsub.f32 %v217, %v789
  %v994 = vsub.f32 %v218, %v789
  %v995 = vsub.f32 %v219, %v789
  %v996 = vsub.f32 %v220, %v789
  %v997 = vsub.f32 %v221, %v789
  %v998 = vsub.f32 %v222, %v789
  %v999 = vsub.f32 %v223, %v789
  %v1000 = vsub.f32 %v224, %v789
  %v1001 = vsub.f32 %v225, %v789
  %v1002 = vsub.f32 %v226, %v789
  %v1003 = vsub.f32 %v227, %v789
  %v1004 = vsub.f32 %v228, %v789
  %v1005 = vsub.f32 %v229, %v789
  %v1006 = vsub.f32 %v230, %v789
  %v1007 = vsub.f32 %v231, %v789
  %v1008 = vsub.f32 %v232, %v789
  %v1009 = vsub.f32 %v233, %v789
  %v1010 = vsub.f32 %v234, %v789
  %v1011 = vsub.f32 %v235, %v789
  %v1012 = vsub.f32 %v236, %v789
  %v1013 = vsub.f32 %v237, %v789
  %v1014 = vsub.f32 %v238, %v789
  %v1015 = vsub.f32 %v239, %v789
  %v1016 = vsub.f32 %v240, %v789
  %v1017 = vsub.f32 %v241, %v789
  %v1018 = vsub.f32 %v242, %v789
  %v1019 = vsub.f32 %v243, %v789
  %v1020 = vsub.f32 %v244, %v789
  %v1021 = vsub.f32 %v245, %v789
  %v1022 = vsub.f32 %v246, %v789
  %v1023 = vsub.f32 %v247, %v789
  %v1024 = vsub.f32 %v248, %v789
  %v1025 = vsub.f32 %v249, %v789
  %v1026 = vsub.f32 %v250, %v789
  %v1027 = vsub.f32 %v251, %v789
  %v1028 = vsub.f32 %v252, %v789
  %v1029 = vsub.f32 %v253, %v789
  %v1030 = vsub.f32 %v254, %v789
  %v1031 = vsub.f32 %v255, %v789
  %v1032 = vsub.f32 %v256, %v789
  %v1033 = vsub.f32 %v257, %v789
  %v1034 = vsub.f32 %v258, %v789
  %v1035 = vsub.f32 %v259, %v789
  %v1036 = vsub.f32 %v260, %v789
  %v1037 = vsub.f32 %v261, %v789
  %v1038 = vsub.f32 %v262, %v789
  %v1039 = vsub.f32 %v263, %v789
  %v1040 = vsub.f32 %v264, %v789
  %v1041 = vsub.f32 %v265, %v789
  %v1042 = vsub.f32 %v266, %v789
  %v1043 = vsub.f32 %v267, %v789
  %v1044 = vsub.f32 %v268, %v789
  %v1045 = vsub.f32 %v269, %v789
  %v1046 = vmul.f32 %v790, %v790
  %v1047 = vmul.f32 %v791, %v791
  %v1048 = vmul.f32 %v792, %v792
  %v1049 = vmul.f32 %v793, %v793
  %v1050 = vmul.f32 %v794, %v794
  %v1051 = vmul.f32 %v795, %v795
  %v1052 = vmul.f32 %v796, %v796
  %v1053 = vmul.f32 %v797, %v797
  %v1054 = vmul.f32 %v798, %v798
  %v1055 = vmul.f32 %v799, %v799
  %v1056 = vmul.f32 %v800, %v800
  %v1057 = vmul.f32 %v801, %v801
  %v1058 = vmul.f32 %v802, %v802
  %v1059 = vmul.f32 %v803, %v803
  %v1060 = vmul.f32 %v804, %v804
  %v1061 = vmul.f32 %v805, %v805
  %v1062 = vmul.f32 %v806, %v806
  %v1063 = vmul.f32 %v807, %v807
  %v1064 = vmul.f32 %v808, %v808
  %v1065 = vmul.f32 %v809, %v809
  %v1066 = vmul.f32 %v810, %v810
  %v1067 = vmul.f32 %v811, %v811
  %v1068 = vmul.f32 %v812, %v812
  %v1069 = vmul.f32 %v813, %v813
  %v1070 = vmul.f32 %v814, %v814
  %v1071 = vmul.f32 %v815, %v815
  %v1072 = vmul.f32 %v816, %v816
  %v1073 = vmul.f32 %v817, %v817
  %v1074 = vmul.f32 %v818, %v818
  %v1075 = vmul.f32 %v819, %v819
  %v1076 = vmul.f32 %v820, %v820
  %v1077 = vmul.f32 %v821, %v821
  %v1078 = vmul.f32 %v822, %v822
  %v1079 = vmul.f32 %v823, %v823
  %v1080 = vmul.f32 %v824, %v824
  %v1081 = vmul.f32 %v825, %v825
  %v1082 = vmul.f32 %v826, %v826
  %v1083 = vmul.f32 %v827, %v827
  %v1084 = vmul.f32 %v828, %v828
  %v1085 = vmul.f32 %v829, %v829
  %v1086 = vmul.f32 %v830, %v830
  %v1087 = vmul.f32 %v831, %v831
  %v1088 = vmul.f32 %v832, %v832
  %v1089 = vmul.f32 %v833, %v833
  %v1090 = vmul.f32 %v834, %v834
  %v1091 = vmul.f32 %v835, %v835
  %v1092 = vmul.f32 %v836, %v836
  %v1093 = vmul.f32 %v837, %v837
  %v1094 = vmul.f32 %v838, %v838
  %v1095 = vmul.f32 %v839, %v839
  %v1096 = vmul.f32 %v840, %v840
  %v1097 = vmul.f32 %v841, %v841
  %v1098 = vmul.f32 %v842, %v842
  %v1099 = vmul.f32 %v843, %v843
  %v1100 = vmul.f32 %v844, %v844
  %v1101 = vmul.f32 %v845, %v845
  %v1102 = vmul.f32 %v846, %v846
  %v1103 = vmul.f32 %v847, %v847
  %v1104 = vmul.f32 %v848, %v848
  %v1105 = vmul.f32 %v849, %v849
  %v1106 = vmul.f32 %v850, %v850
  %v1107 = vmul.f32 %v851, %v851
  %v1108 = vmul.f32 %v852, %v852
  %v1109 = vmul.f32 %v853, %v853
  %v1110 = vmul.f32 %v854, %v854
  %v1111 = vmul.f32 %v855, %v855
  %v1112 = vmul.f32 %v856, %v856
  %v1113 = vmul.f32 %v857, %v857
  %v1114 = vmul.f32 %v858, %v858
  %v1115 = vmul.f32 %v859, %v859
  %v1116 = vmul.f32 %v860, %v860
  %v1117 = vmul.f32 %v861, %v861
  %v1118 = vmul.f32 %v862, %v862
  %v1119 = vmul.f32 %v863, %v863
  %v1120 = vmul.f32 %v864, %v864
  %v1121 = vmul.f32 %v865, %v865
  %v1122 = vmul.f32 %v866, %v866
  %v1123 = vmul.f32 %v867, %v867
  %v1124 = vmul.f32 %v868, %v868
  %v1125 = vmul.f32 %v869, %v869
  %v1126 = vmul.f32 %v870, %v870
  %v1127 = vmul.f32 %v871, %v871
  %v1128 = vmul.f32 %v872, %v872
  %v1129 = vmul.f32 %v873, %v873
  %v1130 = vmul.f32 %v874, %v874
  %v1131 = vmul.f32 %v875, %v875
  %v1132 = vmul.f32 %v876, %v876
  %v1133 = vmul.f32 %v877, %v877
  %v1134 = vmul.f32 %v878, %v878
  %v1135 = vmul.f32 %v879, %v879
  %v1136 = vmul.f32 %v880, %v880
  %v1137 = vmul.f32 %v881, %v881
  %v1138 = vmul.f32 %v882, %v882
  %v1139 = vmul.f32 %v883, %v883
  %v1140 = vmul.f32 %v884, %v884
  %v1141 = vmul.f32 %v885, %v885
  %v1142 = vmul.f32 %v886, %v886
  %v1143 = vmul.f32 %v887, %v887
  %v1144 = vmul.f32 %v888, %v888
  %v1145 = vmul.f32 %v889, %v889
  %v1146 = vmul.f32 %v890, %v890
  %v1147 = vmul.f32 %v891, %v891
  %v1148 = vmul.f32 %v892, %v892
  %v1149 = vmul.f32 %v893, %v893
  %v1150 = vmul.f32 %v894, %v894
  %v1151 = vmul.f32 %v895, %v895
  %v1152 = vmul.f32 %v896, %v896
  %v1153 = vmul.f32 %v897, %v897
  %v1154 = vmul.f32 %v898, %v898
  %v1155 = vmul.f32 %v899, %v899
  %v1156 = vmul.f32 %v900, %v900
  %v1157 = vmul.f32 %v901, %v901
  %v1158 = vmul.f32 %v902, %v902
  %v1159 = vmul.f32 %v903, %v903
  %v1160 = vmul.f32 %v904, %v904
  %v1161 = vmul.f32 %v905, %v905
  %v1162 = vmul.f32 %v906, %v906
  %v1163 = vmul.f32 %v907, %v907
  %v1164 = vmul.f32 %v908, %v908
  %v1165 = vmul.f32 %v909, %v909
  %v1166 = vmul.f32 %v910, %v910
  %v1167 = vmul.f32 %v911, %v911
  %v1168 = vmul.f32 %v912, %v912
  %v1169 = vmul.f32 %v913, %v913
  %v1170 = vmul.f32 %v914, %v914
  %v1171 = vmul.f32 %v915, %v915
  %v1172 = vmul.f32 %v916, %v916
  %v1173 = vmul.f32 %v917, %v917
  %v1174 = vmul.f32 %v918, %v918
  %v1175 = vmul.f32 %v919, %v919
  %v1176 = vmul.f32 %v920, %v920
  %v1177 = vmul.f32 %v921, %v921
  %v1178 = vmul.f32 %v922, %v922
  %v1179 = vmul.f32 %v923, %v923
  %v1180 = vmul.f32 %v924, %v924
  %v1181 = vmul.f32 %v925, %v925
  %v1182 = vmul.f32 %v926, %v926
  %v1183 = vmul.f32 %v927, %v927
  %v1184 = vmul.f32 %v928, %v928
  %v1185 = vmul.f32 %v929, %v929
  %v1186 = vmul.f32 %v930, %v930
  %v1187 = vmul.f32 %v931, %v931
  %v1188 = vmul.f32 %v932, %v932
  %v1189 = vmul.f32 %v933, %v933
  %v1190 = vmul.f32 %v934, %v934
  %v1191 = vmul.f32 %v935, %v935
  %v1192 = vmul.f32 %v936, %v936
  %v1193 = vmul.f32 %v937, %v937
  %v1194 = vmul.f32 %v938, %v938
  %v1195 = vmul.f32 %v939, %v939
  %v1196 = vmul.f32 %v940, %v940
  %v1197 = vmul.f32 %v941, %v941
  %v1198 = vmul.f32 %v942, %v942
  %v1199 = vmul.f32 %v943, %v943
  %v1200 = vmul.f32 %v944, %v944
  %v1201 = vmul.f32 %v945, %v945
  %v1202 = vmul.f32 %v946, %v946
  %v1203 = vmul.f32 %v947, %v947
  %v1204 = vmul.f32 %v948, %v948
  %v1205 = vmul.f32 %v949, %v949
  %v1206 = vmul.f32 %v950, %v950
  %v1207 = vmul.f32 %v951, %v951
  %v1208 = vmul.f32 %v952, %v952
  %v1209 = vmul.f32 %v953, %v953
  %v1210 = vmul.f32 %v954, %v954
  %v1211 = vmul.f32 %v955, %v955
  %v1212 = vmul.f32 %v956, %v956
  %v1213 = vmul.f32 %v957, %v957
  %v1214 = vmul.f32 %v958, %v958
  %v1215 = vmul.f32 %v959, %v959
  %v1216 = vmul.f32 %v960, %v960
  %v1217 = vmul.f32 %v961, %v961
  %v1218 = vmul.f32 %v962, %v962
  %v1219 = vmul.f32 %v963, %v963
  %v1220 = vmul.f32 %v964, %v964
  %v1221 = vmul.f32 %v965, %v965
  %v1222 = vmul.f32 %v966, %v966
  %v1223 = vmul.f32 %v967, %v967
  %v1224 = vmul.f32 %v968, %v968
  %v1225 = vmul.f32 %v969, %v969
  %v1226 = vmul.f32 %v970, %v970
  %v1227 = vmul.f32 %v971, %v971
  %v1228 = vmul.f32 %v972, %v972
  %v1229 = vmul.f32 %v973, %v973
  %v1230 = vmul.f32 %v974, %v974
  %v1231 = vmul.f32 %v975, %v975
  %v1232 = vmul.f32 %v976, %v976
  %v1233 = vmul.f32 %v977, %v977
  %v1234 = vmul.f32 %v978, %v978
  %v1235 = vmul.f32 %v979, %v979
  %v1236 = vmul.f32 %v980, %v980
  %v1237 = vmul.f32 %v981, %v981
  %v1238 = vmul.f32 %v982, %v982
  %v1239 = vmul.f32 %v983, %v983
  %v1240 = vmul.f32 %v984, %v984
  %v1241 = vmul.f32 %v985, %v985
  %v1242 = vmul.f32 %v986, %v986
  %v1243 = vmul.f32 %v987, %v987
  %v1244 = vmul.f32 %v988, %v988
  %v1245 = vmul.f32 %v989, %v989
  %v1246 = vmul.f32 %v990, %v990
  %v1247 = vmul.f32 %v991, %v991
  %v1248 = vmul.f32 %v992, %v992
  %v1249 = vmul.f32 %v993, %v993
  %v1250 = vmul.f32 %v994, %v994
  %v1251 = vmul.f32 %v995, %v995
  %v1252 = vmul.f32 %v996, %v996
  %v1253 = vmul.f32 %v997, %v997
  %v1254 = vmul.f32 %v998, %v998
  %v1255 = vmul.f32 %v999, %v999
  %v1256 = vmul.f32 %v1000, %v1000
  %v1257 = vmul.f32 %v1001, %v1001
  %v1258 = vmul.f32 %v1002, %v1002
  %v1259 = vmul.f32 %v1003, %v1003
  %v1260 = vmul.f32 %v1004, %v1004
  %v1261 = vmul.f32 %v1005, %v1005
  %v1262 = vmul.f32 %v1006, %v1006
  %v1263 = vmul.f32 %v1007, %v1007
  %v1264 = vmul.f32 %v1008, %v1008
  %v1265 = vmul.f32 %v1009, %v1009
  %v1266 = vmul.f32 %v1010, %v1010
  %v1267 = vmul.f32 %v1011, %v1011
  %v1268 = vmul.f32 %v1012, %v1012
  %v1269 = vmul.f32 %v1013, %v1013
  %v1270 = vmul.f32 %v1014, %v1014
  %v1271 = vmul.f32 %v1015, %v1015
  %v1272 = vmul.f32 %v1016, %v1016
  %v1273 = vmul.f32 %v1017, %v1017
  %v1274 = vmul.f32 %v1018, %v1018
  %v1275 = vmul.f32 %v1019, %v1019
  %v1276 = vmul.f32 %v1020, %v1020
  %v1277 = vmul.f32 %v1021, %v1021
  %v1278 = vmul.f32 %v1022, %v1022
  %v1279 = vmul.f32 %v1023, %v1023
  %v1280 = vmul.f32 %v1024, %v1024
  %v1281 = vmul.f32 %v1025, %v1025
  %v1282 = vmul.f32 %v1026, %v1026
  %v1283 = vmul.f32 %v1027, %v1027
  %v1284 = vmul.f32 %v1028, %v1028
  %v1285 = vmul.f32 %v1029, %v1029
  %v1286 = vmul.f32 %v1030, %v1030
  %v1287 = vmul.f32 %v1031, %v1031
  %v1288 = vmul.f32 %v1032, %v1032
  %v1289 = vmul.f32 %v1033, %v1033
  %v1290 = vmul.f32 %v1034, %v1034
  %v1291 = vmul.f32 %v1035, %v1035
  %v1292 = vmul.f32 %v1036, %v1036
  %v1293 = vmul.f32 %v1037, %v1037
  %v1294 = vmul.f32 %v1038, %v1038
  %v1295 = vmul.f32 %v1039, %v1039
  %v1296 = vmul.f32 %v1040, %v1040
  %v1297 = vmul.f32 %v1041, %v1041
  %v1298 = vmul.f32 %v1042, %v1042
  %v1299 = vmul.f32 %v1043, %v1043
  %v1300 = vmul.f32 %v1044, %v1044
  %v1301 = vmul.f32 %v1045, %v1045
  %v1302 = vsel %vm270, %v1046, 0.0
  %v1303 = vsel %vm270, %v1047, 0.0
  %v1304 = vadd.f32 %v1302, %v1303
  %v1305 = vsel %vm270, %v1048, 0.0
  %v1306 = vadd.f32 %v1304, %v1305
  %v1307 = vsel %vm270, %v1049, 0.0
  %v1308 = vadd.f32 %v1306, %v1307
  %v1309 = vsel %vm270, %v1050, 0.0
  %v1310 = vadd.f32 %v1308, %v1309
  %v1311 = vsel %vm270, %v1051, 0.0
  %v1312 = vadd.f32 %v1310, %v1311
  %v1313 = vsel %vm270, %v1052, 0.0
  %v1314 = vadd.f32 %v1312, %v1313
  %v1315 = vsel %vm270, %v1053, 0.0
  %v1316 = vadd.f32 %v1314, %v1315
  %v1317 = vsel %vm270, %v1054, 0.0
  %v1318 = vadd.f32 %v1316, %v1317
  %v1319 = vsel %vm270, %v1055, 0.0
  %v1320 = vadd.f32 %v1318, %v1319
  %v1321 = vsel %vm270, %v1056, 0.0
  %v1322 = vadd.f32 %v1320, %v1321
  %v1323 = vsel %vm270, %v1057, 0.0
  %v1324 = vadd.f32 %v1322, %v1323
  %v1325 = vsel %vm270, %v1058, 0.0
  %v1326 = vadd.f32 %v1324, %v1325
  %v1327 = vsel %vm270, %v1059, 0.0
  %v1328 = vadd.f32 %v1326, %v1327
  %v1329 = vsel %vm270, %v1060, 0.0
  %v1330 = vadd.f32 %v1328, %v1329
  %v1331 = vsel %vm270, %v1061, 0.0
  %v1332 = vadd.f32 %v1330, %v1331
  %v1333 = vsel %vm270, %v1062, 0.0
  %v1334 = vadd.f32 %v1332, %v1333
  %v1335 = vsel %vm270, %v1063, 0.0
  %v1336 = vadd.f32 %v1334, %v1335
  %v1337 = vsel %vm270, %v1064, 0.0
  %v1338 = vadd.f32 %v1336, %v1337
  %v1339 = vsel %vm270, %v1065, 0.0
  %v1340 = vadd.f32 %v1338, %v1339
  %v1341 = vsel %vm270, %v1066, 0.0
  %v1342 = vadd.f32 %v1340, %v1341
  %v1343 = vsel %vm270, %v1067, 0.0
  %v1344 = vadd.f32 %v1342, %v1343
  %v1345 = vsel %vm270, %v1068, 0.0
  %v1346 = vadd.f32 %v1344, %v1345
  %v1347 = vsel %vm270, %v1069, 0.0
  %v1348 = vadd.f32 %v1346, %v1347
  %v1349 = vsel %vm270, %v1070, 0.0
  %v1350 = vadd.f32 %v1348, %v1349
  %v1351 = vsel %vm270, %v1071, 0.0
  %v1352 = vadd.f32 %v1350, %v1351
  %v1353 = vsel %vm270, %v1072, 0.0
  %v1354 = vadd.f32 %v1352, %v1353
  %v1355 = vsel %vm270, %v1073, 0.0
  %v1356 = vadd.f32 %v1354, %v1355
  %v1357 = vsel %vm270, %v1074, 0.0
  %v1358 = vadd.f32 %v1356, %v1357
  %v1359 = vsel %vm270, %v1075, 0.0
  %v1360 = vadd.f32 %v1358, %v1359
  %v1361 = vsel %vm270, %v1076, 0.0
  %v1362 = vadd.f32 %v1360, %v1361
  %v1363 = vsel %vm270, %v1077, 0.0
  %v1364 = vadd.f32 %v1362, %v1363
  %v1365 = vsel %vm270, %v1078, 0.0
  %v1366 = vadd.f32 %v1364, %v1365
  %v1367 = vsel %vm270, %v1079, 0.0
  %v1368 = vadd.f32 %v1366, %v1367
  %v1369 = vsel %vm270, %v1080, 0.0
  %v1370 = vadd.f32 %v1368, %v1369
  %v1371 = vsel %vm270, %v1081, 0.0
  %v1372 = vadd.f32 %v1370, %v1371
  %v1373 = vsel %vm270, %v1082, 0.0
  %v1374 = vadd.f32 %v1372, %v1373
  %v1375 = vsel %vm270, %v1083, 0.0
  %v1376 = vadd.f32 %v1374, %v1375
  %v1377 = vsel %vm270, %v1084, 0.0
  %v1378 = vadd.f32 %v1376, %v1377
  %v1379 = vsel %vm270, %v1085, 0.0
  %v1380 = vadd.f32 %v1378, %v1379
  %v1381 = vsel %vm270, %v1086, 0.0
  %v1382 = vadd.f32 %v1380, %v1381
  %v1383 = vsel %vm270, %v1087, 0.0
  %v1384 = vadd.f32 %v1382, %v1383
  %v1385 = vsel %vm270, %v1088, 0.0
  %v1386 = vadd.f32 %v1384, %v1385
  %v1387 = vsel %vm270, %v1089, 0.0
  %v1388 = vadd.f32 %v1386, %v1387
  %v1389 = vsel %vm270, %v1090, 0.0
  %v1390 = vadd.f32 %v1388, %v1389
  %v1391 = vsel %vm270, %v1091, 0.0
  %v1392 = vadd.f32 %v1390, %v1391
  %v1393 = vsel %vm270, %v1092, 0.0
  %v1394 = vadd.f32 %v1392, %v1393
  %v1395 = vsel %vm270, %v1093, 0.0
  %v1396 = vadd.f32 %v1394, %v1395
  %v1397 = vsel %vm270, %v1094, 0.0
  %v1398 = vadd.f32 %v1396, %v1397
  %v1399 = vsel %vm270, %v1095, 0.0
  %v1400 = vadd.f32 %v1398, %v1399
  %v1401 = vsel %vm270, %v1096, 0.0
  %v1402 = vadd.f32 %v1400, %v1401
  %v1403 = vsel %vm270, %v1097, 0.0
  %v1404 = vadd.f32 %v1402, %v1403
  %v1405 = vsel %vm270, %v1098, 0.0
  %v1406 = vadd.f32 %v1404, %v1405
  %v1407 = vsel %vm270, %v1099, 0.0
  %v1408 = vadd.f32 %v1406, %v1407
  %v1409 = vsel %vm270, %v1100, 0.0
  %v1410 = vadd.f32 %v1408, %v1409
  %v1411 = vsel %vm270, %v1101, 0.0
  %v1412 = vadd.f32 %v1410, %v1411
  %v1413 = vsel %vm270, %v1102, 0.0
  %v1414 = vadd.f32 %v1412, %v1413
  %v1415 = vsel %vm270, %v1103, 0.0
  %v1416 = vadd.f32 %v1414, %v1415
  %v1417 = vsel %vm270, %v1104, 0.0
  %v1418 = vadd.f32 %v1416, %v1417
  %v1419 = vsel %vm270, %v1105, 0.0
  %v1420 = vadd.f32 %v1418, %v1419
  %v1421 = vsel %vm270, %v1106, 0.0
  %v1422 = vadd.f32 %v1420, %v1421
  %v1423 = vsel %vm270, %v1107, 0.0
  %v1424 = vadd.f32 %v1422, %v1423
  %v1425 = vsel %vm270, %v1108, 0.0
  %v1426 = vadd.f32 %v1424, %v1425
  %v1427 = vsel %vm270, %v1109, 0.0
  %v1428 = vadd.f32 %v1426, %v1427
  %v1429 = vsel %vm270, %v1110, 0.0
  %v1430 = vadd.f32 %v1428, %v1429
  %v1431 = vsel %vm270, %v1111, 0.0
  %v1432 = vadd.f32 %v1430, %v1431
  %v1433 = vsel %vm270, %v1112, 0.0
  %v1434 = vadd.f32 %v1432, %v1433
  %v1435 = vsel %vm270, %v1113, 0.0
  %v1436 = vadd.f32 %v1434, %v1435
  %v1437 = vsel %vm270, %v1114, 0.0
  %v1438 = vadd.f32 %v1436, %v1437
  %v1439 = vsel %vm270, %v1115, 0.0
  %v1440 = vadd.f32 %v1438, %v1439
  %v1441 = vsel %vm270, %v1116, 0.0
  %v1442 = vadd.f32 %v1440, %v1441
  %v1443 = vsel %vm270, %v1117, 0.0
  %v1444 = vadd.f32 %v1442, %v1443
  %v1445 = vsel %vm270, %v1118, 0.0
  %v1446 = vadd.f32 %v1444, %v1445
  %v1447 = vsel %vm270, %v1119, 0.0
  %v1448 = vadd.f32 %v1446, %v1447
  %v1449 = vsel %vm270, %v1120, 0.0
  %v1450 = vadd.f32 %v1448, %v1449
  %v1451 = vsel %vm270, %v1121, 0.0
  %v1452 = vadd.f32 %v1450, %v1451
  %v1453 = vsel %vm270, %v1122, 0.0
  %v1454 = vadd.f32 %v1452, %v1453
  %v1455 = vsel %vm270, %v1123, 0.0
  %v1456 = vadd.f32 %v1454, %v1455
  %v1457 = vsel %vm270, %v1124, 0.0
  %v1458 = vadd.f32 %v1456, %v1457
  %v1459 = vsel %vm270, %v1125, 0.0
  %v1460 = vadd.f32 %v1458, %v1459
  %v1461 = vsel %vm270, %v1126, 0.0
  %v1462 = vadd.f32 %v1460, %v1461
  %v1463 = vsel %vm270, %v1127, 0.0
  %v1464 = vadd.f32 %v1462, %v1463
  %v1465 = vsel %vm270, %v1128, 0.0
  %v1466 = vadd.f32 %v1464, %v1465
  %v1467 = vsel %vm270, %v1129, 0.0
  %v1468 = vadd.f32 %v1466, %v1467
  %v1469 = vsel %vm270, %v1130, 0.0
  %v1470 = vadd.f32 %v1468, %v1469
  %v1471 = vsel %vm270, %v1131, 0.0
  %v1472 = vadd.f32 %v1470, %v1471
  %v1473 = vsel %vm270, %v1132, 0.0
  %v1474 = vadd.f32 %v1472, %v1473
  %v1475 = vsel %vm270, %v1133, 0.0
  %v1476 = vadd.f32 %v1474, %v1475
  %v1477 = vsel %vm270, %v1134, 0.0
  %v1478 = vadd.f32 %v1476, %v1477
  %v1479 = vsel %vm270, %v1135, 0.0
  %v1480 = vadd.f32 %v1478, %v1479
  %v1481 = vsel %vm270, %v1136, 0.0
  %v1482 = vadd.f32 %v1480, %v1481
  %v1483 = vsel %vm270, %v1137, 0.0
  %v1484 = vadd.f32 %v1482, %v1483
  %v1485 = vsel %vm270, %v1138, 0.0
  %v1486 = vadd.f32 %v1484, %v1485
  %v1487 = vsel %vm270, %v1139, 0.0
  %v1488 = vadd.f32 %v1486, %v1487
  %v1489 = vsel %vm270, %v1140, 0.0
  %v1490 = vadd.f32 %v1488, %v1489
  %v1491 = vsel %vm270, %v1141, 0.0
  %v1492 = vadd.f32 %v1490, %v1491
  %v1493 = vsel %vm270, %v1142, 0.0
  %v1494 = vadd.f32 %v1492, %v1493
  %v1495 = vsel %vm270, %v1143, 0.0
  %v1496 = vadd.f32 %v1494, %v1495
  %v1497 = vsel %vm270, %v1144, 0.0
  %v1498 = vadd.f32 %v1496, %v1497
  %v1499 = vsel %vm270, %v1145, 0.0
  %v1500 = vadd.f32 %v1498, %v1499
  %v1501 = vsel %vm270, %v1146, 0.0
  %v1502 = vadd.f32 %v1500, %v1501
  %v1503 = vsel %vm270, %v1147, 0.0
  %v1504 = vadd.f32 %v1502, %v1503
  %v1505 = vsel %vm270, %v1148, 0.0
  %v1506 = vadd.f32 %v1504, %v1505
  %v1507 = vsel %vm270, %v1149, 0.0
  %v1508 = vadd.f32 %v1506, %v1507
  %v1509 = vsel %vm270, %v1150, 0.0
  %v1510 = vadd.f32 %v1508, %v1509
  %v1511 = vsel %vm270, %v1151, 0.0
  %v1512 = vadd.f32 %v1510, %v1511
  %v1513 = vsel %vm270, %v1152, 0.0
  %v1514 = vadd.f32 %v1512, %v1513
  %v1515 = vsel %vm270, %v1153, 0.0
  %v1516 = vadd.f32 %v1514, %v1515
  %v1517 = vsel %vm270, %v1154, 0.0
  %v1518 = vadd.f32 %v1516, %v1517
  %v1519 = vsel %vm270, %v1155, 0.0
  %v1520 = vadd.f32 %v1518, %v1519
  %v1521 = vsel %vm270, %v1156, 0.0
  %v1522 = vadd.f32 %v1520, %v1521
  %v1523 = vsel %vm270, %v1157, 0.0
  %v1524 = vadd.f32 %v1522, %v1523
  %v1525 = vsel %vm270, %v1158, 0.0
  %v1526 = vadd.f32 %v1524, %v1525
  %v1527 = vsel %vm270, %v1159, 0.0
  %v1528 = vadd.f32 %v1526, %v1527
  %v1529 = vsel %vm270, %v1160, 0.0
  %v1530 = vadd.f32 %v1528, %v1529
  %v1531 = vsel %vm270, %v1161, 0.0
  %v1532 = vadd.f32 %v1530, %v1531
  %v1533 = vsel %vm270, %v1162, 0.0
  %v1534 = vadd.f32 %v1532, %v1533
  %v1535 = vsel %vm270, %v1163, 0.0
  %v1536 = vadd.f32 %v1534, %v1535
  %v1537 = vsel %vm270, %v1164, 0.0
  %v1538 = vadd.f32 %v1536, %v1537
  %v1539 = vsel %vm270, %v1165, 0.0
  %v1540 = vadd.f32 %v1538, %v1539
  %v1541 = vsel %vm270, %v1166, 0.0
  %v1542 = vadd.f32 %v1540, %v1541
  %v1543 = vsel %vm270, %v1167, 0.0
  %v1544 = vadd.f32 %v1542, %v1543
  %v1545 = vsel %vm270, %v1168, 0.0
  %v1546 = vadd.f32 %v1544, %v1545
  %v1547 = vsel %vm270, %v1169, 0.0
  %v1548 = vadd.f32 %v1546, %v1547
  %v1549 = vsel %vm270, %v1170, 0.0
  %v1550 = vadd.f32 %v1548, %v1549
  %v1551 = vsel %vm270, %v1171, 0.0
  %v1552 = vadd.f32 %v1550, %v1551
  %v1553 = vsel %vm270, %v1172, 0.0
  %v1554 = vadd.f32 %v1552, %v1553
  %v1555 = vsel %vm270, %v1173, 0.0
  %v1556 = vadd.f32 %v1554, %v1555
  %v1557 = vsel %vm270, %v1174, 0.0
  %v1558 = vadd.f32 %v1556, %v1557
  %v1559 = vsel %vm270, %v1175, 0.0
  %v1560 = vadd.f32 %v1558, %v1559
  %v1561 = vsel %vm270, %v1176, 0.0
  %v1562 = vadd.f32 %v1560, %v1561
  %v1563 = vsel %vm270, %v1177, 0.0
  %v1564 = vadd.f32 %v1562, %v1563
  %v1565 = vsel %vm270, %v1178, 0.0
  %v1566 = vadd.f32 %v1564, %v1565
  %v1567 = vsel %vm270, %v1179, 0.0
  %v1568 = vadd.f32 %v1566, %v1567
  %v1569 = vsel %vm270, %v1180, 0.0
  %v1570 = vadd.f32 %v1568, %v1569
  %v1571 = vsel %vm270, %v1181, 0.0
  %v1572 = vadd.f32 %v1570, %v1571
  %v1573 = vsel %vm270, %v1182, 0.0
  %v1574 = vadd.f32 %v1572, %v1573
  %v1575 = vsel %vm270, %v1183, 0.0
  %v1576 = vadd.f32 %v1574, %v1575
  %v1577 = vsel %vm270, %v1184, 0.0
  %v1578 = vadd.f32 %v1576, %v1577
  %v1579 = vsel %vm270, %v1185, 0.0
  %v1580 = vadd.f32 %v1578, %v1579
  %v1581 = vsel %vm270, %v1186, 0.0
  %v1582 = vadd.f32 %v1580, %v1581
  %v1583 = vsel %vm270, %v1187, 0.0
  %v1584 = vadd.f32 %v1582, %v1583
  %v1585 = vsel %vm270, %v1188, 0.0
  %v1586 = vadd.f32 %v1584, %v1585
  %v1587 = vsel %vm270, %v1189, 0.0
  %v1588 = vadd.f32 %v1586, %v1587
  %v1589 = vsel %vm270, %v1190, 0.0
  %v1590 = vadd.f32 %v1588, %v1589
  %v1591 = vsel %vm270, %v1191, 0.0
  %v1592 = vadd.f32 %v1590, %v1591
  %v1593 = vsel %vm270, %v1192, 0.0
  %v1594 = vadd.f32 %v1592, %v1593
  %v1595 = vsel %vm270, %v1193, 0.0
  %v1596 = vadd.f32 %v1594, %v1595
  %v1597 = vsel %vm270, %v1194, 0.0
  %v1598 = vadd.f32 %v1596, %v1597
  %v1599 = vsel %vm270, %v1195, 0.0
  %v1600 = vadd.f32 %v1598, %v1599
  %v1601 = vsel %vm270, %v1196, 0.0
  %v1602 = vadd.f32 %v1600, %v1601
  %v1603 = vsel %vm270, %v1197, 0.0
  %v1604 = vadd.f32 %v1602, %v1603
  %v1605 = vsel %vm270, %v1198, 0.0
  %v1606 = vadd.f32 %v1604, %v1605
  %v1607 = vsel %vm270, %v1199, 0.0
  %v1608 = vadd.f32 %v1606, %v1607
  %v1609 = vsel %vm270, %v1200, 0.0
  %v1610 = vadd.f32 %v1608, %v1609
  %v1611 = vsel %vm270, %v1201, 0.0
  %v1612 = vadd.f32 %v1610, %v1611
  %v1613 = vsel %vm270, %v1202, 0.0
  %v1614 = vadd.f32 %v1612, %v1613
  %v1615 = vsel %vm270, %v1203, 0.0
  %v1616 = vadd.f32 %v1614, %v1615
  %v1617 = vsel %vm270, %v1204, 0.0
  %v1618 = vadd.f32 %v1616, %v1617
  %v1619 = vsel %vm270, %v1205, 0.0
  %v1620 = vadd.f32 %v1618, %v1619
  %v1621 = vsel %vm270, %v1206, 0.0
  %v1622 = vadd.f32 %v1620, %v1621
  %v1623 = vsel %vm270, %v1207, 0.0
  %v1624 = vadd.f32 %v1622, %v1623
  %v1625 = vsel %vm270, %v1208, 0.0
  %v1626 = vadd.f32 %v1624, %v1625
  %v1627 = vsel %vm270, %v1209, 0.0
  %v1628 = vadd.f32 %v1626, %v1627
  %v1629 = vsel %vm270, %v1210, 0.0
  %v1630 = vadd.f32 %v1628, %v1629
  %v1631 = vsel %vm270, %v1211, 0.0
  %v1632 = vadd.f32 %v1630, %v1631
  %v1633 = vsel %vm270, %v1212, 0.0
  %v1634 = vadd.f32 %v1632, %v1633
  %v1635 = vsel %vm270, %v1213, 0.0
  %v1636 = vadd.f32 %v1634, %v1635
  %v1637 = vsel %vm270, %v1214, 0.0
  %v1638 = vadd.f32 %v1636, %v1637
  %v1639 = vsel %vm270, %v1215, 0.0
  %v1640 = vadd.f32 %v1638, %v1639
  %v1641 = vsel %vm270, %v1216, 0.0
  %v1642 = vadd.f32 %v1640, %v1641
  %v1643 = vsel %vm270, %v1217, 0.0
  %v1644 = vadd.f32 %v1642, %v1643
  %v1645 = vsel %vm270, %v1218, 0.0
  %v1646 = vadd.f32 %v1644, %v1645
  %v1647 = vsel %vm270, %v1219, 0.0
  %v1648 = vadd.f32 %v1646, %v1647
  %v1649 = vsel %vm270, %v1220, 0.0
  %v1650 = vadd.f32 %v1648, %v1649
  %v1651 = vsel %vm270, %v1221, 0.0
  %v1652 = vadd.f32 %v1650, %v1651
  %v1653 = vsel %vm270, %v1222, 0.0
  %v1654 = vadd.f32 %v1652, %v1653
  %v1655 = vsel %vm270, %v1223, 0.0
  %v1656 = vadd.f32 %v1654, %v1655
  %v1657 = vsel %vm270, %v1224, 0.0
  %v1658 = vadd.f32 %v1656, %v1657
  %v1659 = vsel %vm270, %v1225, 0.0
  %v1660 = vadd.f32 %v1658, %v1659
  %v1661 = vsel %vm270, %v1226, 0.0
  %v1662 = vadd.f32 %v1660, %v1661
  %v1663 = vsel %vm270, %v1227, 0.0
  %v1664 = vadd.f32 %v1662, %v1663
  %v1665 = vsel %vm270, %v1228, 0.0
  %v1666 = vadd.f32 %v1664, %v1665
  %v1667 = vsel %vm270, %v1229, 0.0
  %v1668 = vadd.f32 %v1666, %v1667
  %v1669 = vsel %vm270, %v1230, 0.0
  %v1670 = vadd.f32 %v1668, %v1669
  %v1671 = vsel %vm270, %v1231, 0.0
  %v1672 = vadd.f32 %v1670, %v1671
  %v1673 = vsel %vm270, %v1232, 0.0
  %v1674 = vadd.f32 %v1672, %v1673
  %v1675 = vsel %vm270, %v1233, 0.0
  %v1676 = vadd.f32 %v1674, %v1675
  %v1677 = vsel %vm270, %v1234, 0.0
  %v1678 = vadd.f32 %v1676, %v1677
  %v1679 = vsel %vm270, %v1235, 0.0
  %v1680 = vadd.f32 %v1678, %v1679
  %v1681 = vsel %vm270, %v1236, 0.0
  %v1682 = vadd.f32 %v1680, %v1681
  %v1683 = vsel %vm270, %v1237, 0.0
  %v1684 = vadd.f32 %v1682, %v1683
  %v1685 = vsel %vm270, %v1238, 0.0
  %v1686 = vadd.f32 %v1684, %v1685
  %v1687 = vsel %vm270, %v1239, 0.0
  %v1688 = vadd.f32 %v1686, %v1687
  %v1689 = vsel %vm270, %v1240, 0.0
  %v1690 = vadd.f32 %v1688, %v1689
  %v1691 = vsel %vm270, %v1241, 0.0
  %v1692 = vadd.f32 %v1690, %v1691
  %v1693 = vsel %vm270, %v1242, 0.0
  %v1694 = vadd.f32 %v1692, %v1693
  %v1695 = vsel %vm270, %v1243, 0.0
  %v1696 = vadd.f32 %v1694, %v1695
  %v1697 = vsel %vm270, %v1244, 0.0
  %v1698 = vadd.f32 %v1696, %v1697
  %v1699 = vsel %vm270, %v1245, 0.0
  %v1700 = vadd.f32 %v1698, %v1699
  %v1701 = vsel %vm270, %v1246, 0.0
  %v1702 = vadd.f32 %v1700, %v1701
  %v1703 = vsel %vm270, %v1247, 0.0
  %v1704 = vadd.f32 %v1702, %v1703
  %v1705 = vsel %vm270, %v1248, 0.0
  %v1706 = vadd.f32 %v1704, %v1705
  %v1707 = vsel %vm270, %v1249, 0.0
  %v1708 = vadd.f32 %v1706, %v1707
  %v1709 = vsel %vm270, %v1250, 0.0
  %v1710 = vadd.f32 %v1708, %v1709
  %v1711 = vsel %vm270, %v1251, 0.0
  %v1712 = vadd.f32 %v1710, %v1711
  %v1713 = vsel %vm270, %v1252, 0.0
  %v1714 = vadd.f32 %v1712, %v1713
  %v1715 = vsel %vm270, %v1253, 0.0
  %v1716 = vadd.f32 %v1714, %v1715
  %v1717 = vsel %vm270, %v1254, 0.0
  %v1718 = vadd.f32 %v1716, %v1717
  %v1719 = vsel %vm270, %v1255, 0.0
  %v1720 = vadd.f32 %v1718, %v1719
  %v1721 = vsel %vm270, %v1256, 0.0
  %v1722 = vadd.f32 %v1720, %v1721
  %v1723 = vsel %vm270, %v1257, 0.0
  %v1724 = vadd.f32 %v1722, %v1723
  %v1725 = vsel %vm270, %v1258, 0.0
  %v1726 = vadd.f32 %v1724, %v1725
  %v1727 = vsel %vm270, %v1259, 0.0
  %v1728 = vadd.f32 %v1726, %v1727
  %v1729 = vsel %vm270, %v1260, 0.0
  %v1730 = vadd.f32 %v1728, %v1729
  %v1731 = vsel %vm270, %v1261, 0.0
  %v1732 = vadd.f32 %v1730, %v1731
  %v1733 = vsel %vm270, %v1262, 0.0
  %v1734 = vadd.f32 %v1732, %v1733
  %v1735 = vsel %vm270, %v1263, 0.0
  %v1736 = vadd.f32 %v1734, %v1735
  %v1737 = vsel %vm270, %v1264, 0.0
  %v1738 = vadd.f32 %v1736, %v1737
  %v1739 = vsel %vm270, %v1265, 0.0
  %v1740 = vadd.f32 %v1738, %v1739
  %v1741 = vsel %vm270, %v1266, 0.0
  %v1742 = vadd.f32 %v1740, %v1741
  %v1743 = vsel %vm270, %v1267, 0.0
  %v1744 = vadd.f32 %v1742, %v1743
  %v1745 = vsel %vm270, %v1268, 0.0
  %v1746 = vadd.f32 %v1744, %v1745
  %v1747 = vsel %vm270, %v1269, 0.0
  %v1748 = vadd.f32 %v1746, %v1747
  %v1749 = vsel %vm270, %v1270, 0.0
  %v1750 = vadd.f32 %v1748, %v1749
  %v1751 = vsel %vm270, %v1271, 0.0
  %v1752 = vadd.f32 %v1750, %v1751
  %v1753 = vsel %vm270, %v1272, 0.0
  %v1754 = vadd.f32 %v1752, %v1753
  %v1755 = vsel %vm270, %v1273, 0.0
  %v1756 = vadd.f32 %v1754, %v1755
  %v1757 = vsel %vm270, %v1274, 0.0
  %v1758 = vadd.f32 %v1756, %v1757
  %v1759 = vsel %vm270, %v1275, 0.0
  %v1760 = vadd.f32 %v1758, %v1759
  %v1761 = vsel %vm270, %v1276, 0.0
  %v1762 = vadd.f32 %v1760, %v1761
  %v1763 = vsel %vm270, %v1277, 0.0
  %v1764 = vadd.f32 %v1762, %v1763
  %v1765 = vsel %vm270, %v1278, 0.0
  %v1766 = vadd.f32 %v1764, %v1765
  %v1767 = vsel %vm270, %v1279, 0.0
  %v1768 = vadd.f32 %v1766, %v1767
  %v1769 = vsel %vm270, %v1280, 0.0
  %v1770 = vadd.f32 %v1768, %v1769
  %v1771 = vsel %vm270, %v1281, 0.0
  %v1772 = vadd.f32 %v1770, %v1771
  %v1773 = vsel %vm270, %v1282, 0.0
  %v1774 = vadd.f32 %v1772, %v1773
  %v1775 = vsel %vm270, %v1283, 0.0
  %v1776 = vadd.f32 %v1774, %v1775
  %v1777 = vsel %vm270, %v1284, 0.0
  %v1778 = vadd.f32 %v1776, %v1777
  %v1779 = vsel %vm270, %v1285, 0.0
  %v1780 = vadd.f32 %v1778, %v1779
  %v1781 = vsel %vm270, %v1286, 0.0
  %v1782 = vadd.f32 %v1780, %v1781
  %v1783 = vsel %vm270, %v1287, 0.0
  %v1784 = vadd.f32 %v1782, %v1783
  %v1785 = vsel %vm270, %v1288, 0.0
  %v1786 = vadd.f32 %v1784, %v1785
  %v1787 = vsel %vm270, %v1289, 0.0
  %v1788 = vadd.f32 %v1786, %v1787
  %v1789 = vsel %vm270, %v1290, 0.0
  %v1790 = vadd.f32 %v1788, %v1789
  %v1791 = vsel %vm270, %v1291, 0.0
  %v1792 = vadd.f32 %v1790, %v1791
  %v1793 = vsel %vm270, %v1292, 0.0
  %v1794 = vadd.f32 %v1792, %v1793
  %v1795 = vsel %vm270, %v1293, 0.0
  %v1796 = vadd.f32 %v1794, %v1795
  %v1797 = vsel %vm270, %v1294, 0.0
  %v1798 = vadd.f32 %v1796, %v1797
  %v1799 = vsel %vm270, %v1295, 0.0
  %v1800 = vadd.f32 %v1798, %v1799
  %v1801 = vsel %vm270, %v1296, 0.0
  %v1802 = vadd.f32 %v1800, %v1801
  %v1803 = vsel %vm270, %v1297, 0.0
  %v1804 = vadd.f32 %v1802, %v1803
  %v1805 = vsel %vm270, %v1298, 0.0
  %v1806 = vadd.f32 %v1804, %v1805
  %v1807 = vsel %vm270, %v1299, 0.0
  %v1808 = vadd.f32 %v1806, %v1807
  %v1809 = vsel %vm270, %v1300, 0.0
  %v1810 = vadd.f32 %v1808, %v1809
  %v1811 = vsel %vm270, %v1301, 0.0
  %v1812 = vadd.f32 %v1810, %v1811
  %v1813 = vrot.slane %v1812, 4
  %v1814 = vadd.f32 %v1812, %v1813
  %v1815 = vrot.slane %v1814, 2
  %v1816 = vadd.f32 %v1814, %v1815
  %v1817 = vrot.slane %v1816, 1
  %v1818 = vadd.f32 %v1816, %v1817
  %v1819 = vmul.f32 %v1818, %v788
  %v1820 = vadd.f32 %v1819, 1e-05
  %v1821 = vrsqrt.pop %v1820
  %v1822 = vmul.f32 %v790, %v1821
  %v1823 = vmul.f32 %v791, %v1821
  %v1824 = vmul.f32 %v792, %v1821
  %v1825 = vmul.f32 %v793, %v1821
  %v1826 = vmul.f32 %v794, %v1821
  %v1827 = vmul.f32 %v795, %v1821
  %v1828 = vmul.f32 %v796, %v1821
  %v1829 = vmul.f32 %v797, %v1821
  %v1830 = vmul.f32 %v798, %v1821
  %v1831 = vmul.f32 %v799, %v1821
  %v1832 = vmul.f32 %v800, %v1821
  %v1833 = vmul.f32 %v801, %v1821
  %v1834 = vmul.f32 %v802, %v1821
  %v1835 = vmul.f32 %v803, %v1821
  %v1836 = vmul.f32 %v804, %v1821
  %v1837 = vmul.f32 %v805, %v1821
  %v1838 = vmul.f32 %v806, %v1821
  %v1839 = vmul.f32 %v807, %v1821
  %v1840 = vmul.f32 %v808, %v1821
  %v1841 = vmul.f32 %v809, %v1821
  %v1842 = vmul.f32 %v810, %v1821
  %v1843 = vmul.f32 %v811, %v1821
  %v1844 = vmul.f32 %v812, %v1821
  %v1845 = vmul.f32 %v813, %v1821
  %v1846 = vmul.f32 %v814, %v1821
  %v1847 = vmul.f32 %v815, %v1821
  %v1848 = vmul.f32 %v816, %v1821
  %v1849 = vmul.f32 %v817, %v1821
  %v1850 = vmul.f32 %v818, %v1821
  %v1851 = vmul.f32 %v819, %v1821
  %v1852 = vmul.f32 %v820, %v1821
  %v1853 = vmul.f32 %v821, %v1821
  %v1854 = vmul.f32 %v822, %v1821
  %v1855 = vmul.f32 %v823, %v1821
  %v1856 = vmul.f32 %v824, %v1821
  %v1857 = vmul.f32 %v825, %v1821
  %v1858 = vmul.f32 %v826, %v1821
  %v1859 = vmul.f32 %v827, %v1821
  %v1860 = vmul.f32 %v828, %v1821
  %v1861 = vmul.f32 %v829, %v1821
  %v1862 = vmul.f32 %v830, %v1821
  %v1863 = vmul.f32 %v831, %v1821
  %v1864 = vmul.f32 %v832, %v1821
  %v1865 = vmul.f32 %v833, %v1821
  %v1866 = vmul.f32 %v834, %v1821
  %v1867 = vmul.f32 %v835, %v1821
  %v1868 = vmul.f32 %v836, %v1821
  %v1869 = vmul.f32 %v837, %v1821
  %v1870 = vmul.f32 %v838, %v1821
  %v1871 = vmul.f32 %v839, %v1821
  %v1872 = vmul.f32 %v840, %v1821
  %v1873 = vmul.f32 %v841, %v1821
  %v1874 = vmul.f32 %v842, %v1821
  %v1875 = vmul.f32 %v843, %v1821
  %v1876 = vmul.f32 %v844, %v1821
  %v1877 = vmul.f32 %v845, %v1821
  %v1878 = vmul.f32 %v846, %v1821
  %v1879 = vmul.f32 %v847, %v1821
  %v1880 = vmul.f32 %v848, %v1821
  %v1881 = vmul.f32 %v849, %v1821
  %v1882 = vmul.f32 %v850, %v1821
  %v1883 = vmul.f32 %v851, %v1821
  %v1884 = vmul.f32 %v852, %v1821
  %v1885 = vmul.f32 %v853, %v1821
  %v1886 = vmul.f32 %v854, %v1821
  %v1887 = vmul.f32 %v855, %v1821
  %v1888 = vmul.f32 %v856, %v1821
  %v1889 = vmul.f32 %v857, %v1821
  %v1890 = vmul.f32 %v858, %v1821
  %v1891 = vmul.f32 %v859, %v1821
  %v1892 = vmul.f32 %v860, %v1821
  %v1893 = vmul.f32 %v861, %v1821
  %v1894 = vmul.f32 %v862, %v1821
  %v1895 = vmul.f32 %v863, %v1821
  %v1896 = vmul.f32 %v864, %v1821
  %v1897 = vmul.f32 %v865, %v1821
  %v1898 = vmul.f32 %v866, %v1821
  %v1899 = vmul.f32 %v867, %v1821
  %v1900 = vmul.f32 %v868, %v1821
  %v1901 = vmul.f32 %v869, %v1821
  %v1902 = vmul.f32 %v870, %v1821
  %v1903 = vmul.f32 %v871, %v1821
  %v1904 = vmul.f32 %v872, %v1821
  %v1905 = vmul.f32 %v873, %v1821
  %v1906 = vmul.f32 %v874, %v1821
  %v1907 = vmul.f32 %v875, %v1821
  %v1908 = vmul.f32 %v876, %v1821
  %v1909 = vmul.f32 %v877, %v1821
  %v1910 = vmul.f32 %v878, %v1821
  %v1911 = vmul.f32 %v879, %v1821
  %v1912 = vmul.f32 %v880, %v1821
  %v1913 = vmul.f32 %v881, %v1821
  %v1914 = vmul.f32 %v882, %v1821
  %v1915 = vmul.f32 %v883, %v1821
  %v1916 = vmul.f32 %v884, %v1821
  %v1917 = vmul.f32 %v885, %v1821
  %v1918 = vmul.f32 %v886, %v1821
  %v1919 = vmul.f32 %v887, %v1821
  %v1920 = vmul.f32 %v888, %v1821
  %v1921 = vmul.f32 %v889, %v1821
  %v1922 = vmul.f32 %v890, %v1821
  %v1923 = vmul.f32 %v891, %v1821
  %v1924 = vmul.f32 %v892, %v1821
  %v1925 = vmul.f32 %v893, %v1821
  %v1926 = vmul.f32 %v894, %v1821
  %v1927 = vmul.f32 %v895, %v1821
  %v1928 = vmul.f32 %v896, %v1821
  %v1929 = vmul.f32 %v897, %v1821
  %v1930 = vmul.f32 %v898, %v1821
  %v1931 = vmul.f32 %v899, %v1821
  %v1932 = vmul.f32 %v900, %v1821
  %v1933 = vmul.f32 %v901, %v1821
  %v1934 = vmul.f32 %v902, %v1821
  %v1935 = vmul.f32 %v903, %v1821
  %v1936 = vmul.f32 %v904, %v1821
  %v1937 = vmul.f32 %v905, %v1821
  %v1938 = vmul.f32 %v906, %v1821
  %v1939 = vmul.f32 %v907, %v1821
  %v1940 = vmul.f32 %v908, %v1821
  %v1941 = vmul.f32 %v909, %v1821
  %v1942 = vmul.f32 %v910, %v1821
  %v1943 = vmul.f32 %v911, %v1821
  %v1944 = vmul.f32 %v912, %v1821
  %v1945 = vmul.f32 %v913, %v1821
  %v1946 = vmul.f32 %v914, %v1821
  %v1947 = vmul.f32 %v915, %v1821
  %v1948 = vmul.f32 %v916, %v1821
  %v1949 = vmul.f32 %v917, %v1821
  %v1950 = vmul.f32 %v918, %v1821
  %v1951 = vmul.f32 %v919, %v1821
  %v1952 = vmul.f32 %v920, %v1821
  %v1953 = vmul.f32 %v921, %v1821
  %v1954 = vmul.f32 %v922, %v1821
  %v1955 = vmul.f32 %v923, %v1821
  %v1956 = vmul.f32 %v924, %v1821
  %v1957 = vmul.f32 %v925, %v1821
  %v1958 = vmul.f32 %v926, %v1821
  %v1959 = vmul.f32 %v927, %v1821
  %v1960 = vmul.f32 %v928, %v1821
  %v1961 = vmul.f32 %v929, %v1821
  %v1962 = vmul.f32 %v930, %v1821
  %v1963 = vmul.f32 %v931, %v1821
  %v1964 = vmul.f32 %v932, %v1821
  %v1965 = vmul.f32 %v933, %v1821
  %v1966 = vmul.f32 %v934, %v1821
  %v1967 = vmul.f32 %v935, %v1821
  %v1968 = vmul.f32 %v936, %v1821
  %v1969 = vmul.f32 %v937, %v1821
  %v1970 = vmul.f32 %v938, %v1821
  %v1971 = vmul.f32 %v939, %v1821
  %v1972 = vmul.f32 %v940, %v1821
  %v1973 = vmul.f32 %v941, %v1821
  %v1974 = vmul.f32 %v942, %v1821
  %v1975 = vmul.f32 %v943, %v1821
  %v1976 = vmul.f32 %v944, %v1821
  %v1977 = vmul.f32 %v945, %v1821
  %v1978 = vmul.f32 %v946, %v1821
  %v1979 = vmul.f32 %v947, %v1821
  %v1980 = vmul.f32 %v948, %v1821
  %v1981 = vmul.f32 %v949, %v1821
  %v1982 = vmul.f32 %v950, %v1821
  %v1983 = vmul.f32 %v951, %v1821
  %v1984 = vmul.f32 %v952, %v1821
  %v1985 = vmul.f32 %v953, %v1821
  %v1986 = vmul.f32 %v954, %v1821
  %v1987 = vmul.f32 %v955, %v1821
  %v1988 = vmul.f32 %v956, %v1821
  %v1989 = vmul.f32 %v957, %v1821
  %v1990 = vmul.f32 %v958, %v1821
  %v1991 = vmul.f32 %v959, %v1821
  %v1992 = vmul.f32 %v960, %v1821
  %v1993 = vmul.f32 %v961, %v1821
  %v1994 = vmul.f32 %v962, %v1821
  %v1995 = vmul.f32 %v963, %v1821
  %v1996 = vmul.f32 %v964, %v1821
  %v1997 = vmul.f32 %v965, %v1821
  %v1998 = vmul.f32 %v966, %v1821
  %v1999 = vmul.f32 %v967, %v1821
  %v2000 = vmul.f32 %v968, %v1821
  %v2001 = vmul.f32 %v969, %v1821
  %v2002 = vmul.f32 %v970, %v1821
  %v2003 = vmul.f32 %v971, %v1821
  %v2004 = vmul.f32 %v972, %v1821
  %v2005 = vmul.f32 %v973, %v1821
  %v2006 = vmul.f32 %v974, %v1821
  %v2007 = vmul.f32 %v975, %v1821
  %v2008 = vmul.f32 %v976, %v1821
  %v2009 = vmul.f32 %v977, %v1821
  %v2010 = vmul.f32 %v978, %v1821
  %v2011 = vmul.f32 %v979, %v1821
  %v2012 = vmul.f32 %v980, %v1821
  %v2013 = vmul.f32 %v981, %v1821
  %v2014 = vmul.f32 %v982, %v1821
  %v2015 = vmul.f32 %v983, %v1821
  %v2016 = vmul.f32 %v984, %v1821
  %v2017 = vmul.f32 %v985, %v1821
  %v2018 = vmul.f32 %v986, %v1821
  %v2019 = vmul.f32 %v987, %v1821
  %v2020 = vmul.f32 %v988, %v1821
  %v2021 = vmul.f32 %v989, %v1821
  %v2022 = vmul.f32 %v990, %v1821
  %v2023 = vmul.f32 %v991, %v1821
  %v2024 = vmul.f32 %v992, %v1821
  %v2025 = vmul.f32 %v993, %v1821
  %v2026 = vmul.f32 %v994, %v1821
  %v2027 = vmul.f32 %v995, %v1821
  %v2028 = vmul.f32 %v996, %v1821
  %v2029 = vmul.f32 %v997, %v1821
  %v2030 = vmul.f32 %v998, %v1821
  %v2031 = vmul.f32 %v999, %v1821
  %v2032 = vmul.f32 %v1000, %v1821
  %v2033 = vmul.f32 %v1001, %v1821
  %v2034 = vmul.f32 %v1002, %v1821
  %v2035 = vmul.f32 %v1003, %v1821
  %v2036 = vmul.f32 %v1004, %v1821
  %v2037 = vmul.f32 %v1005, %v1821
  %v2038 = vmul.f32 %v1006, %v1821
  %v2039 = vmul.f32 %v1007, %v1821
  %v2040 = vmul.f32 %v1008, %v1821
  %v2041 = vmul.f32 %v1009, %v1821
  %v2042 = vmul.f32 %v1010, %v1821
  %v2043 = vmul.f32 %v1011, %v1821
  %v2044 = vmul.f32 %v1012, %v1821
  %v2045 = vmul.f32 %v1013, %v1821
  %v2046 = vmul.f32 %v1014, %v1821
  %v2047 = vmul.f32 %v1015, %v1821
  %v2048 = vmul.f32 %v1016, %v1821
  %v2049 = vmul.f32 %v1017, %v1821
  %v2050 = vmul.f32 %v1018, %v1821
  %v2051 = vmul.f32 %v1019, %v1821
  %v2052 = vmul.f32 %v1020, %v1821
  %v2053 = vmul.f32 %v1021, %v1821
  %v2054 = vmul.f32 %v1022, %v1821
  %v2055 = vmul.f32 %v1023, %v1821
  %v2056 = vmul.f32 %v1024, %v1821
  %v2057 = vmul.f32 %v1025, %v1821
  %v2058 = vmul.f32 %v1026, %v1821
  %v2059 = vmul.f32 %v1027, %v1821
  %v2060 = vmul.f32 %v1028, %v1821
  %v2061 = vmul.f32 %v1029, %v1821
  %v2062 = vmul.f32 %v1030, %v1821
  %v2063 = vmul.f32 %v1031, %v1821
  %v2064 = vmul.f32 %v1032, %v1821
  %v2065 = vmul.f32 %v1033, %v1821
  %v2066 = vmul.f32 %v1034, %v1821
  %v2067 = vmul.f32 %v1035, %v1821
  %v2068 = vmul.f32 %v1036, %v1821
  %v2069 = vmul.f32 %v1037, %v1821
  %v2070 = vmul.f32 %v1038, %v1821
  %v2071 = vmul.f32 %v1039, %v1821
  %v2072 = vmul.f32 %v1040, %v1821
  %v2073 = vmul.f32 %v1041, %v1821
  %v2074 = vmul.f32 %v1042, %v1821
  %v2075 = vmul.f32 %v1043, %v1821
  %v2076 = vmul.f32 %v1044, %v1821
  %v2077 = vmul.f32 %v1045, %v1821
  %v2078 = vld [vmem:[%s1] sm:$0x1]
  %v2080 = vlaneseq
  %v2081 = vshrl.u32 %v2080, 7
  %v2082 = vsub.s32 0, %v2081
  %v2083 = vrot.slane %v2078, %v2082
  %v2085 = vmul.f32 %v1822, %v2083
  %v2086 = vmul.f32 %v1823, %v2083
  %v2087 = vmul.f32 %v1824, %v2083
  %v2088 = vmul.f32 %v1825, %v2083
  %v2089 = vmul.f32 %v1826, %v2083
  %v2090 = vmul.f32 %v1827, %v2083
  %v2091 = vmul.f32 %v1828, %v2083
  %v2092 = vmul.f32 %v1829, %v2083
  %v2093 = vmul.f32 %v1830, %v2083
  %v2094 = vmul.f32 %v1831, %v2083
  %v2095 = vmul.f32 %v1832, %v2083
  %v2096 = vmul.f32 %v1833, %v2083
  %v2097 = vmul.f32 %v1834, %v2083
  %v2098 = vmul.f32 %v1835, %v2083
  %v2099 = vmul.f32 %v1836, %v2083
  %v2100 = vmul.f32 %v1837, %v2083
  %v2101 = vmul.f32 %v1838, %v2083
  %v2102 = vmul.f32 %v1839, %v2083
  %v2103 = vmul.f32 %v1840, %v2083
  %v2104 = vmul.f32 %v1841, %v2083
  %v2105 = vmul.f32 %v1842, %v2083
  %v2106 = vmul.f32 %v1843, %v2083
  %v2107 = vmul.f32 %v1844, %v2083
  %v2108 = vmul.f32 %v1845, %v2083
  %v2109 = vmul.f32 %v1846, %v2083
  %v2110 = vmul.f32 %v1847, %v2083
  %v2111 = vmul.f32 %v1848, %v2083
  %v2112 = vmul.f32 %v1849, %v2083
  %v2113 = vmul.f32 %v1850, %v2083
  %v2114 = vmul.f32 %v1851, %v2083
  %v2115 = vmul.f32 %v1852, %v2083
  %v2116 = vmul.f32 %v1853, %v2083
  %v2117 = vmul.f32 %v1854, %v2083
  %v2118 = vmul.f32 %v1855, %v2083
  %v2119 = vmul.f32 %v1856, %v2083
  %v2120 = vmul.f32 %v1857, %v2083
  %v2121 = vmul.f32 %v1858, %v2083
  %v2122 = vmul.f32 %v1859, %v2083
  %v2123 = vmul.f32 %v1860, %v2083
  %v2124 = vmul.f32 %v1861, %v2083
  %v2125 = vmul.f32 %v1862, %v2083
  %v2126 = vmul.f32 %v1863, %v2083
  %v2127 = vmul.f32 %v1864, %v2083
  %v2128 = vmul.f32 %v1865, %v2083
  %v2129 = vmul.f32 %v1866, %v2083
  %v2130 = vmul.f32 %v1867, %v2083
  %v2131 = vmul.f32 %v1868, %v2083
  %v2132 = vmul.f32 %v1869, %v2083
  %v2133 = vmul.f32 %v1870, %v2083
  %v2134 = vmul.f32 %v1871, %v2083
  %v2135 = vmul.f32 %v1872, %v2083
  %v2136 = vmul.f32 %v1873, %v2083
  %v2137 = vmul.f32 %v1874, %v2083
  %v2138 = vmul.f32 %v1875, %v2083
  %v2139 = vmul.f32 %v1876, %v2083
  %v2140 = vmul.f32 %v1877, %v2083
  %v2141 = vmul.f32 %v1878, %v2083
  %v2142 = vmul.f32 %v1879, %v2083
  %v2143 = vmul.f32 %v1880, %v2083
  %v2144 = vmul.f32 %v1881, %v2083
  %v2145 = vmul.f32 %v1882, %v2083
  %v2146 = vmul.f32 %v1883, %v2083
  %v2147 = vmul.f32 %v1884, %v2083
  %v2148 = vmul.f32 %v1885, %v2083
  %v2149 = vmul.f32 %v1886, %v2083
  %v2150 = vmul.f32 %v1887, %v2083
  %v2151 = vmul.f32 %v1888, %v2083
  %v2152 = vmul.f32 %v1889, %v2083
  %v2153 = vmul.f32 %v1890, %v2083
  %v2154 = vmul.f32 %v1891, %v2083
  %v2155 = vmul.f32 %v1892, %v2083
  %v2156 = vmul.f32 %v1893, %v2083
  %v2157 = vmul.f32 %v1894, %v2083
  %v2158 = vmul.f32 %v1895, %v2083
  %v2159 = vmul.f32 %v1896, %v2083
  %v2160 = vmul.f32 %v1897, %v2083
  %v2161 = vmul.f32 %v1898, %v2083
  %v2162 = vmul.f32 %v1899, %v2083
  %v2163 = vmul.f32 %v1900, %v2083
  %v2164 = vmul.f32 %v1901, %v2083
  %v2165 = vmul.f32 %v1902, %v2083
  %v2166 = vmul.f32 %v1903, %v2083
  %v2167 = vmul.f32 %v1904, %v2083
  %v2168 = vmul.f32 %v1905, %v2083
  %v2169 = vmul.f32 %v1906, %v2083
  %v2170 = vmul.f32 %v1907, %v2083
  %v2171 = vmul.f32 %v1908, %v2083
  %v2172 = vmul.f32 %v1909, %v2083
  %v2173 = vmul.f32 %v1910, %v2083
  %v2174 = vmul.f32 %v1911, %v2083
  %v2175 = vmul.f32 %v1912, %v2083
  %v2176 = vmul.f32 %v1913, %v2083
  %v2177 = vmul.f32 %v1914, %v2083
  %v2178 = vmul.f32 %v1915, %v2083
  %v2179 = vmul.f32 %v1916, %v2083
  %v2180 = vmul.f32 %v1917, %v2083
  %v2181 = vmul.f32 %v1918, %v2083
  %v2182 = vmul.f32 %v1919, %v2083
  %v2183 = vmul.f32 %v1920, %v2083
  %v2184 = vmul.f32 %v1921, %v2083
  %v2185 = vmul.f32 %v1922, %v2083
  %v2186 = vmul.f32 %v1923, %v2083
  %v2187 = vmul.f32 %v1924, %v2083
  %v2188 = vmul.f32 %v1925, %v2083
  %v2189 = vmul.f32 %v1926, %v2083
  %v2190 = vmul.f32 %v1927, %v2083
  %v2191 = vmul.f32 %v1928, %v2083
  %v2192 = vmul.f32 %v1929, %v2083
  %v2193 = vmul.f32 %v1930, %v2083
  %v2194 = vmul.f32 %v1931, %v2083
  %v2195 = vmul.f32 %v1932, %v2083
  %v2196 = vmul.f32 %v1933, %v2083
  %v2197 = vmul.f32 %v1934, %v2083
  %v2198 = vmul.f32 %v1935, %v2083
  %v2199 = vmul.f32 %v1936, %v2083
  %v2200 = vmul.f32 %v1937, %v2083
  %v2201 = vmul.f32 %v1938, %v2083
  %v2202 = vmul.f32 %v1939, %v2083
  %v2203 = vmul.f32 %v1940, %v2083
  %v2204 = vmul.f32 %v1941, %v2083
  %v2205 = vmul.f32 %v1942, %v2083
  %v2206 = vmul.f32 %v1943, %v2083
  %v2207 = vmul.f32 %v1944, %v2083
  %v2208 = vmul.f32 %v1945, %v2083
  %v2209 = vmul.f32 %v1946, %v2083
  %v2210 = vmul.f32 %v1947, %v2083
  %v2211 = vmul.f32 %v1948, %v2083
  %v2212 = vmul.f32 %v1949, %v2083
  %v2213 = vmul.f32 %v1950, %v2083
  %v2214 = vmul.f32 %v1951, %v2083
  %v2215 = vmul.f32 %v1952, %v2083
  %v2216 = vmul.f32 %v1953, %v2083
  %v2217 = vmul.f32 %v1954, %v2083
  %v2218 = vmul.f32 %v1955, %v2083
  %v2219 = vmul.f32 %v1956, %v2083
  %v2220 = vmul.f32 %v1957, %v2083
  %v2221 = vmul.f32 %v1958, %v2083
  %v2222 = vmul.f32 %v1959, %v2083
  %v2223 = vmul.f32 %v1960, %v2083
  %v2224 = vmul.f32 %v1961, %v2083
  %v2225 = vmul.f32 %v1962, %v2083
  %v2226 = vmul.f32 %v1963, %v2083
  %v2227 = vmul.f32 %v1964, %v2083
  %v2228 = vmul.f32 %v1965, %v2083
  %v2229 = vmul.f32 %v1966, %v2083
  %v2230 = vmul.f32 %v1967, %v2083
  %v2231 = vmul.f32 %v1968, %v2083
  %v2232 = vmul.f32 %v1969, %v2083
  %v2233 = vmul.f32 %v1970, %v2083
  %v2234 = vmul.f32 %v1971, %v2083
  %v2235 = vmul.f32 %v1972, %v2083
  %v2236 = vmul.f32 %v1973, %v2083
  %v2237 = vmul.f32 %v1974, %v2083
  %v2238 = vmul.f32 %v1975, %v2083
  %v2239 = vmul.f32 %v1976, %v2083
  %v2240 = vmul.f32 %v1977, %v2083
  %v2241 = vmul.f32 %v1978, %v2083
  %v2242 = vmul.f32 %v1979, %v2083
  %v2243 = vmul.f32 %v1980, %v2083
  %v2244 = vmul.f32 %v1981, %v2083
  %v2245 = vmul.f32 %v1982, %v2083
  %v2246 = vmul.f32 %v1983, %v2083
  %v2247 = vmul.f32 %v1984, %v2083
  %v2248 = vmul.f32 %v1985, %v2083
  %v2249 = vmul.f32 %v1986, %v2083
  %v2250 = vmul.f32 %v1987, %v2083
  %v2251 = vmul.f32 %v1988, %v2083
  %v2252 = vmul.f32 %v1989, %v2083
  %v2253 = vmul.f32 %v1990, %v2083
  %v2254 = vmul.f32 %v1991, %v2083
  %v2255 = vmul.f32 %v1992, %v2083
  %v2256 = vmul.f32 %v1993, %v2083
  %v2257 = vmul.f32 %v1994, %v2083
  %v2258 = vmul.f32 %v1995, %v2083
  %v2259 = vmul.f32 %v1996, %v2083
  %v2260 = vmul.f32 %v1997, %v2083
  %v2261 = vmul.f32 %v1998, %v2083
  %v2262 = vmul.f32 %v1999, %v2083
  %v2263 = vmul.f32 %v2000, %v2083
  %v2264 = vmul.f32 %v2001, %v2083
  %v2265 = vmul.f32 %v2002, %v2083
  %v2266 = vmul.f32 %v2003, %v2083
  %v2267 = vmul.f32 %v2004, %v2083
  %v2268 = vmul.f32 %v2005, %v2083
  %v2269 = vmul.f32 %v2006, %v2083
  %v2270 = vmul.f32 %v2007, %v2083
  %v2271 = vmul.f32 %v2008, %v2083
  %v2272 = vmul.f32 %v2009, %v2083
  %v2273 = vmul.f32 %v2010, %v2083
  %v2274 = vmul.f32 %v2011, %v2083
  %v2275 = vmul.f32 %v2012, %v2083
  %v2276 = vmul.f32 %v2013, %v2083
  %v2277 = vmul.f32 %v2014, %v2083
  %v2278 = vmul.f32 %v2015, %v2083
  %v2279 = vmul.f32 %v2016, %v2083
  %v2280 = vmul.f32 %v2017, %v2083
  %v2281 = vmul.f32 %v2018, %v2083
  %v2282 = vmul.f32 %v2019, %v2083
  %v2283 = vmul.f32 %v2020, %v2083
  %v2284 = vmul.f32 %v2021, %v2083
  %v2285 = vmul.f32 %v2022, %v2083
  %v2286 = vmul.f32 %v2023, %v2083
  %v2287 = vmul.f32 %v2024, %v2083
  %v2288 = vmul.f32 %v2025, %v2083
  %v2289 = vmul.f32 %v2026, %v2083
  %v2290 = vmul.f32 %v2027, %v2083
  %v2291 = vmul.f32 %v2028, %v2083
  %v2292 = vmul.f32 %v2029, %v2083
  %v2293 = vmul.f32 %v2030, %v2083
  %v2294 = vmul.f32 %v2031, %v2083
  %v2295 = vmul.f32 %v2032, %v2083
  %v2296 = vmul.f32 %v2033, %v2083
  %v2297 = vmul.f32 %v2034, %v2083
  %v2298 = vmul.f32 %v2035, %v2083
  %v2299 = vmul.f32 %v2036, %v2083
  %v2300 = vmul.f32 %v2037, %v2083
  %v2301 = vmul.f32 %v2038, %v2083
  %v2302 = vmul.f32 %v2039, %v2083
  %v2303 = vmul.f32 %v2040, %v2083
  %v2304 = vmul.f32 %v2041, %v2083
  %v2305 = vmul.f32 %v2042, %v2083
  %v2306 = vmul.f32 %v2043, %v2083
  %v2307 = vmul.f32 %v2044, %v2083
  %v2308 = vmul.f32 %v2045, %v2083
  %v2309 = vmul.f32 %v2046, %v2083
  %v2310 = vmul.f32 %v2047, %v2083
  %v2311 = vmul.f32 %v2048, %v2083
  %v2312 = vmul.f32 %v2049, %v2083
  %v2313 = vmul.f32 %v2050, %v2083
  %v2314 = vmul.f32 %v2051, %v2083
  %v2315 = vmul.f32 %v2052, %v2083
  %v2316 = vmul.f32 %v2053, %v2083
  %v2317 = vmul.f32 %v2054, %v2083
  %v2318 = vmul.f32 %v2055, %v2083
  %v2319 = vmul.f32 %v2056, %v2083
  %v2320 = vmul.f32 %v2057, %v2083
  %v2321 = vmul.f32 %v2058, %v2083
  %v2322 = vmul.f32 %v2059, %v2083
  %v2323 = vmul.f32 %v2060, %v2083
  %v2324 = vmul.f32 %v2061, %v2083
  %v2325 = vmul.f32 %v2062, %v2083
  %v2326 = vmul.f32 %v2063, %v2083
  %v2327 = vmul.f32 %v2064, %v2083
  %v2328 = vmul.f32 %v2065, %v2083
  %v2329 = vmul.f32 %v2066, %v2083
  %v2330 = vmul.f32 %v2067, %v2083
  %v2331 = vmul.f32 %v2068, %v2083
  %v2332 = vmul.f32 %v2069, %v2083
  %v2333 = vmul.f32 %v2070, %v2083
  %v2334 = vmul.f32 %v2071, %v2083
  %v2335 = vmul.f32 %v2072, %v2083
  %v2336 = vmul.f32 %v2073, %v2083
  %v2337 = vmul.f32 %v2074, %v2083
  %v2338 = vmul.f32 %v2075, %v2083
  %v2339 = vmul.f32 %v2076, %v2083
  %v2340 = vmul.f32 %v2077, %v2083
  %v2341 = vld [vmem:[%s2] sm:$0x1]
  %v2343 = vlaneseq
  %v2344 = vshrl.u32 %v2343, 7
  %v2345 = vsub.s32 0, %v2344
  %v2346 = vrot.slane %v2341, %v2345
  %v2348 = vadd.f32 %v2085, %v2346
  %v2349 = vadd.f32 %v2086, %v2346
  %v2350 = vadd.f32 %v2087, %v2346
  %v2351 = vadd.f32 %v2088, %v2346
  %v2352 = vadd.f32 %v2089, %v2346
  %v2353 = vadd.f32 %v2090, %v2346
  %v2354 = vadd.f32 %v2091, %v2346
  %v2355 = vadd.f32 %v2092, %v2346
  %v2356 = vadd.f32 %v2093, %v2346
  %v2357 = vadd.f32 %v2094, %v2346
  %v2358 = vadd.f32 %v2095, %v2346
  %v2359 = vadd.f32 %v2096, %v2346
  %v2360 = vadd.f32 %v2097, %v2346
  %v2361 = vadd.f32 %v2098, %v2346
  %v2362 = vadd.f32 %v2099, %v2346
  %v2363 = vadd.f32 %v2100, %v2346
  %v2364 = vadd.f32 %v2101, %v2346
  %v2365 = vadd.f32 %v2102, %v2346
  %v2366 = vadd.f32 %v2103, %v2346
  %v2367 = vadd.f32 %v2104, %v2346
  %v2368 = vadd.f32 %v2105, %v2346
  %v2369 = vadd.f32 %v2106, %v2346
  %v2370 = vadd.f32 %v2107, %v2346
  %v2371 = vadd.f32 %v2108, %v2346
  %v2372 = vadd.f32 %v2109, %v2346
  %v2373 = vadd.f32 %v2110, %v2346
  %v2374 = vadd.f32 %v2111, %v2346
  %v2375 = vadd.f32 %v2112, %v2346
  %v2376 = vadd.f32 %v2113, %v2346
  %v2377 = vadd.f32 %v2114, %v2346
  %v2378 = vadd.f32 %v2115, %v2346
  %v2379 = vadd.f32 %v2116, %v2346
  %v2380 = vadd.f32 %v2117, %v2346
  %v2381 = vadd.f32 %v2118, %v2346
  %v2382 = vadd.f32 %v2119, %v2346
  %v2383 = vadd.f32 %v2120, %v2346
  %v2384 = vadd.f32 %v2121, %v2346
  %v2385 = vadd.f32 %v2122, %v2346
  %v2386 = vadd.f32 %v2123, %v2346
  %v2387 = vadd.f32 %v2124, %v2346
  %v2388 = vadd.f32 %v2125, %v2346
  %v2389 = vadd.f32 %v2126, %v2346
  %v2390 = vadd.f32 %v2127, %v2346
  %v2391 = vadd.f32 %v2128, %v2346
  %v2392 = vadd.f32 %v2129, %v2346
  %v2393 = vadd.f32 %v2130, %v2346
  %v2394 = vadd.f32 %v2131, %v2346
  %v2395 = vadd.f32 %v2132, %v2346
  %v2396 = vadd.f32 %v2133, %v2346
  %v2397 = vadd.f32 %v2134, %v2346
  %v2398 = vadd.f32 %v2135, %v2346
  %v2399 = vadd.f32 %v2136, %v2346
  %v2400 = vadd.f32 %v2137, %v2346
  %v2401 = vadd.f32 %v2138, %v2346
  %v2402 = vadd.f32 %v2139, %v2346
  %v2403 = vadd.f32 %v2140, %v2346
  %v2404 = vadd.f32 %v2141, %v2346
  %v2405 = vadd.f32 %v2142, %v2346
  %v2406 = vadd.f32 %v2143, %v2346
  %v2407 = vadd.f32 %v2144, %v2346
  %v2408 = vadd.f32 %v2145, %v2346
  %v2409 = vadd.f32 %v2146, %v2346
  %v2410 = vadd.f32 %v2147, %v2346
  %v2411 = vadd.f32 %v2148, %v2346
  %v2412 = vadd.f32 %v2149, %v2346
  %v2413 = vadd.f32 %v2150, %v2346
  %v2414 = vadd.f32 %v2151, %v2346
  %v2415 = vadd.f32 %v2152, %v2346
  %v2416 = vadd.f32 %v2153, %v2346
  %v2417 = vadd.f32 %v2154, %v2346
  %v2418 = vadd.f32 %v2155, %v2346
  %v2419 = vadd.f32 %v2156, %v2346
  %v2420 = vadd.f32 %v2157, %v2346
  %v2421 = vadd.f32 %v2158, %v2346
  %v2422 = vadd.f32 %v2159, %v2346
  %v2423 = vadd.f32 %v2160, %v2346
  %v2424 = vadd.f32 %v2161, %v2346
  %v2425 = vadd.f32 %v2162, %v2346
  %v2426 = vadd.f32 %v2163, %v2346
  %v2427 = vadd.f32 %v2164, %v2346
  %v2428 = vadd.f32 %v2165, %v2346
  %v2429 = vadd.f32 %v2166, %v2346
  %v2430 = vadd.f32 %v2167, %v2346
  %v2431 = vadd.f32 %v2168, %v2346
  %v2432 = vadd.f32 %v2169, %v2346
  %v2433 = vadd.f32 %v2170, %v2346
  %v2434 = vadd.f32 %v2171, %v2346
  %v2435 = vadd.f32 %v2172, %v2346
  %v2436 = vadd.f32 %v2173, %v2346
  %v2437 = vadd.f32 %v2174, %v2346
  %v2438 = vadd.f32 %v2175, %v2346
  %v2439 = vadd.f32 %v2176, %v2346
  %v2440 = vadd.f32 %v2177, %v2346
  %v2441 = vadd.f32 %v2178, %v2346
  %v2442 = vadd.f32 %v2179, %v2346
  %v2443 = vadd.f32 %v2180, %v2346
  %v2444 = vadd.f32 %v2181, %v2346
  %v2445 = vadd.f32 %v2182, %v2346
  %v2446 = vadd.f32 %v2183, %v2346
  %v2447 = vadd.f32 %v2184, %v2346
  %v2448 = vadd.f32 %v2185, %v2346
  %v2449 = vadd.f32 %v2186, %v2346
  %v2450 = vadd.f32 %v2187, %v2346
  %v2451 = vadd.f32 %v2188, %v2346
  %v2452 = vadd.f32 %v2189, %v2346
  %v2453 = vadd.f32 %v2190, %v2346
  %v2454 = vadd.f32 %v2191, %v2346
  %v2455 = vadd.f32 %v2192, %v2346
  %v2456 = vadd.f32 %v2193, %v2346
  %v2457 = vadd.f32 %v2194, %v2346
  %v2458 = vadd.f32 %v2195, %v2346
  %v2459 = vadd.f32 %v2196, %v2346
  %v2460 = vadd.f32 %v2197, %v2346
  %v2461 = vadd.f32 %v2198, %v2346
  %v2462 = vadd.f32 %v2199, %v2346
  %v2463 = vadd.f32 %v2200, %v2346
  %v2464 = vadd.f32 %v2201, %v2346
  %v2465 = vadd.f32 %v2202, %v2346
  %v2466 = vadd.f32 %v2203, %v2346
  %v2467 = vadd.f32 %v2204, %v2346
  %v2468 = vadd.f32 %v2205, %v2346
  %v2469 = vadd.f32 %v2206, %v2346
  %v2470 = vadd.f32 %v2207, %v2346
  %v2471 = vadd.f32 %v2208, %v2346
  %v2472 = vadd.f32 %v2209, %v2346
  %v2473 = vadd.f32 %v2210, %v2346
  %v2474 = vadd.f32 %v2211, %v2346
  %v2475 = vadd.f32 %v2212, %v2346
  %v2476 = vadd.f32 %v2213, %v2346
  %v2477 = vadd.f32 %v2214, %v2346
  %v2478 = vadd.f32 %v2215, %v2346
  %v2479 = vadd.f32 %v2216, %v2346
  %v2480 = vadd.f32 %v2217, %v2346
  %v2481 = vadd.f32 %v2218, %v2346
  %v2482 = vadd.f32 %v2219, %v2346
  %v2483 = vadd.f32 %v2220, %v2346
  %v2484 = vadd.f32 %v2221, %v2346
  %v2485 = vadd.f32 %v2222, %v2346
  %v2486 = vadd.f32 %v2223, %v2346
  %v2487 = vadd.f32 %v2224, %v2346
  %v2488 = vadd.f32 %v2225, %v2346
  %v2489 = vadd.f32 %v2226, %v2346
  %v2490 = vadd.f32 %v2227, %v2346
  %v2491 = vadd.f32 %v2228, %v2346
  %v2492 = vadd.f32 %v2229, %v2346
  %v2493 = vadd.f32 %v2230, %v2346
  %v2494 = vadd.f32 %v2231, %v2346
  %v2495 = vadd.f32 %v2232, %v2346
  %v2496 = vadd.f32 %v2233, %v2346
  %v2497 = vadd.f32 %v2234, %v2346
  %v2498 = vadd.f32 %v2235, %v2346
  %v2499 = vadd.f32 %v2236, %v2346
  %v2500 = vadd.f32 %v2237, %v2346
  %v2501 = vadd.f32 %v2238, %v2346
  %v2502 = vadd.f32 %v2239, %v2346
  %v2503 = vadd.f32 %v2240, %v2346
  %v2504 = vadd.f32 %v2241, %v2346
  %v2505 = vadd.f32 %v2242, %v2346
  %v2506 = vadd.f32 %v2243, %v2346
  %v2507 = vadd.f32 %v2244, %v2346
  %v2508 = vadd.f32 %v2245, %v2346
  %v2509 = vadd.f32 %v2246, %v2346
  %v2510 = vadd.f32 %v2247, %v2346
  %v2511 = vadd.f32 %v2248, %v2346
  %v2512 = vadd.f32 %v2249, %v2346
  %v2513 = vadd.f32 %v2250, %v2346
  %v2514 = vadd.f32 %v2251, %v2346
  %v2515 = vadd.f32 %v2252, %v2346
  %v2516 = vadd.f32 %v2253, %v2346
  %v2517 = vadd.f32 %v2254, %v2346
  %v2518 = vadd.f32 %v2255, %v2346
  %v2519 = vadd.f32 %v2256, %v2346
  %v2520 = vadd.f32 %v2257, %v2346
  %v2521 = vadd.f32 %v2258, %v2346
  %v2522 = vadd.f32 %v2259, %v2346
  %v2523 = vadd.f32 %v2260, %v2346
  %v2524 = vadd.f32 %v2261, %v2346
  %v2525 = vadd.f32 %v2262, %v2346
  %v2526 = vadd.f32 %v2263, %v2346
  %v2527 = vadd.f32 %v2264, %v2346
  %v2528 = vadd.f32 %v2265, %v2346
  %v2529 = vadd.f32 %v2266, %v2346
  %v2530 = vadd.f32 %v2267, %v2346
  %v2531 = vadd.f32 %v2268, %v2346
  %v2532 = vadd.f32 %v2269, %v2346
  %v2533 = vadd.f32 %v2270, %v2346
  %v2534 = vadd.f32 %v2271, %v2346
  %v2535 = vadd.f32 %v2272, %v2346
  %v2536 = vadd.f32 %v2273, %v2346
  %v2537 = vadd.f32 %v2274, %v2346
  %v2538 = vadd.f32 %v2275, %v2346
  %v2539 = vadd.f32 %v2276, %v2346
  %v2540 = vadd.f32 %v2277, %v2346
  %v2541 = vadd.f32 %v2278, %v2346
  %v2542 = vadd.f32 %v2279, %v2346
  %v2543 = vadd.f32 %v2280, %v2346
  %v2544 = vadd.f32 %v2281, %v2346
  %v2545 = vadd.f32 %v2282, %v2346
  %v2546 = vadd.f32 %v2283, %v2346
  %v2547 = vadd.f32 %v2284, %v2346
  %v2548 = vadd.f32 %v2285, %v2346
  %v2549 = vadd.f32 %v2286, %v2346
  %v2550 = vadd.f32 %v2287, %v2346
  %v2551 = vadd.f32 %v2288, %v2346
  %v2552 = vadd.f32 %v2289, %v2346
  %v2553 = vadd.f32 %v2290, %v2346
  %v2554 = vadd.f32 %v2291, %v2346
  %v2555 = vadd.f32 %v2292, %v2346
  %v2556 = vadd.f32 %v2293, %v2346
  %v2557 = vadd.f32 %v2294, %v2346
  %v2558 = vadd.f32 %v2295, %v2346
  %v2559 = vadd.f32 %v2296, %v2346
  %v2560 = vadd.f32 %v2297, %v2346
  %v2561 = vadd.f32 %v2298, %v2346
  %v2562 = vadd.f32 %v2299, %v2346
  %v2563 = vadd.f32 %v2300, %v2346
  %v2564 = vadd.f32 %v2301, %v2346
  %v2565 = vadd.f32 %v2302, %v2346
  %v2566 = vadd.f32 %v2303, %v2346
  %v2567 = vadd.f32 %v2304, %v2346
  %v2568 = vadd.f32 %v2305, %v2346
  %v2569 = vadd.f32 %v2306, %v2346
  %v2570 = vadd.f32 %v2307, %v2346
  %v2571 = vadd.f32 %v2308, %v2346
  %v2572 = vadd.f32 %v2309, %v2346
  %v2573 = vadd.f32 %v2310, %v2346
  %v2574 = vadd.f32 %v2311, %v2346
  %v2575 = vadd.f32 %v2312, %v2346
  %v2576 = vadd.f32 %v2313, %v2346
  %v2577 = vadd.f32 %v2314, %v2346
  %v2578 = vadd.f32 %v2315, %v2346
  %v2579 = vadd.f32 %v2316, %v2346
  %v2580 = vadd.f32 %v2317, %v2346
  %v2581 = vadd.f32 %v2318, %v2346
  %v2582 = vadd.f32 %v2319, %v2346
  %v2583 = vadd.f32 %v2320, %v2346
  %v2584 = vadd.f32 %v2321, %v2346
  %v2585 = vadd.f32 %v2322, %v2346
  %v2586 = vadd.f32 %v2323, %v2346
  %v2587 = vadd.f32 %v2324, %v2346
  %v2588 = vadd.f32 %v2325, %v2346
  %v2589 = vadd.f32 %v2326, %v2346
  %v2590 = vadd.f32 %v2327, %v2346
  %v2591 = vadd.f32 %v2328, %v2346
  %v2592 = vadd.f32 %v2329, %v2346
  %v2593 = vadd.f32 %v2330, %v2346
  %v2594 = vadd.f32 %v2331, %v2346
  %v2595 = vadd.f32 %v2332, %v2346
  %v2596 = vadd.f32 %v2333, %v2346
  %v2597 = vadd.f32 %v2334, %v2346
  %v2598 = vadd.f32 %v2335, %v2346
  %v2599 = vadd.f32 %v2336, %v2346
  %v2600 = vadd.f32 %v2337, %v2346
  %v2601 = vadd.f32 %v2338, %v2346
  %v2602 = vadd.f32 %v2339, %v2346
  %v2603 = vadd.f32 %v2340, %v2346
  %v2604 = vmax.f32 %v2348, 0.0
  %v2605 = vmax.f32 %v2349, 0.0
  %v2606 = vmax.f32 %v2350, 0.0
  %v2607 = vmax.f32 %v2351, 0.0
  %v2608 = vmax.f32 %v2352, 0.0
  %v2609 = vmax.f32 %v2353, 0.0
  %v2610 = vmax.f32 %v2354, 0.0
  %v2611 = vmax.f32 %v2355, 0.0
  %v2612 = vmax.f32 %v2356, 0.0
  %v2613 = vmax.f32 %v2357, 0.0
  %v2614 = vmax.f32 %v2358, 0.0
  %v2615 = vmax.f32 %v2359, 0.0
  %v2616 = vmax.f32 %v2360, 0.0
  %v2617 = vmax.f32 %v2361, 0.0
  %v2618 = vmax.f32 %v2362, 0.0
  %v2619 = vmax.f32 %v2363, 0.0
  %v2620 = vmax.f32 %v2364, 0.0
  %v2621 = vmax.f32 %v2365, 0.0
  %v2622 = vmax.f32 %v2366, 0.0
  %v2623 = vmax.f32 %v2367, 0.0
  %v2624 = vmax.f32 %v2368, 0.0
  %v2625 = vmax.f32 %v2369, 0.0
  %v2626 = vmax.f32 %v2370, 0.0
  %v2627 = vmax.f32 %v2371, 0.0
  %v2628 = vmax.f32 %v2372, 0.0
  %v2629 = vmax.f32 %v2373, 0.0
  %v2630 = vmax.f32 %v2374, 0.0
  %v2631 = vmax.f32 %v2375, 0.0
  %v2632 = vmax.f32 %v2376, 0.0
  %v2633 = vmax.f32 %v2377, 0.0
  %v2634 = vmax.f32 %v2378, 0.0
  %v2635 = vmax.f32 %v2379, 0.0
  %v2636 = vmax.f32 %v2380, 0.0
  %v2637 = vmax.f32 %v2381, 0.0
  %v2638 = vmax.f32 %v2382, 0.0
  %v2639 = vmax.f32 %v2383, 0.0
  %v2640 = vmax.f32 %v2384, 0.0
  %v2641 = vmax.f32 %v2385, 0.0
  %v2642 = vmax.f32 %v2386, 0.0
  %v2643 = vmax.f32 %v2387, 0.0
  %v2644 = vmax.f32 %v2388, 0.0
  %v2645 = vmax.f32 %v2389, 0.0
  %v2646 = vmax.f32 %v2390, 0.0
  %v2647 = vmax.f32 %v2391, 0.0
  %v2648 = vmax.f32 %v2392, 0.0
  %v2649 = vmax.f32 %v2393, 0.0
  %v2650 = vmax.f32 %v2394, 0.0
  %v2651 = vmax.f32 %v2395, 0.0
  %v2652 = vmax.f32 %v2396, 0.0
  %v2653 = vmax.f32 %v2397, 0.0
  %v2654 = vmax.f32 %v2398, 0.0
  %v2655 = vmax.f32 %v2399, 0.0
  %v2656 = vmax.f32 %v2400, 0.0
  %v2657 = vmax.f32 %v2401, 0.0
  %v2658 = vmax.f32 %v2402, 0.0
  %v2659 = vmax.f32 %v2403, 0.0
  %v2660 = vmax.f32 %v2404, 0.0
  %v2661 = vmax.f32 %v2405, 0.0
  %v2662 = vmax.f32 %v2406, 0.0
  %v2663 = vmax.f32 %v2407, 0.0
  %v2664 = vmax.f32 %v2408, 0.0
  %v2665 = vmax.f32 %v2409, 0.0
  %v2666 = vmax.f32 %v2410, 0.0
  %v2667 = vmax.f32 %v2411, 0.0
  %v2668 = vmax.f32 %v2412, 0.0
  %v2669 = vmax.f32 %v2413, 0.0
  %v2670 = vmax.f32 %v2414, 0.0
  %v2671 = vmax.f32 %v2415, 0.0
  %v2672 = vmax.f32 %v2416, 0.0
  %v2673 = vmax.f32 %v2417, 0.0
  %v2674 = vmax.f32 %v2418, 0.0
  %v2675 = vmax.f32 %v2419, 0.0
  %v2676 = vmax.f32 %v2420, 0.0
  %v2677 = vmax.f32 %v2421, 0.0
  %v2678 = vmax.f32 %v2422, 0.0
  %v2679 = vmax.f32 %v2423, 0.0
  %v2680 = vmax.f32 %v2424, 0.0
  %v2681 = vmax.f32 %v2425, 0.0
  %v2682 = vmax.f32 %v2426, 0.0
  %v2683 = vmax.f32 %v2427, 0.0
  %v2684 = vmax.f32 %v2428, 0.0
  %v2685 = vmax.f32 %v2429, 0.0
  %v2686 = vmax.f32 %v2430, 0.0
  %v2687 = vmax.f32 %v2431, 0.0
  %v2688 = vmax.f32 %v2432, 0.0
  %v2689 = vmax.f32 %v2433, 0.0
  %v2690 = vmax.f32 %v2434, 0.0
  %v2691 = vmax.f32 %v2435, 0.0
  %v2692 = vmax.f32 %v2436, 0.0
  %v2693 = vmax.f32 %v2437, 0.0
  %v2694 = vmax.f32 %v2438, 0.0
  %v2695 = vmax.f32 %v2439, 0.0
  %v2696 = vmax.f32 %v2440, 0.0
  %v2697 = vmax.f32 %v2441, 0.0
  %v2698 = vmax.f32 %v2442, 0.0
  %v2699 = vmax.f32 %v2443, 0.0
  %v2700 = vmax.f32 %v2444, 0.0
  %v2701 = vmax.f32 %v2445, 0.0
  %v2702 = vmax.f32 %v2446, 0.0
  %v2703 = vmax.f32 %v2447, 0.0
  %v2704 = vmax.f32 %v2448, 0.0
  %v2705 = vmax.f32 %v2449, 0.0
  %v2706 = vmax.f32 %v2450, 0.0
  %v2707 = vmax.f32 %v2451, 0.0
  %v2708 = vmax.f32 %v2452, 0.0
  %v2709 = vmax.f32 %v2453, 0.0
  %v2710 = vmax.f32 %v2454, 0.0
  %v2711 = vmax.f32 %v2455, 0.0
  %v2712 = vmax.f32 %v2456, 0.0
  %v2713 = vmax.f32 %v2457, 0.0
  %v2714 = vmax.f32 %v2458, 0.0
  %v2715 = vmax.f32 %v2459, 0.0
  %v2716 = vmax.f32 %v2460, 0.0
  %v2717 = vmax.f32 %v2461, 0.0
  %v2718 = vmax.f32 %v2462, 0.0
  %v2719 = vmax.f32 %v2463, 0.0
  %v2720 = vmax.f32 %v2464, 0.0
  %v2721 = vmax.f32 %v2465, 0.0
  %v2722 = vmax.f32 %v2466, 0.0
  %v2723 = vmax.f32 %v2467, 0.0
  %v2724 = vmax.f32 %v2468, 0.0
  %v2725 = vmax.f32 %v2469, 0.0
  %v2726 = vmax.f32 %v2470, 0.0
  %v2727 = vmax.f32 %v2471, 0.0
  %v2728 = vmax.f32 %v2472, 0.0
  %v2729 = vmax.f32 %v2473, 0.0
  %v2730 = vmax.f32 %v2474, 0.0
  %v2731 = vmax.f32 %v2475, 0.0
  %v2732 = vmax.f32 %v2476, 0.0
  %v2733 = vmax.f32 %v2477, 0.0
  %v2734 = vmax.f32 %v2478, 0.0
  %v2735 = vmax.f32 %v2479, 0.0
  %v2736 = vmax.f32 %v2480, 0.0
  %v2737 = vmax.f32 %v2481, 0.0
  %v2738 = vmax.f32 %v2482, 0.0
  %v2739 = vmax.f32 %v2483, 0.0
  %v2740 = vmax.f32 %v2484, 0.0
  %v2741 = vmax.f32 %v2485, 0.0
  %v2742 = vmax.f32 %v2486, 0.0
  %v2743 = vmax.f32 %v2487, 0.0
  %v2744 = vmax.f32 %v2488, 0.0
  %v2745 = vmax.f32 %v2489, 0.0
  %v2746 = vmax.f32 %v2490, 0.0
  %v2747 = vmax.f32 %v2491, 0.0
  %v2748 = vmax.f32 %v2492, 0.0
  %v2749 = vmax.f32 %v2493, 0.0
  %v2750 = vmax.f32 %v2494, 0.0
  %v2751 = vmax.f32 %v2495, 0.0
  %v2752 = vmax.f32 %v2496, 0.0
  %v2753 = vmax.f32 %v2497, 0.0
  %v2754 = vmax.f32 %v2498, 0.0
  %v2755 = vmax.f32 %v2499, 0.0
  %v2756 = vmax.f32 %v2500, 0.0
  %v2757 = vmax.f32 %v2501, 0.0
  %v2758 = vmax.f32 %v2502, 0.0
  %v2759 = vmax.f32 %v2503, 0.0
  %v2760 = vmax.f32 %v2504, 0.0
  %v2761 = vmax.f32 %v2505, 0.0
  %v2762 = vmax.f32 %v2506, 0.0
  %v2763 = vmax.f32 %v2507, 0.0
  %v2764 = vmax.f32 %v2508, 0.0
  %v2765 = vmax.f32 %v2509, 0.0
  %v2766 = vmax.f32 %v2510, 0.0
  %v2767 = vmax.f32 %v2511, 0.0
  %v2768 = vmax.f32 %v2512, 0.0
  %v2769 = vmax.f32 %v2513, 0.0
  %v2770 = vmax.f32 %v2514, 0.0
  %v2771 = vmax.f32 %v2515, 0.0
  %v2772 = vmax.f32 %v2516, 0.0
  %v2773 = vmax.f32 %v2517, 0.0
  %v2774 = vmax.f32 %v2518, 0.0
  %v2775 = vmax.f32 %v2519, 0.0
  %v2776 = vmax.f32 %v2520, 0.0
  %v2777 = vmax.f32 %v2521, 0.0
  %v2778 = vmax.f32 %v2522, 0.0
  %v2779 = vmax.f32 %v2523, 0.0
  %v2780 = vmax.f32 %v2524, 0.0
  %v2781 = vmax.f32 %v2525, 0.0
  %v2782 = vmax.f32 %v2526, 0.0
  %v2783 = vmax.f32 %v2527, 0.0
  %v2784 = vmax.f32 %v2528, 0.0
  %v2785 = vmax.f32 %v2529, 0.0
  %v2786 = vmax.f32 %v2530, 0.0
  %v2787 = vmax.f32 %v2531, 0.0
  %v2788 = vmax.f32 %v2532, 0.0
  %v2789 = vmax.f32 %v2533, 0.0
  %v2790 = vmax.f32 %v2534, 0.0
  %v2791 = vmax.f32 %v2535, 0.0
  %v2792 = vmax.f32 %v2536, 0.0
  %v2793 = vmax.f32 %v2537, 0.0
  %v2794 = vmax.f32 %v2538, 0.0
  %v2795 = vmax.f32 %v2539, 0.0
  %v2796 = vmax.f32 %v2540, 0.0
  %v2797 = vmax.f32 %v2541, 0.0
  %v2798 = vmax.f32 %v2542, 0.0
  %v2799 = vmax.f32 %v2543, 0.0
  %v2800 = vmax.f32 %v2544, 0.0
  %v2801 = vmax.f32 %v2545, 0.0
  %v2802 = vmax.f32 %v2546, 0.0
  %v2803 = vmax.f32 %v2547, 0.0
  %v2804 = vmax.f32 %v2548, 0.0
  %v2805 = vmax.f32 %v2549, 0.0
  %v2806 = vmax.f32 %v2550, 0.0
  %v2807 = vmax.f32 %v2551, 0.0
  %v2808 = vmax.f32 %v2552, 0.0
  %v2809 = vmax.f32 %v2553, 0.0
  %v2810 = vmax.f32 %v2554, 0.0
  %v2811 = vmax.f32 %v2555, 0.0
  %v2812 = vmax.f32 %v2556, 0.0
  %v2813 = vmax.f32 %v2557, 0.0
  %v2814 = vmax.f32 %v2558, 0.0
  %v2815 = vmax.f32 %v2559, 0.0
  %v2816 = vmax.f32 %v2560, 0.0
  %v2817 = vmax.f32 %v2561, 0.0
  %v2818 = vmax.f32 %v2562, 0.0
  %v2819 = vmax.f32 %v2563, 0.0
  %v2820 = vmax.f32 %v2564, 0.0
  %v2821 = vmax.f32 %v2565, 0.0
  %v2822 = vmax.f32 %v2566, 0.0
  %v2823 = vmax.f32 %v2567, 0.0
  %v2824 = vmax.f32 %v2568, 0.0
  %v2825 = vmax.f32 %v2569, 0.0
  %v2826 = vmax.f32 %v2570, 0.0
  %v2827 = vmax.f32 %v2571, 0.0
  %v2828 = vmax.f32 %v2572, 0.0
  %v2829 = vmax.f32 %v2573, 0.0
  %v2830 = vmax.f32 %v2574, 0.0
  %v2831 = vmax.f32 %v2575, 0.0
  %v2832 = vmax.f32 %v2576, 0.0
  %v2833 = vmax.f32 %v2577, 0.0
  %v2834 = vmax.f32 %v2578, 0.0
  %v2835 = vmax.f32 %v2579, 0.0
  %v2836 = vmax.f32 %v2580, 0.0
  %v2837 = vmax.f32 %v2581, 0.0
  %v2838 = vmax.f32 %v2582, 0.0
  %v2839 = vmax.f32 %v2583, 0.0
  %v2840 = vmax.f32 %v2584, 0.0
  %v2841 = vmax.f32 %v2585, 0.0
  %v2842 = vmax.f32 %v2586, 0.0
  %v2843 = vmax.f32 %v2587, 0.0
  %v2844 = vmax.f32 %v2588, 0.0
  %v2845 = vmax.f32 %v2589, 0.0
  %v2846 = vmax.f32 %v2590, 0.0
  %v2847 = vmax.f32 %v2591, 0.0
  %v2848 = vmax.f32 %v2592, 0.0
  %v2849 = vmax.f32 %v2593, 0.0
  %v2850 = vmax.f32 %v2594, 0.0
  %v2851 = vmax.f32 %v2595, 0.0
  %v2852 = vmax.f32 %v2596, 0.0
  %v2853 = vmax.f32 %v2597, 0.0
  %v2854 = vmax.f32 %v2598, 0.0
  %v2855 = vmax.f32 %v2599, 0.0
  %v2856 = vmax.f32 %v2600, 0.0
  %v2857 = vmax.f32 %v2601, 0.0
  %v2858 = vmax.f32 %v2602, 0.0
  %v2859 = vmax.f32 %v2603, 0.0
  %2860 = vst.msk [vmem:[%s3] sm:$0xff] %vm270, %v2604
  %2861 = vst.msk [vmem:[%s3 + $0x8] sm:$0xff] %vm270, %v2605
  %2862 = vst.msk [vmem:[%s3 + $0x10] sm:$0xff] %vm270, %v2606
  %2863 = vst.msk [vmem:[%s3 + $0x18] sm:$0xff] %vm270, %v2607
  %2864 = vst.msk [vmem:[%s3 + $0x20] sm:$0xff] %vm270, %v2608
  %2865 = vst.msk [vmem:[%s3 + $0x28] sm:$0xff] %vm270, %v2609
  %2866 = vst.msk [vmem:[%s3 + $0x30] sm:$0xff] %vm270, %v2610
  %2867 = vst.msk [vmem:[%s3 + $0x38] sm:$0xff] %vm270, %v2611
  %2868 = vst.msk [vmem:[%s3 + $0x40] sm:$0xff] %vm270, %v2612
  %2869 = vst.msk [vmem:[%s3 + $0x48] sm:$0xff] %vm270, %v2613
  %2870 = vst.msk [vmem:[%s3 + $0x50] sm:$0xff] %vm270, %v2614
  %2871 = vst.msk [vmem:[%s3 + $0x58] sm:$0xff] %vm270, %v2615
  %2872 = vst.msk [vmem:[%s3 + $0x60] sm:$0xff] %vm270, %v2616
  %2873 = vst.msk [vmem:[%s3 + $0x68] sm:$0xff] %vm270, %v2617
  %2874 = vst.msk [vmem:[%s3 + $0x70] sm:$0xff] %vm270, %v2618
  %2875 = vst.msk [vmem:[%s3 + $0x78] sm:$0xff] %vm270, %v2619
  %2876 = vst.msk [vmem:[%s3 + $0x80] sm:$0xff] %vm270, %v2620
  %2877 = vst.msk [vmem:[%s3 + $0x88] sm:$0xff] %vm270, %v2621
  %2878 = vst.msk [vmem:[%s3 + $0x90] sm:$0xff] %vm270, %v2622
  %2879 = vst.msk [vmem:[%s3 + $0x98] sm:$0xff] %vm270, %v2623
  %2880 = vst.msk [vmem:[%s3 + $0xa0] sm:$0xff] %vm270, %v2624
  %2881 = vst.msk [vmem:[%s3 + $0xa8] sm:$0xff] %vm270, %v2625
  %2882 = vst.msk [vmem:[%s3 + $0xb0] sm:$0xff] %vm270, %v2626
  %2883 = vst.msk [vmem:[%s3 + $0xb8] sm:$0xff] %vm270, %v2627
  %2884 = vst.msk [vmem:[%s3 + $0xc0] sm:$0xff] %vm270, %v2628
  %2885 = vst.msk [vmem:[%s3 + $0xc8] sm:$0xff] %vm270, %v2629
  %2886 = vst.msk [vmem:[%s3 + $0xd0] sm:$0xff] %vm270, %v2630
  %2887 = vst.msk [vmem:[%s3 + $0xd8] sm:$0xff] %vm270, %v2631
  %2888 = vst.msk [vmem:[%s3 + $0xe0] sm:$0xff] %vm270, %v2632
  %2889 = vst.msk [vmem:[%s3 + $0xe8] sm:$0xff] %vm270, %v2633
  %2890 = vst.msk [vmem:[%s3 + $0xf0] sm:$0xff] %vm270, %v2634
  %2891 = vst.msk [vmem:[%s3 + $0xf8] sm:$0xff] %vm270, %v2635
  %2892 = vst.msk [vmem:[%s3 + $0x100] sm:$0xff] %vm270, %v2636
  %2893 = vst.msk [vmem:[%s3 + $0x108] sm:$0xff] %vm270, %v2637
  %2894 = vst.msk [vmem:[%s3 + $0x110] sm:$0xff] %vm270, %v2638
  %2895 = vst.msk [vmem:[%s3 + $0x118] sm:$0xff] %vm270, %v2639
  %2896 = vst.msk [vmem:[%s3 + $0x120] sm:$0xff] %vm270, %v2640
  %2897 = vst.msk [vmem:[%s3 + $0x128] sm:$0xff] %vm270, %v2641
  %2898 = vst.msk [vmem:[%s3 + $0x130] sm:$0xff] %vm270, %v2642
  %2899 = vst.msk [vmem:[%s3 + $0x138] sm:$0xff] %vm270, %v2643
  %2900 = vst.msk [vmem:[%s3 + $0x140] sm:$0xff] %vm270, %v2644
  %2901 = vst.msk [vmem:[%s3 + $0x148] sm:$0xff] %vm270, %v2645
  %2902 = vst.msk [vmem:[%s3 + $0x150] sm:$0xff] %vm270, %v2646
  %2903 = vst.msk [vmem:[%s3 + $0x158] sm:$0xff] %vm270, %v2647
  %2904 = vst.msk [vmem:[%s3 + $0x160] sm:$0xff] %vm270, %v2648
  %2905 = vst.msk [vmem:[%s3 + $0x168] sm:$0xff] %vm270, %v2649
  %2906 = vst.msk [vmem:[%s3 + $0x170] sm:$0xff] %vm270, %v2650
  %2907 = vst.msk [vmem:[%s3 + $0x178] sm:$0xff] %vm270, %v2651
  %2908 = vst.msk [vmem:[%s3 + $0x180] sm:$0xff] %vm270, %v2652
  %2909 = vst.msk [vmem:[%s3 + $0x188] sm:$0xff] %vm270, %v2653
  %2910 = vst.msk [vmem:[%s3 + $0x190] sm:$0xff] %vm270, %v2654
  %2911 = vst.msk [vmem:[%s3 + $0x198] sm:$0xff] %vm270, %v2655
  %2912 = vst.msk [vmem:[%s3 + $0x1a0] sm:$0xff] %vm270, %v2656
  %2913 = vst.msk [vmem:[%s3 + $0x1a8] sm:$0xff] %vm270, %v2657
  %2914 = vst.msk [vmem:[%s3 + $0x1b0] sm:$0xff] %vm270, %v2658
  %2915 = vst.msk [vmem:[%s3 + $0x1b8] sm:$0xff] %vm270, %v2659
  %2916 = vst.msk [vmem:[%s3 + $0x1c0] sm:$0xff] %vm270, %v2660
  %2917 = vst.msk [vmem:[%s3 + $0x1c8] sm:$0xff] %vm270, %v2661
  %2918 = vst.msk [vmem:[%s3 + $0x1d0] sm:$0xff] %vm270, %v2662
  %2919 = vst.msk [vmem:[%s3 + $0x1d8] sm:$0xff] %vm270, %v2663
  %2920 = vst.msk [vmem:[%s3 + $0x1e0] sm:$0xff] %vm270, %v2664
  %2921 = vst.msk [vmem:[%s3 + $0x1e8] sm:$0xff] %vm270, %v2665
  %2922 = vst.msk [vmem:[%s3 + $0x1f0] sm:$0xff] %vm270, %v2666
  %2923 = vst.msk [vmem:[%s3 + $0x1f8] sm:$0xff] %vm270, %v2667
  %2924 = vst.msk [vmem:[%s3 + $0x200] sm:$0xff] %vm270, %v2668
  %2925 = vst.msk [vmem:[%s3 + $0x208] sm:$0xff] %vm270, %v2669
  %2926 = vst.msk [vmem:[%s3 + $0x210] sm:$0xff] %vm270, %v2670
  %2927 = vst.msk [vmem:[%s3 + $0x218] sm:$0xff] %vm270, %v2671
  %2928 = vst.msk [vmem:[%s3 + $0x220] sm:$0xff] %vm270, %v2672
  %2929 = vst.msk [vmem:[%s3 + $0x228] sm:$0xff] %vm270, %v2673
  %2930 = vst.msk [vmem:[%s3 + $0x230] sm:$0xff] %vm270, %v2674
  %2931 = vst.msk [vmem:[%s3 + $0x238] sm:$0xff] %vm270, %v2675
  %2932 = vst.msk [vmem:[%s3 + $0x240] sm:$0xff] %vm270, %v2676
  %2933 = vst.msk [vmem:[%s3 + $0x248] sm:$0xff] %vm270, %v2677
  %2934 = vst.msk [vmem:[%s3 + $0x250] sm:$0xff] %vm270, %v2678
  %2935 = vst.msk [vmem:[%s3 + $0x258] sm:$0xff] %vm270, %v2679
  %2936 = vst.msk [vmem:[%s3 + $0x260] sm:$0xff] %vm270, %v2680
  %2937 = vst.msk [vmem:[%s3 + $0x268] sm:$0xff] %vm270, %v2681
  %2938 = vst.msk [vmem:[%s3 + $0x270] sm:$0xff] %vm270, %v2682
  %2939 = vst.msk [vmem:[%s3 + $0x278] sm:$0xff] %vm270, %v2683
  %2940 = vst.msk [vmem:[%s3 + $0x280] sm:$0xff] %vm270, %v2684
  %2941 = vst.msk [vmem:[%s3 + $0x288] sm:$0xff] %vm270, %v2685
  %2942 = vst.msk [vmem:[%s3 + $0x290] sm:$0xff] %vm270, %v2686
  %2943 = vst.msk [vmem:[%s3 + $0x298] sm:$0xff] %vm270, %v2687
  %2944 = vst.msk [vmem:[%s3 + $0x2a0] sm:$0xff] %vm270, %v2688
  %2945 = vst.msk [vmem:[%s3 + $0x2a8] sm:$0xff] %vm270, %v2689
  %2946 = vst.msk [vmem:[%s3 + $0x2b0] sm:$0xff] %vm270, %v2690
  %2947 = vst.msk [vmem:[%s3 + $0x2b8] sm:$0xff] %vm270, %v2691
  %2948 = vst.msk [vmem:[%s3 + $0x2c0] sm:$0xff] %vm270, %v2692
  %2949 = vst.msk [vmem:[%s3 + $0x2c8] sm:$0xff] %vm270, %v2693
  %2950 = vst.msk [vmem:[%s3 + $0x2d0] sm:$0xff] %vm270, %v2694
  %2951 = vst.msk [vmem:[%s3 + $0x2d8] sm:$0xff] %vm270, %v2695
  %2952 = vst.msk [vmem:[%s3 + $0x2e0] sm:$0xff] %vm270, %v2696
  %2953 = vst.msk [vmem:[%s3 + $0x2e8] sm:$0xff] %vm270, %v2697
  %2954 = vst.msk [vmem:[%s3 + $0x2f0] sm:$0xff] %vm270, %v2698
  %2955 = vst.msk [vmem:[%s3 + $0x2f8] sm:$0xff] %vm270, %v2699
  %2956 = vst.msk [vmem:[%s3 + $0x300] sm:$0xff] %vm270, %v2700
  %2957 = vst.msk [vmem:[%s3 + $0x308] sm:$0xff] %vm270, %v2701
  %2958 = vst.msk [vmem:[%s3 + $0x310] sm:$0xff] %vm270, %v2702
  %2959 = vst.msk [vmem:[%s3 + $0x318] sm:$0xff] %vm270, %v2703
  %2960 = vst.msk [vmem:[%s3 + $0x320] sm:$0xff] %vm270, %v2704
  %2961 = vst.msk [vmem:[%s3 + $0x328] sm:$0xff] %vm270, %v2705
  %2962 = vst.msk [vmem:[%s3 + $0x330] sm:$0xff] %vm270, %v2706
  %2963 = vst.msk [vmem:[%s3 + $0x338] sm:$0xff] %vm270, %v2707
  %2964 = vst.msk [vmem:[%s3 + $0x340] sm:$0xff] %vm270, %v2708
  %2965 = vst.msk [vmem:[%s3 + $0x348] sm:$0xff] %vm270, %v2709
  %2966 = vst.msk [vmem:[%s3 + $0x350] sm:$0xff] %vm270, %v2710
  %2967 = vst.msk [vmem:[%s3 + $0x358] sm:$0xff] %vm270, %v2711
  %2968 = vst.msk [vmem:[%s3 + $0x360] sm:$0xff] %vm270, %v2712
  %2969 = vst.msk [vmem:[%s3 + $0x368] sm:$0xff] %vm270, %v2713
  %2970 = vst.msk [vmem:[%s3 + $0x370] sm:$0xff] %vm270, %v2714
  %2971 = vst.msk [vmem:[%s3 + $0x378] sm:$0xff] %vm270, %v2715
  %2972 = vst.msk [vmem:[%s3 + $0x380] sm:$0xff] %vm270, %v2716
  %2973 = vst.msk [vmem:[%s3 + $0x388] sm:$0xff] %vm270, %v2717
  %2974 = vst.msk [vmem:[%s3 + $0x390] sm:$0xff] %vm270, %v2718
  %2975 = vst.msk [vmem:[%s3 + $0x398] sm:$0xff] %vm270, %v2719
  %2976 = vst.msk [vmem:[%s3 + $0x3a0] sm:$0xff] %vm270, %v2720
  %2977 = vst.msk [vmem:[%s3 + $0x3a8] sm:$0xff] %vm270, %v2721
  %2978 = vst.msk [vmem:[%s3 + $0x3b0] sm:$0xff] %vm270, %v2722
  %2979 = vst.msk [vmem:[%s3 + $0x3b8] sm:$0xff] %vm270, %v2723
  %2980 = vst.msk [vmem:[%s3 + $0x3c0] sm:$0xff] %vm270, %v2724
  %2981 = vst.msk [vmem:[%s3 + $0x3c8] sm:$0xff] %vm270, %v2725
  %2982 = vst.msk [vmem:[%s3 + $0x3d0] sm:$0xff] %vm270, %v2726
  %2983 = vst.msk [vmem:[%s3 + $0x3d8] sm:$0xff] %vm270, %v2727
  %2984 = vst.msk [vmem:[%s3 + $0x3e0] sm:$0xff] %vm270, %v2728
  %2985 = vst.msk [vmem:[%s3 + $0x3e8] sm:$0xff] %vm270, %v2729
  %2986 = vst.msk [vmem:[%s3 + $0x3f0] sm:$0xff] %vm270, %v2730
  %2987 = vst.msk [vmem:[%s3 + $0x3f8] sm:$0xff] %vm270, %v2731
  %2988 = vst.msk [vmem:[%s3 + $0x400] sm:$0xff] %vm270, %v2732
  %2989 = vst.msk [vmem:[%s3 + $0x408] sm:$0xff] %vm270, %v2733
  %2990 = vst.msk [vmem:[%s3 + $0x410] sm:$0xff] %vm270, %v2734
  %2991 = vst.msk [vmem:[%s3 + $0x418] sm:$0xff] %vm270, %v2735
  %2992 = vst.msk [vmem:[%s3 + $0x420] sm:$0xff] %vm270, %v2736
  %2993 = vst.msk [vmem:[%s3 + $0x428] sm:$0xff] %vm270, %v2737
  %2994 = vst.msk [vmem:[%s3 + $0x430] sm:$0xff] %vm270, %v2738
  %2995 = vst.msk [vmem:[%s3 + $0x438] sm:$0xff] %vm270, %v2739
  %2996 = vst.msk [vmem:[%s3 + $0x440] sm:$0xff] %vm270, %v2740
  %2997 = vst.msk [vmem:[%s3 + $0x448] sm:$0xff] %vm270, %v2741
  %2998 = vst.msk [vmem:[%s3 + $0x450] sm:$0xff] %vm270, %v2742
  %2999 = vst.msk [vmem:[%s3 + $0x458] sm:$0xff] %vm270, %v2743
  %3000 = vst.msk [vmem:[%s3 + $0x460] sm:$0xff] %vm270, %v2744
  %3001 = vst.msk [vmem:[%s3 + $0x468] sm:$0xff] %vm270, %v2745
  %3002 = vst.msk [vmem:[%s3 + $0x470] sm:$0xff] %vm270, %v2746
  %3003 = vst.msk [vmem:[%s3 + $0x478] sm:$0xff] %vm270, %v2747
  %3004 = vst.msk [vmem:[%s3 + $0x480] sm:$0xff] %vm270, %v2748
  %3005 = vst.msk [vmem:[%s3 + $0x488] sm:$0xff] %vm270, %v2749
  %3006 = vst.msk [vmem:[%s3 + $0x490] sm:$0xff] %vm270, %v2750
  %3007 = vst.msk [vmem:[%s3 + $0x498] sm:$0xff] %vm270, %v2751
  %3008 = vst.msk [vmem:[%s3 + $0x4a0] sm:$0xff] %vm270, %v2752
  %3009 = vst.msk [vmem:[%s3 + $0x4a8] sm:$0xff] %vm270, %v2753
  %3010 = vst.msk [vmem:[%s3 + $0x4b0] sm:$0xff] %vm270, %v2754
  %3011 = vst.msk [vmem:[%s3 + $0x4b8] sm:$0xff] %vm270, %v2755
  %3012 = vst.msk [vmem:[%s3 + $0x4c0] sm:$0xff] %vm270, %v2756
  %3013 = vst.msk [vmem:[%s3 + $0x4c8] sm:$0xff] %vm270, %v2757
  %3014 = vst.msk [vmem:[%s3 + $0x4d0] sm:$0xff] %vm270, %v2758
  %3015 = vst.msk [vmem:[%s3 + $0x4d8] sm:$0xff] %vm270, %v2759
  %3016 = vst.msk [vmem:[%s3 + $0x4e0] sm:$0xff] %vm270, %v2760
  %3017 = vst.msk [vmem:[%s3 + $0x4e8] sm:$0xff] %vm270, %v2761
  %3018 = vst.msk [vmem:[%s3 + $0x4f0] sm:$0xff] %vm270, %v2762
  %3019 = vst.msk [vmem:[%s3 + $0x4f8] sm:$0xff] %vm270, %v2763
  %3020 = vst.msk [vmem:[%s3 + $0x500] sm:$0xff] %vm270, %v2764
  %3021 = vst.msk [vmem:[%s3 + $0x508] sm:$0xff] %vm270, %v2765
  %3022 = vst.msk [vmem:[%s3 + $0x510] sm:$0xff] %vm270, %v2766
  %3023 = vst.msk [vmem:[%s3 + $0x518] sm:$0xff] %vm270, %v2767
  %3024 = vst.msk [vmem:[%s3 + $0x520] sm:$0xff] %vm270, %v2768
  %3025 = vst.msk [vmem:[%s3 + $0x528] sm:$0xff] %vm270, %v2769
  %3026 = vst.msk [vmem:[%s3 + $0x530] sm:$0xff] %vm270, %v2770
  %3027 = vst.msk [vmem:[%s3 + $0x538] sm:$0xff] %vm270, %v2771
  %3028 = vst.msk [vmem:[%s3 + $0x540] sm:$0xff] %vm270, %v2772
  %3029 = vst.msk [vmem:[%s3 + $0x548] sm:$0xff] %vm270, %v2773
  %3030 = vst.msk [vmem:[%s3 + $0x550] sm:$0xff] %vm270, %v2774
  %3031 = vst.msk [vmem:[%s3 + $0x558] sm:$0xff] %vm270, %v2775
  %3032 = vst.msk [vmem:[%s3 + $0x560] sm:$0xff] %vm270, %v2776
  %3033 = vst.msk [vmem:[%s3 + $0x568] sm:$0xff] %vm270, %v2777
  %3034 = vst.msk [vmem:[%s3 + $0x570] sm:$0xff] %vm270, %v2778
  %3035 = vst.msk [vmem:[%s3 + $0x578] sm:$0xff] %vm270, %v2779
  %3036 = vst.msk [vmem:[%s3 + $0x580] sm:$0xff] %vm270, %v2780
  %3037 = vst.msk [vmem:[%s3 + $0x588] sm:$0xff] %vm270, %v2781
  %3038 = vst.msk [vmem:[%s3 + $0x590] sm:$0xff] %vm270, %v2782
  %3039 = vst.msk [vmem:[%s3 + $0x598] sm:$0xff] %vm270, %v2783
  %3040 = vst.msk [vmem:[%s3 + $0x5a0] sm:$0xff] %vm270, %v2784
  %3041 = vst.msk [vmem:[%s3 + $0x5a8] sm:$0xff] %vm270, %v2785
  %3042 = vst.msk [vmem:[%s3 + $0x5b0] sm:$0xff] %vm270, %v2786
  %3043 = vst.msk [vmem:[%s3 + $0x5b8] sm:$0xff] %vm270, %v2787
  %3044 = vst.msk [vmem:[%s3 + $0x5c0] sm:$0xff] %vm270, %v2788
  %3045 = vst.msk [vmem:[%s3 + $0x5c8] sm:$0xff] %vm270, %v2789
  %3046 = vst.msk [vmem:[%s3 + $0x5d0] sm:$0xff] %vm270, %v2790
  %3047 = vst.msk [vmem:[%s3 + $0x5d8] sm:$0xff] %vm270, %v2791
  %3048 = vst.msk [vmem:[%s3 + $0x5e0] sm:$0xff] %vm270, %v2792
  %3049 = vst.msk [vmem:[%s3 + $0x5e8] sm:$0xff] %vm270, %v2793
  %3050 = vst.msk [vmem:[%s3 + $0x5f0] sm:$0xff] %vm270, %v2794
  %3051 = vst.msk [vmem:[%s3 + $0x5f8] sm:$0xff] %vm270, %v2795
  %3052 = vst.msk [vmem:[%s3 + $0x600] sm:$0xff] %vm270, %v2796
  %3053 = vst.msk [vmem:[%s3 + $0x608] sm:$0xff] %vm270, %v2797
  %3054 = vst.msk [vmem:[%s3 + $0x610] sm:$0xff] %vm270, %v2798
  %3055 = vst.msk [vmem:[%s3 + $0x618] sm:$0xff] %vm270, %v2799
  %3056 = vst.msk [vmem:[%s3 + $0x620] sm:$0xff] %vm270, %v2800
  %3057 = vst.msk [vmem:[%s3 + $0x628] sm:$0xff] %vm270, %v2801
  %3058 = vst.msk [vmem:[%s3 + $0x630] sm:$0xff] %vm270, %v2802
  %3059 = vst.msk [vmem:[%s3 + $0x638] sm:$0xff] %vm270, %v2803
  %3060 = vst.msk [vmem:[%s3 + $0x640] sm:$0xff] %vm270, %v2804
  %3061 = vst.msk [vmem:[%s3 + $0x648] sm:$0xff] %vm270, %v2805
  %3062 = vst.msk [vmem:[%s3 + $0x650] sm:$0xff] %vm270, %v2806
  %3063 = vst.msk [vmem:[%s3 + $0x658] sm:$0xff] %vm270, %v2807
  %3064 = vst.msk [vmem:[%s3 + $0x660] sm:$0xff] %vm270, %v2808
  %3065 = vst.msk [vmem:[%s3 + $0x668] sm:$0xff] %vm270, %v2809
  %3066 = vst.msk [vmem:[%s3 + $0x670] sm:$0xff] %vm270, %v2810
  %3067 = vst.msk [vmem:[%s3 + $0x678] sm:$0xff] %vm270, %v2811
  %3068 = vst.msk [vmem:[%s3 + $0x680] sm:$0xff] %vm270, %v2812
  %3069 = vst.msk [vmem:[%s3 + $0x688] sm:$0xff] %vm270, %v2813
  %3070 = vst.msk [vmem:[%s3 + $0x690] sm:$0xff] %vm270, %v2814
  %3071 = vst.msk [vmem:[%s3 + $0x698] sm:$0xff] %vm270, %v2815
  %3072 = vst.msk [vmem:[%s3 + $0x6a0] sm:$0xff] %vm270, %v2816
  %3073 = vst.msk [vmem:[%s3 + $0x6a8] sm:$0xff] %vm270, %v2817
  %3074 = vst.msk [vmem:[%s3 + $0x6b0] sm:$0xff] %vm270, %v2818
  %3075 = vst.msk [vmem:[%s3 + $0x6b8] sm:$0xff] %vm270, %v2819
  %3076 = vst.msk [vmem:[%s3 + $0x6c0] sm:$0xff] %vm270, %v2820
  %3077 = vst.msk [vmem:[%s3 + $0x6c8] sm:$0xff] %vm270, %v2821
  %3078 = vst.msk [vmem:[%s3 + $0x6d0] sm:$0xff] %vm270, %v2822
  %3079 = vst.msk [vmem:[%s3 + $0x6d8] sm:$0xff] %vm270, %v2823
  %3080 = vst.msk [vmem:[%s3 + $0x6e0] sm:$0xff] %vm270, %v2824
  %3081 = vst.msk [vmem:[%s3 + $0x6e8] sm:$0xff] %vm270, %v2825
  %3082 = vst.msk [vmem:[%s3 + $0x6f0] sm:$0xff] %vm270, %v2826
  %3083 = vst.msk [vmem:[%s3 + $0x6f8] sm:$0xff] %vm270, %v2827
  %3084 = vst.msk [vmem:[%s3 + $0x700] sm:$0xff] %vm270, %v2828
  %3085 = vst.msk [vmem:[%s3 + $0x708] sm:$0xff] %vm270, %v2829
  %3086 = vst.msk [vmem:[%s3 + $0x710] sm:$0xff] %vm270, %v2830
  %3087 = vst.msk [vmem:[%s3 + $0x718] sm:$0xff] %vm270, %v2831
  %3088 = vst.msk [vmem:[%s3 + $0x720] sm:$0xff] %vm270, %v2832
  %3089 = vst.msk [vmem:[%s3 + $0x728] sm:$0xff] %vm270, %v2833
  %3090 = vst.msk [vmem:[%s3 + $0x730] sm:$0xff] %vm270, %v2834
  %3091 = vst.msk [vmem:[%s3 + $0x738] sm:$0xff] %vm270, %v2835
  %3092 = vst.msk [vmem:[%s3 + $0x740] sm:$0xff] %vm270, %v2836
  %3093 = vst.msk [vmem:[%s3 + $0x748] sm:$0xff] %vm270, %v2837
  %3094 = vst.msk [vmem:[%s3 + $0x750] sm:$0xff] %vm270, %v2838
  %3095 = vst.msk [vmem:[%s3 + $0x758] sm:$0xff] %vm270, %v2839
  %3096 = vst.msk [vmem:[%s3 + $0x760] sm:$0xff] %vm270, %v2840
  %3097 = vst.msk [vmem:[%s3 + $0x768] sm:$0xff] %vm270, %v2841
  %3098 = vst.msk [vmem:[%s3 + $0x770] sm:$0xff] %vm270, %v2842
  %3099 = vst.msk [vmem:[%s3 + $0x778] sm:$0xff] %vm270, %v2843
  %3100 = vst.msk [vmem:[%s3 + $0x780] sm:$0xff] %vm270, %v2844
  %3101 = vst.msk [vmem:[%s3 + $0x788] sm:$0xff] %vm270, %v2845
  %3102 = vst.msk [vmem:[%s3 + $0x790] sm:$0xff] %vm270, %v2846
  %3103 = vst.msk [vmem:[%s3 + $0x798] sm:$0xff] %vm270, %v2847
  %3104 = vst.msk [vmem:[%s3 + $0x7a0] sm:$0xff] %vm270, %v2848
  %3105 = vst.msk [vmem:[%s3 + $0x7a8] sm:$0xff] %vm270, %v2849
  %3106 = vst.msk [vmem:[%s3 + $0x7b0] sm:$0xff] %vm270, %v2850
  %3107 = vst.msk [vmem:[%s3 + $0x7b8] sm:$0xff] %vm270, %v2851
  %3108 = vst.msk [vmem:[%s3 + $0x7c0] sm:$0xff] %vm270, %v2852
  %3109 = vst.msk [vmem:[%s3 + $0x7c8] sm:$0xff] %vm270, %v2853
  %3110 = vst.msk [vmem:[%s3 + $0x7d0] sm:$0xff] %vm270, %v2854
  %3111 = vst.msk [vmem:[%s3 + $0x7d8] sm:$0xff] %vm270, %v2855
  %3112 = vst.msk [vmem:[%s3 + $0x7e0] sm:$0xff] %vm270, %v2856
  %3113 = vst.msk [vmem:[%s3 + $0x7e8] sm:$0xff] %vm270, %v2857
  %3114 = vst.msk [vmem:[%s3 + $0x7f0] sm:$0xff] %vm270, %v2858
  %3115 = vst.msk [vmem:[%s3 + $0x7f8] sm:$0xff] %vm270, %v2859
  // Predicated region
  $region14: #{_generator_forward.16} parent=0 // pred_check
    _
  $region15: #{_generator_forward.16} parent=0 // pred_check_branch
    %3117 = sbr.rel (0) target = $region17
  $region16: #{_generator_forward.16} parent=0 // pred_region
    _
  $region17: #{_generator_forward.16} parent=0 // pred_fallthru
    _
  // Predicated region
  $region18: #{_generator_forward.16} parent=0 // pred_check
    _
  $region19: #{_generator_forward.16} parent=0 // pred_check_branch
    %3119 = sbr.rel (0) target = $region21
  $region20: #{_generator_forward.16} parent=0 // pred_region
    _
  $region21: #{_generator_forward.16} parent=0 // pred_fallthru
    _

// kernel: _generator_forward.17
$region0: #{_generator_forward.17}
  #allocation0 [shape = 'u32[]', space=smem, size = 0x4, offset = 0x4, fixed_abs, tag = 'smem constant byte address 0x4 - core index']
  #allocation1 [shape = 'u32[144,128]{1,0:T(1,128)}', space=vmem, size = 0x12000, scoped, tag = 'internal scratch']
  #allocation2 [shape = 'f32[256,128]{1,0:T(8,128)}', space=vmem, size = 0x20000, scoped, tag = 'scratch operand']
  %s0 = inlined_call_operand.vmem [shape: bf16[2048,128], index: 0, kind: input, shape index: {}]
  %s1 = inlined_call_operand.vmem [shape: bf16[128,128], index: 1, kind: input, shape index: {}]
  %s2 = inlined_call_operand.vmem [shape: f32[2048,128], index: 2, kind: output, shape index: {}]
  %s3 = sld [smem:[#allocation0]]
  $region49: #{_generator_forward.17} parent=0
    _
  %s5 = ssub.s32 1, %s3
  %s6 = scalar_select 0, %s5, %s3
  loop: start=0, step=1, limit=10
  $region2: #{_generator_forward.17} parent=0 // loop_pre_header
    _
  $region3: #{_generator_forward.17} parent=0 // loop_header
    %s8 = sphi 0, %s12
    %p9 = scmp.ge.s32.totalorder %s8, 10
    %s15 = sphi 0, %s34
    %s16 = sphi 0, %s30
    %s17 = sphi 0, %s26
    %s18 = sphi 0, %s15
    %s19 = sphi 0, %s16
    %s20 = sphi 0, %s17
    %s21 = sphi 0, %s18
    %s22 = sphi 0, %s19
    %s23 = sphi 0, %s20
    %s39 = sphi 0, %s41
    %s42 = sphi 0, %s39
    %s43 = sphi 0, %s42
    %s59 = sphi 0, %s43
    %s67 = sphi 0, %s69
    %s70 = sphi 0, %s67
    %s71 = sphi 0, %s70
    %s87 = sphi 0, %s71
    %s95 = sphi 0, %s97
    %s98 = sphi 0, %s95
    %s99 = sphi 0, %s98
    %s115 = sphi 0, %s99
  $region4: #{_generator_forward.17} parent=0 // loop_header_branch
    %11 = sbr.rel (%p9) target = $region8
  $region5: #{_generator_forward.17} parent=0 // loop_body
    %s13 = ssub.s32 %s8, 1
    %s14 = ssub.s32 %s8, 2
    %s24 = sadd.s32 1, %s17
    %p25 = scmp.ge.s32.totalorder %s24, 1
    %s26 = scalar_select %p25, 0, %s24
    %s27 = sadd.s32 1, %s16
    %s28 = scalar_select %p25, %s27, %s16
    %p29 = scmp.ge.s32.totalorder %s28, 1
    %s30 = scalar_select %p29, 0, %s28
    %s31 = sadd.s32 1, %s15
    %s32 = scalar_select %p29, %s31, %s15
    %p33 = scmp.ge.s32.totalorder %s32, 8
    %s34 = scalar_select %p33, 0, %s32
    %s35 = ssub.s32 %s15, %s34
    %s36 = ssub.s32 %s17, %s26
    %s37 = sor.u32 %s35, %s36
    %p38 = scmp.eq.s32.totalorder %s37, 0
    %s40 = sadd.s32 %s39, 1
    %s41 = scalar_select %p38, %s39, %s40
    %p44 = pneg %p38
    %p45 = scmp.eq.s32.totalorder %s8, 7
    %p46 = por %p44, %p45
    %p47 = scmp.ne.s32.totalorder %s39, %s42
    %p48 = scmp.eq.s32.totalorder %s8, 0
    %p49 = por %p47, %p48
    %p50 = scmp.ne.s32.totalorder %s39, %s42
    %p51 = scmp.eq.s32.totalorder %s13, 7
    %p52 = por %p50, %p51
    %p53 = scmp.ne.s32.totalorder %s42, %s43
    %p54 = scmp.eq.s32.totalorder %s13, 0
    %p55 = por %p53, %p54
    %p56 = scmp.ne.s32.totalorder %s42, %s43
    %p57 = scmp.eq.s32.totalorder %s14, 7
    %p58 = por %p56, %p57
    %p60 = scmp.ne.s32.totalorder %s43, %s59
    %p61 = scmp.eq.s32.totalorder %s14, 0
    %p62 = por %p60, %p61
    %s63 = ssub.s32 %s17, %s26
    %s64 = ssub.s32 %s16, %s30
    %s65 = sor.u32 %s63, %s64
    %p66 = scmp.eq.s32.totalorder %s65, 0
    %s68 = sadd.s32 %s67, 1
    %s69 = scalar_select %p66, %s67, %s68
    %p72 = pneg %p66
    %p73 = scmp.eq.s32.totalorder %s8, 7
    %p74 = por %p72, %p73
    %p75 = scmp.ne.s32.totalorder %s67, %s70
    %p76 = scmp.eq.s32.totalorder %s8, 0
    %p77 = por %p75, %p76
    %p78 = scmp.ne.s32.totalorder %s67, %s70
    %p79 = scmp.eq.s32.totalorder %s13, 7
    %p80 = por %p78, %p79
    %p81 = scmp.ne.s32.totalorder %s70, %s71
    %p82 = scmp.eq.s32.totalorder %s13, 0
    %p83 = por %p81, %p82
    %p84 = scmp.ne.s32.totalorder %s70, %s71
    %p85 = scmp.eq.s32.totalorder %s14, 7
    %p86 = por %p84, %p85
    %p88 = scmp.ne.s32.totalorder %s71, %s87
    %p89 = scmp.eq.s32.totalorder %s14, 0
    %p90 = por %p88, %p89
    %s91 = ssub.s32 %s15, %s34
    %s92 = ssub.s32 %s16, %s30
    %s93 = sor.u32 %s91, %s92
    %p94 = scmp.eq.s32.totalorder %s93, 0
    %s96 = sadd.s32 %s95, 1
    %s97 = scalar_select %p94, %s95, %s96
    %p100 = pneg %p94
    %p101 = scmp.eq.s32.totalorder %s8, 7
    %p102 = por %p100, %p101
    %p103 = scmp.ne.s32.totalorder %s95, %s98
    %p104 = scmp.eq.s32.totalorder %s8, 0
    %p105 = por %p103, %p104
    %p106 = scmp.ne.s32.totalorder %s95, %s98
    %p107 = scmp.eq.s32.totalorder %s13, 7
    %p108 = por %p106, %p107
    %p109 = scmp.ne.s32.totalorder %s98, %s99
    %p110 = scmp.eq.s32.totalorder %s13, 0
    %p111 = por %p109, %p110
    %p112 = scmp.ne.s32.totalorder %s98, %s99
    %p113 = scmp.eq.s32.totalorder %s14, 7
    %p114 = por %p112, %p113
    %p116 = scmp.ne.s32.totalorder %s99, %s115
    %p117 = scmp.eq.s32.totalorder %s14, 0
    %p118 = por %p116, %p117
    %p119 = scmp.le.s32.totalorder 1, %s8
    %p120 = scmp.lt.s32.totalorder %s8, 9
    %p121 = pnand %p119, %p120
    %p122 = pneg %p121
    // Predicated region
    $region9: #{_generator_forward.17} parent=5 // pred_check
      _
    $region10: #{_generator_forward.17} parent=5 // pred_check_branch
      %124 = sbr.rel (%p121) target = $region12
    $region11: #{_generator_forward.17} parent=5 // pred_region
      %s125 = ssub.s32 %s8, 1
      // Predicated region
      $region13: #{_generator_forward.17} parent=11 // pred_check
        %p126 = pneg %p83
      $region14: #{_generator_forward.17} parent=11 // pred_check_branch
        %128 = sbr.rel (%p126) target = $region16
      $region15: #{_generator_forward.17} parent=11 // pred_region
        %s129 = smul.u32 16, %s20
        %p130 = scmp.lt.s32.totalorder %s129, 15
        %s131 = scalar_select %p130, %s129, 15
        %p132 = scmp.lt.s32.totalorder %s19, 0
        %s133 = scalar_select %p132, %s19, 0
        %s134 = sadd.s32 %s133, %s131
        %s135 = smul.addr %s134, 4
        %s136 = scalar_lea.vmem %s1, %s135
        %s137 = smul.u32 16, %s20
      $region16: #{_generator_forward.17} parent=11 // pred_fallthru
        _
    $region12: #{_generator_forward.17} parent=5 // pred_fallthru
      _
    %p138 = scmp.lt.s32.totalorder %s8, 8
    // Predicated region
    $region17: #{_generator_forward.17} parent=5 // pred_check
      %p139 = pneg %p138
    $region18: #{_generator_forward.17} parent=5 // pred_check_branch
      %141 = sbr.rel (%p139) target = $region20
    $region19: #{_generator_forward.17} parent=5 // pred_region
      // Predicated region
      $region21: #{_generator_forward.17} parent=19 // pred_check
        %p142 = pneg %p49
      $region22: #{_generator_forward.17} parent=19 // pred_check_branch
        %144 = sbr.rel (%p142) target = $region24
      $region23: #{_generator_forward.17} parent=19 // pred_region
        %s145 = smul.u32 32, %s15
        %p146 = scmp.lt.s32.totalorder %s145, 255
        %s147 = scalar_select %p146, %s145, 255
        %p148 = scmp.lt.s32.totalorder %s17, 0
        %s149 = scalar_select %p148, %s17, 0
        %s150 = sadd.s32 %s149, %s147
        %s151 = smul.addr %s150, 4
        %s152 = scalar_lea.vmem %s0, %s151
        %s153 = smul.u32 32, %s15
      $region24: #{_generator_forward.17} parent=19 // pred_fallthru
        _
    $region20: #{_generator_forward.17} parent=5 // pred_fallthru
      _
    %p154 = scmp.le.s32.totalorder 1, %s8
    %p155 = scmp.lt.s32.totalorder %s8, 9
    %p156 = pnand %p154, %p155
    %p157 = pneg %p156
    // Predicated region
    $region25: #{_generator_forward.17} parent=5 // pred_check
      _
    $region26: #{_generator_forward.17} parent=5 // pred_check_branch
      %159 = sbr.rel (%p156) target = $region28
    $region27: #{_generator_forward.17} parent=5 // pred_region
      %s160 = ssub.s32 %s8, 1
      %s161 = smul.u32 32, %s18
      %p162 = scmp.lt.s32.totalorder %s161, 255
      %s163 = scalar_select %p162, %s161, 255
      %p164 = scmp.lt.s32.totalorder %s20, 0
      %s165 = scalar_select %p164, %s20, 0
      %s166 = sadd.s32 %s165, %s163
      %s167 = smul.addr %s166, 4
      %s168 = scalar_lea.vmem %s0, %s167
      %p169 = pneg %p55
      %p170 = pneg %p52
      %s171 = smul.u32 16, %s20
      %p172 = scmp.lt.s32.totalorder %s171, 15
      %s173 = scalar_select %p172, %s171, 15
      %p174 = scmp.lt.s32.totalorder %s19, 0
      %s175 = scalar_select %p174, %s19, 0
      %s176 = sadd.s32 %s175, %s173
      %s177 = smul.addr %s176, 4
      %s178 = scalar_lea.vmem %s1, %s177
      %p179 = pneg %p83
      %p180 = pneg %p80
      %p181 = pneg %p111
      %p182 = pneg %p108
      %s183 = smul.u32 32, %s18
      %p184 = scmp.lt.s32.totalorder %s183, 255
      %s185 = scalar_select %p184, %s183, 255
      %p186 = scmp.lt.s32.totalorder %s19, 0
      %s187 = scalar_select %p186, %s19, 0
      %s188 = sadd.s32 %s187, %s185
      %s189 = smul.addr %s188, 8
      %s190 = scalar_lea.vmem %s2, %s189
      %s191 = smul.u32 32, %s18
      %p192 = scmp.lt.s32.totalorder %s191, 255
      %s193 = scalar_select %p192, %s191, 255
      %p194 = scmp.lt.s32.totalorder %s20, 0
      %s195 = scalar_select %p194, %s20, 0
      %s196 = sadd.s32 %s195, %s193
      %s197 = smul.addr %s196, 4
      %s198 = scalar_lea.vmem %s0, %s197
      %s199 = smul.u32 32, %s18
      %s200 = smul.u32 16, %s20
      %p201 = scmp.lt.s32.totalorder %s200, 15
      %s202 = scalar_select %p201, %s200, 15
      %p203 = scmp.lt.s32.totalorder %s19, 0
      %s204 = scalar_select %p203, %s19, 0
      %s205 = sadd.s32 %s204, %s202
      %s206 = smul.addr %s205, 4
      %s207 = scalar_lea.vmem %s1, %s206
      %s208 = smul.u32 16, %s20
      %s209 = smul.u32 32, %s18
      %p210 = scmp.lt.s32.totalorder %s209, 255
      %s211 = scalar_select %p210, %s209, 255
      %p212 = scmp.lt.s32.totalorder %s19, 0
      %s213 = scalar_select %p212, %s19, 0
      %s214 = sadd.s32 %s213, %s211
      %s215 = smul.addr %s214, 8
      %s216 = scalar_lea.vmem %s2, %s215
      %s217 = smul.u32 32, %s18
      %p219 = scmp.eq.s32.totalorder %s20, 0
      // Predicated region
      $region29: #{_generator_forward.17} parent=27 // pred_check
        %p220 = pneg %p219
      $region30: #{_generator_forward.17} parent=27 // pred_check_branch
        %222 = sbr.rel (%p220) target = $region32
      $region31: #{_generator_forward.17} parent=27 // pred_region
        %223 = vst [vmem:[#allocation2] sm:$0xff] 0.0
        %224 = vst [vmem:[#allocation2 + $0x8] sm:$0xff] 0.0
        %225 = vst [vmem:[#allocation2 + $0x10] sm:$0xff] 0.0
        %226 = vst [vmem:[#allocation2 + $0x18] sm:$0xff] 0.0
        %227 = vst [vmem:[#allocation2 + $0x20] sm:$0xff] 0.0
        %228 = vst [vmem:[#allocation2 + $0x28] sm:$0xff] 0.0
        %229 = vst [vmem:[#allocation2 + $0x30] sm:$0xff] 0.0
        %230 = vst [vmem:[#allocation2 + $0x38] sm:$0xff] 0.0
        %231 = vst [vmem:[#allocation2 + $0x40] sm:$0xff] 0.0
        %232 = vst [vmem:[#allocation2 + $0x48] sm:$0xff] 0.0
        %233 = vst [vmem:[#allocation2 + $0x50] sm:$0xff] 0.0
        %234 = vst [vmem:[#allocation2 + $0x58] sm:$0xff] 0.0
        %235 = vst [vmem:[#allocation2 + $0x60] sm:$0xff] 0.0
        %236 = vst [vmem:[#allocation2 + $0x68] sm:$0xff] 0.0
        %237 = vst [vmem:[#allocation2 + $0x70] sm:$0xff] 0.0
        %238 = vst [vmem:[#allocation2 + $0x78] sm:$0xff] 0.0
        %239 = vst [vmem:[#allocation2 + $0x80] sm:$0xff] 0.0
        %240 = vst [vmem:[#allocation2 + $0x88] sm:$0xff] 0.0
        %241 = vst [vmem:[#allocation2 + $0x90] sm:$0xff] 0.0
        %242 = vst [vmem:[#allocation2 + $0x98] sm:$0xff] 0.0
        %243 = vst [vmem:[#allocation2 + $0xa0] sm:$0xff] 0.0
        %244 = vst [vmem:[#allocation2 + $0xa8] sm:$0xff] 0.0
        %245 = vst [vmem:[#allocation2 + $0xb0] sm:$0xff] 0.0
        %246 = vst [vmem:[#allocation2 + $0xb8] sm:$0xff] 0.0
        %247 = vst [vmem:[#allocation2 + $0xc0] sm:$0xff] 0.0
        %248 = vst [vmem:[#allocation2 + $0xc8] sm:$0xff] 0.0
        %249 = vst [vmem:[#allocation2 + $0xd0] sm:$0xff] 0.0
        %250 = vst [vmem:[#allocation2 + $0xd8] sm:$0xff] 0.0
        %251 = vst [vmem:[#allocation2 + $0xe0] sm:$0xff] 0.0
        %252 = vst [vmem:[#allocation2 + $0xe8] sm:$0xff] 0.0
        %253 = vst [vmem:[#allocation2 + $0xf0] sm:$0xff] 0.0
        %254 = vst [vmem:[#allocation2 + $0xf8] sm:$0xff] 0.0
      $region32: #{_generator_forward.17} parent=27 // pred_fallthru
        _
      %v255 = vld [vmem:[#allocation2] sm:$0xff]
      %v256 = vld [vmem:[#allocation2 + $0x8] sm:$0xff]
      %v257 = vld [vmem:[#allocation2 + $0x10] sm:$0xff]
      %v258 = vld [vmem:[#allocation2 + $0x18] sm:$0xff]
      %v259 = vld [vmem:[#allocation2 + $0x20] sm:$0xff]
      %v260 = vld [vmem:[#allocation2 + $0x28] sm:$0xff]
      %v261 = vld [vmem:[#allocation2 + $0x30] sm:$0xff]
      %v262 = vld [vmem:[#allocation2 + $0x38] sm:$0xff]
      %v263 = vld [vmem:[#allocation2 + $0x40] sm:$0xff]
      %v264 = vld [vmem:[#allocation2 + $0x48] sm:$0xff]
      %v265 = vld [vmem:[#allocation2 + $0x50] sm:$0xff]
      %v266 = vld [vmem:[#allocation2 + $0x58] sm:$0xff]
      %v267 = vld [vmem:[#allocation2 + $0x60] sm:$0xff]
      %v268 = vld [vmem:[#allocation2 + $0x68] sm:$0xff]
      %v269 = vld [vmem:[#allocation2 + $0x70] sm:$0xff]
      %v270 = vld [vmem:[#allocation2 + $0x78] sm:$0xff]
      %v271 = vld [vmem:[#allocation2 + $0x80] sm:$0xff]
      %v272 = vld [vmem:[#allocation2 + $0x88] sm:$0xff]
      %v273 = vld [vmem:[#allocation2 + $0x90] sm:$0xff]
      %v274 = vld [vmem:[#allocation2 + $0x98] sm:$0xff]
      %v275 = vld [vmem:[#allocation2 + $0xa0] sm:$0xff]
      %v276 = vld [vmem:[#allocation2 + $0xa8] sm:$0xff]
      %v277 = vld [vmem:[#allocation2 + $0xb0] sm:$0xff]
      %v278 = vld [vmem:[#allocation2 + $0xb8] sm:$0xff]
      %v279 = vld [vmem:[#allocation2 + $0xc0] sm:$0xff]
      %v280 = vld [vmem:[#allocation2 + $0xc8] sm:$0xff]
      %v281 = vld [vmem:[#allocation2 + $0xd0] sm:$0xff]
      %v282 = vld [vmem:[#allocation2 + $0xd8] sm:$0xff]
      %v283 = vld [vmem:[#allocation2 + $0xe0] sm:$0xff]
      %v284 = vld [vmem:[#allocation2 + $0xe8] sm:$0xff]
      %v285 = vld [vmem:[#allocation2 + $0xf0] sm:$0xff]
      %v286 = vld [vmem:[#allocation2 + $0xf8] sm:$0xff]
      %v287 = vld [vmem:[%s198] sm:$0xf]
      %v288 = vld [vmem:[%s198 + $0x4] sm:$0xf]
      %v289 = vld [vmem:[%s198 + $0x8] sm:$0xf]
      %v290 = vld [vmem:[%s198 + $0xc] sm:$0xf]
      %v291 = vld [vmem:[%s198 + $0x10] sm:$0xf]
      %v292 = vld [vmem:[%s198 + $0x14] sm:$0xf]
      %v293 = vld [vmem:[%s198 + $0x18] sm:$0xf]
      %v294 = vld [vmem:[%s198 + $0x1c] sm:$0xf]
      %v295 = vld [vmem:[%s198 + $0x20] sm:$0xf]
      %v296 = vld [vmem:[%s198 + $0x24] sm:$0xf]
      %v297 = vld [vmem:[%s198 + $0x28] sm:$0xf]
      %v298 = vld [vmem:[%s198 + $0x2c] sm:$0xf]
      %v299 = vld [vmem:[%s198 + $0x30] sm:$0xf]
      %v300 = vld [vmem:[%s198 + $0x34] sm:$0xf]
      %v301 = vld [vmem:[%s198 + $0x38] sm:$0xf]
      %v302 = vld [vmem:[%s198 + $0x3c] sm:$0xf]
      %v303 = vld [vmem:[%s198 + $0x40] sm:$0xf]
      %v304 = vld [vmem:[%s198 + $0x44] sm:$0xf]
      %v305 = vld [vmem:[%s198 + $0x48] sm:$0xf]
      %v306 = vld [vmem:[%s198 + $0x4c] sm:$0xf]
      %v307 = vld [vmem:[%s198 + $0x50] sm:$0xf]
      %v308 = vld [vmem:[%s198 + $0x54] sm:$0xf]
      %v309 = vld [vmem:[%s198 + $0x58] sm:$0xf]
      %v310 = vld [vmem:[%s198 + $0x5c] sm:$0xf]
      %v311 = vld [vmem:[%s198 + $0x60] sm:$0xf]
      %v312 = vld [vmem:[%s198 + $0x64] sm:$0xf]
      %v313 = vld [vmem:[%s198 + $0x68] sm:$0xf]
      %v314 = vld [vmem:[%s198 + $0x6c] sm:$0xf]
      %v315 = vld [vmem:[%s198 + $0x70] sm:$0xf]
      %v316 = vld [vmem:[%s198 + $0x74] sm:$0xf]
      %v317 = vld [vmem:[%s198 + $0x78] sm:$0xf]
      %v318 = vld [vmem:[%s198 + $0x7c] sm:$0xf]
      %v319 = vld [vmem:[%s207] sm:$0xf]
      %v320 = vld [vmem:[%s207 + $0x4] sm:$0xf]
      %v321 = vld [vmem:[%s207 + $0x8] sm:$0xf]
      %v322 = vld [vmem:[%s207 + $0xc] sm:$0xf]
      %v323 = vld [vmem:[%s207 + $0x10] sm:$0xf]
      %v324 = vld [vmem:[%s207 + $0x14] sm:$0xf]
      %v325 = vld [vmem:[%s207 + $0x18] sm:$0xf]
      %v326 = vld [vmem:[%s207 + $0x1c] sm:$0xf]
      %v327 = vld [vmem:[%s207 + $0x20] sm:$0xf]
      %v328 = vld [vmem:[%s207 + $0x24] sm:$0xf]
      %v329 = vld [vmem:[%s207 + $0x28] sm:$0xf]
      %v330 = vld [vmem:[%s207 + $0x2c] sm:$0xf]
      %v331 = vld [vmem:[%s207 + $0x30] sm:$0xf]
      %v332 = vld [vmem:[%s207 + $0x34] sm:$0xf]
      %v333 = vld [vmem:[%s207 + $0x38] sm:$0xf]
      %v334 = vld [vmem:[%s207 + $0x3c] sm:$0xf]
      %v367 = vunpack.c.l.b16 %v287
      %v368 = vunpack.c.l.b16 %v288
      %v369 = vunpack.c.l.b16 %v289
      %v370 = vunpack.c.l.b16 %v290
      %v371 = vunpack.c.l.b16 %v291
      %v372 = vunpack.c.l.b16 %v292
      %v373 = vunpack.c.l.b16 %v293
      %v374 = vunpack.c.l.b16 %v294
      %v375 = vunpack.c.l.b16 %v295
      %v376 = vunpack.c.l.b16 %v296
      %v377 = vunpack.c.l.b16 %v297
      %v378 = vunpack.c.l.b16 %v298
      %v379 = vunpack.c.l.b16 %v299
      %v380 = vunpack.c.l.b16 %v300
      %v381 = vunpack.c.l.b16 %v301
      %v382 = vunpack.c.l.b16 %v302
      %v383 = vunpack.c.l.b16 %v303
      %v384 = vunpack.c.l.b16 %v304
      %v385 = vunpack.c.l.b16 %v305
      %v386 = vunpack.c.l.b16 %v306
      %v387 = vunpack.c.l.b16 %v307
      %v388 = vunpack.c.l.b16 %v308
      %v389 = vunpack.c.l.b16 %v309
      %v390 = vunpack.c.l.b16 %v310
      %v391 = vunpack.c.l.b16 %v311
      %v392 = vunpack.c.l.b16 %v312
      %v393 = vunpack.c.l.b16 %v313
      %v394 = vunpack.c.l.b16 %v314
      %v395 = vunpack.c.l.b16 %v315
      %v396 = vunpack.c.l.b16 %v316
      %v397 = vunpack.c.l.b16 %v317
      %v398 = vunpack.c.l.b16 %v318
      %v399 = vpack.c.b16 %v368, %v367
      %v400 = vpack.c.b16 %v370, %v369
      %v401 = vpack.c.b16 %v372, %v371
      %v402 = vpack.c.b16 %v374, %v373
      %v403 = vpack.c.b16 %v376, %v375
      %v404 = vpack.c.b16 %v378, %v377
      %v405 = vpack.c.b16 %v380, %v379
      %v406 = vpack.c.b16 %v382, %v381
      %v407 = vpack.c.b16 %v384, %v383
      %v408 = vpack.c.b16 %v386, %v385
      %v409 = vpack.c.b16 %v388, %v387
      %v410 = vpack.c.b16 %v390, %v389
      %v411 = vpack.c.b16 %v392, %v391
      %v412 = vpack.c.b16 %v394, %v393
      %v413 = vpack.c.b16 %v396, %v395
      %v414 = vpack.c.b16 %v398, %v397
      %v447 = vunpack.c.l.b16 %v319
      %v448 = vunpack.c.l.b16 %v320
      %v449 = vunpack.c.l.b16 %v321
      %v450 = vunpack.c.l.b16 %v322
      %v451 = vunpack.c.l.b16 %v323
      %v452 = vunpack.c.l.b16 %v324
      %v453 = vunpack.c.l.b16 %v325
      %v454 = vunpack.c.l.b16 %v326
      %v455 = vunpack.c.l.b16 %v327
      %v456 = vunpack.c.l.b16 %v328
      %v457 = vunpack.c.l.b16 %v329
      %v458 = vunpack.c.l.b16 %v330
      %v459 = vunpack.c.l.b16 %v331
      %v460 = vunpack.c.l.b16 %v332
      %v461 = vunpack.c.l.b16 %v333
      %v462 = vunpack.c.l.b16 %v334
      %v463 = vpack.c.b16 %v448, %v447
      %v464 = vpack.c.b16 %v450, %v449
      %v465 = vpack.c.b16 %v452, %v451
      %v466 = vpack.c.b16 %v454, %v453
      %v467 = vpack.c.b16 %v456, %v455
      %v468 = vpack.c.b16 %v458, %v457
      %v469 = vpack.c.b16 %v460, %v459
      %v470 = vpack.c.b16 %v462, %v461
      %479 = vmatprep.subr.bf16.mxu0 0
      %480 = vmatpush1.bf16.msra.mxu0 %v463
      %481 = vmatprep.subr.bf16.mxu0 0
      %482 = vmatpush1.bf16.msra.mxu0 %v464
      %483 = vmatprep.subr.bf16.mxu0 0
      %484 = vmatpush1.bf16.msra.mxu0 %v465
      %485 = vmatprep.subr.bf16.mxu0 0
      %486 = vmatpush1.bf16.msra.mxu0 %v466
      %487 = vmatprep.subr.bf16.mxu0 0
      %488 = vmatpush1.bf16.msra.mxu0 %v467
      %489 = vmatprep.subr.bf16.mxu0 0
      %490 = vmatpush1.bf16.msra.mxu0 %v468
      %491 = vmatprep.subr.bf16.mxu0 0
      %492 = vmatpush1.bf16.msra.mxu0 %v469
      %493 = vmatprep.subr.bf16.mxu0 0
      %494 = vmatpush1.bf16.msra.mxu0 %v470
      %495 = vmatprep.subr.bf16.mxu0 0
      %496 = vmatpush1.bf16.msra.mxu0 0
      %497 = vmatprep.subr.bf16.mxu0 0
      %498 = vmatpush1.bf16.msra.mxu0 0
      %499 = vmatprep.subr.bf16.mxu0 0
      %500 = vmatpush1.bf16.msra.mxu0 0
      %501 = vmatprep.subr.bf16.mxu0 0
      %502 = vmatpush1.bf16.msra.mxu0 0
      %503 = vmatprep.subr.bf16.mxu0 0
      %504 = vmatpush1.bf16.msra.mxu0 0
      %505 = vmatprep.subr.bf16.mxu0 0
      %506 = vmatpush1.bf16.msra.mxu0 0
      %507 = vmatprep.subr.bf16.mxu0 0
      %508 = vmatpush1.bf16.msra.mxu0 0
      %509 = vmatprep.subr.bf16.mxu0 0
      %510 = vmatpush1.bf16.msra.mxu0 0
      %511 = vmatprep.mubr.bf16.mxu0 0
      %512 = vmatmul.mubr.bf16.gmra.mrb[0].mxu0 %v399
      %v513 = vpop.f32.mrb[0].mxu0
      %v514 = vadd.f32 0.0, %v513
      %v515 = vpop.f32.mrb[0].mxu0
      %v516 = vpop.f32.mrb[0].mxu0
      %v517 = vadd.f32 0.0, %v516
      %v518 = vpop.f32.mrb[0].mxu0
      %519 = vmatprep.mubr.bf16.mxu0 0
      %520 = vmatmul.mubr.bf16.gmra.mrb[0].mxu0 %v400
      %v521 = vpop.f32.mrb[0].mxu0
      %v522 = vadd.f32 0.0, %v521
      %v523 = vpop.f32.mrb[0].mxu0
      %v524 = vpop.f32.mrb[0].mxu0
      %v525 = vadd.f32 0.0, %v524
      %v526 = vpop.f32.mrb[0].mxu0
      %527 = vmatprep.mubr.bf16.mxu0 0
      %528 = vmatmul.mubr.bf16.gmra.mrb[0].mxu0 %v401
      %v529 = vpop.f32.mrb[0].mxu0
      %v530 = vadd.f32 0.0, %v529
      %v531 = vpop.f32.mrb[0].mxu0
      %v532 = vpop.f32.mrb[0].mxu0
      %v533 = vadd.f32 0.0, %v532
      %v534 = vpop.f32.mrb[0].mxu0
      %535 = vmatprep.mubr.bf16.mxu0 0
      %536 = vmatmul.mubr.bf16.gmra.mrb[0].mxu0 %v402
      %v537 = vpop.f32.mrb[0].mxu0
      %v538 = vadd.f32 0.0, %v537
      %v539 = vpop.f32.mrb[0].mxu0
      %v540 = vpop.f32.mrb[0].mxu0
      %v541 = vadd.f32 0.0, %v540
      %v542 = vpop.f32.mrb[0].mxu0
      %543 = vmatprep.mubr.bf16.mxu0 0
      %544 = vmatmul.mubr.bf16.gmra.mrb[0].mxu0 %v403
      %v545 = vpop.f32.mrb[0].mxu0
      %v546 = vadd.f32 0.0, %v545
      %v547 = vpop.f32.mrb[0].mxu0
      %v548 = vpop.f32.mrb[0].mxu0
      %v549 = vadd.f32 0.0, %v548
      %v550 = vpop.f32.mrb[0].mxu0
      %551 = vmatprep.mubr.bf16.mxu0 0
      %552 = vmatmul.mubr.bf16.gmra.mrb[0].mxu0 %v404
      %v553 = vpop.f32.mrb[0].mxu0
      %v554 = vadd.f32 0.0, %v553
      %v555 = vpop.f32.mrb[0].mxu0
      %v556 = vpop.f32.mrb[0].mxu0
      %v557 = vadd.f32 0.0, %v556
      %v558 = vpop.f32.mrb[0].mxu0
      %559 = vmatprep.mubr.bf16.mxu0 0
      %560 = vmatmul.mubr.bf16.gmra.mrb[0].mxu0 %v405
      %v561 = vpop.f32.mrb[0].mxu0
      %v562 = vadd.f32 0.0, %v561
      %v563 = vpop.f32.mrb[0].mxu0
      %v564 = vpop.f32.mrb[0].mxu0
      %v565 = vadd.f32 0.0, %v564
      %v566 = vpop.f32.mrb[0].mxu0
      %567 = vmatprep.mubr.bf16.mxu0 0
      %568 = vmatmul.mubr.bf16.gmra.mrb[0].mxu0 %v406
      %v569 = vpop.f32.mrb[0].mxu0
      %v570 = vadd.f32 0.0, %v569
      %v571 = vpop.f32.mrb[0].mxu0
      %v572 = vpop.f32.mrb[0].mxu0
      %v573 = vadd.f32 0.0, %v572
      %v574 = vpop.f32.mrb[0].mxu0
      %575 = vmatprep.mubr.bf16.mxu0 0
      %576 = vmatmul.mubr.bf16.gmra.mrb[0].mxu0 %v407
      %v577 = vpop.f32.mrb[0].mxu0
      %v578 = vadd.f32 0.0, %v577
      %v579 = vpop.f32.mrb[0].mxu0
      %v580 = vpop.f32.mrb[0].mxu0
      %v581 = vadd.f32 0.0, %v580
      %v582 = vpop.f32.mrb[0].mxu0
      %583 = vmatprep.mubr.bf16.mxu0 0
      %584 = vmatmul.mubr.bf16.gmra.mrb[0].mxu0 %v408
      %v585 = vpop.f32.mrb[0].mxu0
      %v586 = vadd.f32 0.0, %v585
      %v587 = vpop.f32.mrb[0].mxu0
      %v588 = vpop.f32.mrb[0].mxu0
      %v589 = vadd.f32 0.0, %v588
      %v590 = vpop.f32.mrb[0].mxu0
      %591 = vmatprep.mubr.bf16.mxu0 0
      %592 = vmatmul.mubr.bf16.gmra.mrb[0].mxu0 %v409
      %v593 = vpop.f32.mrb[0].mxu0
      %v594 = vadd.f32 0.0, %v593
      %v595 = vpop.f32.mrb[0].mxu0
      %v596 = vpop.f32.mrb[0].mxu0
      %v597 = vadd.f32 0.0, %v596
      %v598 = vpop.f32.mrb[0].mxu0
      %599 = vmatprep.mubr.bf16.mxu0 0
      %600 = vmatmul.mubr.bf16.gmra.mrb[0].mxu0 %v410
      %v601 = vpop.f32.mrb[0].mxu0
      %v602 = vadd.f32 0.0, %v601
      %v603 = vpop.f32.mrb[0].mxu0
      %v604 = vpop.f32.mrb[0].mxu0
      %v605 = vadd.f32 0.0, %v604
      %v606 = vpop.f32.mrb[0].mxu0
      %607 = vmatprep.mubr.bf16.mxu0 0
      %608 = vmatmul.mubr.bf16.gmra.mrb[0].mxu0 %v411
      %v609 = vpop.f32.mrb[0].mxu0
      %v610 = vadd.f32 0.0, %v609
      %v611 = vpop.f32.mrb[0].mxu0
      %v612 = vpop.f32.mrb[0].mxu0
      %v613 = vadd.f32 0.0, %v612
      %v614 = vpop.f32.mrb[0].mxu0
      %615 = vmatprep.mubr.bf16.mxu0 0
      %616 = vmatmul.mubr.bf16.gmra.mrb[0].mxu0 %v412
      %v617 = vpop.f32.mrb[0].mxu0
      %v618 = vadd.f32 0.0, %v617
      %v619 = vpop.f32.mrb[0].mxu0
      %v620 = vpop.f32.mrb[0].mxu0
      %v621 = vadd.f32 0.0, %v620
      %v622 = vpop.f32.mrb[0].mxu0
      %623 = vmatprep.mubr.bf16.mxu0 0
      %624 = vmatmul.mubr.bf16.gmra.mrb[0].mxu0 %v413
      %v625 = vpop.f32.mrb[0].mxu0
      %v626 = vadd.f32 0.0, %v625
      %v627 = vpop.f32.mrb[0].mxu0
      %v628 = vpop.f32.mrb[0].mxu0
      %v629 = vadd.f32 0.0, %v628
      %v630 = vpop.f32.mrb[0].mxu0
      %631 = vmatprep.mubr.bf16.mxu0 0
      %632 = vmatmul.mubr.bf16.gmra.mrb[0].mxu0 %v414
      %v633 = vpop.f32.mrb[0].mxu0
      %v634 = vadd.f32 0.0, %v633
      %v635 = vpop.f32.mrb[0].mxu0
      %v636 = vpop.f32.mrb[0].mxu0
      %v637 = vadd.f32 0.0, %v636
      %v638 = vpop.f32.mrb[0].mxu0
      %639 = vdwg.mxu0
      %v640 = vadd.f32 %v255, %v514
      %v641 = vadd.f32 %v256, %v517
      %v642 = vadd.f32 %v257, %v522
      %v643 = vadd.f32 %v258, %v525
      %v644 = vadd.f32 %v259, %v530
      %v645 = vadd.f32 %v260, %v533
      %v646 = vadd.f32 %v261, %v538
      %v647 = vadd.f32 %v262, %v541
      %v648 = vadd.f32 %v263, %v546
      %v649 = vadd.f32 %v264, %v549
      %v650 = vadd.f32 %v265, %v554
      %v651 = vadd.f32 %v266, %v557
      %v652 = vadd.f32 %v267, %v562
      %v653 = vadd.f32 %v268, %v565
      %v654 = vadd.f32 %v269, %v570
      %v655 = vadd.f32 %v270, %v573
      %v656 = vadd.f32 %v271, %v578
      %v657 = vadd.f32 %v272, %v581
      %v658 = vadd.f32 %v273, %v586
      %v659 = vadd.f32 %v274, %v589
      %v660 = vadd.f32 %v275, %v594
      %v661 = vadd.f32 %v276, %v597
      %v662 = vadd.f32 %v277, %v602
      %v663 = vadd.f32 %v278, %v605
      %v664 = vadd.f32 %v279, %v610
      %v665 = vadd.f32 %v280, %v613
      %v666 = vadd.f32 %v281, %v618
      %v667 = vadd.f32 %v282, %v621
      %v668 = vadd.f32 %v283, %v626
      %v669 = vadd.f32 %v284, %v629
      %v670 = vadd.f32 %v285, %v634
      %v671 = vadd.f32 %v286, %v637
      %672 = vst [vmem:[#allocation2] sm:$0xff] %v640
      %673 = vst [vmem:[#allocation2 + $0x8] sm:$0xff] %v641
      %674 = vst [vmem:[#allocation2 + $0x10] sm:$0xff] %v642
      %675 = vst [vmem:[#allocation2 + $0x18] sm:$0xff] %v643
      %676 = vst [vmem:[#allocation2 + $0x20] sm:$0xff] %v644
      %677 = vst [vmem:[#allocation2 + $0x28] sm:$0xff] %v645
      %678 = vst [vmem:[#allocation2 + $0x30] sm:$0xff] %v646
      %679 = vst [vmem:[#allocation2 + $0x38] sm:$0xff] %v647
      %680 = vst [vmem:[#allocation2 + $0x40] sm:$0xff] %v648
      %681 = vst [vmem:[#allocation2 + $0x48] sm:$0xff] %v649
      %682 = vst [vmem:[#allocation2 + $0x50] sm:$0xff] %v650
      %683 = vst [vmem:[#allocation2 + $0x58] sm:$0xff] %v651
      %684 = vst [vmem:[#allocation2 + $0x60] sm:$0xff] %v652
      %685 = vst [vmem:[#allocation2 + $0x68] sm:$0xff] %v653
      %686 = vst [vmem:[#allocation2 + $0x70] sm:$0xff] %v654
      %687 = vst [vmem:[#allocation2 + $0x78] sm:$0xff] %v655
      %688 = vst [vmem:[#allocation2 + $0x80] sm:$0xff] %v656
      %689 = vst [vmem:[#allocation2 + $0x88] sm:$0xff] %v657
      %690 = vst [vmem:[#allocation2 + $0x90] sm:$0xff] %v658
      %691 = vst [vmem:[#allocation2 + $0x98] sm:$0xff] %v659
      %692 = vst [vmem:[#allocation2 + $0xa0] sm:$0xff] %v660
      %693 = vst [vmem:[#allocation2 + $0xa8] sm:$0xff] %v661
      %694 = vst [vmem:[#allocation2 + $0xb0] sm:$0xff] %v662
      %695 = vst [vmem:[#allocation2 + $0xb8] sm:$0xff] %v663
      %696 = vst [vmem:[#allocation2 + $0xc0] sm:$0xff] %v664
      %697 = vst [vmem:[#allocation2 + $0xc8] sm:$0xff] %v665
      %698 = vst [vmem:[#allocation2 + $0xd0] sm:$0xff] %v666
      %699 = vst [vmem:[#allocation2 + $0xd8] sm:$0xff] %v667
      %700 = vst [vmem:[#allocation2 + $0xe0] sm:$0xff] %v668
      %701 = vst [vmem:[#allocation2 + $0xe8] sm:$0xff] %v669
      %702 = vst [vmem:[#allocation2 + $0xf0] sm:$0xff] %v670
      %703 = vst [vmem:[#allocation2 + $0xf8] sm:$0xff] %v671
      // Predicated region
      $region33: #{_generator_forward.17} parent=27 // pred_check
        %p704 = pneg %p219
      $region34: #{_generator_forward.17} parent=27 // pred_check_branch
        %706 = sbr.rel (%p704) target = $region36
      $region35: #{_generator_forward.17} parent=27 // pred_region
        %v707 = vld [vmem:[#allocation2] sm:$0xff]
        %v708 = vld [vmem:[#allocation2 + $0x8] sm:$0xff]
        %v709 = vld [vmem:[#allocation2 + $0x10] sm:$0xff]
        %v710 = vld [vmem:[#allocation2 + $0x18] sm:$0xff]
        %v711 = vld [vmem:[#allocation2 + $0x20] sm:$0xff]
        %v712 = vld [vmem:[#allocation2 + $0x28] sm:$0xff]
        %v713 = vld [vmem:[#allocation2 + $0x30] sm:$0xff]
        %v714 = vld [vmem:[#allocation2 + $0x38] sm:$0xff]
        %v715 = vld [vmem:[#allocation2 + $0x40] sm:$0xff]
        %v716 = vld [vmem:[#allocation2 + $0x48] sm:$0xff]
        %v717 = vld [vmem:[#allocation2 + $0x50] sm:$0xff]
        %v718 = vld [vmem:[#allocation2 + $0x58] sm:$0xff]
        %v719 = vld [vmem:[#allocation2 + $0x60] sm:$0xff]
        %v720 = vld [vmem:[#allocation2 + $0x68] sm:$0xff]
        %v721 = vld [vmem:[#allocation2 + $0x70] sm:$0xff]
        %v722 = vld [vmem:[#allocation2 + $0x78] sm:$0xff]
        %v723 = vld [vmem:[#allocation2 + $0x80] sm:$0xff]
        %v724 = vld [vmem:[#allocation2 + $0x88] sm:$0xff]
        %v725 = vld [vmem:[#allocation2 + $0x90] sm:$0xff]
        %v726 = vld [vmem:[#allocation2 + $0x98] sm:$0xff]
        %v727 = vld [vmem:[#allocation2 + $0xa0] sm:$0xff]
        %v728 = vld [vmem:[#allocation2 + $0xa8] sm:$0xff]
        %v729 = vld [vmem:[#allocation2 + $0xb0] sm:$0xff]
        %v730 = vld [vmem:[#allocation2 + $0xb8] sm:$0xff]
        %v731 = vld [vmem:[#allocation2 + $0xc0] sm:$0xff]
        %v732 = vld [vmem:[#allocation2 + $0xc8] sm:$0xff]
        %v733 = vld [vmem:[#allocation2 + $0xd0] sm:$0xff]
        %v734 = vld [vmem:[#allocation2 + $0xd8] sm:$0xff]
        %v735 = vld [vmem:[#allocation2 + $0xe0] sm:$0xff]
        %v736 = vld [vmem:[#allocation2 + $0xe8] sm:$0xff]
        %v737 = vld [vmem:[#allocation2 + $0xf0] sm:$0xff]
        %v738 = vld [vmem:[#allocation2 + $0xf8] sm:$0xff]
        %v739 = vtanh.pop %v707
        %v740 = vtanh.pop %v708
        %v741 = vtanh.pop %v709
        %v742 = vtanh.pop %v710
        %v743 = vtanh.pop %v711
        %v744 = vtanh.pop %v712
        %v745 = vtanh.pop %v713
        %v746 = vtanh.pop %v714
        %v747 = vtanh.pop %v715
        %v748 = vtanh.pop %v716
        %v749 = vtanh.pop %v717
        %v750 = vtanh.pop %v718
        %v751 = vtanh.pop %v719
        %v752 = vtanh.pop %v720
        %v753 = vtanh.pop %v721
        %v754 = vtanh.pop %v722
        %v755 = vtanh.pop %v723
        %v756 = vtanh.pop %v724
        %v757 = vtanh.pop %v725
        %v758 = vtanh.pop %v726
        %v759 = vtanh.pop %v727
        %v760 = vtanh.pop %v728
        %v761 = vtanh.pop %v729
        %v762 = vtanh.pop %v730
        %v763 = vtanh.pop %v731
        %v764 = vtanh.pop %v732
        %v765 = vtanh.pop %v733
        %v766 = vtanh.pop %v734
        %v767 = vtanh.pop %v735
        %v768 = vtanh.pop %v736
        %v769 = vtanh.pop %v737
        %v770 = vtanh.pop %v738
        %771 = vst [vmem:[%s216] sm:$0xff] %v739
        %772 = vst [vmem:[%s216 + $0x8] sm:$0xff] %v740
        %773 = vst [vmem:[%s216 + $0x10] sm:$0xff] %v741
        %774 = vst [vmem:[%s216 + $0x18] sm:$0xff] %v742
        %775 = vst [vmem:[%s216 + $0x20] sm:$0xff] %v743
        %776 = vst [vmem:[%s216 + $0x28] sm:$0xff] %v744
        %777 = vst [vmem:[%s216 + $0x30] sm:$0xff] %v745
        %778 = vst [vmem:[%s216 + $0x38] sm:$0xff] %v746
        %779 = vst [vmem:[%s216 + $0x40] sm:$0xff] %v747
        %780 = vst [vmem:[%s216 + $0x48] sm:$0xff] %v748
        %781 = vst [vmem:[%s216 + $0x50] sm:$0xff] %v749
        %782 = vst [vmem:[%s216 + $0x58] sm:$0xff] %v750
        %783 = vst [vmem:[%s216 + $0x60] sm:$0xff] %v751
        %784 = vst [vmem:[%s216 + $0x68] sm:$0xff] %v752
        %785 = vst [vmem:[%s216 + $0x70] sm:$0xff] %v753
        %786 = vst [vmem:[%s216 + $0x78] sm:$0xff] %v754
        %787 = vst [vmem:[%s216 + $0x80] sm:$0xff] %v755
        %788 = vst [vmem:[%s216 + $0x88] sm:$0xff] %v756
        %789 = vst [vmem:[%s216 + $0x90] sm:$0xff] %v757
        %790 = vst [vmem:[%s216 + $0x98] sm:$0xff] %v758
        %791 = vst [vmem:[%s216 + $0xa0] sm:$0xff] %v759
        %792 = vst [vmem:[%s216 + $0xa8] sm:$0xff] %v760
        %793 = vst [vmem:[%s216 + $0xb0] sm:$0xff] %v761
        %794 = vst [vmem:[%s216 + $0xb8] sm:$0xff] %v762
        %795 = vst [vmem:[%s216 + $0xc0] sm:$0xff] %v763
        %796 = vst [vmem:[%s216 + $0xc8] sm:$0xff] %v764
        %797 = vst [vmem:[%s216 + $0xd0] sm:$0xff] %v765
        %798 = vst [vmem:[%s216 + $0xd8] sm:$0xff] %v766
        %799 = vst [vmem:[%s216 + $0xe0] sm:$0xff] %v767
        %800 = vst [vmem:[%s216 + $0xe8] sm:$0xff] %v768
        %801 = vst [vmem:[%s216 + $0xf0] sm:$0xff] %v769
        %802 = vst [vmem:[%s216 + $0xf8] sm:$0xff] %v770
      $region36: #{_generator_forward.17} parent=27 // pred_fallthru
        _
      %s803 = smul.u32 32, %s18
      %p804 = scmp.lt.s32.totalorder %s803, 255
      %s805 = scalar_select %p804, %s803, 255
      %p806 = scmp.lt.s32.totalorder %s19, 0
      %s807 = scalar_select %p806, %s19, 0
      %s808 = sadd.s32 %s807, %s805
      %s809 = smul.addr %s808, 8
      %s810 = scalar_lea.vmem %s2, %s809
      // Predicated region
      $region37: #{_generator_forward.17} parent=27 // pred_check
        %p811 = pneg %p108
      $region38: #{_generator_forward.17} parent=27 // pred_check_branch
        %813 = sbr.rel (%p811) target = $region40
      $region39: #{_generator_forward.17} parent=27 // pred_region
        %s814 = smul.u32 32, %s18
      $region40: #{_generator_forward.17} parent=27 // pred_fallthru
        _
    $region28: #{_generator_forward.17} parent=5 // pred_fallthru
      _
    %p815 = scmp.le.s32.totalorder 2, %s8
    // Predicated region
    $region41: #{_generator_forward.17} parent=5 // pred_check
      %p816 = pneg %p815
    $region42: #{_generator_forward.17} parent=5 // pred_check_branch
      %818 = sbr.rel (%p816) target = $region44
    $region43: #{_generator_forward.17} parent=5 // pred_region
      %s819 = ssub.s32 %s8, 2
      // Predicated region
      $region45: #{_generator_forward.17} parent=43 // pred_check
        %p820 = pneg %p114
      $region46: #{_generator_forward.17} parent=43 // pred_check_branch
        %822 = sbr.rel (%p820) target = $region48
      $region47: #{_generator_forward.17} parent=43 // pred_region
        %s823 = smul.u32 32, %s21
        %p824 = scmp.lt.s32.totalorder %s823, 255
        %s825 = scalar_select %p824, %s823, 255
        %p826 = scmp.lt.s32.totalorder %s22, 0
        %s827 = scalar_select %p826, %s22, 0
        %s828 = sadd.s32 %s827, %s825
        %s829 = smul.addr %s828, 8
        %s830 = scalar_lea.vmem %s2, %s829
      $region48: #{_generator_forward.17} parent=43 // pred_fallthru
        _
    $region44: #{_generator_forward.17} parent=5 // pred_fallthru
      _
  $region6: #{_generator_forward.17} parent=0 // loop_footer
    %s12 = sadd.s32 1, %s8
  $region7: #{_generator_forward.17} parent=0 // loop_footer_branch
    %7 = sbr.rel target = $region3
  $region8: #{_generator_forward.17} parent=0 // loop_exit
    _

</llo_original>
